<compile_context>
chip_gen: v6e
topology: v6e:2x2x1
jax: 0.10.0
libtpu: 0.0.40
codegen_flags: <defaults>
</compile_context>

<pallas_src>
import functools

import jax
import jax.numpy as jnp
from jax.experimental import pallas as pl
from jax.experimental.pallas import tpu as pltpu

LN_EPS = 1e-5
NEG_INF = -1e30  # same softmax result as float('-inf'), safer on TPU


def _matT(a, w):
    """a @ w.T (PyTorch Linear convention), f32 accumulation on the MXU."""
    return jax.lax.dot_general(
        a, w, (((1,), (1,)), ((), ())), preferred_element_type=jnp.float32
    )


def _layernorm(x, w, b):
    mu = jnp.mean(x, axis=-1, keepdims=True)
    xc = x - mu
    var = jnp.mean(xc * xc, axis=-1, keepdims=True)
    inv = jax.lax.rsqrt(var + LN_EPS)
    return xc * inv * w + b


def fused_made_kernel(seq_ref, emb_ref, pos_ref,
                      wqkv_ref, bqkv_ref, wo_ref, bo_ref,
                      ln1w_ref, ln1b_ref, w1_ref, b1_ref, w2_ref, b2_ref,
                      ln2w_ref, ln2b_ref, dec_w_ref, dec_b_ref,
                      o_ref, *, head_num):
    bb, L, _ = seq_ref.shape
    D = emb_ref.shape[1]
    depth = wqkv_ref.shape[0]
    N = bb * L
    hd = D // head_num
    scale = 1.0 / (hd ** 0.5)

    # ---- fused embedding: 3-token vocab lookup done arithmetically ----
    # t in {0,1,2}; Lagrange weights select the matching embedding row
    # exactly (no gather, no select-with-broadcast): w0+w1+w2 one-hot in t.
    t = seq_ref[...].astype(jnp.float32)                       # (bb, L, 1)
    emb = emb_ref[...]                                         # (3, D)
    e0 = emb[0].reshape(1, 1, D)
    e1 = emb[1].reshape(1, 1, D)
    e2 = emb[2].reshape(1, 1, D)
    w0 = 0.5 * (t - 1.0) * (t - 2.0)
    w1 = t * (2.0 - t)
    w2 = 0.5 * t * (t - 1.0)
    h3 = w0 * e0 + w1 * e1 + w2 * e2 + pos_ref[...][None]      # (bb, L, D)

    # ---- masks built ONCE (no per-layer / per-head rebuild) ----
    row = jax.lax.broadcasted_iota(jnp.int32, (L, L), 0)
    col = jax.lax.broadcasted_iota(jnp.int32, (L, L), 1)
    causal = jnp.where(col > row, jnp.float32(NEG_INF), jnp.float32(0.0))[None]  # (1,L,L)
    lane = jax.lax.broadcasted_iota(jnp.int32, (1, 1, D), 2)
    head_cols = [((lane >= h * hd) & (lane < (h + 1) * hd)).astype(jnp.float32)
                 for h in range(head_num)]

    # Flatten batch*seq onto the sublane axis for all weight matmuls.
    x = h3.reshape(N, D)                                       # (B*L, D)

    for l in range(depth):                                     # static unroll (depth tiny)
        # ---- fused QKV projection: ONE (N, D) @ (D, 3D) matmul ----
        qkv = _matT(x, wqkv_ref[l]) + bqkv_ref[l]              # (N, 3D)
        qkv3 = qkv.reshape(bb, L, 3 * D)
        v_full = qkv3[:, :, 2 * D:3 * D]                       # (bb, L, D) all heads

        # ---- multi-head self-attention, batched over the batch dim per head ----
        attn = jnp.zeros((bb, L, D), dtype=jnp.float32)
        for h in range(head_num):
            c0, c1 = h * hd, (h + 1) * hd
            q_h = qkv3[:, :, c0:c1] * scale                    # scale folded into Q
            k_h = qkv3[:, :, D + c0:D + c1]                    # (bb, L, hd)
            s = jnp.einsum('bqd,bkd->bqk', q_h, k_h,
                           preferred_element_type=jnp.float32) + causal
            m = jnp.max(s, axis=-1, keepdims=True)
            e = jnp.exp(s - m)
            p = e / jnp.sum(e, axis=-1, keepdims=True)
            # p @ (V masked to this head's channels) places (p @ v_h) into the
            # head's output columns; summed over heads this equals
            # concat(heads) — no minor-dim concatenate needed.
            attn = attn + jnp.einsum('bqk,bkd->bqd', p, v_full * head_cols[h],
                                     preferred_element_type=jnp.float32)

        # ---- single merged-heads output-projection matmul ----
        a = _matT(attn.reshape(N, D), wo_ref[l]) + bo_ref[l]   # (N, D)

        # ---- residual + LayerNorm 1 (post-norm) ----
        x = _layernorm(x + a, ln1w_ref[l], ln1b_ref[l])

        # ---- feed-forward (relu), flattened over batch*seq ----
        ff = jnp.maximum(_matT(x, w1_ref[l]) + b1_ref[l], 0.0)
        ff = _matT(ff, w2_ref[l]) + b2_ref[l]

        # ---- residual + LayerNorm 2 ----
        x = _layernorm(x + ff, ln2w_ref[l], ln2b_ref[l])

    # ---- decoder: lane-dense (padded-to-128) output store ----
    logits = _matT(x, dec_w_ref[...]) + dec_b_ref[...]         # (N, out_pad)
    o_ref[...] = logits.reshape(bb, L, -1).astype(o_ref.dtype)


def transformer_made_forward(x_tokens, params, head_num, batch_block=None):
    """x_tokens: (B, qubit_num) int32 in {0, 1} -> (B, qubit_num+1, out_dim)."""
    B, Q = x_tokens.shape
    L = Q + 1
    D = params["embedding"].shape[1]
    out_dim = params["decoder_w"].shape[0]
    out_pad = ((out_dim + 127) // 128) * 128   # lane-dense decoder output

    # Token glue only: prepend START token; embedding happens inside the kernel.
    seq_tok = jnp.concatenate(
        [jnp.full((B, 1), 2, dtype=jnp.int32), x_tokens.astype(jnp.int32)], axis=-1)
    seq3 = seq_tok[:, :, None]                 # (B, L, 1) int32 — only per-sample input

    # Zero-pad decoder weights to a full 128-lane output slab.
    dec_w = jnp.zeros((out_pad, D), jnp.float32).at[:out_dim].set(params["decoder_w"])
    dec_b = jnp.zeros((1, out_pad), jnp.float32).at[0, :out_dim].set(params["decoder_b"])

    weights = (params["embedding"].astype(jnp.float32),        # (3, D)
               params["pos_embedding"][:L].astype(jnp.float32),  # (L, D)
               params["wqkv"], params["bqkv"], params["wo"], params["bo"],
               params["ln1w"], params["ln1b"], params["w1"], params["b1"],
               params["w2"], params["b2"], params["ln2w"], params["ln2b"],
               dec_w, dec_b)

    bb = B if batch_block is None else batch_block
    assert B % bb == 0, (B, bb)
    nb = B // bb   # grid kept "parallel" so larger batches can shard across cores

    in_specs = [pl.BlockSpec((bb, L, 1), lambda i: (i, 0, 0))]
    for w in weights:
        nd = w.ndim
        in_specs.append(pl.BlockSpec(w.shape, lambda i, _nd=nd: (0,) * _nd))

    kernel = functools.partial(fused_made_kernel, head_num=head_num)
    logits_pad = pl.pallas_call(
        kernel,
        out_shape=jax.ShapeDtypeStruct((B, L, out_pad), jnp.float32),
        grid=(nb,),
        in_specs=in_specs,
        out_specs=pl.BlockSpec((bb, L, out_pad), lambda i: (i, 0, 0)),
        compiler_params=pltpu.CompilerParams(dimension_semantics=("parallel",)),
    )(seq3, *weights)
    return logits_pad[..., :out_dim]


def made_reference(x_tokens, params, head_num):
    """Pure-JAX reference (same math, standard head layout) for validation."""
    B, Q = x_tokens.shape
    L = Q + 1
    D = params["embedding"].shape[1]
    hd = D // head_num
    seq = jnp.concatenate(
        [jnp.full((B, 1), 2, dtype=jnp.int32), x_tokens.astype(jnp.int32)], axis=-1)
    x = params["embedding"][seq] + params["pos_embedding"][jnp.arange(L)][None]
    x = x.astype(jnp.float32)
    mask = jnp.where(jnp.arange(L)[None, :] > jnp.arange(L)[:, None], -jnp.inf, 0.0)

    def ln(v, w, b):
        mu = jnp.mean(v, axis=-1, keepdims=True)
        var = jnp.mean((v - mu) ** 2, axis=-1, keepdims=True)
        return (v - mu) * jax.lax.rsqrt(var + LN_EPS) * w + b

    depth = params["wqkv"].shape[0]
    for l in range(depth):
        qkv = x @ params["wqkv"][l].T + params["bqkv"][l]
        q, k, v = qkv[..., :D], qkv[..., D:2 * D], qkv[..., 2 * D:]
        qh = q.reshape(B, L, head_num, hd).transpose(0, 2, 1, 3)
        kh = k.reshape(B, L, head_num, hd).transpose(0, 2, 1, 3)
        vh = v.reshape(B, L, head_num, hd).transpose(0, 2, 1, 3)
        s = jnp.einsum('bhqd,bhkd->bhqk', qh, kh) / jnp.sqrt(1.0 * hd) + mask
        p = jax.nn.softmax(s, axis=-1)
        o = jnp.einsum('bhqk,bhkd->bhqd', p, vh).transpose(0, 2, 1, 3).reshape(B, L, D)
        a = o @ params["wo"][l].T + params["bo"][l]
        x = ln(x + a, params["ln1w"][l], params["ln1b"][l])
        ff = jax.nn.relu(x @ params["w1"][l].T + params["b1"][l])
        ff = ff @ params["w2"][l].T + params["b2"][l]
        x = ln(x + ff, params["ln2w"][l], params["ln2b"][l])
    return x @ params["decoder_w"].T + params["decoder_b"]


def init_params(key, dim, out_dim, depth, qubit_num, head_num):
    D = dim
    assert D % head_num == 0
    keys = jax.random.split(key, 4)
    params = {
        "embedding": jax.random.normal(keys[0], (3, D), jnp.float32),
        "pos_embedding": jax.random.normal(keys[1], (qubit_num + 1, D), jnp.float32),
    }
    lkeys = jax.random.split(keys[2], depth)
    wqkv, bqkv, wo, bo, w1, b1, w2, b2 = ([] for _ in range(8))
    for l in range(depth):
        lk = jax.random.split(lkeys[l], 8)
        wqkv.append(jax.random.normal(lk[0], (3 * D, D), jnp.float32) * 0.1)
        bqkv.append(jax.random.normal(lk[1], (3 * D,), jnp.float32) * 0.01)
        wo.append(jax.random.normal(lk[2], (D, D), jnp.float32) * 0.1)
        bo.append(jax.random.normal(lk[3], (D,), jnp.float32) * 0.01)
        w1.append(jax.random.normal(lk[4], (D, D), jnp.float32) * 0.1)  # dim_feedforward = dim
        b1.append(jax.random.normal(lk[5], (D,), jnp.float32) * 0.01)
        w2.append(jax.random.normal(lk[6], (D, D), jnp.float32) * 0.1)
        b2.append(jax.random.normal(lk[7], (D,), jnp.float32) * 0.01)
    params["wqkv"] = jnp.stack(wqkv)                  # (depth, 3D, D)
    params["bqkv"] = jnp.stack(bqkv)[:, None, :]      # (depth, 1, 3D)
    params["wo"] = jnp.stack(wo)                      # (depth, D, D)
    params["bo"] = jnp.stack(bo)[:, None, :]          # (depth, 1, D)
    params["w1"] = jnp.stack(w1)
    params["b1"] = jnp.stack(b1)[:, None, :]
    params["w2"] = jnp.stack(w2)
    params["b2"] = jnp.stack(b2)[:, None, :]
    params["ln1w"] = jnp.ones((depth, 1, D), jnp.float32)
    params["ln1b"] = jnp.zeros((depth, 1, D), jnp.float32)
    params["ln2w"] = jnp.ones((depth, 1, D), jnp.float32)
    params["ln2b"] = jnp.zeros((depth, 1, D), jnp.float32)
    dk = jax.random.split(keys[3], 2)
    params["decoder_w"] = jax.random.normal(dk[0], (out_dim, D), jnp.float32) * 0.1
    params["decoder_b"] = jax.random.normal(dk[1], (out_dim,), jnp.float32) * 0.01
    return params


if __name__ == "__main__":
    dim, out_dim, depth, qubit_num, head_num = 32, 4, 2, 8, 4
    B = 2
    key = jax.random.PRNGKey(0)
    kp, kx = jax.random.split(key)
    params = init_params(kp, dim, out_dim, depth, qubit_num, head_num)
    x = jax.random.randint(kx, (B, qubit_num), 0, 2, dtype=jnp.int32)

    fwd = jax.jit(lambda xt, p: transformer_made_forward(xt, p, head_num))
    out = jax.block_until_ready(fwd(x, params))

    assert out.shape == (B, qubit_num + 1, out_dim), out.shape
    assert bool(jnp.all(jnp.isfinite(out)))

    ref = made_reference(x, params, head_num)
    assert bool(jnp.allclose(out, ref, atol=2e-3, rtol=2e-3)), (
        float(jnp.max(jnp.abs(out - ref))))
    print("KERNEL_OK")
</pallas_src>

<mosaic_0001>
module attributes {stable_mosaic.version = 11 : i64} {
  func.func @fused_made_kernel(%arg0: i32, %arg1: memref<2x9x1xi32, #tpu.memory_space<vmem>>, %arg2: memref<3x32xf32, #tpu.memory_space<vmem>>, %arg3: memref<9x32xf32, #tpu.memory_space<vmem>>, %arg4: memref<2x96x32xf32, #tpu.memory_space<vmem>>, %arg5: memref<2x1x96xf32, #tpu.memory_space<vmem>>, %arg6: memref<2x32x32xf32, #tpu.memory_space<vmem>>, %arg7: memref<2x1x32xf32, #tpu.memory_space<vmem>>, %arg8: memref<2x1x32xf32, #tpu.memory_space<vmem>>, %arg9: memref<2x1x32xf32, #tpu.memory_space<vmem>>, %arg10: memref<2x32x32xf32, #tpu.memory_space<vmem>>, %arg11: memref<2x1x32xf32, #tpu.memory_space<vmem>>, %arg12: memref<2x32x32xf32, #tpu.memory_space<vmem>>, %arg13: memref<2x1x32xf32, #tpu.memory_space<vmem>>, %arg14: memref<2x1x32xf32, #tpu.memory_space<vmem>>, %arg15: memref<2x1x32xf32, #tpu.memory_space<vmem>>, %arg16: memref<128x32xf32, #tpu.memory_space<vmem>>, %arg17: memref<1x128xf32, #tpu.memory_space<vmem>>, %arg18: memref<2x9x128xf32, #tpu.memory_space<vmem>>) attributes {dimension_semantics = [#tpu.dimension_semantics<parallel>], iteration_bounds = array<i64: 1>, scalar_prefetch = 0 : i64, scratch_operands = 0 : i64, tpu.core_type = #tpu.core_type<tc>, window_params = [{transform_indices = @transform_0, window_bounds = array<i64: 2, 9, 1>}, {pipeline_mode = #tpu.pipeline_mode<synchronous>, transform_indices = @transform_1, window_bounds = array<i64: 3, 32>}, {pipeline_mode = #tpu.pipeline_mode<synchronous>, transform_indices = @transform_2, window_bounds = array<i64: 9, 32>}, {pipeline_mode = #tpu.pipeline_mode<synchronous>, transform_indices = @transform_3, window_bounds = array<i64: 2, 96, 32>}, {pipeline_mode = #tpu.pipeline_mode<synchronous>, transform_indices = @transform_4, window_bounds = array<i64: 2, 1, 96>}, {pipeline_mode = #tpu.pipeline_mode<synchronous>, transform_indices = @transform_5, window_bounds = array<i64: 2, 32, 32>}, {pipeline_mode = #tpu.pipeline_mode<synchronous>, transform_indices = @transform_6, window_bounds = array<i64: 2, 1, 32>}, {pipeline_mode = #tpu.pipeline_mode<synchronous>, transform_indices = @transform_7, window_bounds = array<i64: 2, 1, 32>}, {pipeline_mode = #tpu.pipeline_mode<synchronous>, transform_indices = @transform_8, window_bounds = array<i64: 2, 1, 32>}, {pipeline_mode = #tpu.pipeline_mode<synchronous>, transform_indices = @transform_9, window_bounds = array<i64: 2, 32, 32>}, {pipeline_mode = #tpu.pipeline_mode<synchronous>, transform_indices = @transform_10, window_bounds = array<i64: 2, 1, 32>}, {pipeline_mode = #tpu.pipeline_mode<synchronous>, transform_indices = @transform_11, window_bounds = array<i64: 2, 32, 32>}, {pipeline_mode = #tpu.pipeline_mode<synchronous>, transform_indices = @transform_12, window_bounds = array<i64: 2, 1, 32>}, {pipeline_mode = #tpu.pipeline_mode<synchronous>, transform_indices = @transform_13, window_bounds = array<i64: 2, 1, 32>}, {pipeline_mode = #tpu.pipeline_mode<synchronous>, transform_indices = @transform_14, window_bounds = array<i64: 2, 1, 32>}, {pipeline_mode = #tpu.pipeline_mode<synchronous>, transform_indices = @transform_15, window_bounds = array<i64: 128, 32>}, {pipeline_mode = #tpu.pipeline_mode<synchronous>, transform_indices = @transform_16, window_bounds = array<i64: 1, 128>}, {transform_indices = @transform_17, window_bounds = array<i64: 2, 9, 128>}]} {
    %c0 = arith.constant 0 : index
    %c0_0 = arith.constant 0 : index
    %c0_1 = arith.constant 0 : index
    %0 = vector.load %arg1[%c0, %c0_0, %c0_1] : memref<2x9x1xi32, #tpu.memory_space<vmem>>, vector<2x9x1xi32>
    %1 = arith.sitofp %0 : vector<2x9x1xi32> to vector<2x9x1xf32>
    %c0_2 = arith.constant 0 : index
    %c0_3 = arith.constant 0 : index
    %2 = vector.load %arg2[%c0_2, %c0_3] : memref<3x32xf32, #tpu.memory_space<vmem>>, vector<3x32xf32>
    %3 = vector.extract_strided_slice %2 {offsets = [0, 0], sizes = [1, 32], strides = [1, 1]} : vector<3x32xf32> to vector<1x32xf32>
    %4 = vector.shape_cast %3 : vector<1x32xf32> to vector<32xf32>
    %5 = vector.shape_cast %4 : vector<32xf32> to vector<1x1x32xf32>
    %6 = vector.extract_strided_slice %2 {offsets = [1, 0], sizes = [1, 32], strides = [1, 1]} : vector<3x32xf32> to vector<1x32xf32>
    %7 = vector.shape_cast %6 : vector<1x32xf32> to vector<32xf32>
    %8 = vector.shape_cast %7 : vector<32xf32> to vector<1x1x32xf32>
    %9 = vector.extract_strided_slice %2 {offsets = [2, 0], sizes = [1, 32], strides = [1, 1]} : vector<3x32xf32> to vector<1x32xf32>
    %10 = vector.shape_cast %9 : vector<1x32xf32> to vector<32xf32>
    %11 = vector.shape_cast %10 : vector<32xf32> to vector<1x1x32xf32>
    %cst = arith.constant 1.000000e+00 : f32
    %12 = vector.broadcast %cst : f32 to vector<2x9x1xf32>
    %13 = arith.subf %1, %12 : vector<2x9x1xf32>
    %cst_4 = arith.constant 5.000000e-01 : f32
    %14 = vector.broadcast %cst_4 : f32 to vector<2x9x1xf32>
    %15 = arith.mulf %14, %13 : vector<2x9x1xf32>
    %cst_5 = arith.constant 2.000000e+00 : f32
    %16 = vector.broadcast %cst_5 : f32 to vector<2x9x1xf32>
    %17 = arith.subf %1, %16 : vector<2x9x1xf32>
    %18 = arith.mulf %15, %17 : vector<2x9x1xf32>
    %cst_6 = arith.constant 2.000000e+00 : f32
    %19 = vector.broadcast %cst_6 : f32 to vector<2x9x1xf32>
    %20 = arith.subf %19, %1 : vector<2x9x1xf32>
    %21 = arith.mulf %1, %20 : vector<2x9x1xf32>
    %cst_7 = arith.constant 5.000000e-01 : f32
    %22 = vector.broadcast %cst_7 : f32 to vector<2x9x1xf32>
    %23 = arith.mulf %22, %1 : vector<2x9x1xf32>
    %cst_8 = arith.constant 1.000000e+00 : f32
    %24 = vector.broadcast %cst_8 : f32 to vector<2x9x1xf32>
    %25 = arith.subf %1, %24 : vector<2x9x1xf32>
    %26 = arith.mulf %23, %25 : vector<2x9x1xf32>
    %27 = vector.broadcast %18 : vector<2x9x1xf32> to vector<2x9x32xf32>
    %28 = vector.broadcast %5 : vector<1x1x32xf32> to vector<2x9x32xf32>
    %29 = arith.mulf %27, %28 : vector<2x9x32xf32>
    %30 = vector.broadcast %21 : vector<2x9x1xf32> to vector<2x9x32xf32>
    %31 = vector.broadcast %8 : vector<1x1x32xf32> to vector<2x9x32xf32>
    %32 = arith.mulf %30, %31 : vector<2x9x32xf32>
    %33 = arith.addf %29, %32 : vector<2x9x32xf32>
    %34 = vector.broadcast %26 : vector<2x9x1xf32> to vector<2x9x32xf32>
    %35 = vector.broadcast %11 : vector<1x1x32xf32> to vector<2x9x32xf32>
    %36 = arith.mulf %34, %35 : vector<2x9x32xf32>
    %37 = arith.addf %33, %36 : vector<2x9x32xf32>
    %c0_9 = arith.constant 0 : index
    %c0_10 = arith.constant 0 : index
    %38 = vector.load %arg3[%c0_9, %c0_10] : memref<9x32xf32, #tpu.memory_space<vmem>>, vector<9x32xf32>
    %39 = vector.shape_cast %38 : vector<9x32xf32> to vector<1x9x32xf32>
    %40 = vector.broadcast %39 : vector<1x9x32xf32> to vector<2x9x32xf32>
    %41 = arith.addf %37, %40 : vector<2x9x32xf32>
    %42 = tpu.iota {dimensions = array<i32: 0>} : vector<9x9xi32>
    %43 = tpu.iota {dimensions = array<i32: 1>} : vector<9x9xi32>
    %44 = arith.cmpi sgt, %43, %42 : vector<9x9xi32>
    %cst_11 = arith.constant -1.000000e+30 : f32
    %cst_12 = arith.constant 0.000000e+00 : f32
    %45 = vector.broadcast %cst_11 : f32 to vector<9x9xf32>
    %46 = vector.broadcast %cst_12 : f32 to vector<9x9xf32>
    %47 = arith.select %44, %45, %46 : vector<9x9xi1>, vector<9x9xf32>
    %48 = vector.shape_cast %47 : vector<9x9xf32> to vector<1x9x9xf32>
    %49 = tpu.iota {dimensions = array<i32: 2>} : vector<1x1x32xi32>
    %c0_i32 = arith.constant 0 : i32
    %50 = vector.broadcast %c0_i32 : i32 to vector<1x1x32xi32>
    %51 = arith.cmpi sge, %49, %50 : vector<1x1x32xi32>
    %c8_i32 = arith.constant 8 : i32
    %52 = vector.broadcast %c8_i32 : i32 to vector<1x1x32xi32>
    %53 = arith.cmpi slt, %49, %52 : vector<1x1x32xi32>
    %54 = arith.andi %51, %53 : vector<1x1x32xi1>
    %55 = arith.extui %54 : vector<1x1x32xi1> to vector<1x1x32xi32>
    %56 = arith.sitofp %55 : vector<1x1x32xi32> to vector<1x1x32xf32>
    %c8_i32_13 = arith.constant 8 : i32
    %57 = vector.broadcast %c8_i32_13 : i32 to vector<1x1x32xi32>
    %58 = arith.cmpi sge, %49, %57 : vector<1x1x32xi32>
    %c16_i32 = arith.constant 16 : i32
    %59 = vector.broadcast %c16_i32 : i32 to vector<1x1x32xi32>
    %60 = arith.cmpi slt, %49, %59 : vector<1x1x32xi32>
    %61 = arith.andi %58, %60 : vector<1x1x32xi1>
    %62 = arith.extui %61 : vector<1x1x32xi1> to vector<1x1x32xi32>
    %63 = arith.sitofp %62 : vector<1x1x32xi32> to vector<1x1x32xf32>
    %c16_i32_14 = arith.constant 16 : i32
    %64 = vector.broadcast %c16_i32_14 : i32 to vector<1x1x32xi32>
    %65 = arith.cmpi sge, %49, %64 : vector<1x1x32xi32>
    %c24_i32 = arith.constant 24 : i32
    %66 = vector.broadcast %c24_i32 : i32 to vector<1x1x32xi32>
    %67 = arith.cmpi slt, %49, %66 : vector<1x1x32xi32>
    %68 = arith.andi %65, %67 : vector<1x1x32xi1>
    %69 = arith.extui %68 : vector<1x1x32xi1> to vector<1x1x32xi32>
    %70 = arith.sitofp %69 : vector<1x1x32xi32> to vector<1x1x32xf32>
    %c24_i32_15 = arith.constant 24 : i32
    %71 = vector.broadcast %c24_i32_15 : i32 to vector<1x1x32xi32>
    %72 = arith.cmpi sge, %49, %71 : vector<1x1x32xi32>
    %c32_i32 = arith.constant 32 : i32
    %73 = vector.broadcast %c32_i32 : i32 to vector<1x1x32xi32>
    %74 = arith.cmpi slt, %49, %73 : vector<1x1x32xi32>
    %75 = arith.andi %72, %74 : vector<1x1x32xi1>
    %76 = arith.extui %75 : vector<1x1x32xi1> to vector<1x1x32xi32>
    %77 = arith.sitofp %76 : vector<1x1x32xi32> to vector<1x1x32xf32>
    %78 = vector.shape_cast %41 : vector<2x9x32xf32> to vector<18x32xf32>
    %c0_16 = arith.constant 0 : index
    %c0_17 = arith.constant 0 : index
    %c0_18 = arith.constant 0 : index
    %79 = vector.load %arg4[%c0_16, %c0_17, %c0_18] : memref<2x96x32xf32, #tpu.memory_space<vmem>>, vector<1x96x32xf32>
    %80 = vector.shape_cast %79 : vector<1x96x32xf32> to vector<96x32xf32>
    %cst_19 = arith.constant dense<0.000000e+00> : vector<18x96xf32>
    %81 = tpu.matmul %78, %80, %cst_19 {dimension_numbers = #tpu.dot_dimension_numbers<[1], [1], [0], [0], [0, 0, 1, 0], [], []>} : vector<18x32xf32>, vector<96x32xf32>, vector<18x96xf32> -> vector<18x96xf32>
    %c0_20 = arith.constant 0 : index
    %c0_21 = arith.constant 0 : index
    %c0_22 = arith.constant 0 : index
    %82 = vector.load %arg5[%c0_20, %c0_21, %c0_22] : memref<2x1x96xf32, #tpu.memory_space<vmem>>, vector<1x1x96xf32>
    %83 = vector.shape_cast %82 : vector<1x1x96xf32> to vector<1x96xf32>
    %84 = vector.broadcast %83 : vector<1x96xf32> to vector<18x96xf32>
    %85 = arith.addf %81, %84 : vector<18x96xf32>
    %86 = vector.shape_cast %85 : vector<18x96xf32> to vector<2x9x96xf32>
    %87 = vector.extract_strided_slice %86 {offsets = [0, 0, 64], sizes = [2, 9, 32], strides = [1, 1, 1]} : vector<2x9x96xf32> to vector<2x9x32xf32>
    %cst_23 = arith.constant 0.000000e+00 : f32
    %88 = vector.broadcast %cst_23 : f32 to vector<2x9x32xf32>
    %89 = vector.extract_strided_slice %86 {offsets = [0, 0, 0], sizes = [2, 9, 8], strides = [1, 1, 1]} : vector<2x9x96xf32> to vector<2x9x8xf32>
    %cst_24 = arith.constant 0.353553385 : f32
    %90 = vector.broadcast %cst_24 : f32 to vector<2x9x8xf32>
    %91 = arith.mulf %89, %90 : vector<2x9x8xf32>
    %92 = vector.extract_strided_slice %86 {offsets = [0, 0, 32], sizes = [2, 9, 8], strides = [1, 1, 1]} : vector<2x9x96xf32> to vector<2x9x8xf32>
    "tpu.trace_start"() <{level = 10 : i32, message = "bqd,bkd->bqk"}> : () -> ()
    %cst_25 = arith.constant dense<0.000000e+00> : vector<2x9x9xf32>
    %93 = tpu.matmul %91, %92, %cst_25 {dimension_numbers = #tpu.dot_dimension_numbers<[2], [2], [1], [1], [0, 0, 0, 1, 1, 1], [0], [0]>} : vector<2x9x8xf32>, vector<2x9x8xf32>, vector<2x9x9xf32> -> vector<2x9x9xf32>
    "tpu.trace_stop"() : () -> ()
    %94 = vector.broadcast %48 : vector<1x9x9xf32> to vector<2x9x9xf32>
    %95 = arith.addf %93, %94 : vector<2x9x9xf32>
    %cst_26 = arith.constant dense<0xFF800000> : vector<2x9xf32>
    %96 = vector.multi_reduction <maximumf>, %95, %cst_26 [2] : vector<2x9x9xf32> to vector<2x9xf32>
    %97 = vector.shape_cast %96 : vector<2x9xf32> to vector<2x9x1xf32>
    %98 = vector.broadcast %97 : vector<2x9x1xf32> to vector<2x9x9xf32>
    %99 = arith.subf %95, %98 : vector<2x9x9xf32>
    %100 = math.exp %99 : vector<2x9x9xf32>
    %cst_27 = arith.constant dense<0.000000e+00> : vector<2x9xf32>
    %101 = vector.multi_reduction <add>, %100, %cst_27 [2] : vector<2x9x9xf32> to vector<2x9xf32>
    %102 = vector.shape_cast %101 : vector<2x9xf32> to vector<2x9x1xf32>
    %103 = vector.broadcast %102 : vector<2x9x1xf32> to vector<2x9x9xf32>
    %104 = arith.divf %100, %103 : vector<2x9x9xf32>
    %105 = vector.broadcast %56 : vector<1x1x32xf32> to vector<2x9x32xf32>
    %106 = arith.mulf %87, %105 : vector<2x9x32xf32>
    "tpu.trace_start"() <{level = 10 : i32, message = "bqk,bkd->bqd"}> : () -> ()
    %cst_28 = arith.constant dense<0.000000e+00> : vector<2x9x32xf32>
    %107 = tpu.matmul %104, %106, %cst_28 {dimension_numbers = #tpu.dot_dimension_numbers<[2], [1], [1], [2], [0, 0, 0, 1, 1, 2], [0], [0]>} : vector<2x9x9xf32>, vector<2x9x32xf32>, vector<2x9x32xf32> -> vector<2x9x32xf32>
    "tpu.trace_stop"() : () -> ()
    %108 = arith.addf %88, %107 : vector<2x9x32xf32>
    %109 = vector.extract_strided_slice %86 {offsets = [0, 0, 8], sizes = [2, 9, 8], strides = [1, 1, 1]} : vector<2x9x96xf32> to vector<2x9x8xf32>
    %cst_29 = arith.constant 0.353553385 : f32
    %110 = vector.broadcast %cst_29 : f32 to vector<2x9x8xf32>
    %111 = arith.mulf %109, %110 : vector<2x9x8xf32>
    %112 = vector.extract_strided_slice %86 {offsets = [0, 0, 40], sizes = [2, 9, 8], strides = [1, 1, 1]} : vector<2x9x96xf32> to vector<2x9x8xf32>
    "tpu.trace_start"() <{level = 10 : i32, message = "bqd,bkd->bqk"}> : () -> ()
    %cst_30 = arith.constant dense<0.000000e+00> : vector<2x9x9xf32>
    %113 = tpu.matmul %111, %112, %cst_30 {dimension_numbers = #tpu.dot_dimension_numbers<[2], [2], [1], [1], [0, 0, 0, 1, 1, 1], [0], [0]>} : vector<2x9x8xf32>, vector<2x9x8xf32>, vector<2x9x9xf32> -> vector<2x9x9xf32>
    "tpu.trace_stop"() : () -> ()
    %114 = vector.broadcast %48 : vector<1x9x9xf32> to vector<2x9x9xf32>
    %115 = arith.addf %113, %114 : vector<2x9x9xf32>
    %cst_31 = arith.constant dense<0xFF800000> : vector<2x9xf32>
    %116 = vector.multi_reduction <maximumf>, %115, %cst_31 [2] : vector<2x9x9xf32> to vector<2x9xf32>
    %117 = vector.shape_cast %116 : vector<2x9xf32> to vector<2x9x1xf32>
    %118 = vector.broadcast %117 : vector<2x9x1xf32> to vector<2x9x9xf32>
    %119 = arith.subf %115, %118 : vector<2x9x9xf32>
    %120 = math.exp %119 : vector<2x9x9xf32>
    %cst_32 = arith.constant dense<0.000000e+00> : vector<2x9xf32>
    %121 = vector.multi_reduction <add>, %120, %cst_32 [2] : vector<2x9x9xf32> to vector<2x9xf32>
    %122 = vector.shape_cast %121 : vector<2x9xf32> to vector<2x9x1xf32>
    %123 = vector.broadcast %122 : vector<2x9x1xf32> to vector<2x9x9xf32>
    %124 = arith.divf %120, %123 : vector<2x9x9xf32>
    %125 = vector.broadcast %63 : vector<1x1x32xf32> to vector<2x9x32xf32>
    %126 = arith.mulf %87, %125 : vector<2x9x32xf32>
    "tpu.trace_start"() <{level = 10 : i32, message = "bqk,bkd->bqd"}> : () -> ()
    %cst_33 = arith.constant dense<0.000000e+00> : vector<2x9x32xf32>
    %127 = tpu.matmul %124, %126, %cst_33 {dimension_numbers = #tpu.dot_dimension_numbers<[2], [1], [1], [2], [0, 0, 0, 1, 1, 2], [0], [0]>} : vector<2x9x9xf32>, vector<2x9x32xf32>, vector<2x9x32xf32> -> vector<2x9x32xf32>
    "tpu.trace_stop"() : () -> ()
    %128 = arith.addf %108, %127 : vector<2x9x32xf32>
    %129 = vector.extract_strided_slice %86 {offsets = [0, 0, 16], sizes = [2, 9, 8], strides = [1, 1, 1]} : vector<2x9x96xf32> to vector<2x9x8xf32>
    %cst_34 = arith.constant 0.353553385 : f32
    %130 = vector.broadcast %cst_34 : f32 to vector<2x9x8xf32>
    %131 = arith.mulf %129, %130 : vector<2x9x8xf32>
    %132 = vector.extract_strided_slice %86 {offsets = [0, 0, 48], sizes = [2, 9, 8], strides = [1, 1, 1]} : vector<2x9x96xf32> to vector<2x9x8xf32>
    "tpu.trace_start"() <{level = 10 : i32, message = "bqd,bkd->bqk"}> : () -> ()
    %cst_35 = arith.constant dense<0.000000e+00> : vector<2x9x9xf32>
    %133 = tpu.matmul %131, %132, %cst_35 {dimension_numbers = #tpu.dot_dimension_numbers<[2], [2], [1], [1], [0, 0, 0, 1, 1, 1], [0], [0]>} : vector<2x9x8xf32>, vector<2x9x8xf32>, vector<2x9x9xf32> -> vector<2x9x9xf32>
    "tpu.trace_stop"() : () -> ()
    %134 = vector.broadcast %48 : vector<1x9x9xf32> to vector<2x9x9xf32>
    %135 = arith.addf %133, %134 : vector<2x9x9xf32>
    %cst_36 = arith.constant dense<0xFF800000> : vector<2x9xf32>
    %136 = vector.multi_reduction <maximumf>, %135, %cst_36 [2] : vector<2x9x9xf32> to vector<2x9xf32>
    %137 = vector.shape_cast %136 : vector<2x9xf32> to vector<2x9x1xf32>
    %138 = vector.broadcast %137 : vector<2x9x1xf32> to vector<2x9x9xf32>
    %139 = arith.subf %135, %138 : vector<2x9x9xf32>
    %140 = math.exp %139 : vector<2x9x9xf32>
    %cst_37 = arith.constant dense<0.000000e+00> : vector<2x9xf32>
    %141 = vector.multi_reduction <add>, %140, %cst_37 [2] : vector<2x9x9xf32> to vector<2x9xf32>
    %142 = vector.shape_cast %141 : vector<2x9xf32> to vector<2x9x1xf32>
    %143 = vector.broadcast %142 : vector<2x9x1xf32> to vector<2x9x9xf32>
    %144 = arith.divf %140, %143 : vector<2x9x9xf32>
    %145 = vector.broadcast %70 : vector<1x1x32xf32> to vector<2x9x32xf32>
    %146 = arith.mulf %87, %145 : vector<2x9x32xf32>
    "tpu.trace_start"() <{level = 10 : i32, message = "bqk,bkd->bqd"}> : () -> ()
    %cst_38 = arith.constant dense<0.000000e+00> : vector<2x9x32xf32>
    %147 = tpu.matmul %144, %146, %cst_38 {dimension_numbers = #tpu.dot_dimension_numbers<[2], [1], [1], [2], [0, 0, 0, 1, 1, 2], [0], [0]>} : vector<2x9x9xf32>, vector<2x9x32xf32>, vector<2x9x32xf32> -> vector<2x9x32xf32>
    "tpu.trace_stop"() : () -> ()
    %148 = arith.addf %128, %147 : vector<2x9x32xf32>
    %149 = vector.extract_strided_slice %86 {offsets = [0, 0, 24], sizes = [2, 9, 8], strides = [1, 1, 1]} : vector<2x9x96xf32> to vector<2x9x8xf32>
    %cst_39 = arith.constant 0.353553385 : f32
    %150 = vector.broadcast %cst_39 : f32 to vector<2x9x8xf32>
    %151 = arith.mulf %149, %150 : vector<2x9x8xf32>
    %152 = vector.extract_strided_slice %86 {offsets = [0, 0, 56], sizes = [2, 9, 8], strides = [1, 1, 1]} : vector<2x9x96xf32> to vector<2x9x8xf32>
    "tpu.trace_start"() <{level = 10 : i32, message = "bqd,bkd->bqk"}> : () -> ()
    %cst_40 = arith.constant dense<0.000000e+00> : vector<2x9x9xf32>
    %153 = tpu.matmul %151, %152, %cst_40 {dimension_numbers = #tpu.dot_dimension_numbers<[2], [2], [1], [1], [0, 0, 0, 1, 1, 1], [0], [0]>} : vector<2x9x8xf32>, vector<2x9x8xf32>, vector<2x9x9xf32> -> vector<2x9x9xf32>
    "tpu.trace_stop"() : () -> ()
    %154 = vector.broadcast %48 : vector<1x9x9xf32> to vector<2x9x9xf32>
    %155 = arith.addf %153, %154 : vector<2x9x9xf32>
    %cst_41 = arith.constant dense<0xFF800000> : vector<2x9xf32>
    %156 = vector.multi_reduction <maximumf>, %155, %cst_41 [2] : vector<2x9x9xf32> to vector<2x9xf32>
    %157 = vector.shape_cast %156 : vector<2x9xf32> to vector<2x9x1xf32>
    %158 = vector.broadcast %157 : vector<2x9x1xf32> to vector<2x9x9xf32>
    %159 = arith.subf %155, %158 : vector<2x9x9xf32>
    %160 = math.exp %159 : vector<2x9x9xf32>
    %cst_42 = arith.constant dense<0.000000e+00> : vector<2x9xf32>
    %161 = vector.multi_reduction <add>, %160, %cst_42 [2] : vector<2x9x9xf32> to vector<2x9xf32>
    %162 = vector.shape_cast %161 : vector<2x9xf32> to vector<2x9x1xf32>
    %163 = vector.broadcast %162 : vector<2x9x1xf32> to vector<2x9x9xf32>
    %164 = arith.divf %160, %163 : vector<2x9x9xf32>
    %165 = vector.broadcast %77 : vector<1x1x32xf32> to vector<2x9x32xf32>
    %166 = arith.mulf %87, %165 : vector<2x9x32xf32>
    "tpu.trace_start"() <{level = 10 : i32, message = "bqk,bkd->bqd"}> : () -> ()
    %cst_43 = arith.constant dense<0.000000e+00> : vector<2x9x32xf32>
    %167 = tpu.matmul %164, %166, %cst_43 {dimension_numbers = #tpu.dot_dimension_numbers<[2], [1], [1], [2], [0, 0, 0, 1, 1, 2], [0], [0]>} : vector<2x9x9xf32>, vector<2x9x32xf32>, vector<2x9x32xf32> -> vector<2x9x32xf32>
    "tpu.trace_stop"() : () -> ()
    %168 = arith.addf %148, %167 : vector<2x9x32xf32>
    %169 = vector.shape_cast %168 : vector<2x9x32xf32> to vector<18x32xf32>
    %c0_44 = arith.constant 0 : index
    %c0_45 = arith.constant 0 : index
    %c0_46 = arith.constant 0 : index
    %170 = vector.load %arg6[%c0_44, %c0_45, %c0_46] : memref<2x32x32xf32, #tpu.memory_space<vmem>>, vector<1x32x32xf32>
    %171 = vector.shape_cast %170 : vector<1x32x32xf32> to vector<32x32xf32>
    %cst_47 = arith.constant dense<0.000000e+00> : vector<18x32xf32>
    %172 = tpu.matmul %169, %171, %cst_47 {dimension_numbers = #tpu.dot_dimension_numbers<[1], [1], [0], [0], [0, 0, 1, 0], [], []>} : vector<18x32xf32>, vector<32x32xf32>, vector<18x32xf32> -> vector<18x32xf32>
    %c0_48 = arith.constant 0 : index
    %c0_49 = arith.constant 0 : index
    %c0_50 = arith.constant 0 : index
    %173 = vector.load %arg7[%c0_48, %c0_49, %c0_50] : memref<2x1x32xf32, #tpu.memory_space<vmem>>, vector<1x1x32xf32>
    %174 = vector.shape_cast %173 : vector<1x1x32xf32> to vector<1x32xf32>
    %175 = vector.broadcast %174 : vector<1x32xf32> to vector<18x32xf32>
    %176 = arith.addf %172, %175 : vector<18x32xf32>
    %177 = arith.addf %78, %176 : vector<18x32xf32>
    %c0_51 = arith.constant 0 : index
    %c0_52 = arith.constant 0 : index
    %c0_53 = arith.constant 0 : index
    %178 = vector.load %arg8[%c0_51, %c0_52, %c0_53] : memref<2x1x32xf32, #tpu.memory_space<vmem>>, vector<1x1x32xf32>
    %179 = vector.shape_cast %178 : vector<1x1x32xf32> to vector<1x32xf32>
    %c0_54 = arith.constant 0 : index
    %c0_55 = arith.constant 0 : index
    %c0_56 = arith.constant 0 : index
    %180 = vector.load %arg9[%c0_54, %c0_55, %c0_56] : memref<2x1x32xf32, #tpu.memory_space<vmem>>, vector<1x1x32xf32>
    %181 = vector.shape_cast %180 : vector<1x1x32xf32> to vector<1x32xf32>
    %cst_57 = arith.constant dense<0.000000e+00> : vector<18xf32>
    %182 = vector.multi_reduction <add>, %177, %cst_57 [1] : vector<18x32xf32> to vector<18xf32>
    %183 = vector.shape_cast %182 : vector<18xf32> to vector<18x1xf32>
    %cst_58 = arith.constant 3.200000e+01 : f32
    %184 = vector.broadcast %cst_58 : f32 to vector<18x1xf32>
    %185 = arith.divf %183, %184 : vector<18x1xf32>
    %186 = vector.broadcast %185 : vector<18x1xf32> to vector<18x32xf32>
    %187 = arith.subf %177, %186 : vector<18x32xf32>
    %188 = arith.mulf %187, %187 : vector<18x32xf32>
    %cst_59 = arith.constant dense<0.000000e+00> : vector<18xf32>
    %189 = vector.multi_reduction <add>, %188, %cst_59 [1] : vector<18x32xf32> to vector<18xf32>
    %190 = vector.shape_cast %189 : vector<18xf32> to vector<18x1xf32>
    %cst_60 = arith.constant 3.200000e+01 : f32
    %191 = vector.broadcast %cst_60 : f32 to vector<18x1xf32>
    %192 = arith.divf %190, %191 : vector<18x1xf32>
    %cst_61 = arith.constant 9.99999974E-6 : f32
    %193 = vector.broadcast %cst_61 : f32 to vector<18x1xf32>
    %194 = arith.addf %192, %193 : vector<18x1xf32>
    %195 = math.rsqrt %194 : vector<18x1xf32>
    %196 = vector.broadcast %195 : vector<18x1xf32> to vector<18x32xf32>
    %197 = arith.mulf %187, %196 : vector<18x32xf32>
    %198 = vector.broadcast %179 : vector<1x32xf32> to vector<18x32xf32>
    %199 = arith.mulf %197, %198 : vector<18x32xf32>
    %200 = vector.broadcast %181 : vector<1x32xf32> to vector<18x32xf32>
    %201 = arith.addf %199, %200 : vector<18x32xf32>
    %c0_62 = arith.constant 0 : index
    %c0_63 = arith.constant 0 : index
    %c0_64 = arith.constant 0 : index
    %202 = vector.load %arg10[%c0_62, %c0_63, %c0_64] : memref<2x32x32xf32, #tpu.memory_space<vmem>>, vector<1x32x32xf32>
    %203 = vector.shape_cast %202 : vector<1x32x32xf32> to vector<32x32xf32>
    %cst_65 = arith.constant dense<0.000000e+00> : vector<18x32xf32>
    %204 = tpu.matmul %201, %203, %cst_65 {dimension_numbers = #tpu.dot_dimension_numbers<[1], [1], [0], [0], [0, 0, 1, 0], [], []>} : vector<18x32xf32>, vector<32x32xf32>, vector<18x32xf32> -> vector<18x32xf32>
    %c0_66 = arith.constant 0 : index
    %c0_67 = arith.constant 0 : index
    %c0_68 = arith.constant 0 : index
    %205 = vector.load %arg11[%c0_66, %c0_67, %c0_68] : memref<2x1x32xf32, #tpu.memory_space<vmem>>, vector<1x1x32xf32>
    %206 = vector.shape_cast %205 : vector<1x1x32xf32> to vector<1x32xf32>
    %207 = vector.broadcast %206 : vector<1x32xf32> to vector<18x32xf32>
    %208 = arith.addf %204, %207 : vector<18x32xf32>
    %cst_69 = arith.constant 0.000000e+00 : f32
    %209 = vector.broadcast %cst_69 : f32 to vector<18x32xf32>
    %210 = arith.maximumf %208, %209 : vector<18x32xf32>
    %c0_70 = arith.constant 0 : index
    %c0_71 = arith.constant 0 : index
    %c0_72 = arith.constant 0 : index
    %211 = vector.load %arg12[%c0_70, %c0_71, %c0_72] : memref<2x32x32xf32, #tpu.memory_space<vmem>>, vector<1x32x32xf32>
    %212 = vector.shape_cast %211 : vector<1x32x32xf32> to vector<32x32xf32>
    %cst_73 = arith.constant dense<0.000000e+00> : vector<18x32xf32>
    %213 = tpu.matmul %210, %212, %cst_73 {dimension_numbers = #tpu.dot_dimension_numbers<[1], [1], [0], [0], [0, 0, 1, 0], [], []>} : vector<18x32xf32>, vector<32x32xf32>, vector<18x32xf32> -> vector<18x32xf32>
    %c0_74 = arith.constant 0 : index
    %c0_75 = arith.constant 0 : index
    %c0_76 = arith.constant 0 : index
    %214 = vector.load %arg13[%c0_74, %c0_75, %c0_76] : memref<2x1x32xf32, #tpu.memory_space<vmem>>, vector<1x1x32xf32>
    %215 = vector.shape_cast %214 : vector<1x1x32xf32> to vector<1x32xf32>
    %216 = vector.broadcast %215 : vector<1x32xf32> to vector<18x32xf32>
    %217 = arith.addf %213, %216 : vector<18x32xf32>
    %218 = arith.addf %201, %217 : vector<18x32xf32>
    %c0_77 = arith.constant 0 : index
    %c0_78 = arith.constant 0 : index
    %c0_79 = arith.constant 0 : index
    %219 = vector.load %arg14[%c0_77, %c0_78, %c0_79] : memref<2x1x32xf32, #tpu.memory_space<vmem>>, vector<1x1x32xf32>
    %220 = vector.shape_cast %219 : vector<1x1x32xf32> to vector<1x32xf32>
    %c0_80 = arith.constant 0 : index
    %c0_81 = arith.constant 0 : index
    %c0_82 = arith.constant 0 : index
    %221 = vector.load %arg15[%c0_80, %c0_81, %c0_82] : memref<2x1x32xf32, #tpu.memory_space<vmem>>, vector<1x1x32xf32>
    %222 = vector.shape_cast %221 : vector<1x1x32xf32> to vector<1x32xf32>
    %cst_83 = arith.constant dense<0.000000e+00> : vector<18xf32>
    %223 = vector.multi_reduction <add>, %218, %cst_83 [1] : vector<18x32xf32> to vector<18xf32>
    %224 = vector.shape_cast %223 : vector<18xf32> to vector<18x1xf32>
    %cst_84 = arith.constant 3.200000e+01 : f32
    %225 = vector.broadcast %cst_84 : f32 to vector<18x1xf32>
    %226 = arith.divf %224, %225 : vector<18x1xf32>
    %227 = vector.broadcast %226 : vector<18x1xf32> to vector<18x32xf32>
    %228 = arith.subf %218, %227 : vector<18x32xf32>
    %229 = arith.mulf %228, %228 : vector<18x32xf32>
    %cst_85 = arith.constant dense<0.000000e+00> : vector<18xf32>
    %230 = vector.multi_reduction <add>, %229, %cst_85 [1] : vector<18x32xf32> to vector<18xf32>
    %231 = vector.shape_cast %230 : vector<18xf32> to vector<18x1xf32>
    %cst_86 = arith.constant 3.200000e+01 : f32
    %232 = vector.broadcast %cst_86 : f32 to vector<18x1xf32>
    %233 = arith.divf %231, %232 : vector<18x1xf32>
    %cst_87 = arith.constant 9.99999974E-6 : f32
    %234 = vector.broadcast %cst_87 : f32 to vector<18x1xf32>
    %235 = arith.addf %233, %234 : vector<18x1xf32>
    %236 = math.rsqrt %235 : vector<18x1xf32>
    %237 = vector.broadcast %236 : vector<18x1xf32> to vector<18x32xf32>
    %238 = arith.mulf %228, %237 : vector<18x32xf32>
    %239 = vector.broadcast %220 : vector<1x32xf32> to vector<18x32xf32>
    %240 = arith.mulf %238, %239 : vector<18x32xf32>
    %241 = vector.broadcast %222 : vector<1x32xf32> to vector<18x32xf32>
    %242 = arith.addf %240, %241 : vector<18x32xf32>
    %c1 = arith.constant 1 : index
    %c0_88 = arith.constant 0 : index
    %c0_89 = arith.constant 0 : index
    %243 = vector.load %arg4[%c1, %c0_88, %c0_89] : memref<2x96x32xf32, #tpu.memory_space<vmem>>, vector<1x96x32xf32>
    %244 = vector.shape_cast %243 : vector<1x96x32xf32> to vector<96x32xf32>
    %cst_90 = arith.constant dense<0.000000e+00> : vector<18x96xf32>
    %245 = tpu.matmul %242, %244, %cst_90 {dimension_numbers = #tpu.dot_dimension_numbers<[1], [1], [0], [0], [0, 0, 1, 0], [], []>} : vector<18x32xf32>, vector<96x32xf32>, vector<18x96xf32> -> vector<18x96xf32>
    %c1_91 = arith.constant 1 : index
    %c0_92 = arith.constant 0 : index
    %c0_93 = arith.constant 0 : index
    %246 = vector.load %arg5[%c1_91, %c0_92, %c0_93] : memref<2x1x96xf32, #tpu.memory_space<vmem>>, vector<1x1x96xf32>
    %247 = vector.shape_cast %246 : vector<1x1x96xf32> to vector<1x96xf32>
    %248 = vector.broadcast %247 : vector<1x96xf32> to vector<18x96xf32>
    %249 = arith.addf %245, %248 : vector<18x96xf32>
    %250 = vector.shape_cast %249 : vector<18x96xf32> to vector<2x9x96xf32>
    %251 = vector.extract_strided_slice %250 {offsets = [0, 0, 64], sizes = [2, 9, 32], strides = [1, 1, 1]} : vector<2x9x96xf32> to vector<2x9x32xf32>
    %cst_94 = arith.constant 0.000000e+00 : f32
    %252 = vector.broadcast %cst_94 : f32 to vector<2x9x32xf32>
    %253 = vector.extract_strided_slice %250 {offsets = [0, 0, 0], sizes = [2, 9, 8], strides = [1, 1, 1]} : vector<2x9x96xf32> to vector<2x9x8xf32>
    %cst_95 = arith.constant 0.353553385 : f32
    %254 = vector.broadcast %cst_95 : f32 to vector<2x9x8xf32>
    %255 = arith.mulf %253, %254 : vector<2x9x8xf32>
    %256 = vector.extract_strided_slice %250 {offsets = [0, 0, 32], sizes = [2, 9, 8], strides = [1, 1, 1]} : vector<2x9x96xf32> to vector<2x9x8xf32>
    "tpu.trace_start"() <{level = 10 : i32, message = "bqd,bkd->bqk"}> : () -> ()
    %cst_96 = arith.constant dense<0.000000e+00> : vector<2x9x9xf32>
    %257 = tpu.matmul %255, %256, %cst_96 {dimension_numbers = #tpu.dot_dimension_numbers<[2], [2], [1], [1], [0, 0, 0, 1, 1, 1], [0], [0]>} : vector<2x9x8xf32>, vector<2x9x8xf32>, vector<2x9x9xf32> -> vector<2x9x9xf32>
    "tpu.trace_stop"() : () -> ()
    %258 = vector.broadcast %48 : vector<1x9x9xf32> to vector<2x9x9xf32>
    %259 = arith.addf %257, %258 : vector<2x9x9xf32>
    %cst_97 = arith.constant dense<0xFF800000> : vector<2x9xf32>
    %260 = vector.multi_reduction <maximumf>, %259, %cst_97 [2] : vector<2x9x9xf32> to vector<2x9xf32>
    %261 = vector.shape_cast %260 : vector<2x9xf32> to vector<2x9x1xf32>
    %262 = vector.broadcast %261 : vector<2x9x1xf32> to vector<2x9x9xf32>
    %263 = arith.subf %259, %262 : vector<2x9x9xf32>
    %264 = math.exp %263 : vector<2x9x9xf32>
    %cst_98 = arith.constant dense<0.000000e+00> : vector<2x9xf32>
    %265 = vector.multi_reduction <add>, %264, %cst_98 [2] : vector<2x9x9xf32> to vector<2x9xf32>
    %266 = vector.shape_cast %265 : vector<2x9xf32> to vector<2x9x1xf32>
    %267 = vector.broadcast %266 : vector<2x9x1xf32> to vector<2x9x9xf32>
    %268 = arith.divf %264, %267 : vector<2x9x9xf32>
    %269 = vector.broadcast %56 : vector<1x1x32xf32> to vector<2x9x32xf32>
    %270 = arith.mulf %251, %269 : vector<2x9x32xf32>
    "tpu.trace_start"() <{level = 10 : i32, message = "bqk,bkd->bqd"}> : () -> ()
    %cst_99 = arith.constant dense<0.000000e+00> : vector<2x9x32xf32>
    %271 = tpu.matmul %268, %270, %cst_99 {dimension_numbers = #tpu.dot_dimension_numbers<[2], [1], [1], [2], [0, 0, 0, 1, 1, 2], [0], [0]>} : vector<2x9x9xf32>, vector<2x9x32xf32>, vector<2x9x32xf32> -> vector<2x9x32xf32>
    "tpu.trace_stop"() : () -> ()
    %272 = arith.addf %252, %271 : vector<2x9x32xf32>
    %273 = vector.extract_strided_slice %250 {offsets = [0, 0, 8], sizes = [2, 9, 8], strides = [1, 1, 1]} : vector<2x9x96xf32> to vector<2x9x8xf32>
    %cst_100 = arith.constant 0.353553385 : f32
    %274 = vector.broadcast %cst_100 : f32 to vector<2x9x8xf32>
    %275 = arith.mulf %273, %274 : vector<2x9x8xf32>
    %276 = vector.extract_strided_slice %250 {offsets = [0, 0, 40], sizes = [2, 9, 8], strides = [1, 1, 1]} : vector<2x9x96xf32> to vector<2x9x8xf32>
    "tpu.trace_start"() <{level = 10 : i32, message = "bqd,bkd->bqk"}> : () -> ()
    %cst_101 = arith.constant dense<0.000000e+00> : vector<2x9x9xf32>
    %277 = tpu.matmul %275, %276, %cst_101 {dimension_numbers = #tpu.dot_dimension_numbers<[2], [2], [1], [1], [0, 0, 0, 1, 1, 1], [0], [0]>} : vector<2x9x8xf32>, vector<2x9x8xf32>, vector<2x9x9xf32> -> vector<2x9x9xf32>
    "tpu.trace_stop"() : () -> ()
    %278 = vector.broadcast %48 : vector<1x9x9xf32> to vector<2x9x9xf32>
    %279 = arith.addf %277, %278 : vector<2x9x9xf32>
    %cst_102 = arith.constant dense<0xFF800000> : vector<2x9xf32>
    %280 = vector.multi_reduction <maximumf>, %279, %cst_102 [2] : vector<2x9x9xf32> to vector<2x9xf32>
    %281 = vector.shape_cast %280 : vector<2x9xf32> to vector<2x9x1xf32>
    %282 = vector.broadcast %281 : vector<2x9x1xf32> to vector<2x9x9xf32>
    %283 = arith.subf %279, %282 : vector<2x9x9xf32>
    %284 = math.exp %283 : vector<2x9x9xf32>
    %cst_103 = arith.constant dense<0.000000e+00> : vector<2x9xf32>
    %285 = vector.multi_reduction <add>, %284, %cst_103 [2] : vector<2x9x9xf32> to vector<2x9xf32>
    %286 = vector.shape_cast %285 : vector<2x9xf32> to vector<2x9x1xf32>
    %287 = vector.broadcast %286 : vector<2x9x1xf32> to vector<2x9x9xf32>
    %288 = arith.divf %284, %287 : vector<2x9x9xf32>
    %289 = vector.broadcast %63 : vector<1x1x32xf32> to vector<2x9x32xf32>
    %290 = arith.mulf %251, %289 : vector<2x9x32xf32>
    "tpu.trace_start"() <{level = 10 : i32, message = "bqk,bkd->bqd"}> : () -> ()
    %cst_104 = arith.constant dense<0.000000e+00> : vector<2x9x32xf32>
    %291 = tpu.matmul %288, %290, %cst_104 {dimension_numbers = #tpu.dot_dimension_numbers<[2], [1], [1], [2], [0, 0, 0, 1, 1, 2], [0], [0]>} : vector<2x9x9xf32>, vector<2x9x32xf32>, vector<2x9x32xf32> -> vector<2x9x32xf32>
    "tpu.trace_stop"() : () -> ()
    %292 = arith.addf %272, %291 : vector<2x9x32xf32>
    %293 = vector.extract_strided_slice %250 {offsets = [0, 0, 16], sizes = [2, 9, 8], strides = [1, 1, 1]} : vector<2x9x96xf32> to vector<2x9x8xf32>
    %cst_105 = arith.constant 0.353553385 : f32
    %294 = vector.broadcast %cst_105 : f32 to vector<2x9x8xf32>
    %295 = arith.mulf %293, %294 : vector<2x9x8xf32>
    %296 = vector.extract_strided_slice %250 {offsets = [0, 0, 48], sizes = [2, 9, 8], strides = [1, 1, 1]} : vector<2x9x96xf32> to vector<2x9x8xf32>
    "tpu.trace_start"() <{level = 10 : i32, message = "bqd,bkd->bqk"}> : () -> ()
    %cst_106 = arith.constant dense<0.000000e+00> : vector<2x9x9xf32>
    %297 = tpu.matmul %295, %296, %cst_106 {dimension_numbers = #tpu.dot_dimension_numbers<[2], [2], [1], [1], [0, 0, 0, 1, 1, 1], [0], [0]>} : vector<2x9x8xf32>, vector<2x9x8xf32>, vector<2x9x9xf32> -> vector<2x9x9xf32>
    "tpu.trace_stop"() : () -> ()
    %298 = vector.broadcast %48 : vector<1x9x9xf32> to vector<2x9x9xf32>
    %299 = arith.addf %297, %298 : vector<2x9x9xf32>
    %cst_107 = arith.constant dense<0xFF800000> : vector<2x9xf32>
    %300 = vector.multi_reduction <maximumf>, %299, %cst_107 [2] : vector<2x9x9xf32> to vector<2x9xf32>
    %301 = vector.shape_cast %300 : vector<2x9xf32> to vector<2x9x1xf32>
    %302 = vector.broadcast %301 : vector<2x9x1xf32> to vector<2x9x9xf32>
    %303 = arith.subf %299, %302 : vector<2x9x9xf32>
    %304 = math.exp %303 : vector<2x9x9xf32>
    %cst_108 = arith.constant dense<0.000000e+00> : vector<2x9xf32>
    %305 = vector.multi_reduction <add>, %304, %cst_108 [2] : vector<2x9x9xf32> to vector<2x9xf32>
    %306 = vector.shape_cast %305 : vector<2x9xf32> to vector<2x9x1xf32>
    %307 = vector.broadcast %306 : vector<2x9x1xf32> to vector<2x9x9xf32>
    %308 = arith.divf %304, %307 : vector<2x9x9xf32>
    %309 = vector.broadcast %70 : vector<1x1x32xf32> to vector<2x9x32xf32>
    %310 = arith.mulf %251, %309 : vector<2x9x32xf32>
    "tpu.trace_start"() <{level = 10 : i32, message = "bqk,bkd->bqd"}> : () -> ()
    %cst_109 = arith.constant dense<0.000000e+00> : vector<2x9x32xf32>
    %311 = tpu.matmul %308, %310, %cst_109 {dimension_numbers = #tpu.dot_dimension_numbers<[2], [1], [1], [2], [0, 0, 0, 1, 1, 2], [0], [0]>} : vector<2x9x9xf32>, vector<2x9x32xf32>, vector<2x9x32xf32> -> vector<2x9x32xf32>
    "tpu.trace_stop"() : () -> ()
    %312 = arith.addf %292, %311 : vector<2x9x32xf32>
    %313 = vector.extract_strided_slice %250 {offsets = [0, 0, 24], sizes = [2, 9, 8], strides = [1, 1, 1]} : vector<2x9x96xf32> to vector<2x9x8xf32>
    %cst_110 = arith.constant 0.353553385 : f32
    %314 = vector.broadcast %cst_110 : f32 to vector<2x9x8xf32>
    %315 = arith.mulf %313, %314 : vector<2x9x8xf32>
    %316 = vector.extract_strided_slice %250 {offsets = [0, 0, 56], sizes = [2, 9, 8], strides = [1, 1, 1]} : vector<2x9x96xf32> to vector<2x9x8xf32>
    "tpu.trace_start"() <{level = 10 : i32, message = "bqd,bkd->bqk"}> : () -> ()
    %cst_111 = arith.constant dense<0.000000e+00> : vector<2x9x9xf32>
    %317 = tpu.matmul %315, %316, %cst_111 {dimension_numbers = #tpu.dot_dimension_numbers<[2], [2], [1], [1], [0, 0, 0, 1, 1, 1], [0], [0]>} : vector<2x9x8xf32>, vector<2x9x8xf32>, vector<2x9x9xf32> -> vector<2x9x9xf32>
    "tpu.trace_stop"() : () -> ()
    %318 = vector.broadcast %48 : vector<1x9x9xf32> to vector<2x9x9xf32>
    %319 = arith.addf %317, %318 : vector<2x9x9xf32>
    %cst_112 = arith.constant dense<0xFF800000> : vector<2x9xf32>
    %320 = vector.multi_reduction <maximumf>, %319, %cst_112 [2] : vector<2x9x9xf32> to vector<2x9xf32>
    %321 = vector.shape_cast %320 : vector<2x9xf32> to vector<2x9x1xf32>
    %322 = vector.broadcast %321 : vector<2x9x1xf32> to vector<2x9x9xf32>
    %323 = arith.subf %319, %322 : vector<2x9x9xf32>
    %324 = math.exp %323 : vector<2x9x9xf32>
    %cst_113 = arith.constant dense<0.000000e+00> : vector<2x9xf32>
    %325 = vector.multi_reduction <add>, %324, %cst_113 [2] : vector<2x9x9xf32> to vector<2x9xf32>
    %326 = vector.shape_cast %325 : vector<2x9xf32> to vector<2x9x1xf32>
    %327 = vector.broadcast %326 : vector<2x9x1xf32> to vector<2x9x9xf32>
    %328 = arith.divf %324, %327 : vector<2x9x9xf32>
    %329 = vector.broadcast %77 : vector<1x1x32xf32> to vector<2x9x32xf32>
    %330 = arith.mulf %251, %329 : vector<2x9x32xf32>
    "tpu.trace_start"() <{level = 10 : i32, message = "bqk,bkd->bqd"}> : () -> ()
    %cst_114 = arith.constant dense<0.000000e+00> : vector<2x9x32xf32>
    %331 = tpu.matmul %328, %330, %cst_114 {dimension_numbers = #tpu.dot_dimension_numbers<[2], [1], [1], [2], [0, 0, 0, 1, 1, 2], [0], [0]>} : vector<2x9x9xf32>, vector<2x9x32xf32>, vector<2x9x32xf32> -> vector<2x9x32xf32>
    "tpu.trace_stop"() : () -> ()
    %332 = arith.addf %312, %331 : vector<2x9x32xf32>
    %333 = vector.shape_cast %332 : vector<2x9x32xf32> to vector<18x32xf32>
    %c1_115 = arith.constant 1 : index
    %c0_116 = arith.constant 0 : index
    %c0_117 = arith.constant 0 : index
    %334 = vector.load %arg6[%c1_115, %c0_116, %c0_117] : memref<2x32x32xf32, #tpu.memory_space<vmem>>, vector<1x32x32xf32>
    %335 = vector.shape_cast %334 : vector<1x32x32xf32> to vector<32x32xf32>
    %cst_118 = arith.constant dense<0.000000e+00> : vector<18x32xf32>
    %336 = tpu.matmul %333, %335, %cst_118 {dimension_numbers = #tpu.dot_dimension_numbers<[1], [1], [0], [0], [0, 0, 1, 0], [], []>} : vector<18x32xf32>, vector<32x32xf32>, vector<18x32xf32> -> vector<18x32xf32>
    %c1_119 = arith.constant 1 : index
    %c0_120 = arith.constant 0 : index
    %c0_121 = arith.constant 0 : index
    %337 = vector.load %arg7[%c1_119, %c0_120, %c0_121] : memref<2x1x32xf32, #tpu.memory_space<vmem>>, vector<1x1x32xf32>
    %338 = vector.shape_cast %337 : vector<1x1x32xf32> to vector<1x32xf32>
    %339 = vector.broadcast %338 : vector<1x32xf32> to vector<18x32xf32>
    %340 = arith.addf %336, %339 : vector<18x32xf32>
    %341 = arith.addf %242, %340 : vector<18x32xf32>
    %c1_122 = arith.constant 1 : index
    %c0_123 = arith.constant 0 : index
    %c0_124 = arith.constant 0 : index
    %342 = vector.load %arg8[%c1_122, %c0_123, %c0_124] : memref<2x1x32xf32, #tpu.memory_space<vmem>>, vector<1x1x32xf32>
    %343 = vector.shape_cast %342 : vector<1x1x32xf32> to vector<1x32xf32>
    %c1_125 = arith.constant 1 : index
    %c0_126 = arith.constant 0 : index
    %c0_127 = arith.constant 0 : index
    %344 = vector.load %arg9[%c1_125, %c0_126, %c0_127] : memref<2x1x32xf32, #tpu.memory_space<vmem>>, vector<1x1x32xf32>
    %345 = vector.shape_cast %344 : vector<1x1x32xf32> to vector<1x32xf32>
    %cst_128 = arith.constant dense<0.000000e+00> : vector<18xf32>
    %346 = vector.multi_reduction <add>, %341, %cst_128 [1] : vector<18x32xf32> to vector<18xf32>
    %347 = vector.shape_cast %346 : vector<18xf32> to vector<18x1xf32>
    %cst_129 = arith.constant 3.200000e+01 : f32
    %348 = vector.broadcast %cst_129 : f32 to vector<18x1xf32>
    %349 = arith.divf %347, %348 : vector<18x1xf32>
    %350 = vector.broadcast %349 : vector<18x1xf32> to vector<18x32xf32>
    %351 = arith.subf %341, %350 : vector<18x32xf32>
    %352 = arith.mulf %351, %351 : vector<18x32xf32>
    %cst_130 = arith.constant dense<0.000000e+00> : vector<18xf32>
    %353 = vector.multi_reduction <add>, %352, %cst_130 [1] : vector<18x32xf32> to vector<18xf32>
    %354 = vector.shape_cast %353 : vector<18xf32> to vector<18x1xf32>
    %cst_131 = arith.constant 3.200000e+01 : f32
    %355 = vector.broadcast %cst_131 : f32 to vector<18x1xf32>
    %356 = arith.divf %354, %355 : vector<18x1xf32>
    %cst_132 = arith.constant 9.99999974E-6 : f32
    %357 = vector.broadcast %cst_132 : f32 to vector<18x1xf32>
    %358 = arith.addf %356, %357 : vector<18x1xf32>
    %359 = math.rsqrt %358 : vector<18x1xf32>
    %360 = vector.broadcast %359 : vector<18x1xf32> to vector<18x32xf32>
    %361 = arith.mulf %351, %360 : vector<18x32xf32>
    %362 = vector.broadcast %343 : vector<1x32xf32> to vector<18x32xf32>
    %363 = arith.mulf %361, %362 : vector<18x32xf32>
    %364 = vector.broadcast %345 : vector<1x32xf32> to vector<18x32xf32>
    %365 = arith.addf %363, %364 : vector<18x32xf32>
    %c1_133 = arith.constant 1 : index
    %c0_134 = arith.constant 0 : index
    %c0_135 = arith.constant 0 : index
    %366 = vector.load %arg10[%c1_133, %c0_134, %c0_135] : memref<2x32x32xf32, #tpu.memory_space<vmem>>, vector<1x32x32xf32>
    %367 = vector.shape_cast %366 : vector<1x32x32xf32> to vector<32x32xf32>
    %cst_136 = arith.constant dense<0.000000e+00> : vector<18x32xf32>
    %368 = tpu.matmul %365, %367, %cst_136 {dimension_numbers = #tpu.dot_dimension_numbers<[1], [1], [0], [0], [0, 0, 1, 0], [], []>} : vector<18x32xf32>, vector<32x32xf32>, vector<18x32xf32> -> vector<18x32xf32>
    %c1_137 = arith.constant 1 : index
    %c0_138 = arith.constant 0 : index
    %c0_139 = arith.constant 0 : index
    %369 = vector.load %arg11[%c1_137, %c0_138, %c0_139] : memref<2x1x32xf32, #tpu.memory_space<vmem>>, vector<1x1x32xf32>
    %370 = vector.shape_cast %369 : vector<1x1x32xf32> to vector<1x32xf32>
    %371 = vector.broadcast %370 : vector<1x32xf32> to vector<18x32xf32>
    %372 = arith.addf %368, %371 : vector<18x32xf32>
    %cst_140 = arith.constant 0.000000e+00 : f32
    %373 = vector.broadcast %cst_140 : f32 to vector<18x32xf32>
    %374 = arith.maximumf %372, %373 : vector<18x32xf32>
    %c1_141 = arith.constant 1 : index
    %c0_142 = arith.constant 0 : index
    %c0_143 = arith.constant 0 : index
    %375 = vector.load %arg12[%c1_141, %c0_142, %c0_143] : memref<2x32x32xf32, #tpu.memory_space<vmem>>, vector<1x32x32xf32>
    %376 = vector.shape_cast %375 : vector<1x32x32xf32> to vector<32x32xf32>
    %cst_144 = arith.constant dense<0.000000e+00> : vector<18x32xf32>
    %377 = tpu.matmul %374, %376, %cst_144 {dimension_numbers = #tpu.dot_dimension_numbers<[1], [1], [0], [0], [0, 0, 1, 0], [], []>} : vector<18x32xf32>, vector<32x32xf32>, vector<18x32xf32> -> vector<18x32xf32>
    %c1_145 = arith.constant 1 : index
    %c0_146 = arith.constant 0 : index
    %c0_147 = arith.constant 0 : index
    %378 = vector.load %arg13[%c1_145, %c0_146, %c0_147] : memref<2x1x32xf32, #tpu.memory_space<vmem>>, vector<1x1x32xf32>
    %379 = vector.shape_cast %378 : vector<1x1x32xf32> to vector<1x32xf32>
    %380 = vector.broadcast %379 : vector<1x32xf32> to vector<18x32xf32>
    %381 = arith.addf %377, %380 : vector<18x32xf32>
    %382 = arith.addf %365, %381 : vector<18x32xf32>
    %c1_148 = arith.constant 1 : index
    %c0_149 = arith.constant 0 : index
    %c0_150 = arith.constant 0 : index
    %383 = vector.load %arg14[%c1_148, %c0_149, %c0_150] : memref<2x1x32xf32, #tpu.memory_space<vmem>>, vector<1x1x32xf32>
    %384 = vector.shape_cast %383 : vector<1x1x32xf32> to vector<1x32xf32>
    %c1_151 = arith.constant 1 : index
    %c0_152 = arith.constant 0 : index
    %c0_153 = arith.constant 0 : index
    %385 = vector.load %arg15[%c1_151, %c0_152, %c0_153] : memref<2x1x32xf32, #tpu.memory_space<vmem>>, vector<1x1x32xf32>
    %386 = vector.shape_cast %385 : vector<1x1x32xf32> to vector<1x32xf32>
    %cst_154 = arith.constant dense<0.000000e+00> : vector<18xf32>
    %387 = vector.multi_reduction <add>, %382, %cst_154 [1] : vector<18x32xf32> to vector<18xf32>
    %388 = vector.shape_cast %387 : vector<18xf32> to vector<18x1xf32>
    %cst_155 = arith.constant 3.200000e+01 : f32
    %389 = vector.broadcast %cst_155 : f32 to vector<18x1xf32>
    %390 = arith.divf %388, %389 : vector<18x1xf32>
    %391 = vector.broadcast %390 : vector<18x1xf32> to vector<18x32xf32>
    %392 = arith.subf %382, %391 : vector<18x32xf32>
    %393 = arith.mulf %392, %392 : vector<18x32xf32>
    %cst_156 = arith.constant dense<0.000000e+00> : vector<18xf32>
    %394 = vector.multi_reduction <add>, %393, %cst_156 [1] : vector<18x32xf32> to vector<18xf32>
    %395 = vector.shape_cast %394 : vector<18xf32> to vector<18x1xf32>
    %cst_157 = arith.constant 3.200000e+01 : f32
    %396 = vector.broadcast %cst_157 : f32 to vector<18x1xf32>
    %397 = arith.divf %395, %396 : vector<18x1xf32>
    %cst_158 = arith.constant 9.99999974E-6 : f32
    %398 = vector.broadcast %cst_158 : f32 to vector<18x1xf32>
    %399 = arith.addf %397, %398 : vector<18x1xf32>
    %400 = math.rsqrt %399 : vector<18x1xf32>
    %401 = vector.broadcast %400 : vector<18x1xf32> to vector<18x32xf32>
    %402 = arith.mulf %392, %401 : vector<18x32xf32>
    %403 = vector.broadcast %384 : vector<1x32xf32> to vector<18x32xf32>
    %404 = arith.mulf %402, %403 : vector<18x32xf32>
    %405 = vector.broadcast %386 : vector<1x32xf32> to vector<18x32xf32>
    %406 = arith.addf %404, %405 : vector<18x32xf32>
    %c0_159 = arith.constant 0 : index
    %c0_160 = arith.constant 0 : index
    %407 = vector.load %arg16[%c0_159, %c0_160] : memref<128x32xf32, #tpu.memory_space<vmem>>, vector<128x32xf32>
    %cst_161 = arith.constant dense<0.000000e+00> : vector<18x128xf32>
    %408 = tpu.matmul %406, %407, %cst_161 {dimension_numbers = #tpu.dot_dimension_numbers<[1], [1], [0], [0], [0, 0, 1, 0], [], []>} : vector<18x32xf32>, vector<128x32xf32>, vector<18x128xf32> -> vector<18x128xf32>
    %c0_162 = arith.constant 0 : index
    %c0_163 = arith.constant 0 : index
    %409 = vector.load %arg17[%c0_162, %c0_163] : memref<1x128xf32, #tpu.memory_space<vmem>>, vector<1x128xf32>
    %410 = vector.broadcast %409 : vector<1x128xf32> to vector<18x128xf32>
    %411 = arith.addf %408, %410 : vector<18x128xf32>
    %412 = vector.shape_cast %411 : vector<18x128xf32> to vector<2x9x128xf32>
    %c0_164 = arith.constant 0 : index
    %c0_165 = arith.constant 0 : index
    %c0_166 = arith.constant 0 : index
    %413 = vector.load %arg18[%c0_164, %c0_165, %c0_166] : memref<2x9x128xf32, #tpu.memory_space<vmem>>, vector<2x9x128xf32>
    tpu.vector_store %arg18[%c0_164, %c0_165, %c0_166], %412 {strides = array<i32>} : memref<2x9x128xf32, #tpu.memory_space<vmem>>, vector<2x9x128xf32>,
    return
  }
  func.func @transform_0(%arg0: i32) -> (i32, i32, i32) {
    %c0_i32 = arith.constant 0 : i32
    %c0_i32_0 = arith.constant 0 : i32
    %c0_i32_1 = arith.constant 0 : i32
    return %arg0, %c0_i32, %c0_i32_0 : i32, i32, i32
  }
  func.func @transform_1(%arg0: i32) -> (i32, i32) {
    %c0_i32 = arith.constant 0 : i32
    %c0_i32_0 = arith.constant 0 : i32
    %c0_i32_1 = arith.constant 0 : i32
    return %c0_i32, %c0_i32_0 : i32, i32
  }
  func.func @transform_2(%arg0: i32) -> (i32, i32) {
    %c0_i32 = arith.constant 0 : i32
    %c0_i32_0 = arith.constant 0 : i32
    %c0_i32_1 = arith.constant 0 : i32
    return %c0_i32, %c0_i32_0 : i32, i32
  }
  func.func @transform_3(%arg0: i32) -> (i32, i32, i32) {
    %c0_i32 = arith.constant 0 : i32
    %c0_i32_0 = arith.constant 0 : i32
    %c0_i32_1 = arith.constant 0 : i32
    %c0_i32_2 = arith.constant 0 : i32
    return %c0_i32, %c0_i32_0, %c0_i32_1 : i32, i32, i32
  }
  func.func @transform_4(%arg0: i32) -> (i32, i32, i32) {
    %c0_i32 = arith.constant 0 : i32
    %c0_i32_0 = arith.constant 0 : i32
    %c0_i32_1 = arith.constant 0 : i32
    %c0_i32_2 = arith.constant 0 : i32
    return %c0_i32, %c0_i32_0, %c0_i32_1 : i32, i32, i32
  }
  func.func @transform_5(%arg0: i32) -> (i32, i32, i32) {
    %c0_i32 = arith.constant 0 : i32
    %c0_i32_0 = arith.constant 0 : i32
    %c0_i32_1 = arith.constant 0 : i32
    %c0_i32_2 = arith.constant 0 : i32
    return %c0_i32, %c0_i32_0, %c0_i32_1 : i32, i32, i32
  }
  func.func @transform_6(%arg0: i32) -> (i32, i32, i32) {
    %c0_i32 = arith.constant 0 : i32
    %c0_i32_0 = arith.constant 0 : i32
    %c0_i32_1 = arith.constant 0 : i32
    %c0_i32_2 = arith.constant 0 : i32
    return %c0_i32, %c0_i32_0, %c0_i32_1 : i32, i32, i32
  }
  func.func @transform_7(%arg0: i32) -> (i32, i32, i32) {
    %c0_i32 = arith.constant 0 : i32
    %c0_i32_0 = arith.constant 0 : i32
    %c0_i32_1 = arith.constant 0 : i32
    %c0_i32_2 = arith.constant 0 : i32
    return %c0_i32, %c0_i32_0, %c0_i32_1 : i32, i32, i32
  }
  func.func @transform_8(%arg0: i32) -> (i32, i32, i32) {
    %c0_i32 = arith.constant 0 : i32
    %c0_i32_0 = arith.constant 0 : i32
    %c0_i32_1 = arith.constant 0 : i32
    %c0_i32_2 = arith.constant 0 : i32
    return %c0_i32, %c0_i32_0, %c0_i32_1 : i32, i32, i32
  }
  func.func @transform_9(%arg0: i32) -> (i32, i32, i32) {
    %c0_i32 = arith.constant 0 : i32
    %c0_i32_0 = arith.constant 0 : i32
    %c0_i32_1 = arith.constant 0 : i32
    %c0_i32_2 = arith.constant 0 : i32
    return %c0_i32, %c0_i32_0, %c0_i32_1 : i32, i32, i32
  }
  func.func @transform_10(%arg0: i32) -> (i32, i32, i32) {
    %c0_i32 = arith.constant 0 : i32
    %c0_i32_0 = arith.constant 0 : i32
    %c0_i32_1 = arith.constant 0 : i32
    %c0_i32_2 = arith.constant 0 : i32
    return %c0_i32, %c0_i32_0, %c0_i32_1 : i32, i32, i32
  }
  func.func @transform_11(%arg0: i32) -> (i32, i32, i32) {
    %c0_i32 = arith.constant 0 : i32
    %c0_i32_0 = arith.constant 0 : i32
    %c0_i32_1 = arith.constant 0 : i32
    %c0_i32_2 = arith.constant 0 : i32
    return %c0_i32, %c0_i32_0, %c0_i32_1 : i32, i32, i32
  }
  func.func @transform_12(%arg0: i32) -> (i32, i32, i32) {
    %c0_i32 = arith.constant 0 : i32
    %c0_i32_0 = arith.constant 0 : i32
    %c0_i32_1 = arith.constant 0 : i32
    %c0_i32_2 = arith.constant 0 : i32
    return %c0_i32, %c0_i32_0, %c0_i32_1 : i32, i32, i32
  }
  func.func @transform_13(%arg0: i32) -> (i32, i32, i32) {
    %c0_i32 = arith.constant 0 : i32
    %c0_i32_0 = arith.constant 0 : i32
    %c0_i32_1 = arith.constant 0 : i32
    %c0_i32_2 = arith.constant 0 : i32
    return %c0_i32, %c0_i32_0, %c0_i32_1 : i32, i32, i32
  }
  func.func @transform_14(%arg0: i32) -> (i32, i32, i32) {
    %c0_i32 = arith.constant 0 : i32
    %c0_i32_0 = arith.constant 0 : i32
    %c0_i32_1 = arith.constant 0 : i32
    %c0_i32_2 = arith.constant 0 : i32
    return %c0_i32, %c0_i32_0, %c0_i32_1 : i32, i32, i32
  }
  func.func @transform_15(%arg0: i32) -> (i32, i32) {
    %c0_i32 = arith.constant 0 : i32
    %c0_i32_0 = arith.constant 0 : i32
    %c0_i32_1 = arith.constant 0 : i32
    return %c0_i32, %c0_i32_0 : i32, i32
  }
  func.func @transform_16(%arg0: i32) -> (i32, i32) {
    %c0_i32 = arith.constant 0 : i32
    %c0_i32_0 = arith.constant 0 : i32
    %c0_i32_1 = arith.constant 0 : i32
    return %c0_i32, %c0_i32_0 : i32, i32
  }
  func.func @transform_17(%arg0: i32) -> (i32, i32, i32) {
    %c0_i32 = arith.constant 0 : i32
    %c0_i32_0 = arith.constant 0 : i32
    %c0_i32_1 = arith.constant 0 : i32
    return %arg0, %c0_i32, %c0_i32_0 : i32, i32, i32
  }
}

</mosaic_0001>

<llo_original>
// kernel: _lambda_.1
$region0: #{_lambda_.1}
  #allocation0 [shape = 'u32[]', space=smem, size = 0x4, offset = 0x4, fixed_abs, tag = 'smem constant byte address 0x4 - core index']
  #allocation1 [shape = 'u32[144,128]{1,0:T(1,128)}', space=vmem, size = 0x12000, scoped, tag = 'internal scratch']
  %s0 = inlined_call_operand.vmem [shape: s32[2,9,1], index: 0, kind: input, shape index: {}]
  %s1 = inlined_call_operand.vmem [shape: f32[3,32], index: 1, kind: input, shape index: {}]
  %s2 = inlined_call_operand.vmem [shape: f32[9,32], index: 2, kind: input, shape index: {}]
  %s3 = inlined_call_operand.vmem [shape: f32[2,96,32], index: 3, kind: input, shape index: {}]
  %s4 = inlined_call_operand.vmem [shape: f32[2,1,96], index: 4, kind: input, shape index: {}]
  %s5 = inlined_call_operand.vmem [shape: f32[2,32,32], index: 5, kind: input, shape index: {}]
  %s6 = inlined_call_operand.vmem [shape: f32[2,1,32], index: 6, kind: input, shape index: {}]
  %s7 = inlined_call_operand.vmem [shape: f32[2,1,32], index: 7, kind: input, shape index: {}]
  %s8 = inlined_call_operand.vmem [shape: f32[2,1,32], index: 8, kind: input, shape index: {}]
  %s9 = inlined_call_operand.vmem [shape: f32[2,32,32], index: 9, kind: input, shape index: {}]
  %s10 = inlined_call_operand.vmem [shape: f32[2,1,32], index: 10, kind: input, shape index: {}]
  %s11 = inlined_call_operand.vmem [shape: f32[2,32,32], index: 11, kind: input, shape index: {}]
  %s12 = inlined_call_operand.vmem [shape: f32[2,1,32], index: 12, kind: input, shape index: {}]
  %s13 = inlined_call_operand.vmem [shape: f32[2,1,32], index: 13, kind: input, shape index: {}]
  %s14 = inlined_call_operand.vmem [shape: f32[2,1,32], index: 14, kind: input, shape index: {}]
  %s15 = inlined_call_operand.vmem [shape: f32[128,32], index: 15, kind: input, shape index: {}]
  %s16 = inlined_call_operand.vmem [shape: f32[1,128], index: 16, kind: input, shape index: {}]
  %s17 = inlined_call_operand.vmem [shape: f32[2,9,128], index: 17, kind: output, shape index: {}]
  %s18 = sld [smem:[#allocation0]]
  $region78: #{_lambda_.1} parent=0
    _
  %s20 = ssub.s32 1, %s18
  %s21 = scalar_select 0, %s20, %s18
  // Predicated region
  $region2: #{_lambda_.1} parent=0 // pred_check
    _
  $region3: #{_lambda_.1} parent=0 // pred_check_branch
    %23 = sbr.rel (0) target = $region5
  $region4: #{_lambda_.1} parent=0 // pred_region
    _
  $region5: #{_lambda_.1} parent=0 // pred_fallthru
    _
  // Predicated region
  $region6: #{_lambda_.1} parent=0 // pred_check
    _
  $region7: #{_lambda_.1} parent=0 // pred_check_branch
    %25 = sbr.rel (0) target = $region9
  $region8: #{_lambda_.1} parent=0 // pred_region
    _
  $region9: #{_lambda_.1} parent=0 // pred_fallthru
    _
  // Predicated region
  $region10: #{_lambda_.1} parent=0 // pred_check
    _
  $region11: #{_lambda_.1} parent=0 // pred_check_branch
    %27 = sbr.rel (0) target = $region13
  $region12: #{_lambda_.1} parent=0 // pred_region
    _
  $region13: #{_lambda_.1} parent=0 // pred_fallthru
    _
  // Predicated region
  $region14: #{_lambda_.1} parent=0 // pred_check
    _
  $region15: #{_lambda_.1} parent=0 // pred_check_branch
    %29 = sbr.rel (0) target = $region17
  $region16: #{_lambda_.1} parent=0 // pred_region
    _
  $region17: #{_lambda_.1} parent=0 // pred_fallthru
    _
  // Predicated region
  $region18: #{_lambda_.1} parent=0 // pred_check
    _
  $region19: #{_lambda_.1} parent=0 // pred_check_branch
    %31 = sbr.rel (0) target = $region21
  $region20: #{_lambda_.1} parent=0 // pred_region
    _
  $region21: #{_lambda_.1} parent=0 // pred_fallthru
    _
  // Predicated region
  $region22: #{_lambda_.1} parent=0 // pred_check
    _
  $region23: #{_lambda_.1} parent=0 // pred_check_branch
    %33 = sbr.rel (0) target = $region25
  $region24: #{_lambda_.1} parent=0 // pred_region
    _
  $region25: #{_lambda_.1} parent=0 // pred_fallthru
    _
  // Predicated region
  $region26: #{_lambda_.1} parent=0 // pred_check
    _
  $region27: #{_lambda_.1} parent=0 // pred_check_branch
    %35 = sbr.rel (0) target = $region29
  $region28: #{_lambda_.1} parent=0 // pred_region
    _
  $region29: #{_lambda_.1} parent=0 // pred_fallthru
    _
  // Predicated region
  $region30: #{_lambda_.1} parent=0 // pred_check
    _
  $region31: #{_lambda_.1} parent=0 // pred_check_branch
    %37 = sbr.rel (0) target = $region33
  $region32: #{_lambda_.1} parent=0 // pred_region
    _
  $region33: #{_lambda_.1} parent=0 // pred_fallthru
    _
  // Predicated region
  $region34: #{_lambda_.1} parent=0 // pred_check
    _
  $region35: #{_lambda_.1} parent=0 // pred_check_branch
    %39 = sbr.rel (0) target = $region37
  $region36: #{_lambda_.1} parent=0 // pred_region
    _
  $region37: #{_lambda_.1} parent=0 // pred_fallthru
    _
  // Predicated region
  $region38: #{_lambda_.1} parent=0 // pred_check
    _
  $region39: #{_lambda_.1} parent=0 // pred_check_branch
    %41 = sbr.rel (0) target = $region41
  $region40: #{_lambda_.1} parent=0 // pred_region
    _
  $region41: #{_lambda_.1} parent=0 // pred_fallthru
    _
  // Predicated region
  $region42: #{_lambda_.1} parent=0 // pred_check
    _
  $region43: #{_lambda_.1} parent=0 // pred_check_branch
    %43 = sbr.rel (0) target = $region45
  $region44: #{_lambda_.1} parent=0 // pred_region
    _
  $region45: #{_lambda_.1} parent=0 // pred_fallthru
    _
  // Predicated region
  $region46: #{_lambda_.1} parent=0 // pred_check
    _
  $region47: #{_lambda_.1} parent=0 // pred_check_branch
    %45 = sbr.rel (0) target = $region49
  $region48: #{_lambda_.1} parent=0 // pred_region
    _
  $region49: #{_lambda_.1} parent=0 // pred_fallthru
    _
  // Predicated region
  $region50: #{_lambda_.1} parent=0 // pred_check
    _
  $region51: #{_lambda_.1} parent=0 // pred_check_branch
    %47 = sbr.rel (0) target = $region53
  $region52: #{_lambda_.1} parent=0 // pred_region
    _
  $region53: #{_lambda_.1} parent=0 // pred_fallthru
    _
  // Predicated region
  $region54: #{_lambda_.1} parent=0 // pred_check
    _
  $region55: #{_lambda_.1} parent=0 // pred_check_branch
    %49 = sbr.rel (0) target = $region57
  $region56: #{_lambda_.1} parent=0 // pred_region
    _
  $region57: #{_lambda_.1} parent=0 // pred_fallthru
    _
  // Predicated region
  $region58: #{_lambda_.1} parent=0 // pred_check
    _
  $region59: #{_lambda_.1} parent=0 // pred_check_branch
    %51 = sbr.rel (0) target = $region61
  $region60: #{_lambda_.1} parent=0 // pred_region
    _
  $region61: #{_lambda_.1} parent=0 // pred_fallthru
    _
  // Predicated region
  $region62: #{_lambda_.1} parent=0 // pred_check
    _
  $region63: #{_lambda_.1} parent=0 // pred_check_branch
    %53 = sbr.rel (0) target = $region65
  $region64: #{_lambda_.1} parent=0 // pred_region
    _
  $region65: #{_lambda_.1} parent=0 // pred_fallthru
    _
  // Predicated region
  $region66: #{_lambda_.1} parent=0 // pred_check
    _
  $region67: #{_lambda_.1} parent=0 // pred_check_branch
    %55 = sbr.rel (0) target = $region69
  $region68: #{_lambda_.1} parent=0 // pred_region
    _
  $region69: #{_lambda_.1} parent=0 // pred_fallthru
    _
  %v56 = vld [vmem:[%s0] sm:$0xff]
  %v57 = vld [vmem:[%s0 + $0x8] sm:$0x1]
  %v58 = vld [vmem:[%s0 + $0x10] sm:$0xff]
  %v59 = vld [vmem:[%s0 + $0x18] sm:$0x1]
  %v60 = vcvt.s32.f32 %v56
  %v61 = vcvt.s32.f32 %v57
  %v62 = vcvt.s32.f32 %v58
  %v63 = vcvt.s32.f32 %v59
  %v64 = vld [vmem:[%s1] sm:$0x7]
  %v65 = vsub.f32 %v60, 1.0
  %v66 = vsub.f32 %v61, 1.0
  %v67 = vsub.f32 %v62, 1.0
  %v68 = vsub.f32 %v63, 1.0
  %v69 = vmul.f32 %v65, 0.5
  %v70 = vmul.f32 %v66, 0.5
  %v71 = vmul.f32 %v67, 0.5
  %v72 = vmul.f32 %v68, 0.5
  %v73 = vsub.f32 %v60, 2.0
  %v74 = vsub.f32 %v61, 2.0
  %v75 = vsub.f32 %v62, 2.0
  %v76 = vsub.f32 %v63, 2.0
  %v77 = vmul.f32 %v69, %v73
  %v78 = vmul.f32 %v70, %v74
  %v79 = vmul.f32 %v71, %v75
  %v80 = vmul.f32 %v72, %v76
  %v81 = vsub.f32 2.0, %v60
  %v82 = vsub.f32 2.0, %v61
  %v83 = vsub.f32 2.0, %v62
  %v84 = vsub.f32 2.0, %v63
  %v85 = vmul.f32 %v60, %v81
  %v86 = vmul.f32 %v61, %v82
  %v87 = vmul.f32 %v62, %v83
  %v88 = vmul.f32 %v63, %v84
  %v89 = vmul.f32 %v60, 0.5
  %v90 = vmul.f32 %v61, 0.5
  %v91 = vmul.f32 %v62, 0.5
  %v92 = vmul.f32 %v63, 0.5
  %v93 = vmul.f32 %v89, %v65
  %v94 = vmul.f32 %v90, %v66
  %v95 = vmul.f32 %v91, %v67
  %v96 = vmul.f32 %v92, %v68
  %98 = vset.pattern.permute.xlu0 0
  %99 = vperm.xlu0 %98, %v77
  %v100 = vpop.permute.xlu0 %99
  %103 = vset.pattern.permute.xlu0 0
  %104 = vperm.xlu0 %103, %v78
  %v105 = vpop.permute.xlu0 %104
  %108 = vset.pattern.permute.xlu0 0
  %109 = vperm.xlu0 %108, %v79
  %v110 = vpop.permute.xlu0 %109
  %113 = vset.pattern.permute.xlu0 0
  %114 = vperm.xlu0 %113, %v80
  %v115 = vpop.permute.xlu0 %114
  %v117 = vlaneseq
  %v118 = vshrl.u32 %v117, 7
  %v119 = vsub.s32 0, %v118
  %v120 = vrot.slane %v64, %v119
  %v121 = vmul.f32 %v100, %v120
  %v122 = vmul.f32 %v105, %v120
  %v123 = vmul.f32 %v110, %v120
  %v124 = vmul.f32 %v115, %v120
  %126 = vset.pattern.permute.xlu0 0
  %127 = vperm.xlu0 %126, %v85
  %v128 = vpop.permute.xlu0 %127
  %131 = vset.pattern.permute.xlu0 0
  %132 = vperm.xlu0 %131, %v86
  %v133 = vpop.permute.xlu0 %132
  %136 = vset.pattern.permute.xlu0 0
  %137 = vperm.xlu0 %136, %v87
  %v138 = vpop.permute.xlu0 %137
  %141 = vset.pattern.permute.xlu0 0
  %142 = vperm.xlu0 %141, %v88
  %v143 = vpop.permute.xlu0 %142
  %v145 = vlaneseq
  %v146 = vshrl.u32 %v145, 7
  %v147 = vsub.s32 1, %v146
  %v148 = vrot.slane %v64, %v147
  %v149 = vmul.f32 %v128, %v148
  %v150 = vmul.f32 %v133, %v148
  %v151 = vmul.f32 %v138, %v148
  %v152 = vmul.f32 %v143, %v148
  %v153 = vadd.f32 %v121, %v149
  %v154 = vadd.f32 %v122, %v150
  %v155 = vadd.f32 %v123, %v151
  %v156 = vadd.f32 %v124, %v152
  %158 = vset.pattern.permute.xlu0 0
  %159 = vperm.xlu0 %158, %v93
  %v160 = vpop.permute.xlu0 %159
  %163 = vset.pattern.permute.xlu0 0
  %164 = vperm.xlu0 %163, %v94
  %v165 = vpop.permute.xlu0 %164
  %168 = vset.pattern.permute.xlu0 0
  %169 = vperm.xlu0 %168, %v95
  %v170 = vpop.permute.xlu0 %169
  %173 = vset.pattern.permute.xlu0 0
  %174 = vperm.xlu0 %173, %v96
  %v175 = vpop.permute.xlu0 %174
  %v177 = vlaneseq
  %v178 = vshrl.u32 %v177, 7
  %v179 = vsub.s32 2, %v178
  %v180 = vrot.slane %v64, %v179
  %v181 = vmul.f32 %v160, %v180
  %v182 = vmul.f32 %v165, %v180
  %v183 = vmul.f32 %v170, %v180
  %v184 = vmul.f32 %v175, %v180
  %v185 = vadd.f32 %v153, %v181
  %v186 = vadd.f32 %v154, %v182
  %v187 = vadd.f32 %v155, %v183
  %v188 = vadd.f32 %v156, %v184
  %v189 = vld [vmem:[%s2] sm:$0xff]
  %v190 = vld [vmem:[%s2 + $0x8] sm:$0x1]
  %v191 = vadd.f32 %v185, %v189
  %v192 = vadd.f32 %v186, %v190
  %v193 = vadd.f32 %v187, %v189
  %v194 = vadd.f32 %v188, %v190
  %v195 = vlaneseq
  %v196 = vshrl.u32 %v195, 7
  %v197 = vadd.s32 %v196, 8
  %v198 = vlaneseq
  %v199 = vand.u32 %v198, 127
  %vm200 = vcmp.gt.s32.totalorder %v199, %v196
  %vm201 = vcmp.gt.s32.totalorder %v199, %v197
  %v202 = vsel %vm200, -1e+30, 0.0
  %v203 = vsel %vm201, -1e+30, 0.0
  %vm204 = vcmp.ge.s32.totalorder %v199, 0
  %vm205 = vcmp.lt.s32.totalorder %v199, 8
  %vm206 = vmand %vm204, %vm205
  %v207 = vsel %vm206, 1, 0
  %v208 = vcvt.s32.f32 %v207
  %vm209 = vcmp.ge.s32.totalorder %v199, 8
  %vm210 = vcmp.lt.s32.totalorder %v199, 16
  %vm211 = vmand %vm209, %vm210
  %v212 = vsel %vm211, 1, 0
  %v213 = vcvt.s32.f32 %v212
  %vm214 = vcmp.ge.s32.totalorder %v199, 16
  %vm215 = vcmp.lt.s32.totalorder %v199, 24
  %vm216 = vmand %vm214, %vm215
  %v217 = vsel %vm216, 1, 0
  %v218 = vcvt.s32.f32 %v217
  %vm219 = vcmp.ge.s32.totalorder %v199, 24
  %vm220 = vcmp.lt.s32.totalorder %v199, 32
  %vm221 = vmand %vm219, %vm220
  %v222 = vsel %vm221, 1, 0
  %v223 = vcvt.s32.f32 %v222
  %v228 = vcombine.high %v191, %v191
  %v230 = vunpack.c.l.s4 1966171168
  %v231 = vunpack.c.0.s8 %v230
  %v232 = vlaneseq
  %v233 = vshrl.u32 %v232, 7
  %v234 = vsub.s32 %v231, %v233
  %v235 = vrot.slane %v191, %v234
  %v237 = vunpack.c.l.s4 1966171168
  %v238 = vunpack.c.0.s8 %v237
  %v239 = vlaneseq
  %v240 = vshrl.u32 %v239, 7
  %v241 = vsub.s32 %v238, %v240
  %v242 = vrot.slane %v228, %v241
  %v243 = vcombine.high %v235, %v235
  %v244 = vcombine.high %v242, %v242
  %v246 = vunpack.c.l.s4 1966171168
  %v247 = vunpack.c.0.s8 %v246
  %v248 = vlaneseq
  %v249 = vshrl.u32 %v248, 7
  %v250 = vsub.s32 %v247, %v249
  %v251 = vrot.slane %v235, %v250
  %v253 = vunpack.c.l.s4 1966171168
  %v254 = vunpack.c.0.s8 %v253
  %v255 = vlaneseq
  %v256 = vshrl.u32 %v255, 7
  %v257 = vsub.s32 %v254, %v256
  %v258 = vrot.slane %v242, %v257
  %v260 = vunpack.c.l.s4 1966171168
  %v261 = vunpack.c.0.s8 %v260
  %v262 = vlaneseq
  %v263 = vshrl.u32 %v262, 7
  %v264 = vsub.s32 %v261, %v263
  %v265 = vrot.slane %v243, %v264
  %v267 = vunpack.c.l.s4 1966171168
  %v268 = vunpack.c.0.s8 %v267
  %v269 = vlaneseq
  %v270 = vshrl.u32 %v269, 7
  %v271 = vsub.s32 %v268, %v270
  %v272 = vrot.slane %v244, %v271
  %v273 = vcombine.high %v251, %v251
  %v274 = vcombine.high %v258, %v258
  %v275 = vcombine.high %v265, %v265
  %v276 = vcombine.high %v272, %v272
  %v278 = vunpack.c.l.s4 1966171168
  %v279 = vunpack.c.0.s8 %v278
  %v280 = vlaneseq
  %v281 = vshrl.u32 %v280, 7
  %v282 = vsub.s32 %v279, %v281
  %v283 = vrot.slane %v192, %v282
  %v285 = vunpack.c.l.s4 1966171168
  %v286 = vunpack.c.0.s8 %v285
  %v287 = vlaneseq
  %v288 = vshrl.u32 %v287, 7
  %v289 = vsub.s32 %v286, %v288
  %v290 = vrot.slane %v283, %v289
  %v291 = vcombine.high %v193, %v193
  %v293 = vunpack.c.l.s4 1966171168
  %v294 = vunpack.c.0.s8 %v293
  %v295 = vlaneseq
  %v296 = vshrl.u32 %v295, 7
  %v297 = vsub.s32 %v294, %v296
  %v298 = vrot.slane %v193, %v297
  %v300 = vunpack.c.l.s4 1966171168
  %v301 = vunpack.c.0.s8 %v300
  %v302 = vlaneseq
  %v303 = vshrl.u32 %v302, 7
  %v304 = vsub.s32 %v301, %v303
  %v305 = vrot.slane %v291, %v304
  %v306 = vcombine.high %v298, %v298
  %v307 = vcombine.high %v305, %v305
  %v309 = vunpack.c.l.s4 1966171168
  %v310 = vunpack.c.0.s8 %v309
  %v311 = vlaneseq
  %v312 = vshrl.u32 %v311, 7
  %v313 = vsub.s32 %v310, %v312
  %v314 = vrot.slane %v298, %v313
  %v316 = vunpack.c.l.s4 1966171168
  %v317 = vunpack.c.0.s8 %v316
  %v318 = vlaneseq
  %v319 = vshrl.u32 %v318, 7
  %v320 = vsub.s32 %v317, %v319
  %v321 = vrot.slane %v305, %v320
  %v323 = vunpack.c.l.s4 1966171168
  %v324 = vunpack.c.0.s8 %v323
  %v325 = vlaneseq
  %v326 = vshrl.u32 %v325, 7
  %v327 = vsub.s32 %v324, %v326
  %v328 = vrot.slane %v306, %v327
  %v330 = vunpack.c.l.s4 1966171168
  %v331 = vunpack.c.0.s8 %v330
  %v332 = vlaneseq
  %v333 = vshrl.u32 %v332, 7
  %v334 = vsub.s32 %v331, %v333
  %v335 = vrot.slane %v307, %v334
  %v336 = vcombine.high %v314, %v314
  %v337 = vcombine.high %v321, %v321
  %v338 = vcombine.high %v328, %v328
  %v339 = vcombine.high %v335, %v335
  %v341 = vunpack.c.l.s4 1966171168
  %v342 = vunpack.c.0.s8 %v341
  %v343 = vlaneseq
  %v344 = vshrl.u32 %v343, 7
  %v345 = vsub.s32 %v342, %v344
  %v346 = vrot.slane %v194, %v345
  %v348 = vunpack.c.l.s4 1966171168
  %v349 = vunpack.c.0.s8 %v348
  %v350 = vlaneseq
  %v351 = vshrl.u32 %v350, 7
  %v352 = vsub.s32 %v349, %v351
  %v353 = vrot.slane %v346, %v352
  %v372 = vld [vmem:[%s3] sm:$0xff]
  %v373 = vld [vmem:[%s3 + $0x8] sm:$0xff]
  %v374 = vld [vmem:[%s3 + $0x10] sm:$0xff]
  %v375 = vld [vmem:[%s3 + $0x18] sm:$0xff]
  %v376 = vld [vmem:[%s3 + $0x20] sm:$0xff]
  %v377 = vld [vmem:[%s3 + $0x28] sm:$0xff]
  %v378 = vld [vmem:[%s3 + $0x30] sm:$0xff]
  %v379 = vld [vmem:[%s3 + $0x38] sm:$0xff]
  %v380 = vld [vmem:[%s3 + $0x40] sm:$0xff]
  %v381 = vld [vmem:[%s3 + $0x48] sm:$0xff]
  %v382 = vld [vmem:[%s3 + $0x50] sm:$0xff]
  %v383 = vld [vmem:[%s3 + $0x58] sm:$0xff]
  %v384 = vld [vmem:[%s4] sm:$0x1]
  %v386 = vlaneseq
  %v387 = vshrl.u32 %v386, 7
  %v388 = vsub.s32 0, %v387
  %v389 = vrot.slane %v384, %v388
  %v391 = vcombine.low %v251, %v265
  %v392 = vcombine.low %v273, %v275
  %v393 = vcombine.low %v258, %v272
  %v394 = vcombine.low %v274, %v276
  %v396 = vunpack.c.l.s4 1966171168
  %v397 = vunpack.c.0.s8 %v396
  %v398 = vlaneseq
  %v399 = vshrl.u32 %v398, 7
  %v400 = vsub.s32 %v397, %v399
  %v401 = vrot.slane %v391, %v400
  %v403 = vunpack.c.l.s4 1966171168
  %v404 = vunpack.c.0.s8 %v403
  %v405 = vlaneseq
  %v406 = vshrl.u32 %v405, 7
  %v407 = vsub.s32 %v404, %v406
  %v408 = vrot.slane %v392, %v407
  %v410 = vunpack.c.l.s4 1966171168
  %v411 = vunpack.c.0.s8 %v410
  %v412 = vlaneseq
  %v413 = vshrl.u32 %v412, 7
  %v414 = vsub.s32 %v411, %v413
  %v415 = vrot.slane %v393, %v414
  %v417 = vunpack.c.l.s4 1966171168
  %v418 = vunpack.c.0.s8 %v417
  %v419 = vlaneseq
  %v420 = vshrl.u32 %v419, 7
  %v421 = vsub.s32 %v418, %v420
  %v422 = vrot.slane %v394, %v421
  %v423 = vcombine.low %v401, %v408
  %v424 = vcombine.low %v415, %v422
  %v426 = vunpack.c.l.s4 1966171168
  %v427 = vunpack.c.0.s8 %v426
  %v428 = vlaneseq
  %v429 = vshrl.u32 %v428, 7
  %v430 = vsub.s32 %v427, %v429
  %v431 = vrot.slane %v423, %v430
  %v433 = vunpack.c.l.s4 1966171168
  %v434 = vunpack.c.0.s8 %v433
  %v435 = vlaneseq
  %v436 = vshrl.u32 %v435, 7
  %v437 = vsub.s32 %v434, %v436
  %v438 = vrot.slane %v424, %v437
  %v439 = vcombine.low %v431, %v438
  %v440 = vcombine.low %v290, %v314
  %v441 = vcombine.low %v328, %v336
  %v442 = vcombine.low %v338, %v321
  %v443 = vcombine.low %v335, %v337
  %v445 = vunpack.c.l.s4 1966171168
  %v446 = vunpack.c.0.s8 %v445
  %v447 = vlaneseq
  %v448 = vshrl.u32 %v447, 7
  %v449 = vsub.s32 %v446, %v448
  %v450 = vrot.slane %v440, %v449
  %v452 = vunpack.c.l.s4 1966171168
  %v453 = vunpack.c.0.s8 %v452
  %v454 = vlaneseq
  %v455 = vshrl.u32 %v454, 7
  %v456 = vsub.s32 %v453, %v455
  %v457 = vrot.slane %v441, %v456
  %v459 = vunpack.c.l.s4 1966171168
  %v460 = vunpack.c.0.s8 %v459
  %v461 = vlaneseq
  %v462 = vshrl.u32 %v461, 7
  %v463 = vsub.s32 %v460, %v462
  %v464 = vrot.slane %v442, %v463
  %v466 = vunpack.c.l.s4 1966171168
  %v467 = vunpack.c.0.s8 %v466
  %v468 = vlaneseq
  %v469 = vshrl.u32 %v468, 7
  %v470 = vsub.s32 %v467, %v469
  %v471 = vrot.slane %v443, %v470
  %v472 = vcombine.low %v450, %v457
  %v473 = vcombine.low %v464, %v471
  %v475 = vunpack.c.l.s4 1966171168
  %v476 = vunpack.c.0.s8 %v475
  %v477 = vlaneseq
  %v478 = vshrl.u32 %v477, 7
  %v479 = vsub.s32 %v476, %v478
  %v480 = vrot.slane %v472, %v479
  %v482 = vunpack.c.l.s4 1966171168
  %v483 = vunpack.c.0.s8 %v482
  %v484 = vlaneseq
  %v485 = vshrl.u32 %v484, 7
  %v486 = vsub.s32 %v483, %v485
  %v487 = vrot.slane %v473, %v486
  %v488 = vcombine.low %v480, %v487
  %v489 = vcombine.low %v339, %v353
  %v491 = vunpack.c.l.s4 1966171168
  %v492 = vunpack.c.0.s8 %v491
  %v493 = vlaneseq
  %v494 = vshrl.u32 %v493, 7
  %v495 = vsub.s32 %v492, %v494
  %v496 = vrot.slane %v489, %v495
  %v498 = vunpack.c.l.s4 1966171168
  %v499 = vunpack.c.0.s8 %v498
  %v500 = vlaneseq
  %v501 = vshrl.u32 %v500, 7
  %v502 = vsub.s32 %v499, %v501
  %v503 = vrot.slane %v496, %v502
  %vm504 = vcmask 261120
  %v505 = vsel %vm504, %v439, 0
  %v507 = vsel %vm504, %v488, 0
  %v509 = vsel %vm504, %v503, 0
  %v512 = vsel %vm504, %v372, 0
  %v515 = vsel %vm504, %v373, 0
  %v518 = vsel %vm504, %v374, 0
  %v521 = vsel %vm504, %v375, 0
  %v524 = vsel %vm504, %v376, 0
  %v527 = vsel %vm504, %v377, 0
  %v530 = vsel %vm504, %v378, 0
  %v533 = vsel %vm504, %v379, 0
  %v536 = vsel %vm504, %v380, 0
  %v539 = vsel %vm504, %v381, 0
  %v542 = vsel %vm504, %v382, 0
  %v545 = vsel %vm504, %v383, 0
  %547 = vmatprep.subr.mxu0 0.0
  %548 = vmatpush1.xpose.msra.mxu0 0.0
  %549 = vmatprep.subr.mxu0 0.0
  %550 = vmatpush1.xpose.msra.mxu0 0.0
  %551 = vmatprep.subr.mxu0 0.0
  %552 = vmatpush1.xpose.msra.mxu0 0.0
  %553 = vmatprep.subr.mxu0 0.0
  %554 = vmatpush1.xpose.msra.mxu0 0.0
  %555 = vmatprep.subr.mxu0 0.0
  %556 = vmatpush1.xpose.msra.mxu0 %v545
  %557 = vmatprep.subr.mxu0 0.0
  %558 = vmatpush1.xpose.msra.mxu0 %v542
  %559 = vmatprep.subr.mxu0 0.0
  %560 = vmatpush1.xpose.msra.mxu0 %v539
  %561 = vmatprep.subr.mxu0 0.0
  %562 = vmatpush1.xpose.msra.mxu0 %v536
  %563 = vmatprep.subr.mxu0 0.0
  %564 = vmatpush1.xpose.msra.mxu0 %v533
  %565 = vmatprep.subr.mxu0 0.0
  %566 = vmatpush1.xpose.msra.mxu0 %v530
  %567 = vmatprep.subr.mxu0 0.0
  %568 = vmatpush1.xpose.msra.mxu0 %v527
  %569 = vmatprep.subr.mxu0 0.0
  %570 = vmatpush1.xpose.msra.mxu0 %v524
  %571 = vmatprep.subr.mxu0 0.0
  %572 = vmatpush1.xpose.msra.mxu0 %v521
  %573 = vmatprep.subr.mxu0 0.0
  %574 = vmatpush1.xpose.msra.mxu0 %v518
  %575 = vmatprep.subr.mxu0 0.0
  %576 = vmatpush1.xpose.msra.mxu0 %v515
  %577 = vmatprep.subr.mxu0 0.0
  %578 = vmatpush1.xpose.msra.mxu0 %v512
  %579 = vmatprep.subr.mxu0 0.0
  %580 = vmatpush2.xpose.msra.mxu0 0.0
  %581 = vmatprep.subr.mxu0 0.0
  %582 = vmatpush2.xpose.msra.mxu0 0.0
  %583 = vmatprep.subr.mxu0 0.0
  %584 = vmatpush2.xpose.msra.mxu0 0.0
  %585 = vmatprep.subr.mxu0 0.0
  %586 = vmatpush2.xpose.msra.mxu0 0.0
  %587 = vmatprep.subr.mxu0 0.0
  %588 = vmatpush2.xpose.msra.mxu0 0.0
  %589 = vmatprep.subr.mxu0 0.0
  %590 = vmatpush2.xpose.msra.mxu0 0.0
  %591 = vmatprep.subr.mxu0 0.0
  %592 = vmatpush2.xpose.msra.mxu0 0.0
  %593 = vmatprep.subr.mxu0 0.0
  %594 = vmatpush2.xpose.msra.mxu0 0.0
  %595 = vmatprep.subr.mxu0 0.0
  %596 = vmatpush2.xpose.msra.mxu0 0.0
  %597 = vmatprep.subr.mxu0 0.0
  %598 = vmatpush2.xpose.msra.mxu0 0.0
  %599 = vmatprep.subr.mxu0 0.0
  %600 = vmatpush2.xpose.msra.mxu0 0.0
  %601 = vmatprep.subr.mxu0 0.0
  %602 = vmatpush2.xpose.msra.mxu0 0.0
  %603 = vmatprep.subr.mxu0 0.0
  %604 = vmatpush2.xpose.msra.mxu0 0.0
  %605 = vmatprep.subr.mxu0 0.0
  %606 = vmatpush2.xpose.msra.mxu0 0.0
  %607 = vmatprep.subr.mxu0 0.0
  %608 = vmatpush2.xpose.msra.mxu0 0.0
  %609 = vmatprep.subr.mxu0 0.0
  %610 = vmatpush2.xpose.msra.mxu0 0.0
  %611 = vmatprep.mubr.f32.mxu0 0.0
  %612 = vmatmul.mubr.f32.gmra.mxu0 %v505
  %v613 = vpop.f32.mrf.mxu0
  %v614 = vadd.f32 %v389, %v613
  %v615 = vpop.f32.mrf.mxu0
  %616 = vmatprep.mubr.f32.mxu0 0.0
  %617 = vmatmul.mubr.f32.gmra.mxu0 %v507
  %v618 = vpop.f32.mrf.mxu0
  %v619 = vadd.f32 %v389, %v618
  %v620 = vpop.f32.mrf.mxu0
  %621 = vmatprep.mubr.f32.mxu0 0.0
  %622 = vmatmul.mubr.f32.gmra.mxu0 %v509
  %v623 = vpop.f32.mrf.mxu0
  %v624 = vadd.f32 %v389, %v623
  %v625 = vpop.f32.mrf.mxu0
  %626 = vdwg.mxu0
  %v630 = vcombine.high %v614, %v614
  %v632 = vunpack.c.l.s4 1966171168
  %v633 = vunpack.c.0.s8 %v632
  %v634 = vlaneseq
  %v635 = vshrl.u32 %v634, 7
  %v636 = vsub.s32 %v633, %v635
  %v637 = vrot.slane %v614, %v636
  %v639 = vunpack.c.l.s4 1966171168
  %v640 = vunpack.c.0.s8 %v639
  %v641 = vlaneseq
  %v642 = vshrl.u32 %v641, 7
  %v643 = vsub.s32 %v640, %v642
  %v644 = vrot.slane %v630, %v643
  %v645 = vcombine.high %v637, %v637
  %v646 = vcombine.high %v644, %v644
  %v648 = vunpack.c.l.s4 1966171168
  %v649 = vunpack.c.0.s8 %v648
  %v650 = vlaneseq
  %v651 = vshrl.u32 %v650, 7
  %v652 = vsub.s32 %v649, %v651
  %v653 = vrot.slane %v637, %v652
  %v655 = vunpack.c.l.s4 1966171168
  %v656 = vunpack.c.0.s8 %v655
  %v657 = vlaneseq
  %v658 = vshrl.u32 %v657, 7
  %v659 = vsub.s32 %v656, %v658
  %v660 = vrot.slane %v644, %v659
  %v662 = vunpack.c.l.s4 1966171168
  %v663 = vunpack.c.0.s8 %v662
  %v664 = vlaneseq
  %v665 = vshrl.u32 %v664, 7
  %v666 = vsub.s32 %v663, %v665
  %v667 = vrot.slane %v645, %v666
  %v669 = vunpack.c.l.s4 1966171168
  %v670 = vunpack.c.0.s8 %v669
  %v671 = vlaneseq
  %v672 = vshrl.u32 %v671, 7
  %v673 = vsub.s32 %v670, %v672
  %v674 = vrot.slane %v646, %v673
  %v675 = vcombine.high %v653, %v653
  %v676 = vcombine.high %v660, %v660
  %v677 = vcombine.high %v667, %v667
  %v678 = vcombine.high %v674, %v674
  %v679 = vcombine.high %v619, %v619
  %v681 = vunpack.c.l.s4 1966171168
  %v682 = vunpack.c.0.s8 %v681
  %v683 = vlaneseq
  %v684 = vshrl.u32 %v683, 7
  %v685 = vsub.s32 %v682, %v684
  %v686 = vrot.slane %v619, %v685
  %v688 = vunpack.c.l.s4 1966171168
  %v689 = vunpack.c.0.s8 %v688
  %v690 = vlaneseq
  %v691 = vshrl.u32 %v690, 7
  %v692 = vsub.s32 %v689, %v691
  %v693 = vrot.slane %v679, %v692
  %v694 = vcombine.high %v686, %v686
  %v695 = vcombine.high %v693, %v693
  %v697 = vunpack.c.l.s4 1966171168
  %v698 = vunpack.c.0.s8 %v697
  %v699 = vlaneseq
  %v700 = vshrl.u32 %v699, 7
  %v701 = vsub.s32 %v698, %v700
  %v702 = vrot.slane %v686, %v701
  %v704 = vunpack.c.l.s4 1966171168
  %v705 = vunpack.c.0.s8 %v704
  %v706 = vlaneseq
  %v707 = vshrl.u32 %v706, 7
  %v708 = vsub.s32 %v705, %v707
  %v709 = vrot.slane %v693, %v708
  %v711 = vunpack.c.l.s4 1966171168
  %v712 = vunpack.c.0.s8 %v711
  %v713 = vlaneseq
  %v714 = vshrl.u32 %v713, 7
  %v715 = vsub.s32 %v712, %v714
  %v716 = vrot.slane %v694, %v715
  %v718 = vunpack.c.l.s4 1966171168
  %v719 = vunpack.c.0.s8 %v718
  %v720 = vlaneseq
  %v721 = vshrl.u32 %v720, 7
  %v722 = vsub.s32 %v719, %v721
  %v723 = vrot.slane %v695, %v722
  %v724 = vcombine.high %v702, %v702
  %v725 = vcombine.high %v709, %v709
  %v726 = vcombine.high %v716, %v716
  %v727 = vcombine.high %v723, %v723
  %v729 = vunpack.c.l.s4 1966171168
  %v730 = vunpack.c.0.s8 %v729
  %v731 = vlaneseq
  %v732 = vshrl.u32 %v731, 7
  %v733 = vsub.s32 %v730, %v732
  %v734 = vrot.slane %v624, %v733
  %v735 = vcombine.high %v734, %v734
  %v737 = vunpack.c.l.s4 1966171168
  %v738 = vunpack.c.0.s8 %v737
  %v739 = vlaneseq
  %v740 = vshrl.u32 %v739, 7
  %v741 = vsub.s32 %v738, %v740
  %v742 = vrot.slane %v734, %v741
  %v744 = vunpack.c.l.s4 1966171168
  %v745 = vunpack.c.0.s8 %v744
  %v746 = vlaneseq
  %v747 = vshrl.u32 %v746, 7
  %v748 = vsub.s32 %v745, %v747
  %v749 = vrot.slane %v735, %v748
  %v768 = vmul.f32 %v653, 0.35355338
  %v769 = vmul.f32 %v667, 0.35355338
  %v770 = vmul.f32 %v675, 0.35355338
  %v771 = vmul.f32 %v677, 0.35355338
  %v772 = vmul.f32 %v660, 0.35355338
  %v773 = vmul.f32 %v674, 0.35355338
  %v774 = vmul.f32 %v676, 0.35355338
  %v775 = vmul.f32 %v678, 0.35355338
  %v776 = vmul.f32 %v702, 0.35355338
  %v777 = vmul.f32 %v716, 0.35355338
  %v778 = vmul.f32 %v724, 0.35355338
  %v779 = vmul.f32 %v726, 0.35355338
  %v780 = vmul.f32 %v709, 0.35355338
  %v781 = vmul.f32 %v723, 0.35355338
  %v782 = vmul.f32 %v725, 0.35355338
  %v783 = vmul.f32 %v727, 0.35355338
  %v784 = vmul.f32 %v742, 0.35355338
  %v785 = vmul.f32 %v749, 0.35355338
  %v795 = vcombine.low %v768, %v769
  %v796 = vcombine.low %v770, %v771
  %v797 = vcombine.low %v772, %v773
  %v798 = vcombine.low %v774, %v775
  %v800 = vunpack.c.l.s4 1966171168
  %v801 = vunpack.c.0.s8 %v800
  %v802 = vlaneseq
  %v803 = vshrl.u32 %v802, 7
  %v804 = vsub.s32 %v801, %v803
  %v805 = vrot.slane %v795, %v804
  %v807 = vunpack.c.l.s4 1966171168
  %v808 = vunpack.c.0.s8 %v807
  %v809 = vlaneseq
  %v810 = vshrl.u32 %v809, 7
  %v811 = vsub.s32 %v808, %v810
  %v812 = vrot.slane %v796, %v811
  %v814 = vunpack.c.l.s4 1966171168
  %v815 = vunpack.c.0.s8 %v814
  %v816 = vlaneseq
  %v817 = vshrl.u32 %v816, 7
  %v818 = vsub.s32 %v815, %v817
  %v819 = vrot.slane %v797, %v818
  %v821 = vunpack.c.l.s4 1966171168
  %v822 = vunpack.c.0.s8 %v821
  %v823 = vlaneseq
  %v824 = vshrl.u32 %v823, 7
  %v825 = vsub.s32 %v822, %v824
  %v826 = vrot.slane %v798, %v825
  %v827 = vcombine.low %v805, %v812
  %v828 = vcombine.low %v819, %v826
  %v830 = vunpack.c.l.s4 1966171168
  %v831 = vunpack.c.0.s8 %v830
  %v832 = vlaneseq
  %v833 = vshrl.u32 %v832, 7
  %v834 = vsub.s32 %v831, %v833
  %v835 = vrot.slane %v827, %v834
  %v837 = vunpack.c.l.s4 1966171168
  %v838 = vunpack.c.0.s8 %v837
  %v839 = vlaneseq
  %v840 = vshrl.u32 %v839, 7
  %v841 = vsub.s32 %v838, %v840
  %v842 = vrot.slane %v828, %v841
  %v843 = vcombine.low %v835, %v842
  %v845 = vunpack.c.l.s4 1966171168
  %v846 = vunpack.c.0.s8 %v845
  %v847 = vlaneseq
  %v848 = vshrl.u32 %v847, 7
  %v849 = vsub.s32 %v846, %v848
  %v850 = vrot.slane %v776, %v849
  %v852 = vunpack.c.l.s4 1966171168
  %v853 = vunpack.c.0.s8 %v852
  %v854 = vlaneseq
  %v855 = vshrl.u32 %v854, 7
  %v856 = vsub.s32 %v853, %v855
  %v857 = vrot.slane %v850, %v856
  %v858 = vcombine.low %v653, %v667
  %v859 = vcombine.low %v675, %v677
  %v860 = vcombine.low %v660, %v674
  %v861 = vcombine.low %v676, %v678
  %v863 = vunpack.c.l.s4 1966171168
  %v864 = vunpack.c.0.s8 %v863
  %v865 = vlaneseq
  %v866 = vshrl.u32 %v865, 7
  %v867 = vsub.s32 %v864, %v866
  %v868 = vrot.slane %v858, %v867
  %v870 = vunpack.c.l.s4 1966171168
  %v871 = vunpack.c.0.s8 %v870
  %v872 = vlaneseq
  %v873 = vshrl.u32 %v872, 7
  %v874 = vsub.s32 %v871, %v873
  %v875 = vrot.slane %v859, %v874
  %v877 = vunpack.c.l.s4 1966171168
  %v878 = vunpack.c.0.s8 %v877
  %v879 = vlaneseq
  %v880 = vshrl.u32 %v879, 7
  %v881 = vsub.s32 %v878, %v880
  %v882 = vrot.slane %v860, %v881
  %v884 = vunpack.c.l.s4 1966171168
  %v885 = vunpack.c.0.s8 %v884
  %v886 = vlaneseq
  %v887 = vshrl.u32 %v886, 7
  %v888 = vsub.s32 %v885, %v887
  %v889 = vrot.slane %v861, %v888
  %v890 = vcombine.low %v868, %v875
  %v891 = vcombine.low %v882, %v889
  %v893 = vunpack.c.l.s4 1966171168
  %v894 = vunpack.c.0.s8 %v893
  %v895 = vlaneseq
  %v896 = vshrl.u32 %v895, 7
  %v897 = vsub.s32 %v894, %v896
  %v898 = vrot.slane %v890, %v897
  %v900 = vunpack.c.l.s4 1966171168
  %v901 = vunpack.c.0.s8 %v900
  %v902 = vlaneseq
  %v903 = vshrl.u32 %v902, 7
  %v904 = vsub.s32 %v901, %v903
  %v905 = vrot.slane %v891, %v904
  %v906 = vcombine.low %v898, %v905
  %v908 = vunpack.c.l.s4 1966171168
  %v909 = vunpack.c.0.s8 %v908
  %v910 = vlaneseq
  %v911 = vshrl.u32 %v910, 7
  %v912 = vsub.s32 %v909, %v911
  %v913 = vrot.slane %v702, %v912
  %v915 = vunpack.c.l.s4 1966171168
  %v916 = vunpack.c.0.s8 %v915
  %v917 = vlaneseq
  %v918 = vshrl.u32 %v917, 7
  %v919 = vsub.s32 %v916, %v918
  %v920 = vrot.slane %v913, %v919
  %921 = vrot.lane.b32.xlu0 %v906, 96
  %v922 = vpop.permute.xlu0 %921
  %923 = vrot.lane.b32.xlu0 %v920, 96
  %v924 = vpop.permute.xlu0 %923
  %vm925 = vcmask 64512
  %v926 = vsel %vm925, %v843, 0
  %v928 = vsel %vm925, %v857, 0
  %v930 = vsel %vm925, %v922, 0
  %v932 = vsel %vm925, %v924, 0
  %934 = vmatprep.subr.mxu0 0.0
  %935 = vmatpush1.xpose.msra.mxu0 0.0
  %936 = vmatprep.subr.mxu0 0.0
  %937 = vmatpush1.xpose.msra.mxu0 0.0
  %938 = vmatprep.subr.mxu0 0.0
  %939 = vmatpush1.xpose.msra.mxu0 0.0
  %940 = vmatprep.subr.mxu0 0.0
  %941 = vmatpush1.xpose.msra.mxu0 0.0
  %942 = vmatprep.subr.mxu0 0.0
  %943 = vmatpush1.xpose.msra.mxu0 0.0
  %944 = vmatprep.subr.mxu0 0.0
  %945 = vmatpush1.xpose.msra.mxu0 0.0
  %946 = vmatprep.subr.mxu0 0.0
  %947 = vmatpush1.xpose.msra.mxu0 0.0
  %948 = vmatprep.subr.mxu0 0.0
  %949 = vmatpush1.xpose.msra.mxu0 0.0
  %950 = vmatprep.subr.mxu0 0.0
  %951 = vmatpush1.xpose.msra.mxu0 0.0
  %952 = vmatprep.subr.mxu0 0.0
  %953 = vmatpush1.xpose.msra.mxu0 0.0
  %954 = vmatprep.subr.mxu0 0.0
  %955 = vmatpush1.xpose.msra.mxu0 0.0
  %956 = vmatprep.subr.mxu0 0.0
  %957 = vmatpush1.xpose.msra.mxu0 0.0
  %958 = vmatprep.subr.mxu0 0.0
  %959 = vmatpush1.xpose.msra.mxu0 0.0
  %960 = vmatprep.subr.mxu0 0.0
  %961 = vmatpush1.xpose.msra.mxu0 0.0
  %962 = vmatprep.subr.mxu0 0.0
  %963 = vmatpush1.xpose.msra.mxu0 %v932
  %964 = vmatprep.subr.mxu0 0.0
  %965 = vmatpush1.xpose.msra.mxu0 %v930
  %966 = vmatprep.subr.mxu0 0.0
  %967 = vmatpush2.xpose.msra.mxu0 0.0
  %968 = vmatprep.subr.mxu0 0.0
  %969 = vmatpush2.xpose.msra.mxu0 0.0
  %970 = vmatprep.subr.mxu0 0.0
  %971 = vmatpush2.xpose.msra.mxu0 0.0
  %972 = vmatprep.subr.mxu0 0.0
  %973 = vmatpush2.xpose.msra.mxu0 0.0
  %974 = vmatprep.subr.mxu0 0.0
  %975 = vmatpush2.xpose.msra.mxu0 0.0
  %976 = vmatprep.subr.mxu0 0.0
  %977 = vmatpush2.xpose.msra.mxu0 0.0
  %978 = vmatprep.subr.mxu0 0.0
  %979 = vmatpush2.xpose.msra.mxu0 0.0
  %980 = vmatprep.subr.mxu0 0.0
  %981 = vmatpush2.xpose.msra.mxu0 0.0
  %982 = vmatprep.subr.mxu0 0.0
  %983 = vmatpush2.xpose.msra.mxu0 0.0
  %984 = vmatprep.subr.mxu0 0.0
  %985 = vmatpush2.xpose.msra.mxu0 0.0
  %986 = vmatprep.subr.mxu0 0.0
  %987 = vmatpush2.xpose.msra.mxu0 0.0
  %988 = vmatprep.subr.mxu0 0.0
  %989 = vmatpush2.xpose.msra.mxu0 0.0
  %990 = vmatprep.subr.mxu0 0.0
  %991 = vmatpush2.xpose.msra.mxu0 0.0
  %992 = vmatprep.subr.mxu0 0.0
  %993 = vmatpush2.xpose.msra.mxu0 0.0
  %994 = vmatprep.subr.mxu0 0.0
  %995 = vmatpush2.xpose.msra.mxu0 0.0
  %996 = vmatprep.subr.mxu0 0.0
  %997 = vmatpush2.xpose.msra.mxu0 0.0
  %998 = vmatprep.mubr.f32.mxu0 0.0
  %999 = vmatmul.mubr.f32.gmra.mxu0 %v926
  %v1000 = vpop.f32.mrf.mxu0
  %v1001 = vadd.f32 %v202, %v1000
  %v1002 = vpop.f32.mrf.mxu0
  %1003 = vmatprep.mubr.f32.mxu0 0.0
  %1004 = vmatmul.mubr.f32.gmra.mxu0 %v928
  %v1005 = vpop.f32.mrf.mxu0
  %v1006 = vadd.f32 %v203, %v1005
  %v1007 = vpop.f32.mrf.mxu0
  %1008 = vdwg.mxu0
  %v1018 = vcombine.low %v777, %v778
  %v1019 = vcombine.low %v779, %v780
  %v1020 = vcombine.low %v781, %v782
  %v1021 = vcombine.low %v783, %v784
  %v1023 = vunpack.c.l.s4 1966171168
  %v1024 = vunpack.c.0.s8 %v1023
  %v1025 = vlaneseq
  %v1026 = vshrl.u32 %v1025, 7
  %v1027 = vsub.s32 %v1024, %v1026
  %v1028 = vrot.slane %v1018, %v1027
  %v1030 = vunpack.c.l.s4 1966171168
  %v1031 = vunpack.c.0.s8 %v1030
  %v1032 = vlaneseq
  %v1033 = vshrl.u32 %v1032, 7
  %v1034 = vsub.s32 %v1031, %v1033
  %v1035 = vrot.slane %v1019, %v1034
  %v1037 = vunpack.c.l.s4 1966171168
  %v1038 = vunpack.c.0.s8 %v1037
  %v1039 = vlaneseq
  %v1040 = vshrl.u32 %v1039, 7
  %v1041 = vsub.s32 %v1038, %v1040
  %v1042 = vrot.slane %v1020, %v1041
  %v1044 = vunpack.c.l.s4 1966171168
  %v1045 = vunpack.c.0.s8 %v1044
  %v1046 = vlaneseq
  %v1047 = vshrl.u32 %v1046, 7
  %v1048 = vsub.s32 %v1045, %v1047
  %v1049 = vrot.slane %v1021, %v1048
  %v1050 = vcombine.low %v1028, %v1035
  %v1051 = vcombine.low %v1042, %v1049
  %v1053 = vunpack.c.l.s4 1966171168
  %v1054 = vunpack.c.0.s8 %v1053
  %v1055 = vlaneseq
  %v1056 = vshrl.u32 %v1055, 7
  %v1057 = vsub.s32 %v1054, %v1056
  %v1058 = vrot.slane %v1050, %v1057
  %v1060 = vunpack.c.l.s4 1966171168
  %v1061 = vunpack.c.0.s8 %v1060
  %v1062 = vlaneseq
  %v1063 = vshrl.u32 %v1062, 7
  %v1064 = vsub.s32 %v1061, %v1063
  %v1065 = vrot.slane %v1051, %v1064
  %v1066 = vcombine.low %v1058, %v1065
  %v1068 = vunpack.c.l.s4 1966171168
  %v1069 = vunpack.c.0.s8 %v1068
  %v1070 = vlaneseq
  %v1071 = vshrl.u32 %v1070, 7
  %v1072 = vsub.s32 %v1069, %v1071
  %v1073 = vrot.slane %v785, %v1072
  %v1075 = vunpack.c.l.s4 1966171168
  %v1076 = vunpack.c.0.s8 %v1075
  %v1077 = vlaneseq
  %v1078 = vshrl.u32 %v1077, 7
  %v1079 = vsub.s32 %v1076, %v1078
  %v1080 = vrot.slane %v1073, %v1079
  %v1081 = vcombine.low %v716, %v724
  %v1082 = vcombine.low %v726, %v709
  %v1083 = vcombine.low %v723, %v725
  %v1084 = vcombine.low %v727, %v742
  %v1086 = vunpack.c.l.s4 1966171168
  %v1087 = vunpack.c.0.s8 %v1086
  %v1088 = vlaneseq
  %v1089 = vshrl.u32 %v1088, 7
  %v1090 = vsub.s32 %v1087, %v1089
  %v1091 = vrot.slane %v1081, %v1090
  %v1093 = vunpack.c.l.s4 1966171168
  %v1094 = vunpack.c.0.s8 %v1093
  %v1095 = vlaneseq
  %v1096 = vshrl.u32 %v1095, 7
  %v1097 = vsub.s32 %v1094, %v1096
  %v1098 = vrot.slane %v1082, %v1097
  %v1100 = vunpack.c.l.s4 1966171168
  %v1101 = vunpack.c.0.s8 %v1100
  %v1102 = vlaneseq
  %v1103 = vshrl.u32 %v1102, 7
  %v1104 = vsub.s32 %v1101, %v1103
  %v1105 = vrot.slane %v1083, %v1104
  %v1107 = vunpack.c.l.s4 1966171168
  %v1108 = vunpack.c.0.s8 %v1107
  %v1109 = vlaneseq
  %v1110 = vshrl.u32 %v1109, 7
  %v1111 = vsub.s32 %v1108, %v1110
  %v1112 = vrot.slane %v1084, %v1111
  %v1113 = vcombine.low %v1091, %v1098
  %v1114 = vcombine.low %v1105, %v1112
  %v1116 = vunpack.c.l.s4 1966171168
  %v1117 = vunpack.c.0.s8 %v1116
  %v1118 = vlaneseq
  %v1119 = vshrl.u32 %v1118, 7
  %v1120 = vsub.s32 %v1117, %v1119
  %v1121 = vrot.slane %v1113, %v1120
  %v1123 = vunpack.c.l.s4 1966171168
  %v1124 = vunpack.c.0.s8 %v1123
  %v1125 = vlaneseq
  %v1126 = vshrl.u32 %v1125, 7
  %v1127 = vsub.s32 %v1124, %v1126
  %v1128 = vrot.slane %v1114, %v1127
  %v1129 = vcombine.low %v1121, %v1128
  %v1131 = vunpack.c.l.s4 1966171168
  %v1132 = vunpack.c.0.s8 %v1131
  %v1133 = vlaneseq
  %v1134 = vshrl.u32 %v1133, 7
  %v1135 = vsub.s32 %v1132, %v1134
  %v1136 = vrot.slane %v749, %v1135
  %v1138 = vunpack.c.l.s4 1966171168
  %v1139 = vunpack.c.0.s8 %v1138
  %v1140 = vlaneseq
  %v1141 = vshrl.u32 %v1140, 7
  %v1142 = vsub.s32 %v1139, %v1141
  %v1143 = vrot.slane %v1136, %v1142
  %1144 = vrot.lane.b32.xlu0 %v1129, 96
  %v1145 = vpop.permute.xlu0 %1144
  %1146 = vrot.lane.b32.xlu0 %v1143, 96
  %v1147 = vpop.permute.xlu0 %1146
  %v1148 = vsel %vm925, %v1066, 0
  %v1150 = vsel %vm925, %v1080, 0
  %v1152 = vsel %vm925, %v1145, 0
  %v1154 = vsel %vm925, %v1147, 0
  %1156 = vmatprep.subr.mxu0 0.0
  %1157 = vmatpush1.xpose.msra.mxu0 0.0
  %1158 = vmatprep.subr.mxu0 0.0
  %1159 = vmatpush1.xpose.msra.mxu0 0.0
  %1160 = vmatprep.subr.mxu0 0.0
  %1161 = vmatpush1.xpose.msra.mxu0 0.0
  %1162 = vmatprep.subr.mxu0 0.0
  %1163 = vmatpush1.xpose.msra.mxu0 0.0
  %1164 = vmatprep.subr.mxu0 0.0
  %1165 = vmatpush1.xpose.msra.mxu0 0.0
  %1166 = vmatprep.subr.mxu0 0.0
  %1167 = vmatpush1.xpose.msra.mxu0 0.0
  %1168 = vmatprep.subr.mxu0 0.0
  %1169 = vmatpush1.xpose.msra.mxu0 0.0
  %1170 = vmatprep.subr.mxu0 0.0
  %1171 = vmatpush1.xpose.msra.mxu0 0.0
  %1172 = vmatprep.subr.mxu0 0.0
  %1173 = vmatpush1.xpose.msra.mxu0 0.0
  %1174 = vmatprep.subr.mxu0 0.0
  %1175 = vmatpush1.xpose.msra.mxu0 0.0
  %1176 = vmatprep.subr.mxu0 0.0
  %1177 = vmatpush1.xpose.msra.mxu0 0.0
  %1178 = vmatprep.subr.mxu0 0.0
  %1179 = vmatpush1.xpose.msra.mxu0 0.0
  %1180 = vmatprep.subr.mxu0 0.0
  %1181 = vmatpush1.xpose.msra.mxu0 0.0
  %1182 = vmatprep.subr.mxu0 0.0
  %1183 = vmatpush1.xpose.msra.mxu0 0.0
  %1184 = vmatprep.subr.mxu0 0.0
  %1185 = vmatpush1.xpose.msra.mxu0 %v1154
  %1186 = vmatprep.subr.mxu0 0.0
  %1187 = vmatpush1.xpose.msra.mxu0 %v1152
  %1188 = vmatprep.subr.mxu0 0.0
  %1189 = vmatpush2.xpose.msra.mxu0 0.0
  %1190 = vmatprep.subr.mxu0 0.0
  %1191 = vmatpush2.xpose.msra.mxu0 0.0
  %1192 = vmatprep.subr.mxu0 0.0
  %1193 = vmatpush2.xpose.msra.mxu0 0.0
  %1194 = vmatprep.subr.mxu0 0.0
  %1195 = vmatpush2.xpose.msra.mxu0 0.0
  %1196 = vmatprep.subr.mxu0 0.0
  %1197 = vmatpush2.xpose.msra.mxu0 0.0
  %1198 = vmatprep.subr.mxu0 0.0
  %1199 = vmatpush2.xpose.msra.mxu0 0.0
  %1200 = vmatprep.subr.mxu0 0.0
  %1201 = vmatpush2.xpose.msra.mxu0 0.0
  %1202 = vmatprep.subr.mxu0 0.0
  %1203 = vmatpush2.xpose.msra.mxu0 0.0
  %1204 = vmatprep.subr.mxu0 0.0
  %1205 = vmatpush2.xpose.msra.mxu0 0.0
  %1206 = vmatprep.subr.mxu0 0.0
  %1207 = vmatpush2.xpose.msra.mxu0 0.0
  %1208 = vmatprep.subr.mxu0 0.0
  %1209 = vmatpush2.xpose.msra.mxu0 0.0
  %1210 = vmatprep.subr.mxu0 0.0
  %1211 = vmatpush2.xpose.msra.mxu0 0.0
  %1212 = vmatprep.subr.mxu0 0.0
  %1213 = vmatpush2.xpose.msra.mxu0 0.0
  %1214 = vmatprep.subr.mxu0 0.0
  %1215 = vmatpush2.xpose.msra.mxu0 0.0
  %1216 = vmatprep.subr.mxu0 0.0
  %1217 = vmatpush2.xpose.msra.mxu0 0.0
  %1218 = vmatprep.subr.mxu0 0.0
  %1219 = vmatpush2.xpose.msra.mxu0 0.0
  %1220 = vmatprep.mubr.f32.mxu0 0.0
  %1221 = vmatmul.mubr.f32.gmra.mxu0 %v1148
  %v1222 = vpop.f32.mrf.mxu0
  %v1223 = vadd.f32 %v202, %v1222
  %v1224 = vpop.f32.mrf.mxu0
  %1225 = vmatprep.mubr.f32.mxu0 0.0
  %1226 = vmatmul.mubr.f32.gmra.mxu0 %v1150
  %v1227 = vpop.f32.mrf.mxu0
  %v1228 = vadd.f32 %v203, %v1227
  %v1229 = vpop.f32.mrf.mxu0
  %1230 = vdwg.mxu0
  %vm1231 = vcmask 72704
  %v1232 = vsel %vm1231, %v1001, -inf
  %1233 = vmax.xlane.f32.xlu0 %v1232
  %v1234 = vpop.xlane.xlu0 %1233
  %vm1235 = vcmask 65536
  %v1236 = vsel %vm1235, %v1006, -inf
  %1237 = vmax.xlane.f32.xlu0 %v1236
  %v1238 = vpop.xlane.xlu0 %1237
  %v1239 = vsel %vm1231, %v1223, -inf
  %1240 = vmax.xlane.f32.xlu0 %v1239
  %v1241 = vpop.xlane.xlu0 %1240
  %v1242 = vsel %vm1235, %v1228, -inf
  %1243 = vmax.xlane.f32.xlu0 %v1242
  %v1244 = vpop.xlane.xlu0 %1243
  %v1245 = vsub.f32 %v1001, %v1234
  %v1246 = vsub.f32 %v1006, %v1238
  %v1247 = vsub.f32 %v1223, %v1241
  %v1248 = vsub.f32 %v1228, %v1244
  %v1249 = vmul.f32 %v1245, 1.442695
  %v1250 = vpow.pop %v1249
  %v1251 = vmul.f32 %v1246, 1.442695
  %v1252 = vpow.pop %v1251
  %v1253 = vmul.f32 %v1247, 1.442695
  %v1254 = vpow.pop %v1253
  %v1255 = vmul.f32 %v1248, 1.442695
  %v1256 = vpow.pop %v1255
  %v1257 = vsel %vm1231, %v1250, 0.0
  %1258 = vadd.xlane.f32.xlu0 %v1257
  %v1259 = vpop.xlane.xlu0 %1258
  %v1260 = vsel %vm1235, %v1252, 0.0
  %1261 = vadd.xlane.f32.xlu0 %v1260
  %v1262 = vpop.xlane.xlu0 %1261
  %v1263 = vsel %vm1231, %v1254, 0.0
  %1264 = vadd.xlane.f32.xlu0 %v1263
  %v1265 = vpop.xlane.xlu0 %1264
  %v1266 = vsel %vm1235, %v1256, 0.0
  %1267 = vadd.xlane.f32.xlu0 %v1266
  %v1268 = vpop.xlane.xlu0 %1267
  %v1269 = vrcp.pop %v1259
  %v1270 = vmul.f32 %v1250, %v1269
  %v1271 = vrcp.pop %v1262
  %v1272 = vmul.f32 %v1252, %v1271
  %v1273 = vrcp.pop %v1265
  %v1274 = vmul.f32 %v1254, %v1273
  %v1275 = vrcp.pop %v1268
  %v1276 = vmul.f32 %v1256, %v1275
  %v1278 = vcombine.high %v208, %v208
  %v1280 = vunpack.c.l.s4 1966171168
  %v1281 = vunpack.c.0.s8 %v1280
  %v1282 = vlaneseq
  %v1283 = vshrl.u32 %v1282, 7
  %v1284 = vsub.s32 %v1281, %v1283
  %v1285 = vrot.slane %v208, %v1284
  %v1287 = vunpack.c.l.s4 1966171168
  %v1288 = vunpack.c.0.s8 %v1287
  %v1289 = vlaneseq
  %v1290 = vshrl.u32 %v1289, 7
  %v1291 = vsub.s32 %v1288, %v1290
  %v1292 = vrot.slane %v1278, %v1291
  %v1293 = vcombine.high %v1285, %v1285
  %v1294 = vcombine.high %v1292, %v1292
  %v1296 = vunpack.c.l.s4 1966171168
  %v1297 = vunpack.c.0.s8 %v1296
  %v1298 = vlaneseq
  %v1299 = vshrl.u32 %v1298, 7
  %v1300 = vsub.s32 %v1297, %v1299
  %v1301 = vrot.slane %v1285, %v1300
  %v1303 = vunpack.c.l.s4 1966171168
  %v1304 = vunpack.c.0.s8 %v1303
  %v1305 = vlaneseq
  %v1306 = vshrl.u32 %v1305, 7
  %v1307 = vsub.s32 %v1304, %v1306
  %v1308 = vrot.slane %v1292, %v1307
  %v1310 = vunpack.c.l.s4 1966171168
  %v1311 = vunpack.c.0.s8 %v1310
  %v1312 = vlaneseq
  %v1313 = vshrl.u32 %v1312, 7
  %v1314 = vsub.s32 %v1311, %v1313
  %v1315 = vrot.slane %v1293, %v1314
  %v1317 = vunpack.c.l.s4 1966171168
  %v1318 = vunpack.c.0.s8 %v1317
  %v1319 = vlaneseq
  %v1320 = vshrl.u32 %v1319, 7
  %v1321 = vsub.s32 %v1318, %v1320
  %v1322 = vrot.slane %v1294, %v1321
  %v1323 = vcombine.high %v1301, %v1301
  %v1324 = vcombine.high %v1308, %v1308
  %v1325 = vcombine.high %v1315, %v1315
  %v1326 = vcombine.high %v1322, %v1322
  %1327 = vrot.lane.b32.xlu0 %v1301, 64
  %v1328 = vpop.permute.xlu0 %1327
  %1329 = vrot.lane.b32.xlu0 %v1315, 64
  %v1330 = vpop.permute.xlu0 %1329
  %1331 = vrot.lane.b32.xlu0 %v1323, 64
  %v1332 = vpop.permute.xlu0 %1331
  %1333 = vrot.lane.b32.xlu0 %v1325, 64
  %v1334 = vpop.permute.xlu0 %1333
  %1335 = vrot.lane.b32.xlu0 %v1308, 64
  %v1336 = vpop.permute.xlu0 %1335
  %1337 = vrot.lane.b32.xlu0 %v1322, 64
  %v1338 = vpop.permute.xlu0 %1337
  %1339 = vrot.lane.b32.xlu0 %v1324, 64
  %v1340 = vpop.permute.xlu0 %1339
  %1341 = vrot.lane.b32.xlu0 %v1326, 64
  %v1342 = vpop.permute.xlu0 %1341
  %v1351 = vmul.f32 %v653, %v1328
  %v1352 = vmul.f32 %v667, %v1330
  %v1353 = vmul.f32 %v675, %v1332
  %v1354 = vmul.f32 %v677, %v1334
  %v1355 = vmul.f32 %v660, %v1336
  %v1356 = vmul.f32 %v674, %v1338
  %v1357 = vmul.f32 %v676, %v1340
  %v1358 = vmul.f32 %v678, %v1342
  %v1359 = vmul.f32 %v702, %v1328
  %v1360 = vmul.f32 %v716, %v1328
  %v1361 = vmul.f32 %v724, %v1330
  %v1362 = vmul.f32 %v726, %v1332
  %v1363 = vmul.f32 %v709, %v1334
  %v1364 = vmul.f32 %v723, %v1336
  %v1365 = vmul.f32 %v725, %v1338
  %v1366 = vmul.f32 %v727, %v1340
  %v1367 = vmul.f32 %v742, %v1342
  %v1368 = vmul.f32 %v749, %v1328
  %1369 = vrot.lane.b32.xlu0 %v843, 120
  %v1370 = vpop.permute.xlu0 %1369
  %1371 = vrot.lane.b32.xlu0 %v857, 120
  %v1372 = vpop.permute.xlu0 %1371
  %1373 = vrot.lane.b32.xlu0 %v906, 88
  %v1374 = vpop.permute.xlu0 %1373
  %1375 = vrot.lane.b32.xlu0 %v920, 88
  %v1376 = vpop.permute.xlu0 %1375
  %v1377 = vsel %vm925, %v1370, 0
  %v1379 = vsel %vm925, %v1372, 0
  %v1381 = vsel %vm925, %v1374, 0
  %v1383 = vsel %vm925, %v1376, 0
  %1385 = vmatprep.subr.mxu0 0.0
  %1386 = vmatpush1.xpose.msra.mxu0 0.0
  %1387 = vmatprep.subr.mxu0 0.0
  %1388 = vmatpush1.xpose.msra.mxu0 0.0
  %1389 = vmatprep.subr.mxu0 0.0
  %1390 = vmatpush1.xpose.msra.mxu0 0.0
  %1391 = vmatprep.subr.mxu0 0.0
  %1392 = vmatpush1.xpose.msra.mxu0 0.0
  %1393 = vmatprep.subr.mxu0 0.0
  %1394 = vmatpush1.xpose.msra.mxu0 0.0
  %1395 = vmatprep.subr.mxu0 0.0
  %1396 = vmatpush1.xpose.msra.mxu0 0.0
  %1397 = vmatprep.subr.mxu0 0.0
  %1398 = vmatpush1.xpose.msra.mxu0 0.0
  %1399 = vmatprep.subr.mxu0 0.0
  %1400 = vmatpush1.xpose.msra.mxu0 0.0
  %1401 = vmatprep.subr.mxu0 0.0
  %1402 = vmatpush1.xpose.msra.mxu0 0.0
  %1403 = vmatprep.subr.mxu0 0.0
  %1404 = vmatpush1.xpose.msra.mxu0 0.0
  %1405 = vmatprep.subr.mxu0 0.0
  %1406 = vmatpush1.xpose.msra.mxu0 0.0
  %1407 = vmatprep.subr.mxu0 0.0
  %1408 = vmatpush1.xpose.msra.mxu0 0.0
  %1409 = vmatprep.subr.mxu0 0.0
  %1410 = vmatpush1.xpose.msra.mxu0 0.0
  %1411 = vmatprep.subr.mxu0 0.0
  %1412 = vmatpush1.xpose.msra.mxu0 0.0
  %1413 = vmatprep.subr.mxu0 0.0
  %1414 = vmatpush1.xpose.msra.mxu0 %v1383
  %1415 = vmatprep.subr.mxu0 0.0
  %1416 = vmatpush1.xpose.msra.mxu0 %v1381
  %1417 = vmatprep.subr.mxu0 0.0
  %1418 = vmatpush2.xpose.msra.mxu0 0.0
  %1419 = vmatprep.subr.mxu0 0.0
  %1420 = vmatpush2.xpose.msra.mxu0 0.0
  %1421 = vmatprep.subr.mxu0 0.0
  %1422 = vmatpush2.xpose.msra.mxu0 0.0
  %1423 = vmatprep.subr.mxu0 0.0
  %1424 = vmatpush2.xpose.msra.mxu0 0.0
  %1425 = vmatprep.subr.mxu0 0.0
  %1426 = vmatpush2.xpose.msra.mxu0 0.0
  %1427 = vmatprep.subr.mxu0 0.0
  %1428 = vmatpush2.xpose.msra.mxu0 0.0
  %1429 = vmatprep.subr.mxu0 0.0
  %1430 = vmatpush2.xpose.msra.mxu0 0.0
  %1431 = vmatprep.subr.mxu0 0.0
  %1432 = vmatpush2.xpose.msra.mxu0 0.0
  %1433 = vmatprep.subr.mxu0 0.0
  %1434 = vmatpush2.xpose.msra.mxu0 0.0
  %1435 = vmatprep.subr.mxu0 0.0
  %1436 = vmatpush2.xpose.msra.mxu0 0.0
  %1437 = vmatprep.subr.mxu0 0.0
  %1438 = vmatpush2.xpose.msra.mxu0 0.0
  %1439 = vmatprep.subr.mxu0 0.0
  %1440 = vmatpush2.xpose.msra.mxu0 0.0
  %1441 = vmatprep.subr.mxu0 0.0
  %1442 = vmatpush2.xpose.msra.mxu0 0.0
  %1443 = vmatprep.subr.mxu0 0.0
  %1444 = vmatpush2.xpose.msra.mxu0 0.0
  %1445 = vmatprep.subr.mxu0 0.0
  %1446 = vmatpush2.xpose.msra.mxu0 0.0
  %1447 = vmatprep.subr.mxu0 0.0
  %1448 = vmatpush2.xpose.msra.mxu0 0.0
  %1449 = vmatprep.mubr.f32.mxu0 0.0
  %1450 = vmatmul.mubr.f32.gmra.mxu0 %v1377
  %v1451 = vpop.f32.mrf.mxu0
  %v1452 = vadd.f32 %v202, %v1451
  %v1453 = vpop.f32.mrf.mxu0
  %1454 = vmatprep.mubr.f32.mxu0 0.0
  %1455 = vmatmul.mubr.f32.gmra.mxu0 %v1379
  %v1456 = vpop.f32.mrf.mxu0
  %v1457 = vadd.f32 %v203, %v1456
  %v1458 = vpop.f32.mrf.mxu0
  %1459 = vdwg.mxu0
  %1460 = vrot.lane.b32.xlu0 %v1066, 120
  %v1461 = vpop.permute.xlu0 %1460
  %1462 = vrot.lane.b32.xlu0 %v1080, 120
  %v1463 = vpop.permute.xlu0 %1462
  %1464 = vrot.lane.b32.xlu0 %v1129, 88
  %v1465 = vpop.permute.xlu0 %1464
  %1466 = vrot.lane.b32.xlu0 %v1143, 88
  %v1467 = vpop.permute.xlu0 %1466
  %v1468 = vsel %vm925, %v1461, 0
  %v1470 = vsel %vm925, %v1463, 0
  %v1472 = vsel %vm925, %v1465, 0
  %v1474 = vsel %vm925, %v1467, 0
  %1476 = vmatprep.subr.mxu0 0.0
  %1477 = vmatpush1.xpose.msra.mxu0 0.0
  %1478 = vmatprep.subr.mxu0 0.0
  %1479 = vmatpush1.xpose.msra.mxu0 0.0
  %1480 = vmatprep.subr.mxu0 0.0
  %1481 = vmatpush1.xpose.msra.mxu0 0.0
  %1482 = vmatprep.subr.mxu0 0.0
  %1483 = vmatpush1.xpose.msra.mxu0 0.0
  %1484 = vmatprep.subr.mxu0 0.0
  %1485 = vmatpush1.xpose.msra.mxu0 0.0
  %1486 = vmatprep.subr.mxu0 0.0
  %1487 = vmatpush1.xpose.msra.mxu0 0.0
  %1488 = vmatprep.subr.mxu0 0.0
  %1489 = vmatpush1.xpose.msra.mxu0 0.0
  %1490 = vmatprep.subr.mxu0 0.0
  %1491 = vmatpush1.xpose.msra.mxu0 0.0
  %1492 = vmatprep.subr.mxu0 0.0
  %1493 = vmatpush1.xpose.msra.mxu0 0.0
  %1494 = vmatprep.subr.mxu0 0.0
  %1495 = vmatpush1.xpose.msra.mxu0 0.0
  %1496 = vmatprep.subr.mxu0 0.0
  %1497 = vmatpush1.xpose.msra.mxu0 0.0
  %1498 = vmatprep.subr.mxu0 0.0
  %1499 = vmatpush1.xpose.msra.mxu0 0.0
  %1500 = vmatprep.subr.mxu0 0.0
  %1501 = vmatpush1.xpose.msra.mxu0 0.0
  %1502 = vmatprep.subr.mxu0 0.0
  %1503 = vmatpush1.xpose.msra.mxu0 0.0
  %1504 = vmatprep.subr.mxu0 0.0
  %1505 = vmatpush1.xpose.msra.mxu0 %v1474
  %1506 = vmatprep.subr.mxu0 0.0
  %1507 = vmatpush1.xpose.msra.mxu0 %v1472
  %1508 = vmatprep.subr.mxu0 0.0
  %1509 = vmatpush2.xpose.msra.mxu0 0.0
  %1510 = vmatprep.subr.mxu0 0.0
  %1511 = vmatpush2.xpose.msra.mxu0 0.0
  %1512 = vmatprep.subr.mxu0 0.0
  %1513 = vmatpush2.xpose.msra.mxu0 0.0
  %1514 = vmatprep.subr.mxu0 0.0
  %1515 = vmatpush2.xpose.msra.mxu0 0.0
  %1516 = vmatprep.subr.mxu0 0.0
  %1517 = vmatpush2.xpose.msra.mxu0 0.0
  %1518 = vmatprep.subr.mxu0 0.0
  %1519 = vmatpush2.xpose.msra.mxu0 0.0
  %1520 = vmatprep.subr.mxu0 0.0
  %1521 = vmatpush2.xpose.msra.mxu0 0.0
  %1522 = vmatprep.subr.mxu0 0.0
  %1523 = vmatpush2.xpose.msra.mxu0 0.0
  %1524 = vmatprep.subr.mxu0 0.0
  %1525 = vmatpush2.xpose.msra.mxu0 0.0
  %1526 = vmatprep.subr.mxu0 0.0
  %1527 = vmatpush2.xpose.msra.mxu0 0.0
  %1528 = vmatprep.subr.mxu0 0.0
  %1529 = vmatpush2.xpose.msra.mxu0 0.0
  %1530 = vmatprep.subr.mxu0 0.0
  %1531 = vmatpush2.xpose.msra.mxu0 0.0
  %1532 = vmatprep.subr.mxu0 0.0
  %1533 = vmatpush2.xpose.msra.mxu0 0.0
  %1534 = vmatprep.subr.mxu0 0.0
  %1535 = vmatpush2.xpose.msra.mxu0 0.0
  %1536 = vmatprep.subr.mxu0 0.0
  %1537 = vmatpush2.xpose.msra.mxu0 0.0
  %1538 = vmatprep.subr.mxu0 0.0
  %1539 = vmatpush2.xpose.msra.mxu0 0.0
  %1540 = vmatprep.mubr.f32.mxu0 0.0
  %1541 = vmatmul.mubr.f32.gmra.mxu0 %v1468
  %v1542 = vpop.f32.mrf.mxu0
  %v1543 = vadd.f32 %v202, %v1542
  %v1544 = vpop.f32.mrf.mxu0
  %1545 = vmatprep.mubr.f32.mxu0 0.0
  %1546 = vmatmul.mubr.f32.gmra.mxu0 %v1470
  %v1547 = vpop.f32.mrf.mxu0
  %v1548 = vadd.f32 %v203, %v1547
  %v1549 = vpop.f32.mrf.mxu0
  %1550 = vdwg.mxu0
  %v1551 = vsel %vm1231, %v1452, -inf
  %1552 = vmax.xlane.f32.xlu0 %v1551
  %v1553 = vpop.xlane.xlu0 %1552
  %v1554 = vsel %vm1235, %v1457, -inf
  %1555 = vmax.xlane.f32.xlu0 %v1554
  %v1556 = vpop.xlane.xlu0 %1555
  %v1557 = vsel %vm1231, %v1543, -inf
  %1558 = vmax.xlane.f32.xlu0 %v1557
  %v1559 = vpop.xlane.xlu0 %1558
  %v1560 = vsel %vm1235, %v1548, -inf
  %1561 = vmax.xlane.f32.xlu0 %v1560
  %v1562 = vpop.xlane.xlu0 %1561
  %v1563 = vsub.f32 %v1452, %v1553
  %v1564 = vsub.f32 %v1457, %v1556
  %v1565 = vsub.f32 %v1543, %v1559
  %v1566 = vsub.f32 %v1548, %v1562
  %v1567 = vmul.f32 %v1563, 1.442695
  %v1568 = vpow.pop %v1567
  %v1569 = vmul.f32 %v1564, 1.442695
  %v1570 = vpow.pop %v1569
  %v1571 = vmul.f32 %v1565, 1.442695
  %v1572 = vpow.pop %v1571
  %v1573 = vmul.f32 %v1566, 1.442695
  %v1574 = vpow.pop %v1573
  %v1575 = vsel %vm1231, %v1568, 0.0
  %1576 = vadd.xlane.f32.xlu0 %v1575
  %v1577 = vpop.xlane.xlu0 %1576
  %v1578 = vsel %vm1235, %v1570, 0.0
  %1579 = vadd.xlane.f32.xlu0 %v1578
  %v1580 = vpop.xlane.xlu0 %1579
  %v1581 = vsel %vm1231, %v1572, 0.0
  %1582 = vadd.xlane.f32.xlu0 %v1581
  %v1583 = vpop.xlane.xlu0 %1582
  %v1584 = vsel %vm1235, %v1574, 0.0
  %1585 = vadd.xlane.f32.xlu0 %v1584
  %v1586 = vpop.xlane.xlu0 %1585
  %v1587 = vrcp.pop %v1577
  %v1588 = vmul.f32 %v1568, %v1587
  %v1589 = vrcp.pop %v1580
  %v1590 = vmul.f32 %v1570, %v1589
  %v1591 = vrcp.pop %v1583
  %v1592 = vmul.f32 %v1572, %v1591
  %v1593 = vrcp.pop %v1586
  %v1594 = vmul.f32 %v1574, %v1593
  %v1596 = vcombine.high %v213, %v213
  %v1598 = vunpack.c.l.s4 1966171168
  %v1599 = vunpack.c.0.s8 %v1598
  %v1600 = vlaneseq
  %v1601 = vshrl.u32 %v1600, 7
  %v1602 = vsub.s32 %v1599, %v1601
  %v1603 = vrot.slane %v213, %v1602
  %v1605 = vunpack.c.l.s4 1966171168
  %v1606 = vunpack.c.0.s8 %v1605
  %v1607 = vlaneseq
  %v1608 = vshrl.u32 %v1607, 7
  %v1609 = vsub.s32 %v1606, %v1608
  %v1610 = vrot.slane %v1596, %v1609
  %v1611 = vcombine.high %v1603, %v1603
  %v1612 = vcombine.high %v1610, %v1610
  %v1614 = vunpack.c.l.s4 1966171168
  %v1615 = vunpack.c.0.s8 %v1614
  %v1616 = vlaneseq
  %v1617 = vshrl.u32 %v1616, 7
  %v1618 = vsub.s32 %v1615, %v1617
  %v1619 = vrot.slane %v1603, %v1618
  %v1621 = vunpack.c.l.s4 1966171168
  %v1622 = vunpack.c.0.s8 %v1621
  %v1623 = vlaneseq
  %v1624 = vshrl.u32 %v1623, 7
  %v1625 = vsub.s32 %v1622, %v1624
  %v1626 = vrot.slane %v1610, %v1625
  %v1628 = vunpack.c.l.s4 1966171168
  %v1629 = vunpack.c.0.s8 %v1628
  %v1630 = vlaneseq
  %v1631 = vshrl.u32 %v1630, 7
  %v1632 = vsub.s32 %v1629, %v1631
  %v1633 = vrot.slane %v1611, %v1632
  %v1635 = vunpack.c.l.s4 1966171168
  %v1636 = vunpack.c.0.s8 %v1635
  %v1637 = vlaneseq
  %v1638 = vshrl.u32 %v1637, 7
  %v1639 = vsub.s32 %v1636, %v1638
  %v1640 = vrot.slane %v1612, %v1639
  %v1641 = vcombine.high %v1619, %v1619
  %v1642 = vcombine.high %v1626, %v1626
  %v1643 = vcombine.high %v1633, %v1633
  %v1644 = vcombine.high %v1640, %v1640
  %1645 = vrot.lane.b32.xlu0 %v1619, 64
  %v1646 = vpop.permute.xlu0 %1645
  %1647 = vrot.lane.b32.xlu0 %v1633, 64
  %v1648 = vpop.permute.xlu0 %1647
  %1649 = vrot.lane.b32.xlu0 %v1641, 64
  %v1650 = vpop.permute.xlu0 %1649
  %1651 = vrot.lane.b32.xlu0 %v1643, 64
  %v1652 = vpop.permute.xlu0 %1651
  %1653 = vrot.lane.b32.xlu0 %v1626, 64
  %v1654 = vpop.permute.xlu0 %1653
  %1655 = vrot.lane.b32.xlu0 %v1640, 64
  %v1656 = vpop.permute.xlu0 %1655
  %1657 = vrot.lane.b32.xlu0 %v1642, 64
  %v1658 = vpop.permute.xlu0 %1657
  %1659 = vrot.lane.b32.xlu0 %v1644, 64
  %v1660 = vpop.permute.xlu0 %1659
  %v1669 = vmul.f32 %v653, %v1646
  %v1670 = vmul.f32 %v667, %v1648
  %v1671 = vmul.f32 %v675, %v1650
  %v1672 = vmul.f32 %v677, %v1652
  %v1673 = vmul.f32 %v660, %v1654
  %v1674 = vmul.f32 %v674, %v1656
  %v1675 = vmul.f32 %v676, %v1658
  %v1676 = vmul.f32 %v678, %v1660
  %v1677 = vmul.f32 %v702, %v1646
  %v1678 = vmul.f32 %v716, %v1646
  %v1679 = vmul.f32 %v724, %v1648
  %v1680 = vmul.f32 %v726, %v1650
  %v1681 = vmul.f32 %v709, %v1652
  %v1682 = vmul.f32 %v723, %v1654
  %v1683 = vmul.f32 %v725, %v1656
  %v1684 = vmul.f32 %v727, %v1658
  %v1685 = vmul.f32 %v742, %v1660
  %v1686 = vmul.f32 %v749, %v1646
  %v1696 = vcombine.low %v1669, %v1670
  %v1697 = vcombine.low %v1671, %v1672
  %v1698 = vcombine.low %v1673, %v1674
  %v1699 = vcombine.low %v1675, %v1676
  %v1701 = vunpack.c.l.s4 1966171168
  %v1702 = vunpack.c.0.s8 %v1701
  %v1703 = vlaneseq
  %v1704 = vshrl.u32 %v1703, 7
  %v1705 = vsub.s32 %v1702, %v1704
  %v1706 = vrot.slane %v1696, %v1705
  %v1708 = vunpack.c.l.s4 1966171168
  %v1709 = vunpack.c.0.s8 %v1708
  %v1710 = vlaneseq
  %v1711 = vshrl.u32 %v1710, 7
  %v1712 = vsub.s32 %v1709, %v1711
  %v1713 = vrot.slane %v1697, %v1712
  %v1715 = vunpack.c.l.s4 1966171168
  %v1716 = vunpack.c.0.s8 %v1715
  %v1717 = vlaneseq
  %v1718 = vshrl.u32 %v1717, 7
  %v1719 = vsub.s32 %v1716, %v1718
  %v1720 = vrot.slane %v1698, %v1719
  %v1722 = vunpack.c.l.s4 1966171168
  %v1723 = vunpack.c.0.s8 %v1722
  %v1724 = vlaneseq
  %v1725 = vshrl.u32 %v1724, 7
  %v1726 = vsub.s32 %v1723, %v1725
  %v1727 = vrot.slane %v1699, %v1726
  %v1728 = vcombine.low %v1706, %v1713
  %v1729 = vcombine.low %v1720, %v1727
  %v1731 = vunpack.c.l.s4 1966171168
  %v1732 = vunpack.c.0.s8 %v1731
  %v1733 = vlaneseq
  %v1734 = vshrl.u32 %v1733, 7
  %v1735 = vsub.s32 %v1732, %v1734
  %v1736 = vrot.slane %v1728, %v1735
  %v1738 = vunpack.c.l.s4 1966171168
  %v1739 = vunpack.c.0.s8 %v1738
  %v1740 = vlaneseq
  %v1741 = vshrl.u32 %v1740, 7
  %v1742 = vsub.s32 %v1739, %v1741
  %v1743 = vrot.slane %v1729, %v1742
  %v1744 = vcombine.low %v1736, %v1743
  %v1746 = vunpack.c.l.s4 1966171168
  %v1747 = vunpack.c.0.s8 %v1746
  %v1748 = vlaneseq
  %v1749 = vshrl.u32 %v1748, 7
  %v1750 = vsub.s32 %v1747, %v1749
  %v1751 = vrot.slane %v1677, %v1750
  %v1753 = vunpack.c.l.s4 1966171168
  %v1754 = vunpack.c.0.s8 %v1753
  %v1755 = vlaneseq
  %v1756 = vshrl.u32 %v1755, 7
  %v1757 = vsub.s32 %v1754, %v1756
  %v1758 = vrot.slane %v1751, %v1757
  %1759 = vrot.lane.b32.xlu0 %v1744, 64
  %v1760 = vpop.permute.xlu0 %1759
  %1761 = vrot.lane.b32.xlu0 %v1758, 64
  %v1762 = vpop.permute.xlu0 %1761
  %v1765 = vsel %vm1231, %v1588, 0
  %v1768 = vsel %vm1231, %v1590, 0
  %vm1770 = vcmask 1040384
  %v1771 = vsel %vm1770, %v1762, 0
  %1773 = vmatprep.subr.mxu0 0.0
  %1774 = vmatpush1.msra.mxu0 0.0
  %1775 = vmatprep.subr.mxu0 0.0
  %1776 = vmatpush1.msra.mxu0 0.0
  %1777 = vmatprep.subr.mxu0 0.0
  %1778 = vmatpush1.msra.mxu0 0.0
  %1779 = vmatprep.subr.mxu0 0.0
  %1780 = vmatpush1.msra.mxu0 0.0
  %1781 = vmatprep.subr.mxu0 0.0
  %1782 = vmatpush1.msra.mxu0 0.0
  %1783 = vmatprep.subr.mxu0 0.0
  %1784 = vmatpush1.msra.mxu0 0.0
  %1785 = vmatprep.subr.mxu0 0.0
  %1786 = vmatpush1.msra.mxu0 0.0
  %1787 = vmatprep.subr.mxu0 0.0
  %1788 = vmatpush1.msra.mxu0 0.0
  %1789 = vmatprep.subr.mxu0 0.0
  %1790 = vmatpush1.msra.mxu0 0.0
  %1791 = vmatprep.subr.mxu0 0.0
  %1792 = vmatpush1.msra.mxu0 0.0
  %1793 = vmatprep.subr.mxu0 0.0
  %1794 = vmatpush1.msra.mxu0 0.0
  %1795 = vmatprep.subr.mxu0 0.0
  %1796 = vmatpush1.msra.mxu0 0.0
  %1797 = vmatprep.subr.mxu0 0.0
  %1798 = vmatpush1.msra.mxu0 0.0
  %1799 = vmatprep.subr.mxu0 0.0
  %1800 = vmatpush1.msra.mxu0 0.0
  %1801 = vmatprep.subr.mxu0 0.0
  %1802 = vmatpush1.msra.mxu0 %v1771
  %1803 = vmatprep.subr.mxu0 0.0
  %1804 = vmatpush1.msra.mxu0 %v1760
  %1805 = vmatprep.subr.mxu0 0.0
  %1806 = vmatpush2.msra.mxu0 0.0
  %1807 = vmatprep.subr.mxu0 0.0
  %1808 = vmatpush2.msra.mxu0 0.0
  %1809 = vmatprep.subr.mxu0 0.0
  %1810 = vmatpush2.msra.mxu0 0.0
  %1811 = vmatprep.subr.mxu0 0.0
  %1812 = vmatpush2.msra.mxu0 0.0
  %1813 = vmatprep.subr.mxu0 0.0
  %1814 = vmatpush2.msra.mxu0 0.0
  %1815 = vmatprep.subr.mxu0 0.0
  %1816 = vmatpush2.msra.mxu0 0.0
  %1817 = vmatprep.subr.mxu0 0.0
  %1818 = vmatpush2.msra.mxu0 0.0
  %1819 = vmatprep.subr.mxu0 0.0
  %1820 = vmatpush2.msra.mxu0 0.0
  %1821 = vmatprep.subr.mxu0 0.0
  %1822 = vmatpush2.msra.mxu0 0.0
  %1823 = vmatprep.subr.mxu0 0.0
  %1824 = vmatpush2.msra.mxu0 0.0
  %1825 = vmatprep.subr.mxu0 0.0
  %1826 = vmatpush2.msra.mxu0 0.0
  %1827 = vmatprep.subr.mxu0 0.0
  %1828 = vmatpush2.msra.mxu0 0.0
  %1829 = vmatprep.subr.mxu0 0.0
  %1830 = vmatpush2.msra.mxu0 0.0
  %1831 = vmatprep.subr.mxu0 0.0
  %1832 = vmatpush2.msra.mxu0 0.0
  %1833 = vmatprep.subr.mxu0 0.0
  %1834 = vmatpush2.msra.mxu0 0.0
  %1835 = vmatprep.subr.mxu0 0.0
  %1836 = vmatpush2.msra.mxu0 0.0
  %1837 = vmatprep.mubr.f32.mxu0 0.0
  %1838 = vmatmul.mubr.f32.gmra.mxu0 %v1765
  %v1839 = vpop.f32.mrf.mxu0
  %v1840 = vadd.f32 0.0, %v1839
  %v1841 = vpop.f32.mrf.mxu0
  %1842 = vmatprep.mubr.f32.mxu0 0.0
  %1843 = vmatmul.mubr.f32.gmra.mxu0 %v1768
  %v1844 = vpop.f32.mrf.mxu0
  %v1845 = vadd.f32 0.0, %v1844
  %v1846 = vpop.f32.mrf.mxu0
  %1847 = vdwg.mxu0
  %v1857 = vcombine.low %v1678, %v1679
  %v1858 = vcombine.low %v1680, %v1681
  %v1859 = vcombine.low %v1682, %v1683
  %v1860 = vcombine.low %v1684, %v1685
  %v1862 = vunpack.c.l.s4 1966171168
  %v1863 = vunpack.c.0.s8 %v1862
  %v1864 = vlaneseq
  %v1865 = vshrl.u32 %v1864, 7
  %v1866 = vsub.s32 %v1863, %v1865
  %v1867 = vrot.slane %v1857, %v1866
  %v1869 = vunpack.c.l.s4 1966171168
  %v1870 = vunpack.c.0.s8 %v1869
  %v1871 = vlaneseq
  %v1872 = vshrl.u32 %v1871, 7
  %v1873 = vsub.s32 %v1870, %v1872
  %v1874 = vrot.slane %v1858, %v1873
  %v1876 = vunpack.c.l.s4 1966171168
  %v1877 = vunpack.c.0.s8 %v1876
  %v1878 = vlaneseq
  %v1879 = vshrl.u32 %v1878, 7
  %v1880 = vsub.s32 %v1877, %v1879
  %v1881 = vrot.slane %v1859, %v1880
  %v1883 = vunpack.c.l.s4 1966171168
  %v1884 = vunpack.c.0.s8 %v1883
  %v1885 = vlaneseq
  %v1886 = vshrl.u32 %v1885, 7
  %v1887 = vsub.s32 %v1884, %v1886
  %v1888 = vrot.slane %v1860, %v1887
  %v1889 = vcombine.low %v1867, %v1874
  %v1890 = vcombine.low %v1881, %v1888
  %v1892 = vunpack.c.l.s4 1966171168
  %v1893 = vunpack.c.0.s8 %v1892
  %v1894 = vlaneseq
  %v1895 = vshrl.u32 %v1894, 7
  %v1896 = vsub.s32 %v1893, %v1895
  %v1897 = vrot.slane %v1889, %v1896
  %v1899 = vunpack.c.l.s4 1966171168
  %v1900 = vunpack.c.0.s8 %v1899
  %v1901 = vlaneseq
  %v1902 = vshrl.u32 %v1901, 7
  %v1903 = vsub.s32 %v1900, %v1902
  %v1904 = vrot.slane %v1890, %v1903
  %v1905 = vcombine.low %v1897, %v1904
  %v1907 = vunpack.c.l.s4 1966171168
  %v1908 = vunpack.c.0.s8 %v1907
  %v1909 = vlaneseq
  %v1910 = vshrl.u32 %v1909, 7
  %v1911 = vsub.s32 %v1908, %v1910
  %v1912 = vrot.slane %v1686, %v1911
  %v1914 = vunpack.c.l.s4 1966171168
  %v1915 = vunpack.c.0.s8 %v1914
  %v1916 = vlaneseq
  %v1917 = vshrl.u32 %v1916, 7
  %v1918 = vsub.s32 %v1915, %v1917
  %v1919 = vrot.slane %v1912, %v1918
  %1920 = vrot.lane.b32.xlu0 %v1905, 64
  %v1921 = vpop.permute.xlu0 %1920
  %1922 = vrot.lane.b32.xlu0 %v1919, 64
  %v1923 = vpop.permute.xlu0 %1922
  %v1926 = vsel %vm1231, %v1592, 0
  %v1929 = vsel %vm1231, %v1594, 0
  %v1931 = vsel %vm1770, %v1923, 0
  %1933 = vmatprep.subr.mxu0 0.0
  %1934 = vmatpush1.msra.mxu0 0.0
  %1935 = vmatprep.subr.mxu0 0.0
  %1936 = vmatpush1.msra.mxu0 0.0
  %1937 = vmatprep.subr.mxu0 0.0
  %1938 = vmatpush1.msra.mxu0 0.0
  %1939 = vmatprep.subr.mxu0 0.0
  %1940 = vmatpush1.msra.mxu0 0.0
  %1941 = vmatprep.subr.mxu0 0.0
  %1942 = vmatpush1.msra.mxu0 0.0
  %1943 = vmatprep.subr.mxu0 0.0
  %1944 = vmatpush1.msra.mxu0 0.0
  %1945 = vmatprep.subr.mxu0 0.0
  %1946 = vmatpush1.msra.mxu0 0.0
  %1947 = vmatprep.subr.mxu0 0.0
  %1948 = vmatpush1.msra.mxu0 0.0
  %1949 = vmatprep.subr.mxu0 0.0
  %1950 = vmatpush1.msra.mxu0 0.0
  %1951 = vmatprep.subr.mxu0 0.0
  %1952 = vmatpush1.msra.mxu0 0.0
  %1953 = vmatprep.subr.mxu0 0.0
  %1954 = vmatpush1.msra.mxu0 0.0
  %1955 = vmatprep.subr.mxu0 0.0
  %1956 = vmatpush1.msra.mxu0 0.0
  %1957 = vmatprep.subr.mxu0 0.0
  %1958 = vmatpush1.msra.mxu0 0.0
  %1959 = vmatprep.subr.mxu0 0.0
  %1960 = vmatpush1.msra.mxu0 0.0
  %1961 = vmatprep.subr.mxu0 0.0
  %1962 = vmatpush1.msra.mxu0 %v1931
  %1963 = vmatprep.subr.mxu0 0.0
  %1964 = vmatpush1.msra.mxu0 %v1921
  %1965 = vmatprep.subr.mxu0 0.0
  %1966 = vmatpush2.msra.mxu0 0.0
  %1967 = vmatprep.subr.mxu0 0.0
  %1968 = vmatpush2.msra.mxu0 0.0
  %1969 = vmatprep.subr.mxu0 0.0
  %1970 = vmatpush2.msra.mxu0 0.0
  %1971 = vmatprep.subr.mxu0 0.0
  %1972 = vmatpush2.msra.mxu0 0.0
  %1973 = vmatprep.subr.mxu0 0.0
  %1974 = vmatpush2.msra.mxu0 0.0
  %1975 = vmatprep.subr.mxu0 0.0
  %1976 = vmatpush2.msra.mxu0 0.0
  %1977 = vmatprep.subr.mxu0 0.0
  %1978 = vmatpush2.msra.mxu0 0.0
  %1979 = vmatprep.subr.mxu0 0.0
  %1980 = vmatpush2.msra.mxu0 0.0
  %1981 = vmatprep.subr.mxu0 0.0
  %1982 = vmatpush2.msra.mxu0 0.0
  %1983 = vmatprep.subr.mxu0 0.0
  %1984 = vmatpush2.msra.mxu0 0.0
  %1985 = vmatprep.subr.mxu0 0.0
  %1986 = vmatpush2.msra.mxu0 0.0
  %1987 = vmatprep.subr.mxu0 0.0
  %1988 = vmatpush2.msra.mxu0 0.0
  %1989 = vmatprep.subr.mxu0 0.0
  %1990 = vmatpush2.msra.mxu0 0.0
  %1991 = vmatprep.subr.mxu0 0.0
  %1992 = vmatpush2.msra.mxu0 0.0
  %1993 = vmatprep.subr.mxu0 0.0
  %1994 = vmatpush2.msra.mxu0 0.0
  %1995 = vmatprep.subr.mxu0 0.0
  %1996 = vmatpush2.msra.mxu0 0.0
  %1997 = vmatprep.mubr.f32.mxu0 0.0
  %1998 = vmatmul.mubr.f32.gmra.mxu0 %v1926
  %v1999 = vpop.f32.mrf.mxu0
  %v2000 = vadd.f32 0.0, %v1999
  %v2001 = vpop.f32.mrf.mxu0
  %2002 = vmatprep.mubr.f32.mxu0 0.0
  %2003 = vmatmul.mubr.f32.gmra.mxu0 %v1929
  %v2004 = vpop.f32.mrf.mxu0
  %v2005 = vadd.f32 0.0, %v2004
  %v2006 = vpop.f32.mrf.mxu0
  %2007 = vdwg.mxu0
  %v2017 = vcombine.low %v1351, %v1352
  %v2018 = vcombine.low %v1353, %v1354
  %v2019 = vcombine.low %v1355, %v1356
  %v2020 = vcombine.low %v1357, %v1358
  %v2022 = vunpack.c.l.s4 1966171168
  %v2023 = vunpack.c.0.s8 %v2022
  %v2024 = vlaneseq
  %v2025 = vshrl.u32 %v2024, 7
  %v2026 = vsub.s32 %v2023, %v2025
  %v2027 = vrot.slane %v2017, %v2026
  %v2029 = vunpack.c.l.s4 1966171168
  %v2030 = vunpack.c.0.s8 %v2029
  %v2031 = vlaneseq
  %v2032 = vshrl.u32 %v2031, 7
  %v2033 = vsub.s32 %v2030, %v2032
  %v2034 = vrot.slane %v2018, %v2033
  %v2036 = vunpack.c.l.s4 1966171168
  %v2037 = vunpack.c.0.s8 %v2036
  %v2038 = vlaneseq
  %v2039 = vshrl.u32 %v2038, 7
  %v2040 = vsub.s32 %v2037, %v2039
  %v2041 = vrot.slane %v2019, %v2040
  %v2043 = vunpack.c.l.s4 1966171168
  %v2044 = vunpack.c.0.s8 %v2043
  %v2045 = vlaneseq
  %v2046 = vshrl.u32 %v2045, 7
  %v2047 = vsub.s32 %v2044, %v2046
  %v2048 = vrot.slane %v2020, %v2047
  %v2049 = vcombine.low %v2027, %v2034
  %v2050 = vcombine.low %v2041, %v2048
  %v2052 = vunpack.c.l.s4 1966171168
  %v2053 = vunpack.c.0.s8 %v2052
  %v2054 = vlaneseq
  %v2055 = vshrl.u32 %v2054, 7
  %v2056 = vsub.s32 %v2053, %v2055
  %v2057 = vrot.slane %v2049, %v2056
  %v2059 = vunpack.c.l.s4 1966171168
  %v2060 = vunpack.c.0.s8 %v2059
  %v2061 = vlaneseq
  %v2062 = vshrl.u32 %v2061, 7
  %v2063 = vsub.s32 %v2060, %v2062
  %v2064 = vrot.slane %v2050, %v2063
  %v2065 = vcombine.low %v2057, %v2064
  %v2067 = vunpack.c.l.s4 1966171168
  %v2068 = vunpack.c.0.s8 %v2067
  %v2069 = vlaneseq
  %v2070 = vshrl.u32 %v2069, 7
  %v2071 = vsub.s32 %v2068, %v2070
  %v2072 = vrot.slane %v1359, %v2071
  %v2074 = vunpack.c.l.s4 1966171168
  %v2075 = vunpack.c.0.s8 %v2074
  %v2076 = vlaneseq
  %v2077 = vshrl.u32 %v2076, 7
  %v2078 = vsub.s32 %v2075, %v2077
  %v2079 = vrot.slane %v2072, %v2078
  %2080 = vrot.lane.b32.xlu0 %v2065, 64
  %v2081 = vpop.permute.xlu0 %2080
  %2082 = vrot.lane.b32.xlu0 %v2079, 64
  %v2083 = vpop.permute.xlu0 %2082
  %v2086 = vsel %vm1231, %v1270, 0
  %v2089 = vsel %vm1231, %v1272, 0
  %v2091 = vsel %vm1770, %v2083, 0
  %2093 = vmatprep.subr.mxu0 0.0
  %2094 = vmatpush1.msra.mxu0 0.0
  %2095 = vmatprep.subr.mxu0 0.0
  %2096 = vmatpush1.msra.mxu0 0.0
  %2097 = vmatprep.subr.mxu0 0.0
  %2098 = vmatpush1.msra.mxu0 0.0
  %2099 = vmatprep.subr.mxu0 0.0
  %2100 = vmatpush1.msra.mxu0 0.0
  %2101 = vmatprep.subr.mxu0 0.0
  %2102 = vmatpush1.msra.mxu0 0.0
  %2103 = vmatprep.subr.mxu0 0.0
  %2104 = vmatpush1.msra.mxu0 0.0
  %2105 = vmatprep.subr.mxu0 0.0
  %2106 = vmatpush1.msra.mxu0 0.0
  %2107 = vmatprep.subr.mxu0 0.0
  %2108 = vmatpush1.msra.mxu0 0.0
  %2109 = vmatprep.subr.mxu0 0.0
  %2110 = vmatpush1.msra.mxu0 0.0
  %2111 = vmatprep.subr.mxu0 0.0
  %2112 = vmatpush1.msra.mxu0 0.0
  %2113 = vmatprep.subr.mxu0 0.0
  %2114 = vmatpush1.msra.mxu0 0.0
  %2115 = vmatprep.subr.mxu0 0.0
  %2116 = vmatpush1.msra.mxu0 0.0
  %2117 = vmatprep.subr.mxu0 0.0
  %2118 = vmatpush1.msra.mxu0 0.0
  %2119 = vmatprep.subr.mxu0 0.0
  %2120 = vmatpush1.msra.mxu0 0.0
  %2121 = vmatprep.subr.mxu0 0.0
  %2122 = vmatpush1.msra.mxu0 %v2091
  %2123 = vmatprep.subr.mxu0 0.0
  %2124 = vmatpush1.msra.mxu0 %v2081
  %2125 = vmatprep.subr.mxu0 0.0
  %2126 = vmatpush2.msra.mxu0 0.0
  %2127 = vmatprep.subr.mxu0 0.0
  %2128 = vmatpush2.msra.mxu0 0.0
  %2129 = vmatprep.subr.mxu0 0.0
  %2130 = vmatpush2.msra.mxu0 0.0
  %2131 = vmatprep.subr.mxu0 0.0
  %2132 = vmatpush2.msra.mxu0 0.0
  %2133 = vmatprep.subr.mxu0 0.0
  %2134 = vmatpush2.msra.mxu0 0.0
  %2135 = vmatprep.subr.mxu0 0.0
  %2136 = vmatpush2.msra.mxu0 0.0
  %2137 = vmatprep.subr.mxu0 0.0
  %2138 = vmatpush2.msra.mxu0 0.0
  %2139 = vmatprep.subr.mxu0 0.0
  %2140 = vmatpush2.msra.mxu0 0.0
  %2141 = vmatprep.subr.mxu0 0.0
  %2142 = vmatpush2.msra.mxu0 0.0
  %2143 = vmatprep.subr.mxu0 0.0
  %2144 = vmatpush2.msra.mxu0 0.0
  %2145 = vmatprep.subr.mxu0 0.0
  %2146 = vmatpush2.msra.mxu0 0.0
  %2147 = vmatprep.subr.mxu0 0.0
  %2148 = vmatpush2.msra.mxu0 0.0
  %2149 = vmatprep.subr.mxu0 0.0
  %2150 = vmatpush2.msra.mxu0 0.0
  %2151 = vmatprep.subr.mxu0 0.0
  %2152 = vmatpush2.msra.mxu0 0.0
  %2153 = vmatprep.subr.mxu0 0.0
  %2154 = vmatpush2.msra.mxu0 0.0
  %2155 = vmatprep.subr.mxu0 0.0
  %2156 = vmatpush2.msra.mxu0 0.0
  %2157 = vmatprep.mubr.f32.mxu0 0.0
  %2158 = vmatmul.mubr.f32.gmra.mxu0 %v2086
  %v2159 = vpop.f32.mrf.mxu0
  %v2160 = vadd.f32 %v1840, %v2159
  %v2161 = vpop.f32.mrf.mxu0
  %2162 = vmatprep.mubr.f32.mxu0 0.0
  %2163 = vmatmul.mubr.f32.gmra.mxu0 %v2089
  %v2164 = vpop.f32.mrf.mxu0
  %v2165 = vadd.f32 %v1845, %v2164
  %v2166 = vpop.f32.mrf.mxu0
  %2167 = vdwg.mxu0
  %v2177 = vcombine.low %v1360, %v1361
  %v2178 = vcombine.low %v1362, %v1363
  %v2179 = vcombine.low %v1364, %v1365
  %v2180 = vcombine.low %v1366, %v1367
  %v2182 = vunpack.c.l.s4 1966171168
  %v2183 = vunpack.c.0.s8 %v2182
  %v2184 = vlaneseq
  %v2185 = vshrl.u32 %v2184, 7
  %v2186 = vsub.s32 %v2183, %v2185
  %v2187 = vrot.slane %v2177, %v2186
  %v2189 = vunpack.c.l.s4 1966171168
  %v2190 = vunpack.c.0.s8 %v2189
  %v2191 = vlaneseq
  %v2192 = vshrl.u32 %v2191, 7
  %v2193 = vsub.s32 %v2190, %v2192
  %v2194 = vrot.slane %v2178, %v2193
  %v2196 = vunpack.c.l.s4 1966171168
  %v2197 = vunpack.c.0.s8 %v2196
  %v2198 = vlaneseq
  %v2199 = vshrl.u32 %v2198, 7
  %v2200 = vsub.s32 %v2197, %v2199
  %v2201 = vrot.slane %v2179, %v2200
  %v2203 = vunpack.c.l.s4 1966171168
  %v2204 = vunpack.c.0.s8 %v2203
  %v2205 = vlaneseq
  %v2206 = vshrl.u32 %v2205, 7
  %v2207 = vsub.s32 %v2204, %v2206
  %v2208 = vrot.slane %v2180, %v2207
  %v2209 = vcombine.low %v2187, %v2194
  %v2210 = vcombine.low %v2201, %v2208
  %v2212 = vunpack.c.l.s4 1966171168
  %v2213 = vunpack.c.0.s8 %v2212
  %v2214 = vlaneseq
  %v2215 = vshrl.u32 %v2214, 7
  %v2216 = vsub.s32 %v2213, %v2215
  %v2217 = vrot.slane %v2209, %v2216
  %v2219 = vunpack.c.l.s4 1966171168
  %v2220 = vunpack.c.0.s8 %v2219
  %v2221 = vlaneseq
  %v2222 = vshrl.u32 %v2221, 7
  %v2223 = vsub.s32 %v2220, %v2222
  %v2224 = vrot.slane %v2210, %v2223
  %v2225 = vcombine.low %v2217, %v2224
  %v2227 = vunpack.c.l.s4 1966171168
  %v2228 = vunpack.c.0.s8 %v2227
  %v2229 = vlaneseq
  %v2230 = vshrl.u32 %v2229, 7
  %v2231 = vsub.s32 %v2228, %v2230
  %v2232 = vrot.slane %v1368, %v2231
  %v2234 = vunpack.c.l.s4 1966171168
  %v2235 = vunpack.c.0.s8 %v2234
  %v2236 = vlaneseq
  %v2237 = vshrl.u32 %v2236, 7
  %v2238 = vsub.s32 %v2235, %v2237
  %v2239 = vrot.slane %v2232, %v2238
  %2240 = vrot.lane.b32.xlu0 %v2225, 64
  %v2241 = vpop.permute.xlu0 %2240
  %2242 = vrot.lane.b32.xlu0 %v2239, 64
  %v2243 = vpop.permute.xlu0 %2242
  %v2246 = vsel %vm1231, %v1274, 0
  %v2249 = vsel %vm1231, %v1276, 0
  %v2251 = vsel %vm1770, %v2243, 0
  %2253 = vmatprep.subr.mxu0 0.0
  %2254 = vmatpush1.msra.mxu0 0.0
  %2255 = vmatprep.subr.mxu0 0.0
  %2256 = vmatpush1.msra.mxu0 0.0
  %2257 = vmatprep.subr.mxu0 0.0
  %2258 = vmatpush1.msra.mxu0 0.0
  %2259 = vmatprep.subr.mxu0 0.0
  %2260 = vmatpush1.msra.mxu0 0.0
  %2261 = vmatprep.subr.mxu0 0.0
  %2262 = vmatpush1.msra.mxu0 0.0
  %2263 = vmatprep.subr.mxu0 0.0
  %2264 = vmatpush1.msra.mxu0 0.0
  %2265 = vmatprep.subr.mxu0 0.0
  %2266 = vmatpush1.msra.mxu0 0.0
  %2267 = vmatprep.subr.mxu0 0.0
  %2268 = vmatpush1.msra.mxu0 0.0
  %2269 = vmatprep.subr.mxu0 0.0
  %2270 = vmatpush1.msra.mxu0 0.0
  %2271 = vmatprep.subr.mxu0 0.0
  %2272 = vmatpush1.msra.mxu0 0.0
  %2273 = vmatprep.subr.mxu0 0.0
  %2274 = vmatpush1.msra.mxu0 0.0
  %2275 = vmatprep.subr.mxu0 0.0
  %2276 = vmatpush1.msra.mxu0 0.0
  %2277 = vmatprep.subr.mxu0 0.0
  %2278 = vmatpush1.msra.mxu0 0.0
  %2279 = vmatprep.subr.mxu0 0.0
  %2280 = vmatpush1.msra.mxu0 0.0
  %2281 = vmatprep.subr.mxu0 0.0
  %2282 = vmatpush1.msra.mxu0 %v2251
  %2283 = vmatprep.subr.mxu0 0.0
  %2284 = vmatpush1.msra.mxu0 %v2241
  %2285 = vmatprep.subr.mxu0 0.0
  %2286 = vmatpush2.msra.mxu0 0.0
  %2287 = vmatprep.subr.mxu0 0.0
  %2288 = vmatpush2.msra.mxu0 0.0
  %2289 = vmatprep.subr.mxu0 0.0
  %2290 = vmatpush2.msra.mxu0 0.0
  %2291 = vmatprep.subr.mxu0 0.0
  %2292 = vmatpush2.msra.mxu0 0.0
  %2293 = vmatprep.subr.mxu0 0.0
  %2294 = vmatpush2.msra.mxu0 0.0
  %2295 = vmatprep.subr.mxu0 0.0
  %2296 = vmatpush2.msra.mxu0 0.0
  %2297 = vmatprep.subr.mxu0 0.0
  %2298 = vmatpush2.msra.mxu0 0.0
  %2299 = vmatprep.subr.mxu0 0.0
  %2300 = vmatpush2.msra.mxu0 0.0
  %2301 = vmatprep.subr.mxu0 0.0
  %2302 = vmatpush2.msra.mxu0 0.0
  %2303 = vmatprep.subr.mxu0 0.0
  %2304 = vmatpush2.msra.mxu0 0.0
  %2305 = vmatprep.subr.mxu0 0.0
  %2306 = vmatpush2.msra.mxu0 0.0
  %2307 = vmatprep.subr.mxu0 0.0
  %2308 = vmatpush2.msra.mxu0 0.0
  %2309 = vmatprep.subr.mxu0 0.0
  %2310 = vmatpush2.msra.mxu0 0.0
  %2311 = vmatprep.subr.mxu0 0.0
  %2312 = vmatpush2.msra.mxu0 0.0
  %2313 = vmatprep.subr.mxu0 0.0
  %2314 = vmatpush2.msra.mxu0 0.0
  %2315 = vmatprep.subr.mxu0 0.0
  %2316 = vmatpush2.msra.mxu0 0.0
  %2317 = vmatprep.mubr.f32.mxu0 0.0
  %2318 = vmatmul.mubr.f32.gmra.mxu0 %v2246
  %v2319 = vpop.f32.mrf.mxu0
  %v2320 = vadd.f32 %v2000, %v2319
  %v2321 = vpop.f32.mrf.mxu0
  %2322 = vmatprep.mubr.f32.mxu0 0.0
  %2323 = vmatmul.mubr.f32.gmra.mxu0 %v2249
  %v2324 = vpop.f32.mrf.mxu0
  %v2325 = vadd.f32 %v2005, %v2324
  %v2326 = vpop.f32.mrf.mxu0
  %2327 = vdwg.mxu0
  %2328 = vrot.lane.b32.xlu0 %v843, 112
  %v2329 = vpop.permute.xlu0 %2328
  %2330 = vrot.lane.b32.xlu0 %v857, 112
  %v2331 = vpop.permute.xlu0 %2330
  %2332 = vrot.lane.b32.xlu0 %v906, 80
  %v2333 = vpop.permute.xlu0 %2332
  %2334 = vrot.lane.b32.xlu0 %v920, 80
  %v2335 = vpop.permute.xlu0 %2334
  %v2336 = vsel %vm925, %v2329, 0
  %v2338 = vsel %vm925, %v2331, 0
  %v2340 = vsel %vm925, %v2333, 0
  %v2342 = vsel %vm925, %v2335, 0
  %2344 = vmatprep.subr.mxu0 0.0
  %2345 = vmatpush1.xpose.msra.mxu0 0.0
  %2346 = vmatprep.subr.mxu0 0.0
  %2347 = vmatpush1.xpose.msra.mxu0 0.0
  %2348 = vmatprep.subr.mxu0 0.0
  %2349 = vmatpush1.xpose.msra.mxu0 0.0
  %2350 = vmatprep.subr.mxu0 0.0
  %2351 = vmatpush1.xpose.msra.mxu0 0.0
  %2352 = vmatprep.subr.mxu0 0.0
  %2353 = vmatpush1.xpose.msra.mxu0 0.0
  %2354 = vmatprep.subr.mxu0 0.0
  %2355 = vmatpush1.xpose.msra.mxu0 0.0
  %2356 = vmatprep.subr.mxu0 0.0
  %2357 = vmatpush1.xpose.msra.mxu0 0.0
  %2358 = vmatprep.subr.mxu0 0.0
  %2359 = vmatpush1.xpose.msra.mxu0 0.0
  %2360 = vmatprep.subr.mxu0 0.0
  %2361 = vmatpush1.xpose.msra.mxu0 0.0
  %2362 = vmatprep.subr.mxu0 0.0
  %2363 = vmatpush1.xpose.msra.mxu0 0.0
  %2364 = vmatprep.subr.mxu0 0.0
  %2365 = vmatpush1.xpose.msra.mxu0 0.0
  %2366 = vmatprep.subr.mxu0 0.0
  %2367 = vmatpush1.xpose.msra.mxu0 0.0
  %2368 = vmatprep.subr.mxu0 0.0
  %2369 = vmatpush1.xpose.msra.mxu0 0.0
  %2370 = vmatprep.subr.mxu0 0.0
  %2371 = vmatpush1.xpose.msra.mxu0 0.0
  %2372 = vmatprep.subr.mxu0 0.0
  %2373 = vmatpush1.xpose.msra.mxu0 %v2342
  %2374 = vmatprep.subr.mxu0 0.0
  %2375 = vmatpush1.xpose.msra.mxu0 %v2340
  %2376 = vmatprep.subr.mxu0 0.0
  %2377 = vmatpush2.xpose.msra.mxu0 0.0
  %2378 = vmatprep.subr.mxu0 0.0
  %2379 = vmatpush2.xpose.msra.mxu0 0.0
  %2380 = vmatprep.subr.mxu0 0.0
  %2381 = vmatpush2.xpose.msra.mxu0 0.0
  %2382 = vmatprep.subr.mxu0 0.0
  %2383 = vmatpush2.xpose.msra.mxu0 0.0
  %2384 = vmatprep.subr.mxu0 0.0
  %2385 = vmatpush2.xpose.msra.mxu0 0.0
  %2386 = vmatprep.subr.mxu0 0.0
  %2387 = vmatpush2.xpose.msra.mxu0 0.0
  %2388 = vmatprep.subr.mxu0 0.0
  %2389 = vmatpush2.xpose.msra.mxu0 0.0
  %2390 = vmatprep.subr.mxu0 0.0
  %2391 = vmatpush2.xpose.msra.mxu0 0.0
  %2392 = vmatprep.subr.mxu0 0.0
  %2393 = vmatpush2.xpose.msra.mxu0 0.0
  %2394 = vmatprep.subr.mxu0 0.0
  %2395 = vmatpush2.xpose.msra.mxu0 0.0
  %2396 = vmatprep.subr.mxu0 0.0
  %2397 = vmatpush2.xpose.msra.mxu0 0.0
  %2398 = vmatprep.subr.mxu0 0.0
  %2399 = vmatpush2.xpose.msra.mxu0 0.0
  %2400 = vmatprep.subr.mxu0 0.0
  %2401 = vmatpush2.xpose.msra.mxu0 0.0
  %2402 = vmatprep.subr.mxu0 0.0
  %2403 = vmatpush2.xpose.msra.mxu0 0.0
  %2404 = vmatprep.subr.mxu0 0.0
  %2405 = vmatpush2.xpose.msra.mxu0 0.0
  %2406 = vmatprep.subr.mxu0 0.0
  %2407 = vmatpush2.xpose.msra.mxu0 0.0
  %2408 = vmatprep.mubr.f32.mxu0 0.0
  %2409 = vmatmul.mubr.f32.gmra.mxu0 %v2336
  %v2410 = vpop.f32.mrf.mxu0
  %v2411 = vadd.f32 %v202, %v2410
  %v2412 = vpop.f32.mrf.mxu0
  %2413 = vmatprep.mubr.f32.mxu0 0.0
  %2414 = vmatmul.mubr.f32.gmra.mxu0 %v2338
  %v2415 = vpop.f32.mrf.mxu0
  %v2416 = vadd.f32 %v203, %v2415
  %v2417 = vpop.f32.mrf.mxu0
  %2418 = vdwg.mxu0
  %2419 = vrot.lane.b32.xlu0 %v1066, 112
  %v2420 = vpop.permute.xlu0 %2419
  %2421 = vrot.lane.b32.xlu0 %v1080, 112
  %v2422 = vpop.permute.xlu0 %2421
  %2423 = vrot.lane.b32.xlu0 %v1129, 80
  %v2424 = vpop.permute.xlu0 %2423
  %2425 = vrot.lane.b32.xlu0 %v1143, 80
  %v2426 = vpop.permute.xlu0 %2425
  %v2427 = vsel %vm925, %v2420, 0
  %v2429 = vsel %vm925, %v2422, 0
  %v2431 = vsel %vm925, %v2424, 0
  %v2433 = vsel %vm925, %v2426, 0
  %2435 = vmatprep.subr.mxu0 0.0
  %2436 = vmatpush1.xpose.msra.mxu0 0.0
  %2437 = vmatprep.subr.mxu0 0.0
  %2438 = vmatpush1.xpose.msra.mxu0 0.0
  %2439 = vmatprep.subr.mxu0 0.0
  %2440 = vmatpush1.xpose.msra.mxu0 0.0
  %2441 = vmatprep.subr.mxu0 0.0
  %2442 = vmatpush1.xpose.msra.mxu0 0.0
  %2443 = vmatprep.subr.mxu0 0.0
  %2444 = vmatpush1.xpose.msra.mxu0 0.0
  %2445 = vmatprep.subr.mxu0 0.0
  %2446 = vmatpush1.xpose.msra.mxu0 0.0
  %2447 = vmatprep.subr.mxu0 0.0
  %2448 = vmatpush1.xpose.msra.mxu0 0.0
  %2449 = vmatprep.subr.mxu0 0.0
  %2450 = vmatpush1.xpose.msra.mxu0 0.0
  %2451 = vmatprep.subr.mxu0 0.0
  %2452 = vmatpush1.xpose.msra.mxu0 0.0
  %2453 = vmatprep.subr.mxu0 0.0
  %2454 = vmatpush1.xpose.msra.mxu0 0.0
  %2455 = vmatprep.subr.mxu0 0.0
  %2456 = vmatpush1.xpose.msra.mxu0 0.0
  %2457 = vmatprep.subr.mxu0 0.0
  %2458 = vmatpush1.xpose.msra.mxu0 0.0
  %2459 = vmatprep.subr.mxu0 0.0
  %2460 = vmatpush1.xpose.msra.mxu0 0.0
  %2461 = vmatprep.subr.mxu0 0.0
  %2462 = vmatpush1.xpose.msra.mxu0 0.0
  %2463 = vmatprep.subr.mxu0 0.0
  %2464 = vmatpush1.xpose.msra.mxu0 %v2433
  %2465 = vmatprep.subr.mxu0 0.0
  %2466 = vmatpush1.xpose.msra.mxu0 %v2431
  %2467 = vmatprep.subr.mxu0 0.0
  %2468 = vmatpush2.xpose.msra.mxu0 0.0
  %2469 = vmatprep.subr.mxu0 0.0
  %2470 = vmatpush2.xpose.msra.mxu0 0.0
  %2471 = vmatprep.subr.mxu0 0.0
  %2472 = vmatpush2.xpose.msra.mxu0 0.0
  %2473 = vmatprep.subr.mxu0 0.0
  %2474 = vmatpush2.xpose.msra.mxu0 0.0
  %2475 = vmatprep.subr.mxu0 0.0
  %2476 = vmatpush2.xpose.msra.mxu0 0.0
  %2477 = vmatprep.subr.mxu0 0.0
  %2478 = vmatpush2.xpose.msra.mxu0 0.0
  %2479 = vmatprep.subr.mxu0 0.0
  %2480 = vmatpush2.xpose.msra.mxu0 0.0
  %2481 = vmatprep.subr.mxu0 0.0
  %2482 = vmatpush2.xpose.msra.mxu0 0.0
  %2483 = vmatprep.subr.mxu0 0.0
  %2484 = vmatpush2.xpose.msra.mxu0 0.0
  %2485 = vmatprep.subr.mxu0 0.0
  %2486 = vmatpush2.xpose.msra.mxu0 0.0
  %2487 = vmatprep.subr.mxu0 0.0
  %2488 = vmatpush2.xpose.msra.mxu0 0.0
  %2489 = vmatprep.subr.mxu0 0.0
  %2490 = vmatpush2.xpose.msra.mxu0 0.0
  %2491 = vmatprep.subr.mxu0 0.0
  %2492 = vmatpush2.xpose.msra.mxu0 0.0
  %2493 = vmatprep.subr.mxu0 0.0
  %2494 = vmatpush2.xpose.msra.mxu0 0.0
  %2495 = vmatprep.subr.mxu0 0.0
  %2496 = vmatpush2.xpose.msra.mxu0 0.0
  %2497 = vmatprep.subr.mxu0 0.0
  %2498 = vmatpush2.xpose.msra.mxu0 0.0
  %2499 = vmatprep.mubr.f32.mxu0 0.0
  %2500 = vmatmul.mubr.f32.gmra.mxu0 %v2427
  %v2501 = vpop.f32.mrf.mxu0
  %v2502 = vadd.f32 %v202, %v2501
  %v2503 = vpop.f32.mrf.mxu0
  %2504 = vmatprep.mubr.f32.mxu0 0.0
  %2505 = vmatmul.mubr.f32.gmra.mxu0 %v2429
  %v2506 = vpop.f32.mrf.mxu0
  %v2507 = vadd.f32 %v203, %v2506
  %v2508 = vpop.f32.mrf.mxu0
  %2509 = vdwg.mxu0
  %v2510 = vsel %vm1231, %v2411, -inf
  %2511 = vmax.xlane.f32.xlu0 %v2510
  %v2512 = vpop.xlane.xlu0 %2511
  %v2513 = vsel %vm1235, %v2416, -inf
  %2514 = vmax.xlane.f32.xlu0 %v2513
  %v2515 = vpop.xlane.xlu0 %2514
  %v2516 = vsel %vm1231, %v2502, -inf
  %2517 = vmax.xlane.f32.xlu0 %v2516
  %v2518 = vpop.xlane.xlu0 %2517
  %v2519 = vsel %vm1235, %v2507, -inf
  %2520 = vmax.xlane.f32.xlu0 %v2519
  %v2521 = vpop.xlane.xlu0 %2520
  %v2522 = vsub.f32 %v2411, %v2512
  %v2523 = vsub.f32 %v2416, %v2515
  %v2524 = vsub.f32 %v2502, %v2518
  %v2525 = vsub.f32 %v2507, %v2521
  %v2526 = vmul.f32 %v2522, 1.442695
  %v2527 = vpow.pop %v2526
  %v2528 = vmul.f32 %v2523, 1.442695
  %v2529 = vpow.pop %v2528
  %v2530 = vmul.f32 %v2524, 1.442695
  %v2531 = vpow.pop %v2530
  %v2532 = vmul.f32 %v2525, 1.442695
  %v2533 = vpow.pop %v2532
  %v2534 = vsel %vm1231, %v2527, 0.0
  %2535 = vadd.xlane.f32.xlu0 %v2534
  %v2536 = vpop.xlane.xlu0 %2535
  %v2537 = vsel %vm1235, %v2529, 0.0
  %2538 = vadd.xlane.f32.xlu0 %v2537
  %v2539 = vpop.xlane.xlu0 %2538
  %v2540 = vsel %vm1231, %v2531, 0.0
  %2541 = vadd.xlane.f32.xlu0 %v2540
  %v2542 = vpop.xlane.xlu0 %2541
  %v2543 = vsel %vm1235, %v2533, 0.0
  %2544 = vadd.xlane.f32.xlu0 %v2543
  %v2545 = vpop.xlane.xlu0 %2544
  %v2546 = vrcp.pop %v2536
  %v2547 = vmul.f32 %v2527, %v2546
  %v2548 = vrcp.pop %v2539
  %v2549 = vmul.f32 %v2529, %v2548
  %v2550 = vrcp.pop %v2542
  %v2551 = vmul.f32 %v2531, %v2550
  %v2552 = vrcp.pop %v2545
  %v2553 = vmul.f32 %v2533, %v2552
  %v2555 = vcombine.high %v218, %v218
  %v2557 = vunpack.c.l.s4 1966171168
  %v2558 = vunpack.c.0.s8 %v2557
  %v2559 = vlaneseq
  %v2560 = vshrl.u32 %v2559, 7
  %v2561 = vsub.s32 %v2558, %v2560
  %v2562 = vrot.slane %v218, %v2561
  %v2564 = vunpack.c.l.s4 1966171168
  %v2565 = vunpack.c.0.s8 %v2564
  %v2566 = vlaneseq
  %v2567 = vshrl.u32 %v2566, 7
  %v2568 = vsub.s32 %v2565, %v2567
  %v2569 = vrot.slane %v2555, %v2568
  %v2570 = vcombine.high %v2562, %v2562
  %v2571 = vcombine.high %v2569, %v2569
  %v2573 = vunpack.c.l.s4 1966171168
  %v2574 = vunpack.c.0.s8 %v2573
  %v2575 = vlaneseq
  %v2576 = vshrl.u32 %v2575, 7
  %v2577 = vsub.s32 %v2574, %v2576
  %v2578 = vrot.slane %v2562, %v2577
  %v2580 = vunpack.c.l.s4 1966171168
  %v2581 = vunpack.c.0.s8 %v2580
  %v2582 = vlaneseq
  %v2583 = vshrl.u32 %v2582, 7
  %v2584 = vsub.s32 %v2581, %v2583
  %v2585 = vrot.slane %v2569, %v2584
  %v2587 = vunpack.c.l.s4 1966171168
  %v2588 = vunpack.c.0.s8 %v2587
  %v2589 = vlaneseq
  %v2590 = vshrl.u32 %v2589, 7
  %v2591 = vsub.s32 %v2588, %v2590
  %v2592 = vrot.slane %v2570, %v2591
  %v2594 = vunpack.c.l.s4 1966171168
  %v2595 = vunpack.c.0.s8 %v2594
  %v2596 = vlaneseq
  %v2597 = vshrl.u32 %v2596, 7
  %v2598 = vsub.s32 %v2595, %v2597
  %v2599 = vrot.slane %v2571, %v2598
  %v2600 = vcombine.high %v2578, %v2578
  %v2601 = vcombine.high %v2585, %v2585
  %v2602 = vcombine.high %v2592, %v2592
  %v2603 = vcombine.high %v2599, %v2599
  %2604 = vrot.lane.b32.xlu0 %v2578, 64
  %v2605 = vpop.permute.xlu0 %2604
  %2606 = vrot.lane.b32.xlu0 %v2592, 64
  %v2607 = vpop.permute.xlu0 %2606
  %2608 = vrot.lane.b32.xlu0 %v2600, 64
  %v2609 = vpop.permute.xlu0 %2608
  %2610 = vrot.lane.b32.xlu0 %v2602, 64
  %v2611 = vpop.permute.xlu0 %2610
  %2612 = vrot.lane.b32.xlu0 %v2585, 64
  %v2613 = vpop.permute.xlu0 %2612
  %2614 = vrot.lane.b32.xlu0 %v2599, 64
  %v2615 = vpop.permute.xlu0 %2614
  %2616 = vrot.lane.b32.xlu0 %v2601, 64
  %v2617 = vpop.permute.xlu0 %2616
  %2618 = vrot.lane.b32.xlu0 %v2603, 64
  %v2619 = vpop.permute.xlu0 %2618
  %v2628 = vmul.f32 %v653, %v2605
  %v2629 = vmul.f32 %v667, %v2607
  %v2630 = vmul.f32 %v675, %v2609
  %v2631 = vmul.f32 %v677, %v2611
  %v2632 = vmul.f32 %v660, %v2613
  %v2633 = vmul.f32 %v674, %v2615
  %v2634 = vmul.f32 %v676, %v2617
  %v2635 = vmul.f32 %v678, %v2619
  %v2636 = vmul.f32 %v702, %v2605
  %v2637 = vmul.f32 %v716, %v2605
  %v2638 = vmul.f32 %v724, %v2607
  %v2639 = vmul.f32 %v726, %v2609
  %v2640 = vmul.f32 %v709, %v2611
  %v2641 = vmul.f32 %v723, %v2613
  %v2642 = vmul.f32 %v725, %v2615
  %v2643 = vmul.f32 %v727, %v2617
  %v2644 = vmul.f32 %v742, %v2619
  %v2645 = vmul.f32 %v749, %v2605
  %v2655 = vcombine.low %v2628, %v2629
  %v2656 = vcombine.low %v2630, %v2631
  %v2657 = vcombine.low %v2632, %v2633
  %v2658 = vcombine.low %v2634, %v2635
  %v2660 = vunpack.c.l.s4 1966171168
  %v2661 = vunpack.c.0.s8 %v2660
  %v2662 = vlaneseq
  %v2663 = vshrl.u32 %v2662, 7
  %v2664 = vsub.s32 %v2661, %v2663
  %v2665 = vrot.slane %v2655, %v2664
  %v2667 = vunpack.c.l.s4 1966171168
  %v2668 = vunpack.c.0.s8 %v2667
  %v2669 = vlaneseq
  %v2670 = vshrl.u32 %v2669, 7
  %v2671 = vsub.s32 %v2668, %v2670
  %v2672 = vrot.slane %v2656, %v2671
  %v2674 = vunpack.c.l.s4 1966171168
  %v2675 = vunpack.c.0.s8 %v2674
  %v2676 = vlaneseq
  %v2677 = vshrl.u32 %v2676, 7
  %v2678 = vsub.s32 %v2675, %v2677
  %v2679 = vrot.slane %v2657, %v2678
  %v2681 = vunpack.c.l.s4 1966171168
  %v2682 = vunpack.c.0.s8 %v2681
  %v2683 = vlaneseq
  %v2684 = vshrl.u32 %v2683, 7
  %v2685 = vsub.s32 %v2682, %v2684
  %v2686 = vrot.slane %v2658, %v2685
  %v2687 = vcombine.low %v2665, %v2672
  %v2688 = vcombine.low %v2679, %v2686
  %v2690 = vunpack.c.l.s4 1966171168
  %v2691 = vunpack.c.0.s8 %v2690
  %v2692 = vlaneseq
  %v2693 = vshrl.u32 %v2692, 7
  %v2694 = vsub.s32 %v2691, %v2693
  %v2695 = vrot.slane %v2687, %v2694
  %v2697 = vunpack.c.l.s4 1966171168
  %v2698 = vunpack.c.0.s8 %v2697
  %v2699 = vlaneseq
  %v2700 = vshrl.u32 %v2699, 7
  %v2701 = vsub.s32 %v2698, %v2700
  %v2702 = vrot.slane %v2688, %v2701
  %v2703 = vcombine.low %v2695, %v2702
  %v2705 = vunpack.c.l.s4 1966171168
  %v2706 = vunpack.c.0.s8 %v2705
  %v2707 = vlaneseq
  %v2708 = vshrl.u32 %v2707, 7
  %v2709 = vsub.s32 %v2706, %v2708
  %v2710 = vrot.slane %v2636, %v2709
  %v2712 = vunpack.c.l.s4 1966171168
  %v2713 = vunpack.c.0.s8 %v2712
  %v2714 = vlaneseq
  %v2715 = vshrl.u32 %v2714, 7
  %v2716 = vsub.s32 %v2713, %v2715
  %v2717 = vrot.slane %v2710, %v2716
  %2718 = vrot.lane.b32.xlu0 %v2703, 64
  %v2719 = vpop.permute.xlu0 %2718
  %2720 = vrot.lane.b32.xlu0 %v2717, 64
  %v2721 = vpop.permute.xlu0 %2720
  %v2724 = vsel %vm1231, %v2547, 0
  %v2727 = vsel %vm1231, %v2549, 0
  %v2729 = vsel %vm1770, %v2721, 0
  %2731 = vmatprep.subr.mxu0 0.0
  %2732 = vmatpush1.msra.mxu0 0.0
  %2733 = vmatprep.subr.mxu0 0.0
  %2734 = vmatpush1.msra.mxu0 0.0
  %2735 = vmatprep.subr.mxu0 0.0
  %2736 = vmatpush1.msra.mxu0 0.0
  %2737 = vmatprep.subr.mxu0 0.0
  %2738 = vmatpush1.msra.mxu0 0.0
  %2739 = vmatprep.subr.mxu0 0.0
  %2740 = vmatpush1.msra.mxu0 0.0
  %2741 = vmatprep.subr.mxu0 0.0
  %2742 = vmatpush1.msra.mxu0 0.0
  %2743 = vmatprep.subr.mxu0 0.0
  %2744 = vmatpush1.msra.mxu0 0.0
  %2745 = vmatprep.subr.mxu0 0.0
  %2746 = vmatpush1.msra.mxu0 0.0
  %2747 = vmatprep.subr.mxu0 0.0
  %2748 = vmatpush1.msra.mxu0 0.0
  %2749 = vmatprep.subr.mxu0 0.0
  %2750 = vmatpush1.msra.mxu0 0.0
  %2751 = vmatprep.subr.mxu0 0.0
  %2752 = vmatpush1.msra.mxu0 0.0
  %2753 = vmatprep.subr.mxu0 0.0
  %2754 = vmatpush1.msra.mxu0 0.0
  %2755 = vmatprep.subr.mxu0 0.0
  %2756 = vmatpush1.msra.mxu0 0.0
  %2757 = vmatprep.subr.mxu0 0.0
  %2758 = vmatpush1.msra.mxu0 0.0
  %2759 = vmatprep.subr.mxu0 0.0
  %2760 = vmatpush1.msra.mxu0 %v2729
  %2761 = vmatprep.subr.mxu0 0.0
  %2762 = vmatpush1.msra.mxu0 %v2719
  %2763 = vmatprep.subr.mxu0 0.0
  %2764 = vmatpush2.msra.mxu0 0.0
  %2765 = vmatprep.subr.mxu0 0.0
  %2766 = vmatpush2.msra.mxu0 0.0
  %2767 = vmatprep.subr.mxu0 0.0
  %2768 = vmatpush2.msra.mxu0 0.0
  %2769 = vmatprep.subr.mxu0 0.0
  %2770 = vmatpush2.msra.mxu0 0.0
  %2771 = vmatprep.subr.mxu0 0.0
  %2772 = vmatpush2.msra.mxu0 0.0
  %2773 = vmatprep.subr.mxu0 0.0
  %2774 = vmatpush2.msra.mxu0 0.0
  %2775 = vmatprep.subr.mxu0 0.0
  %2776 = vmatpush2.msra.mxu0 0.0
  %2777 = vmatprep.subr.mxu0 0.0
  %2778 = vmatpush2.msra.mxu0 0.0
  %2779 = vmatprep.subr.mxu0 0.0
  %2780 = vmatpush2.msra.mxu0 0.0
  %2781 = vmatprep.subr.mxu0 0.0
  %2782 = vmatpush2.msra.mxu0 0.0
  %2783 = vmatprep.subr.mxu0 0.0
  %2784 = vmatpush2.msra.mxu0 0.0
  %2785 = vmatprep.subr.mxu0 0.0
  %2786 = vmatpush2.msra.mxu0 0.0
  %2787 = vmatprep.subr.mxu0 0.0
  %2788 = vmatpush2.msra.mxu0 0.0
  %2789 = vmatprep.subr.mxu0 0.0
  %2790 = vmatpush2.msra.mxu0 0.0
  %2791 = vmatprep.subr.mxu0 0.0
  %2792 = vmatpush2.msra.mxu0 0.0
  %2793 = vmatprep.subr.mxu0 0.0
  %2794 = vmatpush2.msra.mxu0 0.0
  %2795 = vmatprep.mubr.f32.mxu0 0.0
  %2796 = vmatmul.mubr.f32.gmra.mxu0 %v2724
  %v2797 = vpop.f32.mrf.mxu0
  %v2798 = vadd.f32 0.0, %v2797
  %v2799 = vpop.f32.mrf.mxu0
  %2800 = vmatprep.mubr.f32.mxu0 0.0
  %2801 = vmatmul.mubr.f32.gmra.mxu0 %v2727
  %v2802 = vpop.f32.mrf.mxu0
  %v2803 = vadd.f32 0.0, %v2802
  %v2804 = vpop.f32.mrf.mxu0
  %2805 = vdwg.mxu0
  %v2815 = vcombine.low %v2637, %v2638
  %v2816 = vcombine.low %v2639, %v2640
  %v2817 = vcombine.low %v2641, %v2642
  %v2818 = vcombine.low %v2643, %v2644
  %v2820 = vunpack.c.l.s4 1966171168
  %v2821 = vunpack.c.0.s8 %v2820
  %v2822 = vlaneseq
  %v2823 = vshrl.u32 %v2822, 7
  %v2824 = vsub.s32 %v2821, %v2823
  %v2825 = vrot.slane %v2815, %v2824
  %v2827 = vunpack.c.l.s4 1966171168
  %v2828 = vunpack.c.0.s8 %v2827
  %v2829 = vlaneseq
  %v2830 = vshrl.u32 %v2829, 7
  %v2831 = vsub.s32 %v2828, %v2830
  %v2832 = vrot.slane %v2816, %v2831
  %v2834 = vunpack.c.l.s4 1966171168
  %v2835 = vunpack.c.0.s8 %v2834
  %v2836 = vlaneseq
  %v2837 = vshrl.u32 %v2836, 7
  %v2838 = vsub.s32 %v2835, %v2837
  %v2839 = vrot.slane %v2817, %v2838
  %v2841 = vunpack.c.l.s4 1966171168
  %v2842 = vunpack.c.0.s8 %v2841
  %v2843 = vlaneseq
  %v2844 = vshrl.u32 %v2843, 7
  %v2845 = vsub.s32 %v2842, %v2844
  %v2846 = vrot.slane %v2818, %v2845
  %v2847 = vcombine.low %v2825, %v2832
  %v2848 = vcombine.low %v2839, %v2846
  %v2850 = vunpack.c.l.s4 1966171168
  %v2851 = vunpack.c.0.s8 %v2850
  %v2852 = vlaneseq
  %v2853 = vshrl.u32 %v2852, 7
  %v2854 = vsub.s32 %v2851, %v2853
  %v2855 = vrot.slane %v2847, %v2854
  %v2857 = vunpack.c.l.s4 1966171168
  %v2858 = vunpack.c.0.s8 %v2857
  %v2859 = vlaneseq
  %v2860 = vshrl.u32 %v2859, 7
  %v2861 = vsub.s32 %v2858, %v2860
  %v2862 = vrot.slane %v2848, %v2861
  %v2863 = vcombine.low %v2855, %v2862
  %v2865 = vunpack.c.l.s4 1966171168
  %v2866 = vunpack.c.0.s8 %v2865
  %v2867 = vlaneseq
  %v2868 = vshrl.u32 %v2867, 7
  %v2869 = vsub.s32 %v2866, %v2868
  %v2870 = vrot.slane %v2645, %v2869
  %v2872 = vunpack.c.l.s4 1966171168
  %v2873 = vunpack.c.0.s8 %v2872
  %v2874 = vlaneseq
  %v2875 = vshrl.u32 %v2874, 7
  %v2876 = vsub.s32 %v2873, %v2875
  %v2877 = vrot.slane %v2870, %v2876
  %2878 = vrot.lane.b32.xlu0 %v2863, 64
  %v2879 = vpop.permute.xlu0 %2878
  %2880 = vrot.lane.b32.xlu0 %v2877, 64
  %v2881 = vpop.permute.xlu0 %2880
  %v2884 = vsel %vm1231, %v2551, 0
  %v2887 = vsel %vm1231, %v2553, 0
  %v2889 = vsel %vm1770, %v2881, 0
  %2891 = vmatprep.subr.mxu0 0.0
  %2892 = vmatpush1.msra.mxu0 0.0
  %2893 = vmatprep.subr.mxu0 0.0
  %2894 = vmatpush1.msra.mxu0 0.0
  %2895 = vmatprep.subr.mxu0 0.0
  %2896 = vmatpush1.msra.mxu0 0.0
  %2897 = vmatprep.subr.mxu0 0.0
  %2898 = vmatpush1.msra.mxu0 0.0
  %2899 = vmatprep.subr.mxu0 0.0
  %2900 = vmatpush1.msra.mxu0 0.0
  %2901 = vmatprep.subr.mxu0 0.0
  %2902 = vmatpush1.msra.mxu0 0.0
  %2903 = vmatprep.subr.mxu0 0.0
  %2904 = vmatpush1.msra.mxu0 0.0
  %2905 = vmatprep.subr.mxu0 0.0
  %2906 = vmatpush1.msra.mxu0 0.0
  %2907 = vmatprep.subr.mxu0 0.0
  %2908 = vmatpush1.msra.mxu0 0.0
  %2909 = vmatprep.subr.mxu0 0.0
  %2910 = vmatpush1.msra.mxu0 0.0
  %2911 = vmatprep.subr.mxu0 0.0
  %2912 = vmatpush1.msra.mxu0 0.0
  %2913 = vmatprep.subr.mxu0 0.0
  %2914 = vmatpush1.msra.mxu0 0.0
  %2915 = vmatprep.subr.mxu0 0.0
  %2916 = vmatpush1.msra.mxu0 0.0
  %2917 = vmatprep.subr.mxu0 0.0
  %2918 = vmatpush1.msra.mxu0 0.0
  %2919 = vmatprep.subr.mxu0 0.0
  %2920 = vmatpush1.msra.mxu0 %v2889
  %2921 = vmatprep.subr.mxu0 0.0
  %2922 = vmatpush1.msra.mxu0 %v2879
  %2923 = vmatprep.subr.mxu0 0.0
  %2924 = vmatpush2.msra.mxu0 0.0
  %2925 = vmatprep.subr.mxu0 0.0
  %2926 = vmatpush2.msra.mxu0 0.0
  %2927 = vmatprep.subr.mxu0 0.0
  %2928 = vmatpush2.msra.mxu0 0.0
  %2929 = vmatprep.subr.mxu0 0.0
  %2930 = vmatpush2.msra.mxu0 0.0
  %2931 = vmatprep.subr.mxu0 0.0
  %2932 = vmatpush2.msra.mxu0 0.0
  %2933 = vmatprep.subr.mxu0 0.0
  %2934 = vmatpush2.msra.mxu0 0.0
  %2935 = vmatprep.subr.mxu0 0.0
  %2936 = vmatpush2.msra.mxu0 0.0
  %2937 = vmatprep.subr.mxu0 0.0
  %2938 = vmatpush2.msra.mxu0 0.0
  %2939 = vmatprep.subr.mxu0 0.0
  %2940 = vmatpush2.msra.mxu0 0.0
  %2941 = vmatprep.subr.mxu0 0.0
  %2942 = vmatpush2.msra.mxu0 0.0
  %2943 = vmatprep.subr.mxu0 0.0
  %2944 = vmatpush2.msra.mxu0 0.0
  %2945 = vmatprep.subr.mxu0 0.0
  %2946 = vmatpush2.msra.mxu0 0.0
  %2947 = vmatprep.subr.mxu0 0.0
  %2948 = vmatpush2.msra.mxu0 0.0
  %2949 = vmatprep.subr.mxu0 0.0
  %2950 = vmatpush2.msra.mxu0 0.0
  %2951 = vmatprep.subr.mxu0 0.0
  %2952 = vmatpush2.msra.mxu0 0.0
  %2953 = vmatprep.subr.mxu0 0.0
  %2954 = vmatpush2.msra.mxu0 0.0
  %2955 = vmatprep.mubr.f32.mxu0 0.0
  %2956 = vmatmul.mubr.f32.gmra.mxu0 %v2884
  %v2957 = vpop.f32.mrf.mxu0
  %v2958 = vadd.f32 0.0, %v2957
  %v2959 = vpop.f32.mrf.mxu0
  %2960 = vmatprep.mubr.f32.mxu0 0.0
  %2961 = vmatmul.mubr.f32.gmra.mxu0 %v2887
  %v2962 = vpop.f32.mrf.mxu0
  %v2963 = vadd.f32 0.0, %v2962
  %v2964 = vpop.f32.mrf.mxu0
  %2965 = vdwg.mxu0
  %v2966 = vadd.f32 %v2160, %v2798
  %v2967 = vadd.f32 %v2165, %v2803
  %v2968 = vadd.f32 %v2320, %v2958
  %v2969 = vadd.f32 %v2325, %v2963
  %2970 = vrot.lane.b32.xlu0 %v843, 104
  %v2971 = vpop.permute.xlu0 %2970
  %2972 = vrot.lane.b32.xlu0 %v857, 104
  %v2973 = vpop.permute.xlu0 %2972
  %2974 = vrot.lane.b32.xlu0 %v906, 72
  %v2975 = vpop.permute.xlu0 %2974
  %2976 = vrot.lane.b32.xlu0 %v920, 72
  %v2977 = vpop.permute.xlu0 %2976
  %v2978 = vsel %vm925, %v2971, 0
  %v2980 = vsel %vm925, %v2973, 0
  %v2982 = vsel %vm925, %v2975, 0
  %v2984 = vsel %vm925, %v2977, 0
  %2986 = vmatprep.subr.mxu0 0.0
  %2987 = vmatpush1.xpose.msra.mxu0 0.0
  %2988 = vmatprep.subr.mxu0 0.0
  %2989 = vmatpush1.xpose.msra.mxu0 0.0
  %2990 = vmatprep.subr.mxu0 0.0
  %2991 = vmatpush1.xpose.msra.mxu0 0.0
  %2992 = vmatprep.subr.mxu0 0.0
  %2993 = vmatpush1.xpose.msra.mxu0 0.0
  %2994 = vmatprep.subr.mxu0 0.0
  %2995 = vmatpush1.xpose.msra.mxu0 0.0
  %2996 = vmatprep.subr.mxu0 0.0
  %2997 = vmatpush1.xpose.msra.mxu0 0.0
  %2998 = vmatprep.subr.mxu0 0.0
  %2999 = vmatpush1.xpose.msra.mxu0 0.0
  %3000 = vmatprep.subr.mxu0 0.0
  %3001 = vmatpush1.xpose.msra.mxu0 0.0
  %3002 = vmatprep.subr.mxu0 0.0
  %3003 = vmatpush1.xpose.msra.mxu0 0.0
  %3004 = vmatprep.subr.mxu0 0.0
  %3005 = vmatpush1.xpose.msra.mxu0 0.0
  %3006 = vmatprep.subr.mxu0 0.0
  %3007 = vmatpush1.xpose.msra.mxu0 0.0
  %3008 = vmatprep.subr.mxu0 0.0
  %3009 = vmatpush1.xpose.msra.mxu0 0.0
  %3010 = vmatprep.subr.mxu0 0.0
  %3011 = vmatpush1.xpose.msra.mxu0 0.0
  %3012 = vmatprep.subr.mxu0 0.0
  %3013 = vmatpush1.xpose.msra.mxu0 0.0
  %3014 = vmatprep.subr.mxu0 0.0
  %3015 = vmatpush1.xpose.msra.mxu0 %v2984
  %3016 = vmatprep.subr.mxu0 0.0
  %3017 = vmatpush1.xpose.msra.mxu0 %v2982
  %3018 = vmatprep.subr.mxu0 0.0
  %3019 = vmatpush2.xpose.msra.mxu0 0.0
  %3020 = vmatprep.subr.mxu0 0.0
  %3021 = vmatpush2.xpose.msra.mxu0 0.0
  %3022 = vmatprep.subr.mxu0 0.0
  %3023 = vmatpush2.xpose.msra.mxu0 0.0
  %3024 = vmatprep.subr.mxu0 0.0
  %3025 = vmatpush2.xpose.msra.mxu0 0.0
  %3026 = vmatprep.subr.mxu0 0.0
  %3027 = vmatpush2.xpose.msra.mxu0 0.0
  %3028 = vmatprep.subr.mxu0 0.0
  %3029 = vmatpush2.xpose.msra.mxu0 0.0
  %3030 = vmatprep.subr.mxu0 0.0
  %3031 = vmatpush2.xpose.msra.mxu0 0.0
  %3032 = vmatprep.subr.mxu0 0.0
  %3033 = vmatpush2.xpose.msra.mxu0 0.0
  %3034 = vmatprep.subr.mxu0 0.0
  %3035 = vmatpush2.xpose.msra.mxu0 0.0
  %3036 = vmatprep.subr.mxu0 0.0
  %3037 = vmatpush2.xpose.msra.mxu0 0.0
  %3038 = vmatprep.subr.mxu0 0.0
  %3039 = vmatpush2.xpose.msra.mxu0 0.0
  %3040 = vmatprep.subr.mxu0 0.0
  %3041 = vmatpush2.xpose.msra.mxu0 0.0
  %3042 = vmatprep.subr.mxu0 0.0
  %3043 = vmatpush2.xpose.msra.mxu0 0.0
  %3044 = vmatprep.subr.mxu0 0.0
  %3045 = vmatpush2.xpose.msra.mxu0 0.0
  %3046 = vmatprep.subr.mxu0 0.0
  %3047 = vmatpush2.xpose.msra.mxu0 0.0
  %3048 = vmatprep.subr.mxu0 0.0
  %3049 = vmatpush2.xpose.msra.mxu0 0.0
  %3050 = vmatprep.mubr.f32.mxu0 0.0
  %3051 = vmatmul.mubr.f32.gmra.mxu0 %v2978
  %v3052 = vpop.f32.mrf.mxu0
  %v3053 = vadd.f32 %v202, %v3052
  %v3054 = vpop.f32.mrf.mxu0
  %3055 = vmatprep.mubr.f32.mxu0 0.0
  %3056 = vmatmul.mubr.f32.gmra.mxu0 %v2980
  %v3057 = vpop.f32.mrf.mxu0
  %v3058 = vadd.f32 %v203, %v3057
  %v3059 = vpop.f32.mrf.mxu0
  %3060 = vdwg.mxu0
  %3061 = vrot.lane.b32.xlu0 %v1066, 104
  %v3062 = vpop.permute.xlu0 %3061
  %3063 = vrot.lane.b32.xlu0 %v1080, 104
  %v3064 = vpop.permute.xlu0 %3063
  %3065 = vrot.lane.b32.xlu0 %v1129, 72
  %v3066 = vpop.permute.xlu0 %3065
  %3067 = vrot.lane.b32.xlu0 %v1143, 72
  %v3068 = vpop.permute.xlu0 %3067
  %v3069 = vsel %vm925, %v3062, 0
  %v3071 = vsel %vm925, %v3064, 0
  %v3073 = vsel %vm925, %v3066, 0
  %v3075 = vsel %vm925, %v3068, 0
  %3077 = vmatprep.subr.mxu0 0.0
  %3078 = vmatpush1.xpose.msra.mxu0 0.0
  %3079 = vmatprep.subr.mxu0 0.0
  %3080 = vmatpush1.xpose.msra.mxu0 0.0
  %3081 = vmatprep.subr.mxu0 0.0
  %3082 = vmatpush1.xpose.msra.mxu0 0.0
  %3083 = vmatprep.subr.mxu0 0.0
  %3084 = vmatpush1.xpose.msra.mxu0 0.0
  %3085 = vmatprep.subr.mxu0 0.0
  %3086 = vmatpush1.xpose.msra.mxu0 0.0
  %3087 = vmatprep.subr.mxu0 0.0
  %3088 = vmatpush1.xpose.msra.mxu0 0.0
  %3089 = vmatprep.subr.mxu0 0.0
  %3090 = vmatpush1.xpose.msra.mxu0 0.0
  %3091 = vmatprep.subr.mxu0 0.0
  %3092 = vmatpush1.xpose.msra.mxu0 0.0
  %3093 = vmatprep.subr.mxu0 0.0
  %3094 = vmatpush1.xpose.msra.mxu0 0.0
  %3095 = vmatprep.subr.mxu0 0.0
  %3096 = vmatpush1.xpose.msra.mxu0 0.0
  %3097 = vmatprep.subr.mxu0 0.0
  %3098 = vmatpush1.xpose.msra.mxu0 0.0
  %3099 = vmatprep.subr.mxu0 0.0
  %3100 = vmatpush1.xpose.msra.mxu0 0.0
  %3101 = vmatprep.subr.mxu0 0.0
  %3102 = vmatpush1.xpose.msra.mxu0 0.0
  %3103 = vmatprep.subr.mxu0 0.0
  %3104 = vmatpush1.xpose.msra.mxu0 0.0
  %3105 = vmatprep.subr.mxu0 0.0
  %3106 = vmatpush1.xpose.msra.mxu0 %v3075
  %3107 = vmatprep.subr.mxu0 0.0
  %3108 = vmatpush1.xpose.msra.mxu0 %v3073
  %3109 = vmatprep.subr.mxu0 0.0
  %3110 = vmatpush2.xpose.msra.mxu0 0.0
  %3111 = vmatprep.subr.mxu0 0.0
  %3112 = vmatpush2.xpose.msra.mxu0 0.0
  %3113 = vmatprep.subr.mxu0 0.0
  %3114 = vmatpush2.xpose.msra.mxu0 0.0
  %3115 = vmatprep.subr.mxu0 0.0
  %3116 = vmatpush2.xpose.msra.mxu0 0.0
  %3117 = vmatprep.subr.mxu0 0.0
  %3118 = vmatpush2.xpose.msra.mxu0 0.0
  %3119 = vmatprep.subr.mxu0 0.0
  %3120 = vmatpush2.xpose.msra.mxu0 0.0
  %3121 = vmatprep.subr.mxu0 0.0
  %3122 = vmatpush2.xpose.msra.mxu0 0.0
  %3123 = vmatprep.subr.mxu0 0.0
  %3124 = vmatpush2.xpose.msra.mxu0 0.0
  %3125 = vmatprep.subr.mxu0 0.0
  %3126 = vmatpush2.xpose.msra.mxu0 0.0
  %3127 = vmatprep.subr.mxu0 0.0
  %3128 = vmatpush2.xpose.msra.mxu0 0.0
  %3129 = vmatprep.subr.mxu0 0.0
  %3130 = vmatpush2.xpose.msra.mxu0 0.0
  %3131 = vmatprep.subr.mxu0 0.0
  %3132 = vmatpush2.xpose.msra.mxu0 0.0
  %3133 = vmatprep.subr.mxu0 0.0
  %3134 = vmatpush2.xpose.msra.mxu0 0.0
  %3135 = vmatprep.subr.mxu0 0.0
  %3136 = vmatpush2.xpose.msra.mxu0 0.0
  %3137 = vmatprep.subr.mxu0 0.0
  %3138 = vmatpush2.xpose.msra.mxu0 0.0
  %3139 = vmatprep.subr.mxu0 0.0
  %3140 = vmatpush2.xpose.msra.mxu0 0.0
  %3141 = vmatprep.mubr.f32.mxu0 0.0
  %3142 = vmatmul.mubr.f32.gmra.mxu0 %v3069
  %v3143 = vpop.f32.mrf.mxu0
  %v3144 = vadd.f32 %v202, %v3143
  %v3145 = vpop.f32.mrf.mxu0
  %3146 = vmatprep.mubr.f32.mxu0 0.0
  %3147 = vmatmul.mubr.f32.gmra.mxu0 %v3071
  %v3148 = vpop.f32.mrf.mxu0
  %v3149 = vadd.f32 %v203, %v3148
  %v3150 = vpop.f32.mrf.mxu0
  %3151 = vdwg.mxu0
  %v3152 = vsel %vm1231, %v3053, -inf
  %3153 = vmax.xlane.f32.xlu0 %v3152
  %v3154 = vpop.xlane.xlu0 %3153
  %v3155 = vsel %vm1235, %v3058, -inf
  %3156 = vmax.xlane.f32.xlu0 %v3155
  %v3157 = vpop.xlane.xlu0 %3156
  %v3158 = vsel %vm1231, %v3144, -inf
  %3159 = vmax.xlane.f32.xlu0 %v3158
  %v3160 = vpop.xlane.xlu0 %3159
  %v3161 = vsel %vm1235, %v3149, -inf
  %3162 = vmax.xlane.f32.xlu0 %v3161
  %v3163 = vpop.xlane.xlu0 %3162
  %v3164 = vsub.f32 %v3053, %v3154
  %v3165 = vsub.f32 %v3058, %v3157
  %v3166 = vsub.f32 %v3144, %v3160
  %v3167 = vsub.f32 %v3149, %v3163
  %v3168 = vmul.f32 %v3164, 1.442695
  %v3169 = vpow.pop %v3168
  %v3170 = vmul.f32 %v3165, 1.442695
  %v3171 = vpow.pop %v3170
  %v3172 = vmul.f32 %v3166, 1.442695
  %v3173 = vpow.pop %v3172
  %v3174 = vmul.f32 %v3167, 1.442695
  %v3175 = vpow.pop %v3174
  %v3176 = vsel %vm1231, %v3169, 0.0
  %3177 = vadd.xlane.f32.xlu0 %v3176
  %v3178 = vpop.xlane.xlu0 %3177
  %v3179 = vsel %vm1235, %v3171, 0.0
  %3180 = vadd.xlane.f32.xlu0 %v3179
  %v3181 = vpop.xlane.xlu0 %3180
  %v3182 = vsel %vm1231, %v3173, 0.0
  %3183 = vadd.xlane.f32.xlu0 %v3182
  %v3184 = vpop.xlane.xlu0 %3183
  %v3185 = vsel %vm1235, %v3175, 0.0
  %3186 = vadd.xlane.f32.xlu0 %v3185
  %v3187 = vpop.xlane.xlu0 %3186
  %v3188 = vrcp.pop %v3178
  %v3189 = vmul.f32 %v3169, %v3188
  %v3190 = vrcp.pop %v3181
  %v3191 = vmul.f32 %v3171, %v3190
  %v3192 = vrcp.pop %v3184
  %v3193 = vmul.f32 %v3173, %v3192
  %v3194 = vrcp.pop %v3187
  %v3195 = vmul.f32 %v3175, %v3194
  %v3197 = vcombine.high %v223, %v223
  %v3199 = vunpack.c.l.s4 1966171168
  %v3200 = vunpack.c.0.s8 %v3199
  %v3201 = vlaneseq
  %v3202 = vshrl.u32 %v3201, 7
  %v3203 = vsub.s32 %v3200, %v3202
  %v3204 = vrot.slane %v223, %v3203
  %v3206 = vunpack.c.l.s4 1966171168
  %v3207 = vunpack.c.0.s8 %v3206
  %v3208 = vlaneseq
  %v3209 = vshrl.u32 %v3208, 7
  %v3210 = vsub.s32 %v3207, %v3209
  %v3211 = vrot.slane %v3197, %v3210
  %v3212 = vcombine.high %v3204, %v3204
  %v3213 = vcombine.high %v3211, %v3211
  %v3215 = vunpack.c.l.s4 1966171168
  %v3216 = vunpack.c.0.s8 %v3215
  %v3217 = vlaneseq
  %v3218 = vshrl.u32 %v3217, 7
  %v3219 = vsub.s32 %v3216, %v3218
  %v3220 = vrot.slane %v3204, %v3219
  %v3222 = vunpack.c.l.s4 1966171168
  %v3223 = vunpack.c.0.s8 %v3222
  %v3224 = vlaneseq
  %v3225 = vshrl.u32 %v3224, 7
  %v3226 = vsub.s32 %v3223, %v3225
  %v3227 = vrot.slane %v3211, %v3226
  %v3229 = vunpack.c.l.s4 1966171168
  %v3230 = vunpack.c.0.s8 %v3229
  %v3231 = vlaneseq
  %v3232 = vshrl.u32 %v3231, 7
  %v3233 = vsub.s32 %v3230, %v3232
  %v3234 = vrot.slane %v3212, %v3233
  %v3236 = vunpack.c.l.s4 1966171168
  %v3237 = vunpack.c.0.s8 %v3236
  %v3238 = vlaneseq
  %v3239 = vshrl.u32 %v3238, 7
  %v3240 = vsub.s32 %v3237, %v3239
  %v3241 = vrot.slane %v3213, %v3240
  %v3242 = vcombine.high %v3220, %v3220
  %v3243 = vcombine.high %v3227, %v3227
  %v3244 = vcombine.high %v3234, %v3234
  %v3245 = vcombine.high %v3241, %v3241
  %3246 = vrot.lane.b32.xlu0 %v3220, 64
  %v3247 = vpop.permute.xlu0 %3246
  %3248 = vrot.lane.b32.xlu0 %v3234, 64
  %v3249 = vpop.permute.xlu0 %3248
  %3250 = vrot.lane.b32.xlu0 %v3242, 64
  %v3251 = vpop.permute.xlu0 %3250
  %3252 = vrot.lane.b32.xlu0 %v3244, 64
  %v3253 = vpop.permute.xlu0 %3252
  %3254 = vrot.lane.b32.xlu0 %v3227, 64
  %v3255 = vpop.permute.xlu0 %3254
  %3256 = vrot.lane.b32.xlu0 %v3241, 64
  %v3257 = vpop.permute.xlu0 %3256
  %3258 = vrot.lane.b32.xlu0 %v3243, 64
  %v3259 = vpop.permute.xlu0 %3258
  %3260 = vrot.lane.b32.xlu0 %v3245, 64
  %v3261 = vpop.permute.xlu0 %3260
  %v3270 = vmul.f32 %v653, %v3247
  %v3271 = vmul.f32 %v667, %v3249
  %v3272 = vmul.f32 %v675, %v3251
  %v3273 = vmul.f32 %v677, %v3253
  %v3274 = vmul.f32 %v660, %v3255
  %v3275 = vmul.f32 %v674, %v3257
  %v3276 = vmul.f32 %v676, %v3259
  %v3277 = vmul.f32 %v678, %v3261
  %v3278 = vmul.f32 %v702, %v3247
  %v3279 = vmul.f32 %v716, %v3247
  %v3280 = vmul.f32 %v724, %v3249
  %v3281 = vmul.f32 %v726, %v3251
  %v3282 = vmul.f32 %v709, %v3253
  %v3283 = vmul.f32 %v723, %v3255
  %v3284 = vmul.f32 %v725, %v3257
  %v3285 = vmul.f32 %v727, %v3259
  %v3286 = vmul.f32 %v742, %v3261
  %v3287 = vmul.f32 %v749, %v3247
  %v3297 = vcombine.low %v3270, %v3271
  %v3298 = vcombine.low %v3272, %v3273
  %v3299 = vcombine.low %v3274, %v3275
  %v3300 = vcombine.low %v3276, %v3277
  %v3302 = vunpack.c.l.s4 1966171168
  %v3303 = vunpack.c.0.s8 %v3302
  %v3304 = vlaneseq
  %v3305 = vshrl.u32 %v3304, 7
  %v3306 = vsub.s32 %v3303, %v3305
  %v3307 = vrot.slane %v3297, %v3306
  %v3309 = vunpack.c.l.s4 1966171168
  %v3310 = vunpack.c.0.s8 %v3309
  %v3311 = vlaneseq
  %v3312 = vshrl.u32 %v3311, 7
  %v3313 = vsub.s32 %v3310, %v3312
  %v3314 = vrot.slane %v3298, %v3313
  %v3316 = vunpack.c.l.s4 1966171168
  %v3317 = vunpack.c.0.s8 %v3316
  %v3318 = vlaneseq
  %v3319 = vshrl.u32 %v3318, 7
  %v3320 = vsub.s32 %v3317, %v3319
  %v3321 = vrot.slane %v3299, %v3320
  %v3323 = vunpack.c.l.s4 1966171168
  %v3324 = vunpack.c.0.s8 %v3323
  %v3325 = vlaneseq
  %v3326 = vshrl.u32 %v3325, 7
  %v3327 = vsub.s32 %v3324, %v3326
  %v3328 = vrot.slane %v3300, %v3327
  %v3329 = vcombine.low %v3307, %v3314
  %v3330 = vcombine.low %v3321, %v3328
  %v3332 = vunpack.c.l.s4 1966171168
  %v3333 = vunpack.c.0.s8 %v3332
  %v3334 = vlaneseq
  %v3335 = vshrl.u32 %v3334, 7
  %v3336 = vsub.s32 %v3333, %v3335
  %v3337 = vrot.slane %v3329, %v3336
  %v3339 = vunpack.c.l.s4 1966171168
  %v3340 = vunpack.c.0.s8 %v3339
  %v3341 = vlaneseq
  %v3342 = vshrl.u32 %v3341, 7
  %v3343 = vsub.s32 %v3340, %v3342
  %v3344 = vrot.slane %v3330, %v3343
  %v3345 = vcombine.low %v3337, %v3344
  %v3347 = vunpack.c.l.s4 1966171168
  %v3348 = vunpack.c.0.s8 %v3347
  %v3349 = vlaneseq
  %v3350 = vshrl.u32 %v3349, 7
  %v3351 = vsub.s32 %v3348, %v3350
  %v3352 = vrot.slane %v3278, %v3351
  %v3354 = vunpack.c.l.s4 1966171168
  %v3355 = vunpack.c.0.s8 %v3354
  %v3356 = vlaneseq
  %v3357 = vshrl.u32 %v3356, 7
  %v3358 = vsub.s32 %v3355, %v3357
  %v3359 = vrot.slane %v3352, %v3358
  %3360 = vrot.lane.b32.xlu0 %v3345, 64
  %v3361 = vpop.permute.xlu0 %3360
  %3362 = vrot.lane.b32.xlu0 %v3359, 64
  %v3363 = vpop.permute.xlu0 %3362
  %v3366 = vsel %vm1231, %v3189, 0
  %v3369 = vsel %vm1231, %v3191, 0
  %v3371 = vsel %vm1770, %v3363, 0
  %3373 = vmatprep.subr.mxu0 0.0
  %3374 = vmatpush1.msra.mxu0 0.0
  %3375 = vmatprep.subr.mxu0 0.0
  %3376 = vmatpush1.msra.mxu0 0.0
  %3377 = vmatprep.subr.mxu0 0.0
  %3378 = vmatpush1.msra.mxu0 0.0
  %3379 = vmatprep.subr.mxu0 0.0
  %3380 = vmatpush1.msra.mxu0 0.0
  %3381 = vmatprep.subr.mxu0 0.0
  %3382 = vmatpush1.msra.mxu0 0.0
  %3383 = vmatprep.subr.mxu0 0.0
  %3384 = vmatpush1.msra.mxu0 0.0
  %3385 = vmatprep.subr.mxu0 0.0
  %3386 = vmatpush1.msra.mxu0 0.0
  %3387 = vmatprep.subr.mxu0 0.0
  %3388 = vmatpush1.msra.mxu0 0.0
  %3389 = vmatprep.subr.mxu0 0.0
  %3390 = vmatpush1.msra.mxu0 0.0
  %3391 = vmatprep.subr.mxu0 0.0
  %3392 = vmatpush1.msra.mxu0 0.0
  %3393 = vmatprep.subr.mxu0 0.0
  %3394 = vmatpush1.msra.mxu0 0.0
  %3395 = vmatprep.subr.mxu0 0.0
  %3396 = vmatpush1.msra.mxu0 0.0
  %3397 = vmatprep.subr.mxu0 0.0
  %3398 = vmatpush1.msra.mxu0 0.0
  %3399 = vmatprep.subr.mxu0 0.0
  %3400 = vmatpush1.msra.mxu0 0.0
  %3401 = vmatprep.subr.mxu0 0.0
  %3402 = vmatpush1.msra.mxu0 %v3371
  %3403 = vmatprep.subr.mxu0 0.0
  %3404 = vmatpush1.msra.mxu0 %v3361
  %3405 = vmatprep.subr.mxu0 0.0
  %3406 = vmatpush2.msra.mxu0 0.0
  %3407 = vmatprep.subr.mxu0 0.0
  %3408 = vmatpush2.msra.mxu0 0.0
  %3409 = vmatprep.subr.mxu0 0.0
  %3410 = vmatpush2.msra.mxu0 0.0
  %3411 = vmatprep.subr.mxu0 0.0
  %3412 = vmatpush2.msra.mxu0 0.0
  %3413 = vmatprep.subr.mxu0 0.0
  %3414 = vmatpush2.msra.mxu0 0.0
  %3415 = vmatprep.subr.mxu0 0.0
  %3416 = vmatpush2.msra.mxu0 0.0
  %3417 = vmatprep.subr.mxu0 0.0
  %3418 = vmatpush2.msra.mxu0 0.0
  %3419 = vmatprep.subr.mxu0 0.0
  %3420 = vmatpush2.msra.mxu0 0.0
  %3421 = vmatprep.subr.mxu0 0.0
  %3422 = vmatpush2.msra.mxu0 0.0
  %3423 = vmatprep.subr.mxu0 0.0
  %3424 = vmatpush2.msra.mxu0 0.0
  %3425 = vmatprep.subr.mxu0 0.0
  %3426 = vmatpush2.msra.mxu0 0.0
  %3427 = vmatprep.subr.mxu0 0.0
  %3428 = vmatpush2.msra.mxu0 0.0
  %3429 = vmatprep.subr.mxu0 0.0
  %3430 = vmatpush2.msra.mxu0 0.0
  %3431 = vmatprep.subr.mxu0 0.0
  %3432 = vmatpush2.msra.mxu0 0.0
  %3433 = vmatprep.subr.mxu0 0.0
  %3434 = vmatpush2.msra.mxu0 0.0
  %3435 = vmatprep.subr.mxu0 0.0
  %3436 = vmatpush2.msra.mxu0 0.0
  %3437 = vmatprep.mubr.f32.mxu0 0.0
  %3438 = vmatmul.mubr.f32.gmra.mxu0 %v3366
  %v3439 = vpop.f32.mrf.mxu0
  %v3440 = vadd.f32 0.0, %v3439
  %v3441 = vpop.f32.mrf.mxu0
  %3442 = vmatprep.mubr.f32.mxu0 0.0
  %3443 = vmatmul.mubr.f32.gmra.mxu0 %v3369
  %v3444 = vpop.f32.mrf.mxu0
  %v3445 = vadd.f32 0.0, %v3444
  %v3446 = vpop.f32.mrf.mxu0
  %3447 = vdwg.mxu0
  %v3457 = vcombine.low %v3279, %v3280
  %v3458 = vcombine.low %v3281, %v3282
  %v3459 = vcombine.low %v3283, %v3284
  %v3460 = vcombine.low %v3285, %v3286
  %v3462 = vunpack.c.l.s4 1966171168
  %v3463 = vunpack.c.0.s8 %v3462
  %v3464 = vlaneseq
  %v3465 = vshrl.u32 %v3464, 7
  %v3466 = vsub.s32 %v3463, %v3465
  %v3467 = vrot.slane %v3457, %v3466
  %v3469 = vunpack.c.l.s4 1966171168
  %v3470 = vunpack.c.0.s8 %v3469
  %v3471 = vlaneseq
  %v3472 = vshrl.u32 %v3471, 7
  %v3473 = vsub.s32 %v3470, %v3472
  %v3474 = vrot.slane %v3458, %v3473
  %v3476 = vunpack.c.l.s4 1966171168
  %v3477 = vunpack.c.0.s8 %v3476
  %v3478 = vlaneseq
  %v3479 = vshrl.u32 %v3478, 7
  %v3480 = vsub.s32 %v3477, %v3479
  %v3481 = vrot.slane %v3459, %v3480
  %v3483 = vunpack.c.l.s4 1966171168
  %v3484 = vunpack.c.0.s8 %v3483
  %v3485 = vlaneseq
  %v3486 = vshrl.u32 %v3485, 7
  %v3487 = vsub.s32 %v3484, %v3486
  %v3488 = vrot.slane %v3460, %v3487
  %v3489 = vcombine.low %v3467, %v3474
  %v3490 = vcombine.low %v3481, %v3488
  %v3492 = vunpack.c.l.s4 1966171168
  %v3493 = vunpack.c.0.s8 %v3492
  %v3494 = vlaneseq
  %v3495 = vshrl.u32 %v3494, 7
  %v3496 = vsub.s32 %v3493, %v3495
  %v3497 = vrot.slane %v3489, %v3496
  %v3499 = vunpack.c.l.s4 1966171168
  %v3500 = vunpack.c.0.s8 %v3499
  %v3501 = vlaneseq
  %v3502 = vshrl.u32 %v3501, 7
  %v3503 = vsub.s32 %v3500, %v3502
  %v3504 = vrot.slane %v3490, %v3503
  %v3505 = vcombine.low %v3497, %v3504
  %v3507 = vunpack.c.l.s4 1966171168
  %v3508 = vunpack.c.0.s8 %v3507
  %v3509 = vlaneseq
  %v3510 = vshrl.u32 %v3509, 7
  %v3511 = vsub.s32 %v3508, %v3510
  %v3512 = vrot.slane %v3287, %v3511
  %v3514 = vunpack.c.l.s4 1966171168
  %v3515 = vunpack.c.0.s8 %v3514
  %v3516 = vlaneseq
  %v3517 = vshrl.u32 %v3516, 7
  %v3518 = vsub.s32 %v3515, %v3517
  %v3519 = vrot.slane %v3512, %v3518
  %3520 = vrot.lane.b32.xlu0 %v3505, 64
  %v3521 = vpop.permute.xlu0 %3520
  %3522 = vrot.lane.b32.xlu0 %v3519, 64
  %v3523 = vpop.permute.xlu0 %3522
  %v3526 = vsel %vm1231, %v3193, 0
  %v3529 = vsel %vm1231, %v3195, 0
  %v3531 = vsel %vm1770, %v3523, 0
  %3533 = vmatprep.subr.mxu0 0.0
  %3534 = vmatpush1.msra.mxu0 0.0
  %3535 = vmatprep.subr.mxu0 0.0
  %3536 = vmatpush1.msra.mxu0 0.0
  %3537 = vmatprep.subr.mxu0 0.0
  %3538 = vmatpush1.msra.mxu0 0.0
  %3539 = vmatprep.subr.mxu0 0.0
  %3540 = vmatpush1.msra.mxu0 0.0
  %3541 = vmatprep.subr.mxu0 0.0
  %3542 = vmatpush1.msra.mxu0 0.0
  %3543 = vmatprep.subr.mxu0 0.0
  %3544 = vmatpush1.msra.mxu0 0.0
  %3545 = vmatprep.subr.mxu0 0.0
  %3546 = vmatpush1.msra.mxu0 0.0
  %3547 = vmatprep.subr.mxu0 0.0
  %3548 = vmatpush1.msra.mxu0 0.0
  %3549 = vmatprep.subr.mxu0 0.0
  %3550 = vmatpush1.msra.mxu0 0.0
  %3551 = vmatprep.subr.mxu0 0.0
  %3552 = vmatpush1.msra.mxu0 0.0
  %3553 = vmatprep.subr.mxu0 0.0
  %3554 = vmatpush1.msra.mxu0 0.0
  %3555 = vmatprep.subr.mxu0 0.0
  %3556 = vmatpush1.msra.mxu0 0.0
  %3557 = vmatprep.subr.mxu0 0.0
  %3558 = vmatpush1.msra.mxu0 0.0
  %3559 = vmatprep.subr.mxu0 0.0
  %3560 = vmatpush1.msra.mxu0 0.0
  %3561 = vmatprep.subr.mxu0 0.0
  %3562 = vmatpush1.msra.mxu0 %v3531
  %3563 = vmatprep.subr.mxu0 0.0
  %3564 = vmatpush1.msra.mxu0 %v3521
  %3565 = vmatprep.subr.mxu0 0.0
  %3566 = vmatpush2.msra.mxu0 0.0
  %3567 = vmatprep.subr.mxu0 0.0
  %3568 = vmatpush2.msra.mxu0 0.0
  %3569 = vmatprep.subr.mxu0 0.0
  %3570 = vmatpush2.msra.mxu0 0.0
  %3571 = vmatprep.subr.mxu0 0.0
  %3572 = vmatpush2.msra.mxu0 0.0
  %3573 = vmatprep.subr.mxu0 0.0
  %3574 = vmatpush2.msra.mxu0 0.0
  %3575 = vmatprep.subr.mxu0 0.0
  %3576 = vmatpush2.msra.mxu0 0.0
  %3577 = vmatprep.subr.mxu0 0.0
  %3578 = vmatpush2.msra.mxu0 0.0
  %3579 = vmatprep.subr.mxu0 0.0
  %3580 = vmatpush2.msra.mxu0 0.0
  %3581 = vmatprep.subr.mxu0 0.0
  %3582 = vmatpush2.msra.mxu0 0.0
  %3583 = vmatprep.subr.mxu0 0.0
  %3584 = vmatpush2.msra.mxu0 0.0
  %3585 = vmatprep.subr.mxu0 0.0
  %3586 = vmatpush2.msra.mxu0 0.0
  %3587 = vmatprep.subr.mxu0 0.0
  %3588 = vmatpush2.msra.mxu0 0.0
  %3589 = vmatprep.subr.mxu0 0.0
  %3590 = vmatpush2.msra.mxu0 0.0
  %3591 = vmatprep.subr.mxu0 0.0
  %3592 = vmatpush2.msra.mxu0 0.0
  %3593 = vmatprep.subr.mxu0 0.0
  %3594 = vmatpush2.msra.mxu0 0.0
  %3595 = vmatprep.subr.mxu0 0.0
  %3596 = vmatpush2.msra.mxu0 0.0
  %3597 = vmatprep.mubr.f32.mxu0 0.0
  %3598 = vmatmul.mubr.f32.gmra.mxu0 %v3526
  %v3599 = vpop.f32.mrf.mxu0
  %v3600 = vadd.f32 0.0, %v3599
  %v3601 = vpop.f32.mrf.mxu0
  %3602 = vmatprep.mubr.f32.mxu0 0.0
  %3603 = vmatmul.mubr.f32.gmra.mxu0 %v3529
  %v3604 = vpop.f32.mrf.mxu0
  %v3605 = vadd.f32 0.0, %v3604
  %v3606 = vpop.f32.mrf.mxu0
  %3607 = vdwg.mxu0
  %v3608 = vadd.f32 %v2966, %v3440
  %v3609 = vadd.f32 %v2967, %v3445
  %v3610 = vadd.f32 %v2968, %v3600
  %v3611 = vadd.f32 %v2969, %v3605
  %v3616 = vcombine.high %v3608, %v3608
  %v3618 = vunpack.c.l.s4 1966171168
  %v3619 = vunpack.c.0.s8 %v3618
  %v3620 = vlaneseq
  %v3621 = vshrl.u32 %v3620, 7
  %v3622 = vsub.s32 %v3619, %v3621
  %v3623 = vrot.slane %v3608, %v3622
  %v3625 = vunpack.c.l.s4 1966171168
  %v3626 = vunpack.c.0.s8 %v3625
  %v3627 = vlaneseq
  %v3628 = vshrl.u32 %v3627, 7
  %v3629 = vsub.s32 %v3626, %v3628
  %v3630 = vrot.slane %v3616, %v3629
  %v3631 = vcombine.high %v3623, %v3623
  %v3632 = vcombine.high %v3630, %v3630
  %v3634 = vunpack.c.l.s4 1966171168
  %v3635 = vunpack.c.0.s8 %v3634
  %v3636 = vlaneseq
  %v3637 = vshrl.u32 %v3636, 7
  %v3638 = vsub.s32 %v3635, %v3637
  %v3639 = vrot.slane %v3623, %v3638
  %v3641 = vunpack.c.l.s4 1966171168
  %v3642 = vunpack.c.0.s8 %v3641
  %v3643 = vlaneseq
  %v3644 = vshrl.u32 %v3643, 7
  %v3645 = vsub.s32 %v3642, %v3644
  %v3646 = vrot.slane %v3630, %v3645
  %v3648 = vunpack.c.l.s4 1966171168
  %v3649 = vunpack.c.0.s8 %v3648
  %v3650 = vlaneseq
  %v3651 = vshrl.u32 %v3650, 7
  %v3652 = vsub.s32 %v3649, %v3651
  %v3653 = vrot.slane %v3631, %v3652
  %v3655 = vunpack.c.l.s4 1966171168
  %v3656 = vunpack.c.0.s8 %v3655
  %v3657 = vlaneseq
  %v3658 = vshrl.u32 %v3657, 7
  %v3659 = vsub.s32 %v3656, %v3658
  %v3660 = vrot.slane %v3632, %v3659
  %v3661 = vcombine.high %v3639, %v3639
  %v3662 = vcombine.high %v3646, %v3646
  %v3663 = vcombine.high %v3653, %v3653
  %v3664 = vcombine.high %v3660, %v3660
  %v3666 = vunpack.c.l.s4 1966171168
  %v3667 = vunpack.c.0.s8 %v3666
  %v3668 = vlaneseq
  %v3669 = vshrl.u32 %v3668, 7
  %v3670 = vsub.s32 %v3667, %v3669
  %v3671 = vrot.slane %v3609, %v3670
  %v3673 = vunpack.c.l.s4 1966171168
  %v3674 = vunpack.c.0.s8 %v3673
  %v3675 = vlaneseq
  %v3676 = vshrl.u32 %v3675, 7
  %v3677 = vsub.s32 %v3674, %v3676
  %v3678 = vrot.slane %v3671, %v3677
  %v3679 = vcombine.high %v3610, %v3610
  %v3681 = vunpack.c.l.s4 1966171168
  %v3682 = vunpack.c.0.s8 %v3681
  %v3683 = vlaneseq
  %v3684 = vshrl.u32 %v3683, 7
  %v3685 = vsub.s32 %v3682, %v3684
  %v3686 = vrot.slane %v3610, %v3685
  %v3688 = vunpack.c.l.s4 1966171168
  %v3689 = vunpack.c.0.s8 %v3688
  %v3690 = vlaneseq
  %v3691 = vshrl.u32 %v3690, 7
  %v3692 = vsub.s32 %v3689, %v3691
  %v3693 = vrot.slane %v3679, %v3692
  %v3694 = vcombine.high %v3686, %v3686
  %v3695 = vcombine.high %v3693, %v3693
  %v3697 = vunpack.c.l.s4 1966171168
  %v3698 = vunpack.c.0.s8 %v3697
  %v3699 = vlaneseq
  %v3700 = vshrl.u32 %v3699, 7
  %v3701 = vsub.s32 %v3698, %v3700
  %v3702 = vrot.slane %v3686, %v3701
  %v3704 = vunpack.c.l.s4 1966171168
  %v3705 = vunpack.c.0.s8 %v3704
  %v3706 = vlaneseq
  %v3707 = vshrl.u32 %v3706, 7
  %v3708 = vsub.s32 %v3705, %v3707
  %v3709 = vrot.slane %v3693, %v3708
  %v3711 = vunpack.c.l.s4 1966171168
  %v3712 = vunpack.c.0.s8 %v3711
  %v3713 = vlaneseq
  %v3714 = vshrl.u32 %v3713, 7
  %v3715 = vsub.s32 %v3712, %v3714
  %v3716 = vrot.slane %v3694, %v3715
  %v3718 = vunpack.c.l.s4 1966171168
  %v3719 = vunpack.c.0.s8 %v3718
  %v3720 = vlaneseq
  %v3721 = vshrl.u32 %v3720, 7
  %v3722 = vsub.s32 %v3719, %v3721
  %v3723 = vrot.slane %v3695, %v3722
  %v3724 = vcombine.high %v3702, %v3702
  %v3725 = vcombine.high %v3709, %v3709
  %v3726 = vcombine.high %v3716, %v3716
  %v3727 = vcombine.high %v3723, %v3723
  %v3729 = vunpack.c.l.s4 1966171168
  %v3730 = vunpack.c.0.s8 %v3729
  %v3731 = vlaneseq
  %v3732 = vshrl.u32 %v3731, 7
  %v3733 = vsub.s32 %v3730, %v3732
  %v3734 = vrot.slane %v3611, %v3733
  %v3736 = vunpack.c.l.s4 1966171168
  %v3737 = vunpack.c.0.s8 %v3736
  %v3738 = vlaneseq
  %v3739 = vshrl.u32 %v3738, 7
  %v3740 = vsub.s32 %v3737, %v3739
  %v3741 = vrot.slane %v3734, %v3740
  %v3742 = vld [vmem:[%s5] sm:$0xff]
  %v3743 = vld [vmem:[%s5 + $0x8] sm:$0xff]
  %v3744 = vld [vmem:[%s5 + $0x10] sm:$0xff]
  %v3745 = vld [vmem:[%s5 + $0x18] sm:$0xff]
  %v3746 = vld [vmem:[%s6] sm:$0x1]
  %v3748 = vlaneseq
  %v3749 = vshrl.u32 %v3748, 7
  %v3750 = vsub.s32 0, %v3749
  %v3751 = vrot.slane %v3746, %v3750
  %v3753 = vcombine.low %v3639, %v3653
  %v3754 = vcombine.low %v3661, %v3663
  %v3755 = vcombine.low %v3646, %v3660
  %v3756 = vcombine.low %v3662, %v3664
  %v3758 = vunpack.c.l.s4 1966171168
  %v3759 = vunpack.c.0.s8 %v3758
  %v3760 = vlaneseq
  %v3761 = vshrl.u32 %v3760, 7
  %v3762 = vsub.s32 %v3759, %v3761
  %v3763 = vrot.slane %v3753, %v3762
  %v3765 = vunpack.c.l.s4 1966171168
  %v3766 = vunpack.c.0.s8 %v3765
  %v3767 = vlaneseq
  %v3768 = vshrl.u32 %v3767, 7
  %v3769 = vsub.s32 %v3766, %v3768
  %v3770 = vrot.slane %v3754, %v3769
  %v3772 = vunpack.c.l.s4 1966171168
  %v3773 = vunpack.c.0.s8 %v3772
  %v3774 = vlaneseq
  %v3775 = vshrl.u32 %v3774, 7
  %v3776 = vsub.s32 %v3773, %v3775
  %v3777 = vrot.slane %v3755, %v3776
  %v3779 = vunpack.c.l.s4 1966171168
  %v3780 = vunpack.c.0.s8 %v3779
  %v3781 = vlaneseq
  %v3782 = vshrl.u32 %v3781, 7
  %v3783 = vsub.s32 %v3780, %v3782
  %v3784 = vrot.slane %v3756, %v3783
  %v3785 = vcombine.low %v3763, %v3770
  %v3786 = vcombine.low %v3777, %v3784
  %v3788 = vunpack.c.l.s4 1966171168
  %v3789 = vunpack.c.0.s8 %v3788
  %v3790 = vlaneseq
  %v3791 = vshrl.u32 %v3790, 7
  %v3792 = vsub.s32 %v3789, %v3791
  %v3793 = vrot.slane %v3785, %v3792
  %v3795 = vunpack.c.l.s4 1966171168
  %v3796 = vunpack.c.0.s8 %v3795
  %v3797 = vlaneseq
  %v3798 = vshrl.u32 %v3797, 7
  %v3799 = vsub.s32 %v3796, %v3798
  %v3800 = vrot.slane %v3786, %v3799
  %v3801 = vcombine.low %v3793, %v3800
  %v3802 = vcombine.low %v3678, %v3702
  %v3803 = vcombine.low %v3716, %v3724
  %v3804 = vcombine.low %v3726, %v3709
  %v3805 = vcombine.low %v3723, %v3725
  %v3807 = vunpack.c.l.s4 1966171168
  %v3808 = vunpack.c.0.s8 %v3807
  %v3809 = vlaneseq
  %v3810 = vshrl.u32 %v3809, 7
  %v3811 = vsub.s32 %v3808, %v3810
  %v3812 = vrot.slane %v3802, %v3811
  %v3814 = vunpack.c.l.s4 1966171168
  %v3815 = vunpack.c.0.s8 %v3814
  %v3816 = vlaneseq
  %v3817 = vshrl.u32 %v3816, 7
  %v3818 = vsub.s32 %v3815, %v3817
  %v3819 = vrot.slane %v3803, %v3818
  %v3821 = vunpack.c.l.s4 1966171168
  %v3822 = vunpack.c.0.s8 %v3821
  %v3823 = vlaneseq
  %v3824 = vshrl.u32 %v3823, 7
  %v3825 = vsub.s32 %v3822, %v3824
  %v3826 = vrot.slane %v3804, %v3825
  %v3828 = vunpack.c.l.s4 1966171168
  %v3829 = vunpack.c.0.s8 %v3828
  %v3830 = vlaneseq
  %v3831 = vshrl.u32 %v3830, 7
  %v3832 = vsub.s32 %v3829, %v3831
  %v3833 = vrot.slane %v3805, %v3832
  %v3834 = vcombine.low %v3812, %v3819
  %v3835 = vcombine.low %v3826, %v3833
  %v3837 = vunpack.c.l.s4 1966171168
  %v3838 = vunpack.c.0.s8 %v3837
  %v3839 = vlaneseq
  %v3840 = vshrl.u32 %v3839, 7
  %v3841 = vsub.s32 %v3838, %v3840
  %v3842 = vrot.slane %v3834, %v3841
  %v3844 = vunpack.c.l.s4 1966171168
  %v3845 = vunpack.c.0.s8 %v3844
  %v3846 = vlaneseq
  %v3847 = vshrl.u32 %v3846, 7
  %v3848 = vsub.s32 %v3845, %v3847
  %v3849 = vrot.slane %v3835, %v3848
  %v3850 = vcombine.low %v3842, %v3849
  %v3851 = vcombine.low %v3727, %v3741
  %v3853 = vunpack.c.l.s4 1966171168
  %v3854 = vunpack.c.0.s8 %v3853
  %v3855 = vlaneseq
  %v3856 = vshrl.u32 %v3855, 7
  %v3857 = vsub.s32 %v3854, %v3856
  %v3858 = vrot.slane %v3851, %v3857
  %v3860 = vunpack.c.l.s4 1966171168
  %v3861 = vunpack.c.0.s8 %v3860
  %v3862 = vlaneseq
  %v3863 = vshrl.u32 %v3862, 7
  %v3864 = vsub.s32 %v3861, %v3863
  %v3865 = vrot.slane %v3858, %v3864
  %v3866 = vsel %vm504, %v3801, 0
  %v3868 = vsel %vm504, %v3850, 0
  %v3870 = vsel %vm504, %v3865, 0
  %v3873 = vsel %vm504, %v3742, 0
  %v3876 = vsel %vm504, %v3743, 0
  %v3879 = vsel %vm504, %v3744, 0
  %v3882 = vsel %vm504, %v3745, 0
  %3884 = vmatprep.subr.mxu0 0.0
  %3885 = vmatpush1.xpose.msra.mxu0 0.0
  %3886 = vmatprep.subr.mxu0 0.0
  %3887 = vmatpush1.xpose.msra.mxu0 0.0
  %3888 = vmatprep.subr.mxu0 0.0
  %3889 = vmatpush1.xpose.msra.mxu0 0.0
  %3890 = vmatprep.subr.mxu0 0.0
  %3891 = vmatpush1.xpose.msra.mxu0 0.0
  %3892 = vmatprep.subr.mxu0 0.0
  %3893 = vmatpush1.xpose.msra.mxu0 0.0
  %3894 = vmatprep.subr.mxu0 0.0
  %3895 = vmatpush1.xpose.msra.mxu0 0.0
  %3896 = vmatprep.subr.mxu0 0.0
  %3897 = vmatpush1.xpose.msra.mxu0 0.0
  %3898 = vmatprep.subr.mxu0 0.0
  %3899 = vmatpush1.xpose.msra.mxu0 0.0
  %3900 = vmatprep.subr.mxu0 0.0
  %3901 = vmatpush1.xpose.msra.mxu0 0.0
  %3902 = vmatprep.subr.mxu0 0.0
  %3903 = vmatpush1.xpose.msra.mxu0 0.0
  %3904 = vmatprep.subr.mxu0 0.0
  %3905 = vmatpush1.xpose.msra.mxu0 0.0
  %3906 = vmatprep.subr.mxu0 0.0
  %3907 = vmatpush1.xpose.msra.mxu0 0.0
  %3908 = vmatprep.subr.mxu0 0.0
  %3909 = vmatpush1.xpose.msra.mxu0 %v3882
  %3910 = vmatprep.subr.mxu0 0.0
  %3911 = vmatpush1.xpose.msra.mxu0 %v3879
  %3912 = vmatprep.subr.mxu0 0.0
  %3913 = vmatpush1.xpose.msra.mxu0 %v3876
  %3914 = vmatprep.subr.mxu0 0.0
  %3915 = vmatpush1.xpose.msra.mxu0 %v3873
  %3916 = vmatprep.subr.mxu0 0.0
  %3917 = vmatpush2.xpose.msra.mxu0 0.0
  %3918 = vmatprep.subr.mxu0 0.0
  %3919 = vmatpush2.xpose.msra.mxu0 0.0
  %3920 = vmatprep.subr.mxu0 0.0
  %3921 = vmatpush2.xpose.msra.mxu0 0.0
  %3922 = vmatprep.subr.mxu0 0.0
  %3923 = vmatpush2.xpose.msra.mxu0 0.0
  %3924 = vmatprep.subr.mxu0 0.0
  %3925 = vmatpush2.xpose.msra.mxu0 0.0
  %3926 = vmatprep.subr.mxu0 0.0
  %3927 = vmatpush2.xpose.msra.mxu0 0.0
  %3928 = vmatprep.subr.mxu0 0.0
  %3929 = vmatpush2.xpose.msra.mxu0 0.0
  %3930 = vmatprep.subr.mxu0 0.0
  %3931 = vmatpush2.xpose.msra.mxu0 0.0
  %3932 = vmatprep.subr.mxu0 0.0
  %3933 = vmatpush2.xpose.msra.mxu0 0.0
  %3934 = vmatprep.subr.mxu0 0.0
  %3935 = vmatpush2.xpose.msra.mxu0 0.0
  %3936 = vmatprep.subr.mxu0 0.0
  %3937 = vmatpush2.xpose.msra.mxu0 0.0
  %3938 = vmatprep.subr.mxu0 0.0
  %3939 = vmatpush2.xpose.msra.mxu0 0.0
  %3940 = vmatprep.subr.mxu0 0.0
  %3941 = vmatpush2.xpose.msra.mxu0 0.0
  %3942 = vmatprep.subr.mxu0 0.0
  %3943 = vmatpush2.xpose.msra.mxu0 0.0
  %3944 = vmatprep.subr.mxu0 0.0
  %3945 = vmatpush2.xpose.msra.mxu0 0.0
  %3946 = vmatprep.subr.mxu0 0.0
  %3947 = vmatpush2.xpose.msra.mxu0 0.0
  %3948 = vmatprep.mubr.f32.mxu0 0.0
  %3949 = vmatmul.mubr.f32.gmra.mxu0 %v3866
  %v3950 = vpop.f32.mrf.mxu0
  %v3951 = vadd.f32 %v3751, %v3950
  %v3952 = vpop.f32.mrf.mxu0
  %3953 = vmatprep.mubr.f32.mxu0 0.0
  %3954 = vmatmul.mubr.f32.gmra.mxu0 %v3868
  %v3955 = vpop.f32.mrf.mxu0
  %v3956 = vadd.f32 %v3751, %v3955
  %v3957 = vpop.f32.mrf.mxu0
  %3958 = vmatprep.mubr.f32.mxu0 0.0
  %3959 = vmatmul.mubr.f32.gmra.mxu0 %v3870
  %v3960 = vpop.f32.mrf.mxu0
  %v3961 = vadd.f32 %v3751, %v3960
  %v3962 = vpop.f32.mrf.mxu0
  %3963 = vdwg.mxu0
  %v3967 = vcombine.high %v3951, %v3951
  %v3969 = vunpack.c.l.s4 1966171168
  %v3970 = vunpack.c.0.s8 %v3969
  %v3971 = vlaneseq
  %v3972 = vshrl.u32 %v3971, 7
  %v3973 = vsub.s32 %v3970, %v3972
  %v3974 = vrot.slane %v3951, %v3973
  %v3976 = vunpack.c.l.s4 1966171168
  %v3977 = vunpack.c.0.s8 %v3976
  %v3978 = vlaneseq
  %v3979 = vshrl.u32 %v3978, 7
  %v3980 = vsub.s32 %v3977, %v3979
  %v3981 = vrot.slane %v3967, %v3980
  %v3982 = vcombine.high %v3974, %v3974
  %v3983 = vcombine.high %v3981, %v3981
  %v3985 = vunpack.c.l.s4 1966171168
  %v3986 = vunpack.c.0.s8 %v3985
  %v3987 = vlaneseq
  %v3988 = vshrl.u32 %v3987, 7
  %v3989 = vsub.s32 %v3986, %v3988
  %v3990 = vrot.slane %v3974, %v3989
  %v3992 = vunpack.c.l.s4 1966171168
  %v3993 = vunpack.c.0.s8 %v3992
  %v3994 = vlaneseq
  %v3995 = vshrl.u32 %v3994, 7
  %v3996 = vsub.s32 %v3993, %v3995
  %v3997 = vrot.slane %v3981, %v3996
  %v3999 = vunpack.c.l.s4 1966171168
  %v4000 = vunpack.c.0.s8 %v3999
  %v4001 = vlaneseq
  %v4002 = vshrl.u32 %v4001, 7
  %v4003 = vsub.s32 %v4000, %v4002
  %v4004 = vrot.slane %v3982, %v4003
  %v4006 = vunpack.c.l.s4 1966171168
  %v4007 = vunpack.c.0.s8 %v4006
  %v4008 = vlaneseq
  %v4009 = vshrl.u32 %v4008, 7
  %v4010 = vsub.s32 %v4007, %v4009
  %v4011 = vrot.slane %v3983, %v4010
  %v4012 = vcombine.high %v3990, %v3990
  %v4013 = vcombine.high %v3997, %v3997
  %v4014 = vcombine.high %v4004, %v4004
  %v4015 = vcombine.high %v4011, %v4011
  %v4016 = vcombine.high %v3956, %v3956
  %v4018 = vunpack.c.l.s4 1966171168
  %v4019 = vunpack.c.0.s8 %v4018
  %v4020 = vlaneseq
  %v4021 = vshrl.u32 %v4020, 7
  %v4022 = vsub.s32 %v4019, %v4021
  %v4023 = vrot.slane %v3956, %v4022
  %v4025 = vunpack.c.l.s4 1966171168
  %v4026 = vunpack.c.0.s8 %v4025
  %v4027 = vlaneseq
  %v4028 = vshrl.u32 %v4027, 7
  %v4029 = vsub.s32 %v4026, %v4028
  %v4030 = vrot.slane %v4016, %v4029
  %v4031 = vcombine.high %v4023, %v4023
  %v4032 = vcombine.high %v4030, %v4030
  %v4034 = vunpack.c.l.s4 1966171168
  %v4035 = vunpack.c.0.s8 %v4034
  %v4036 = vlaneseq
  %v4037 = vshrl.u32 %v4036, 7
  %v4038 = vsub.s32 %v4035, %v4037
  %v4039 = vrot.slane %v4023, %v4038
  %v4041 = vunpack.c.l.s4 1966171168
  %v4042 = vunpack.c.0.s8 %v4041
  %v4043 = vlaneseq
  %v4044 = vshrl.u32 %v4043, 7
  %v4045 = vsub.s32 %v4042, %v4044
  %v4046 = vrot.slane %v4030, %v4045
  %v4048 = vunpack.c.l.s4 1966171168
  %v4049 = vunpack.c.0.s8 %v4048
  %v4050 = vlaneseq
  %v4051 = vshrl.u32 %v4050, 7
  %v4052 = vsub.s32 %v4049, %v4051
  %v4053 = vrot.slane %v4031, %v4052
  %v4055 = vunpack.c.l.s4 1966171168
  %v4056 = vunpack.c.0.s8 %v4055
  %v4057 = vlaneseq
  %v4058 = vshrl.u32 %v4057, 7
  %v4059 = vsub.s32 %v4056, %v4058
  %v4060 = vrot.slane %v4032, %v4059
  %v4061 = vcombine.high %v4039, %v4039
  %v4062 = vcombine.high %v4046, %v4046
  %v4063 = vcombine.high %v4053, %v4053
  %v4064 = vcombine.high %v4060, %v4060
  %v4066 = vunpack.c.l.s4 1966171168
  %v4067 = vunpack.c.0.s8 %v4066
  %v4068 = vlaneseq
  %v4069 = vshrl.u32 %v4068, 7
  %v4070 = vsub.s32 %v4067, %v4069
  %v4071 = vrot.slane %v3961, %v4070
  %v4072 = vcombine.high %v4071, %v4071
  %v4074 = vunpack.c.l.s4 1966171168
  %v4075 = vunpack.c.0.s8 %v4074
  %v4076 = vlaneseq
  %v4077 = vshrl.u32 %v4076, 7
  %v4078 = vsub.s32 %v4075, %v4077
  %v4079 = vrot.slane %v4071, %v4078
  %v4081 = vunpack.c.l.s4 1966171168
  %v4082 = vunpack.c.0.s8 %v4081
  %v4083 = vlaneseq
  %v4084 = vshrl.u32 %v4083, 7
  %v4085 = vsub.s32 %v4082, %v4084
  %v4086 = vrot.slane %v4072, %v4085
  %v4105 = vadd.f32 %v251, %v3990
  %v4106 = vadd.f32 %v265, %v4004
  %v4107 = vadd.f32 %v273, %v4012
  %v4108 = vadd.f32 %v275, %v4014
  %v4109 = vadd.f32 %v258, %v3997
  %v4110 = vadd.f32 %v272, %v4011
  %v4111 = vadd.f32 %v274, %v4013
  %v4112 = vadd.f32 %v276, %v4015
  %v4113 = vadd.f32 %v290, %v4039
  %v4114 = vadd.f32 %v314, %v4053
  %v4115 = vadd.f32 %v328, %v4061
  %v4116 = vadd.f32 %v336, %v4063
  %v4117 = vadd.f32 %v338, %v4046
  %v4118 = vadd.f32 %v321, %v4060
  %v4119 = vadd.f32 %v335, %v4062
  %v4120 = vadd.f32 %v337, %v4064
  %v4121 = vadd.f32 %v339, %v4079
  %v4122 = vadd.f32 %v353, %v4086
  %v4123 = vld [vmem:[%s7] sm:$0x1]
  %v4124 = vld [vmem:[%s8] sm:$0x1]
  %v4143 = vcombine.low %v4105, %v4106
  %v4144 = vcombine.low %v4107, %v4108
  %v4145 = vcombine.low %v4109, %v4110
  %v4146 = vcombine.low %v4111, %v4112
  %v4148 = vunpack.c.l.s4 1966171168
  %v4149 = vunpack.c.0.s8 %v4148
  %v4150 = vlaneseq
  %v4151 = vshrl.u32 %v4150, 7
  %v4152 = vsub.s32 %v4149, %v4151
  %v4153 = vrot.slane %v4143, %v4152
  %v4155 = vunpack.c.l.s4 1966171168
  %v4156 = vunpack.c.0.s8 %v4155
  %v4157 = vlaneseq
  %v4158 = vshrl.u32 %v4157, 7
  %v4159 = vsub.s32 %v4156, %v4158
  %v4160 = vrot.slane %v4144, %v4159
  %v4162 = vunpack.c.l.s4 1966171168
  %v4163 = vunpack.c.0.s8 %v4162
  %v4164 = vlaneseq
  %v4165 = vshrl.u32 %v4164, 7
  %v4166 = vsub.s32 %v4163, %v4165
  %v4167 = vrot.slane %v4145, %v4166
  %v4169 = vunpack.c.l.s4 1966171168
  %v4170 = vunpack.c.0.s8 %v4169
  %v4171 = vlaneseq
  %v4172 = vshrl.u32 %v4171, 7
  %v4173 = vsub.s32 %v4170, %v4172
  %v4174 = vrot.slane %v4146, %v4173
  %v4175 = vcombine.low %v4153, %v4160
  %v4176 = vcombine.low %v4167, %v4174
  %v4178 = vunpack.c.l.s4 1966171168
  %v4179 = vunpack.c.0.s8 %v4178
  %v4180 = vlaneseq
  %v4181 = vshrl.u32 %v4180, 7
  %v4182 = vsub.s32 %v4179, %v4181
  %v4183 = vrot.slane %v4175, %v4182
  %v4185 = vunpack.c.l.s4 1966171168
  %v4186 = vunpack.c.0.s8 %v4185
  %v4187 = vlaneseq
  %v4188 = vshrl.u32 %v4187, 7
  %v4189 = vsub.s32 %v4186, %v4188
  %v4190 = vrot.slane %v4176, %v4189
  %v4191 = vcombine.low %v4183, %v4190
  %v4192 = vcombine.low %v4113, %v4114
  %v4193 = vcombine.low %v4115, %v4116
  %v4194 = vcombine.low %v4117, %v4118
  %v4195 = vcombine.low %v4119, %v4120
  %v4197 = vunpack.c.l.s4 1966171168
  %v4198 = vunpack.c.0.s8 %v4197
  %v4199 = vlaneseq
  %v4200 = vshrl.u32 %v4199, 7
  %v4201 = vsub.s32 %v4198, %v4200
  %v4202 = vrot.slane %v4192, %v4201
  %v4204 = vunpack.c.l.s4 1966171168
  %v4205 = vunpack.c.0.s8 %v4204
  %v4206 = vlaneseq
  %v4207 = vshrl.u32 %v4206, 7
  %v4208 = vsub.s32 %v4205, %v4207
  %v4209 = vrot.slane %v4193, %v4208
  %v4211 = vunpack.c.l.s4 1966171168
  %v4212 = vunpack.c.0.s8 %v4211
  %v4213 = vlaneseq
  %v4214 = vshrl.u32 %v4213, 7
  %v4215 = vsub.s32 %v4212, %v4214
  %v4216 = vrot.slane %v4194, %v4215
  %v4218 = vunpack.c.l.s4 1966171168
  %v4219 = vunpack.c.0.s8 %v4218
  %v4220 = vlaneseq
  %v4221 = vshrl.u32 %v4220, 7
  %v4222 = vsub.s32 %v4219, %v4221
  %v4223 = vrot.slane %v4195, %v4222
  %v4224 = vcombine.low %v4202, %v4209
  %v4225 = vcombine.low %v4216, %v4223
  %v4227 = vunpack.c.l.s4 1966171168
  %v4228 = vunpack.c.0.s8 %v4227
  %v4229 = vlaneseq
  %v4230 = vshrl.u32 %v4229, 7
  %v4231 = vsub.s32 %v4228, %v4230
  %v4232 = vrot.slane %v4224, %v4231
  %v4234 = vunpack.c.l.s4 1966171168
  %v4235 = vunpack.c.0.s8 %v4234
  %v4236 = vlaneseq
  %v4237 = vshrl.u32 %v4236, 7
  %v4238 = vsub.s32 %v4235, %v4237
  %v4239 = vrot.slane %v4225, %v4238
  %v4240 = vcombine.low %v4232, %v4239
  %v4241 = vcombine.low %v4121, %v4122
  %v4243 = vunpack.c.l.s4 1966171168
  %v4244 = vunpack.c.0.s8 %v4243
  %v4245 = vlaneseq
  %v4246 = vshrl.u32 %v4245, 7
  %v4247 = vsub.s32 %v4244, %v4246
  %v4248 = vrot.slane %v4241, %v4247
  %v4250 = vunpack.c.l.s4 1966171168
  %v4251 = vunpack.c.0.s8 %v4250
  %v4252 = vlaneseq
  %v4253 = vshrl.u32 %v4252, 7
  %v4254 = vsub.s32 %v4251, %v4253
  %v4255 = vrot.slane %v4248, %v4254
  %v4259 = vsel %vm504, %v4191, 0.0
  %4260 = vadd.xlane.f32.xlu0 %v4259
  %v4261 = vpop.xlane.xlu0 %4260
  %v4262 = vsel %vm504, %v4240, 0.0
  %4263 = vadd.xlane.f32.xlu0 %v4262
  %v4264 = vpop.xlane.xlu0 %4263
  %vm4265 = vcmask 254976
  %v4266 = vsel %vm4265, %v4255, 0.0
  %4267 = vadd.xlane.f32.xlu0 %v4266
  %v4268 = vpop.xlane.xlu0 %4267
  %v4269 = vrcp.pop 32.0
  %v4270 = vmul.f32 %v4261, %v4269
  %v4271 = vmul.f32 %v4264, %v4269
  %v4272 = vmul.f32 %v4268, %v4269
  %v4276 = vlaneseq
  %v4277 = vshrl.u32 %v4276, 7
  %v4278 = vsub.s32 0, %v4277
  %v4279 = vrot.slane %v4270, %v4278
  %v4280 = vlaneseq
  %v4281 = vshrl.u32 %v4280, 7
  %v4282 = vsub.s32 1, %v4281
  %v4283 = vrot.slane %v4270, %v4282
  %v4284 = vlaneseq
  %v4285 = vshrl.u32 %v4284, 7
  %v4286 = vsub.s32 2, %v4285
  %v4287 = vrot.slane %v4270, %v4286
  %v4288 = vlaneseq
  %v4289 = vshrl.u32 %v4288, 7
  %v4290 = vsub.s32 3, %v4289
  %v4291 = vrot.slane %v4270, %v4290
  %v4292 = vlaneseq
  %v4293 = vshrl.u32 %v4292, 7
  %v4294 = vsub.s32 4, %v4293
  %v4295 = vrot.slane %v4270, %v4294
  %v4296 = vlaneseq
  %v4297 = vshrl.u32 %v4296, 7
  %v4298 = vsub.s32 5, %v4297
  %v4299 = vrot.slane %v4270, %v4298
  %v4300 = vlaneseq
  %v4301 = vshrl.u32 %v4300, 7
  %v4302 = vsub.s32 6, %v4301
  %v4303 = vrot.slane %v4270, %v4302
  %v4304 = vlaneseq
  %v4305 = vshrl.u32 %v4304, 7
  %v4306 = vsub.s32 7, %v4305
  %v4307 = vrot.slane %v4270, %v4306
  %v4308 = vlaneseq
  %v4309 = vshrl.u32 %v4308, 7
  %v4310 = vsub.s32 0, %v4309
  %v4311 = vrot.slane %v4271, %v4310
  %v4312 = vlaneseq
  %v4313 = vshrl.u32 %v4312, 7
  %v4314 = vsub.s32 1, %v4313
  %v4315 = vrot.slane %v4271, %v4314
  %v4316 = vlaneseq
  %v4317 = vshrl.u32 %v4316, 7
  %v4318 = vsub.s32 2, %v4317
  %v4319 = vrot.slane %v4271, %v4318
  %v4320 = vlaneseq
  %v4321 = vshrl.u32 %v4320, 7
  %v4322 = vsub.s32 3, %v4321
  %v4323 = vrot.slane %v4271, %v4322
  %v4324 = vlaneseq
  %v4325 = vshrl.u32 %v4324, 7
  %v4326 = vsub.s32 4, %v4325
  %v4327 = vrot.slane %v4271, %v4326
  %v4328 = vlaneseq
  %v4329 = vshrl.u32 %v4328, 7
  %v4330 = vsub.s32 5, %v4329
  %v4331 = vrot.slane %v4271, %v4330
  %v4332 = vlaneseq
  %v4333 = vshrl.u32 %v4332, 7
  %v4334 = vsub.s32 6, %v4333
  %v4335 = vrot.slane %v4271, %v4334
  %v4336 = vlaneseq
  %v4337 = vshrl.u32 %v4336, 7
  %v4338 = vsub.s32 7, %v4337
  %v4339 = vrot.slane %v4271, %v4338
  %v4340 = vlaneseq
  %v4341 = vshrl.u32 %v4340, 7
  %v4342 = vsub.s32 0, %v4341
  %v4343 = vrot.slane %v4272, %v4342
  %v4344 = vlaneseq
  %v4345 = vshrl.u32 %v4344, 7
  %v4346 = vsub.s32 1, %v4345
  %v4347 = vrot.slane %v4272, %v4346
  %v4366 = vsub.f32 %v4105, %v4279
  %v4367 = vsub.f32 %v4106, %v4283
  %v4368 = vsub.f32 %v4107, %v4287
  %v4369 = vsub.f32 %v4108, %v4291
  %v4370 = vsub.f32 %v4109, %v4295
  %v4371 = vsub.f32 %v4110, %v4299
  %v4372 = vsub.f32 %v4111, %v4303
  %v4373 = vsub.f32 %v4112, %v4307
  %v4374 = vsub.f32 %v4113, %v4311
  %v4375 = vsub.f32 %v4114, %v4315
  %v4376 = vsub.f32 %v4115, %v4319
  %v4377 = vsub.f32 %v4116, %v4323
  %v4378 = vsub.f32 %v4117, %v4327
  %v4379 = vsub.f32 %v4118, %v4331
  %v4380 = vsub.f32 %v4119, %v4335
  %v4381 = vsub.f32 %v4120, %v4339
  %v4382 = vsub.f32 %v4121, %v4343
  %v4383 = vsub.f32 %v4122, %v4347
  %v4384 = vmul.f32 %v4366, %v4366
  %v4385 = vmul.f32 %v4367, %v4367
  %v4386 = vmul.f32 %v4368, %v4368
  %v4387 = vmul.f32 %v4369, %v4369
  %v4388 = vmul.f32 %v4370, %v4370
  %v4389 = vmul.f32 %v4371, %v4371
  %v4390 = vmul.f32 %v4372, %v4372
  %v4391 = vmul.f32 %v4373, %v4373
  %v4392 = vmul.f32 %v4374, %v4374
  %v4393 = vmul.f32 %v4375, %v4375
  %v4394 = vmul.f32 %v4376, %v4376
  %v4395 = vmul.f32 %v4377, %v4377
  %v4396 = vmul.f32 %v4378, %v4378
  %v4397 = vmul.f32 %v4379, %v4379
  %v4398 = vmul.f32 %v4380, %v4380
  %v4399 = vmul.f32 %v4381, %v4381
  %v4400 = vmul.f32 %v4382, %v4382
  %v4401 = vmul.f32 %v4383, %v4383
  %v4420 = vcombine.low %v4384, %v4385
  %v4421 = vcombine.low %v4386, %v4387
  %v4422 = vcombine.low %v4388, %v4389
  %v4423 = vcombine.low %v4390, %v4391
  %v4425 = vunpack.c.l.s4 1966171168
  %v4426 = vunpack.c.0.s8 %v4425
  %v4427 = vlaneseq
  %v4428 = vshrl.u32 %v4427, 7
  %v4429 = vsub.s32 %v4426, %v4428
  %v4430 = vrot.slane %v4420, %v4429
  %v4432 = vunpack.c.l.s4 1966171168
  %v4433 = vunpack.c.0.s8 %v4432
  %v4434 = vlaneseq
  %v4435 = vshrl.u32 %v4434, 7
  %v4436 = vsub.s32 %v4433, %v4435
  %v4437 = vrot.slane %v4421, %v4436
  %v4439 = vunpack.c.l.s4 1966171168
  %v4440 = vunpack.c.0.s8 %v4439
  %v4441 = vlaneseq
  %v4442 = vshrl.u32 %v4441, 7
  %v4443 = vsub.s32 %v4440, %v4442
  %v4444 = vrot.slane %v4422, %v4443
  %v4446 = vunpack.c.l.s4 1966171168
  %v4447 = vunpack.c.0.s8 %v4446
  %v4448 = vlaneseq
  %v4449 = vshrl.u32 %v4448, 7
  %v4450 = vsub.s32 %v4447, %v4449
  %v4451 = vrot.slane %v4423, %v4450
  %v4452 = vcombine.low %v4430, %v4437
  %v4453 = vcombine.low %v4444, %v4451
  %v4455 = vunpack.c.l.s4 1966171168
  %v4456 = vunpack.c.0.s8 %v4455
  %v4457 = vlaneseq
  %v4458 = vshrl.u32 %v4457, 7
  %v4459 = vsub.s32 %v4456, %v4458
  %v4460 = vrot.slane %v4452, %v4459
  %v4462 = vunpack.c.l.s4 1966171168
  %v4463 = vunpack.c.0.s8 %v4462
  %v4464 = vlaneseq
  %v4465 = vshrl.u32 %v4464, 7
  %v4466 = vsub.s32 %v4463, %v4465
  %v4467 = vrot.slane %v4453, %v4466
  %v4468 = vcombine.low %v4460, %v4467
  %v4469 = vcombine.low %v4392, %v4393
  %v4470 = vcombine.low %v4394, %v4395
  %v4471 = vcombine.low %v4396, %v4397
  %v4472 = vcombine.low %v4398, %v4399
  %v4474 = vunpack.c.l.s4 1966171168
  %v4475 = vunpack.c.0.s8 %v4474
  %v4476 = vlaneseq
  %v4477 = vshrl.u32 %v4476, 7
  %v4478 = vsub.s32 %v4475, %v4477
  %v4479 = vrot.slane %v4469, %v4478
  %v4481 = vunpack.c.l.s4 1966171168
  %v4482 = vunpack.c.0.s8 %v4481
  %v4483 = vlaneseq
  %v4484 = vshrl.u32 %v4483, 7
  %v4485 = vsub.s32 %v4482, %v4484
  %v4486 = vrot.slane %v4470, %v4485
  %v4488 = vunpack.c.l.s4 1966171168
  %v4489 = vunpack.c.0.s8 %v4488
  %v4490 = vlaneseq
  %v4491 = vshrl.u32 %v4490, 7
  %v4492 = vsub.s32 %v4489, %v4491
  %v4493 = vrot.slane %v4471, %v4492
  %v4495 = vunpack.c.l.s4 1966171168
  %v4496 = vunpack.c.0.s8 %v4495
  %v4497 = vlaneseq
  %v4498 = vshrl.u32 %v4497, 7
  %v4499 = vsub.s32 %v4496, %v4498
  %v4500 = vrot.slane %v4472, %v4499
  %v4501 = vcombine.low %v4479, %v4486
  %v4502 = vcombine.low %v4493, %v4500
  %v4504 = vunpack.c.l.s4 1966171168
  %v4505 = vunpack.c.0.s8 %v4504
  %v4506 = vlaneseq
  %v4507 = vshrl.u32 %v4506, 7
  %v4508 = vsub.s32 %v4505, %v4507
  %v4509 = vrot.slane %v4501, %v4508
  %v4511 = vunpack.c.l.s4 1966171168
  %v4512 = vunpack.c.0.s8 %v4511
  %v4513 = vlaneseq
  %v4514 = vshrl.u32 %v4513, 7
  %v4515 = vsub.s32 %v4512, %v4514
  %v4516 = vrot.slane %v4502, %v4515
  %v4517 = vcombine.low %v4509, %v4516
  %v4518 = vcombine.low %v4400, %v4401
  %v4520 = vunpack.c.l.s4 1966171168
  %v4521 = vunpack.c.0.s8 %v4520
  %v4522 = vlaneseq
  %v4523 = vshrl.u32 %v4522, 7
  %v4524 = vsub.s32 %v4521, %v4523
  %v4525 = vrot.slane %v4518, %v4524
  %v4527 = vunpack.c.l.s4 1966171168
  %v4528 = vunpack.c.0.s8 %v4527
  %v4529 = vlaneseq
  %v4530 = vshrl.u32 %v4529, 7
  %v4531 = vsub.s32 %v4528, %v4530
  %v4532 = vrot.slane %v4525, %v4531
  %v4536 = vsel %vm504, %v4468, 0.0
  %4537 = vadd.xlane.f32.xlu0 %v4536
  %v4538 = vpop.xlane.xlu0 %4537
  %v4539 = vsel %vm504, %v4517, 0.0
  %4540 = vadd.xlane.f32.xlu0 %v4539
  %v4541 = vpop.xlane.xlu0 %4540
  %v4542 = vsel %vm4265, %v4532, 0.0
  %4543 = vadd.xlane.f32.xlu0 %v4542
  %v4544 = vpop.xlane.xlu0 %4543
  %v4545 = vmul.f32 %v4538, %v4269
  %v4546 = vmul.f32 %v4541, %v4269
  %v4547 = vmul.f32 %v4544, %v4269
  %v4548 = vadd.f32 %v4545, 1e-05
  %v4549 = vadd.f32 %v4546, 1e-05
  %v4550 = vadd.f32 %v4547, 1e-05
  %v4551 = vrsqrt.pop %v4548
  %v4552 = vrsqrt.pop %v4549
  %v4553 = vrsqrt.pop %v4550
  %v4557 = vlaneseq
  %v4558 = vshrl.u32 %v4557, 7
  %v4559 = vsub.s32 0, %v4558
  %v4560 = vrot.slane %v4551, %v4559
  %v4561 = vlaneseq
  %v4562 = vshrl.u32 %v4561, 7
  %v4563 = vsub.s32 1, %v4562
  %v4564 = vrot.slane %v4551, %v4563
  %v4565 = vlaneseq
  %v4566 = vshrl.u32 %v4565, 7
  %v4567 = vsub.s32 2, %v4566
  %v4568 = vrot.slane %v4551, %v4567
  %v4569 = vlaneseq
  %v4570 = vshrl.u32 %v4569, 7
  %v4571 = vsub.s32 3, %v4570
  %v4572 = vrot.slane %v4551, %v4571
  %v4573 = vlaneseq
  %v4574 = vshrl.u32 %v4573, 7
  %v4575 = vsub.s32 4, %v4574
  %v4576 = vrot.slane %v4551, %v4575
  %v4577 = vlaneseq
  %v4578 = vshrl.u32 %v4577, 7
  %v4579 = vsub.s32 5, %v4578
  %v4580 = vrot.slane %v4551, %v4579
  %v4581 = vlaneseq
  %v4582 = vshrl.u32 %v4581, 7
  %v4583 = vsub.s32 6, %v4582
  %v4584 = vrot.slane %v4551, %v4583
  %v4585 = vlaneseq
  %v4586 = vshrl.u32 %v4585, 7
  %v4587 = vsub.s32 7, %v4586
  %v4588 = vrot.slane %v4551, %v4587
  %v4589 = vlaneseq
  %v4590 = vshrl.u32 %v4589, 7
  %v4591 = vsub.s32 0, %v4590
  %v4592 = vrot.slane %v4552, %v4591
  %v4593 = vlaneseq
  %v4594 = vshrl.u32 %v4593, 7
  %v4595 = vsub.s32 1, %v4594
  %v4596 = vrot.slane %v4552, %v4595
  %v4597 = vlaneseq
  %v4598 = vshrl.u32 %v4597, 7
  %v4599 = vsub.s32 2, %v4598
  %v4600 = vrot.slane %v4552, %v4599
  %v4601 = vlaneseq
  %v4602 = vshrl.u32 %v4601, 7
  %v4603 = vsub.s32 3, %v4602
  %v4604 = vrot.slane %v4552, %v4603
  %v4605 = vlaneseq
  %v4606 = vshrl.u32 %v4605, 7
  %v4607 = vsub.s32 4, %v4606
  %v4608 = vrot.slane %v4552, %v4607
  %v4609 = vlaneseq
  %v4610 = vshrl.u32 %v4609, 7
  %v4611 = vsub.s32 5, %v4610
  %v4612 = vrot.slane %v4552, %v4611
  %v4613 = vlaneseq
  %v4614 = vshrl.u32 %v4613, 7
  %v4615 = vsub.s32 6, %v4614
  %v4616 = vrot.slane %v4552, %v4615
  %v4617 = vlaneseq
  %v4618 = vshrl.u32 %v4617, 7
  %v4619 = vsub.s32 7, %v4618
  %v4620 = vrot.slane %v4552, %v4619
  %v4621 = vlaneseq
  %v4622 = vshrl.u32 %v4621, 7
  %v4623 = vsub.s32 0, %v4622
  %v4624 = vrot.slane %v4553, %v4623
  %v4625 = vlaneseq
  %v4626 = vshrl.u32 %v4625, 7
  %v4627 = vsub.s32 1, %v4626
  %v4628 = vrot.slane %v4553, %v4627
  %v4647 = vmul.f32 %v4366, %v4560
  %v4648 = vmul.f32 %v4367, %v4564
  %v4649 = vmul.f32 %v4368, %v4568
  %v4650 = vmul.f32 %v4369, %v4572
  %v4651 = vmul.f32 %v4370, %v4576
  %v4652 = vmul.f32 %v4371, %v4580
  %v4653 = vmul.f32 %v4372, %v4584
  %v4654 = vmul.f32 %v4373, %v4588
  %v4655 = vmul.f32 %v4374, %v4592
  %v4656 = vmul.f32 %v4375, %v4596
  %v4657 = vmul.f32 %v4376, %v4600
  %v4658 = vmul.f32 %v4377, %v4604
  %v4659 = vmul.f32 %v4378, %v4608
  %v4660 = vmul.f32 %v4379, %v4612
  %v4661 = vmul.f32 %v4380, %v4616
  %v4662 = vmul.f32 %v4381, %v4620
  %v4663 = vmul.f32 %v4382, %v4624
  %v4664 = vmul.f32 %v4383, %v4628
  %v4666 = vlaneseq
  %v4667 = vshrl.u32 %v4666, 7
  %v4668 = vsub.s32 0, %v4667
  %v4669 = vrot.slane %v4123, %v4668
  %v4670 = vcombine.high %v4669, %v4669
  %v4672 = vunpack.c.l.s4 1966171168
  %v4673 = vunpack.c.0.s8 %v4672
  %v4674 = vlaneseq
  %v4675 = vshrl.u32 %v4674, 7
  %v4676 = vsub.s32 %v4673, %v4675
  %v4677 = vrot.slane %v4669, %v4676
  %v4679 = vunpack.c.l.s4 1966171168
  %v4680 = vunpack.c.0.s8 %v4679
  %v4681 = vlaneseq
  %v4682 = vshrl.u32 %v4681, 7
  %v4683 = vsub.s32 %v4680, %v4682
  %v4684 = vrot.slane %v4670, %v4683
  %v4685 = vcombine.high %v4677, %v4677
  %v4686 = vcombine.high %v4684, %v4684
  %v4688 = vunpack.c.l.s4 1966171168
  %v4689 = vunpack.c.0.s8 %v4688
  %v4690 = vlaneseq
  %v4691 = vshrl.u32 %v4690, 7
  %v4692 = vsub.s32 %v4689, %v4691
  %v4693 = vrot.slane %v4677, %v4692
  %v4695 = vunpack.c.l.s4 1966171168
  %v4696 = vunpack.c.0.s8 %v4695
  %v4697 = vlaneseq
  %v4698 = vshrl.u32 %v4697, 7
  %v4699 = vsub.s32 %v4696, %v4698
  %v4700 = vrot.slane %v4684, %v4699
  %v4702 = vunpack.c.l.s4 1966171168
  %v4703 = vunpack.c.0.s8 %v4702
  %v4704 = vlaneseq
  %v4705 = vshrl.u32 %v4704, 7
  %v4706 = vsub.s32 %v4703, %v4705
  %v4707 = vrot.slane %v4685, %v4706
  %v4709 = vunpack.c.l.s4 1966171168
  %v4710 = vunpack.c.0.s8 %v4709
  %v4711 = vlaneseq
  %v4712 = vshrl.u32 %v4711, 7
  %v4713 = vsub.s32 %v4710, %v4712
  %v4714 = vrot.slane %v4686, %v4713
  %v4715 = vcombine.high %v4693, %v4693
  %v4716 = vcombine.high %v4700, %v4700
  %v4717 = vcombine.high %v4707, %v4707
  %v4718 = vcombine.high %v4714, %v4714
  %v4727 = vmul.f32 %v4647, %v4693
  %v4728 = vmul.f32 %v4648, %v4707
  %v4729 = vmul.f32 %v4649, %v4715
  %v4730 = vmul.f32 %v4650, %v4717
  %v4731 = vmul.f32 %v4651, %v4700
  %v4732 = vmul.f32 %v4652, %v4714
  %v4733 = vmul.f32 %v4653, %v4716
  %v4734 = vmul.f32 %v4654, %v4718
  %v4735 = vmul.f32 %v4655, %v4693
  %v4736 = vmul.f32 %v4656, %v4707
  %v4737 = vmul.f32 %v4657, %v4715
  %v4738 = vmul.f32 %v4658, %v4717
  %v4739 = vmul.f32 %v4659, %v4700
  %v4740 = vmul.f32 %v4660, %v4714
  %v4741 = vmul.f32 %v4661, %v4716
  %v4742 = vmul.f32 %v4662, %v4718
  %v4743 = vmul.f32 %v4663, %v4693
  %v4744 = vmul.f32 %v4664, %v4707
  %v4746 = vlaneseq
  %v4747 = vshrl.u32 %v4746, 7
  %v4748 = vsub.s32 0, %v4747
  %v4749 = vrot.slane %v4124, %v4748
  %v4750 = vcombine.high %v4749, %v4749
  %v4752 = vunpack.c.l.s4 1966171168
  %v4753 = vunpack.c.0.s8 %v4752
  %v4754 = vlaneseq
  %v4755 = vshrl.u32 %v4754, 7
  %v4756 = vsub.s32 %v4753, %v4755
  %v4757 = vrot.slane %v4749, %v4756
  %v4759 = vunpack.c.l.s4 1966171168
  %v4760 = vunpack.c.0.s8 %v4759
  %v4761 = vlaneseq
  %v4762 = vshrl.u32 %v4761, 7
  %v4763 = vsub.s32 %v4760, %v4762
  %v4764 = vrot.slane %v4750, %v4763
  %v4765 = vcombine.high %v4757, %v4757
  %v4766 = vcombine.high %v4764, %v4764
  %v4768 = vunpack.c.l.s4 1966171168
  %v4769 = vunpack.c.0.s8 %v4768
  %v4770 = vlaneseq
  %v4771 = vshrl.u32 %v4770, 7
  %v4772 = vsub.s32 %v4769, %v4771
  %v4773 = vrot.slane %v4757, %v4772
  %v4775 = vunpack.c.l.s4 1966171168
  %v4776 = vunpack.c.0.s8 %v4775
  %v4777 = vlaneseq
  %v4778 = vshrl.u32 %v4777, 7
  %v4779 = vsub.s32 %v4776, %v4778
  %v4780 = vrot.slane %v4764, %v4779
  %v4782 = vunpack.c.l.s4 1966171168
  %v4783 = vunpack.c.0.s8 %v4782
  %v4784 = vlaneseq
  %v4785 = vshrl.u32 %v4784, 7
  %v4786 = vsub.s32 %v4783, %v4785
  %v4787 = vrot.slane %v4765, %v4786
  %v4789 = vunpack.c.l.s4 1966171168
  %v4790 = vunpack.c.0.s8 %v4789
  %v4791 = vlaneseq
  %v4792 = vshrl.u32 %v4791, 7
  %v4793 = vsub.s32 %v4790, %v4792
  %v4794 = vrot.slane %v4766, %v4793
  %v4795 = vcombine.high %v4773, %v4773
  %v4796 = vcombine.high %v4780, %v4780
  %v4797 = vcombine.high %v4787, %v4787
  %v4798 = vcombine.high %v4794, %v4794
  %v4807 = vadd.f32 %v4727, %v4773
  %v4808 = vadd.f32 %v4728, %v4787
  %v4809 = vadd.f32 %v4729, %v4795
  %v4810 = vadd.f32 %v4730, %v4797
  %v4811 = vadd.f32 %v4731, %v4780
  %v4812 = vadd.f32 %v4732, %v4794
  %v4813 = vadd.f32 %v4733, %v4796
  %v4814 = vadd.f32 %v4734, %v4798
  %v4815 = vadd.f32 %v4735, %v4773
  %v4816 = vadd.f32 %v4736, %v4787
  %v4817 = vadd.f32 %v4737, %v4795
  %v4818 = vadd.f32 %v4738, %v4797
  %v4819 = vadd.f32 %v4739, %v4780
  %v4820 = vadd.f32 %v4740, %v4794
  %v4821 = vadd.f32 %v4741, %v4796
  %v4822 = vadd.f32 %v4742, %v4798
  %v4823 = vadd.f32 %v4743, %v4773
  %v4824 = vadd.f32 %v4744, %v4787
  %v4825 = vld [vmem:[%s9] sm:$0xff]
  %v4826 = vld [vmem:[%s9 + $0x8] sm:$0xff]
  %v4827 = vld [vmem:[%s9 + $0x10] sm:$0xff]
  %v4828 = vld [vmem:[%s9 + $0x18] sm:$0xff]
  %v4829 = vld [vmem:[%s10] sm:$0x1]
  %v4831 = vlaneseq
  %v4832 = vshrl.u32 %v4831, 7
  %v4833 = vsub.s32 0, %v4832
  %v4834 = vrot.slane %v4829, %v4833
  %v4854 = vcombine.low %v4807, %v4808
  %v4855 = vcombine.low %v4809, %v4810
  %v4856 = vcombine.low %v4811, %v4812
  %v4857 = vcombine.low %v4813, %v4814
  %v4859 = vunpack.c.l.s4 1966171168
  %v4860 = vunpack.c.0.s8 %v4859
  %v4861 = vlaneseq
  %v4862 = vshrl.u32 %v4861, 7
  %v4863 = vsub.s32 %v4860, %v4862
  %v4864 = vrot.slane %v4854, %v4863
  %v4866 = vunpack.c.l.s4 1966171168
  %v4867 = vunpack.c.0.s8 %v4866
  %v4868 = vlaneseq
  %v4869 = vshrl.u32 %v4868, 7
  %v4870 = vsub.s32 %v4867, %v4869
  %v4871 = vrot.slane %v4855, %v4870
  %v4873 = vunpack.c.l.s4 1966171168
  %v4874 = vunpack.c.0.s8 %v4873
  %v4875 = vlaneseq
  %v4876 = vshrl.u32 %v4875, 7
  %v4877 = vsub.s32 %v4874, %v4876
  %v4878 = vrot.slane %v4856, %v4877
  %v4880 = vunpack.c.l.s4 1966171168
  %v4881 = vunpack.c.0.s8 %v4880
  %v4882 = vlaneseq
  %v4883 = vshrl.u32 %v4882, 7
  %v4884 = vsub.s32 %v4881, %v4883
  %v4885 = vrot.slane %v4857, %v4884
  %v4886 = vcombine.low %v4864, %v4871
  %v4887 = vcombine.low %v4878, %v4885
  %v4889 = vunpack.c.l.s4 1966171168
  %v4890 = vunpack.c.0.s8 %v4889
  %v4891 = vlaneseq
  %v4892 = vshrl.u32 %v4891, 7
  %v4893 = vsub.s32 %v4890, %v4892
  %v4894 = vrot.slane %v4886, %v4893
  %v4896 = vunpack.c.l.s4 1966171168
  %v4897 = vunpack.c.0.s8 %v4896
  %v4898 = vlaneseq
  %v4899 = vshrl.u32 %v4898, 7
  %v4900 = vsub.s32 %v4897, %v4899
  %v4901 = vrot.slane %v4887, %v4900
  %v4902 = vcombine.low %v4894, %v4901
  %v4903 = vcombine.low %v4815, %v4816
  %v4904 = vcombine.low %v4817, %v4818
  %v4905 = vcombine.low %v4819, %v4820
  %v4906 = vcombine.low %v4821, %v4822
  %v4908 = vunpack.c.l.s4 1966171168
  %v4909 = vunpack.c.0.s8 %v4908
  %v4910 = vlaneseq
  %v4911 = vshrl.u32 %v4910, 7
  %v4912 = vsub.s32 %v4909, %v4911
  %v4913 = vrot.slane %v4903, %v4912
  %v4915 = vunpack.c.l.s4 1966171168
  %v4916 = vunpack.c.0.s8 %v4915
  %v4917 = vlaneseq
  %v4918 = vshrl.u32 %v4917, 7
  %v4919 = vsub.s32 %v4916, %v4918
  %v4920 = vrot.slane %v4904, %v4919
  %v4922 = vunpack.c.l.s4 1966171168
  %v4923 = vunpack.c.0.s8 %v4922
  %v4924 = vlaneseq
  %v4925 = vshrl.u32 %v4924, 7
  %v4926 = vsub.s32 %v4923, %v4925
  %v4927 = vrot.slane %v4905, %v4926
  %v4929 = vunpack.c.l.s4 1966171168
  %v4930 = vunpack.c.0.s8 %v4929
  %v4931 = vlaneseq
  %v4932 = vshrl.u32 %v4931, 7
  %v4933 = vsub.s32 %v4930, %v4932
  %v4934 = vrot.slane %v4906, %v4933
  %v4935 = vcombine.low %v4913, %v4920
  %v4936 = vcombine.low %v4927, %v4934
  %v4938 = vunpack.c.l.s4 1966171168
  %v4939 = vunpack.c.0.s8 %v4938
  %v4940 = vlaneseq
  %v4941 = vshrl.u32 %v4940, 7
  %v4942 = vsub.s32 %v4939, %v4941
  %v4943 = vrot.slane %v4935, %v4942
  %v4945 = vunpack.c.l.s4 1966171168
  %v4946 = vunpack.c.0.s8 %v4945
  %v4947 = vlaneseq
  %v4948 = vshrl.u32 %v4947, 7
  %v4949 = vsub.s32 %v4946, %v4948
  %v4950 = vrot.slane %v4936, %v4949
  %v4951 = vcombine.low %v4943, %v4950
  %v4952 = vcombine.low %v4823, %v4824
  %v4954 = vunpack.c.l.s4 1966171168
  %v4955 = vunpack.c.0.s8 %v4954
  %v4956 = vlaneseq
  %v4957 = vshrl.u32 %v4956, 7
  %v4958 = vsub.s32 %v4955, %v4957
  %v4959 = vrot.slane %v4952, %v4958
  %v4961 = vunpack.c.l.s4 1966171168
  %v4962 = vunpack.c.0.s8 %v4961
  %v4963 = vlaneseq
  %v4964 = vshrl.u32 %v4963, 7
  %v4965 = vsub.s32 %v4962, %v4964
  %v4966 = vrot.slane %v4959, %v4965
  %v4967 = vsel %vm504, %v4902, 0
  %v4969 = vsel %vm504, %v4951, 0
  %v4971 = vsel %vm504, %v4966, 0
  %v4974 = vsel %vm504, %v4825, 0
  %v4977 = vsel %vm504, %v4826, 0
  %v4980 = vsel %vm504, %v4827, 0
  %v4983 = vsel %vm504, %v4828, 0
  %4985 = vmatprep.subr.mxu0 0.0
  %4986 = vmatpush1.xpose.msra.mxu0 0.0
  %4987 = vmatprep.subr.mxu0 0.0
  %4988 = vmatpush1.xpose.msra.mxu0 0.0
  %4989 = vmatprep.subr.mxu0 0.0
  %4990 = vmatpush1.xpose.msra.mxu0 0.0
  %4991 = vmatprep.subr.mxu0 0.0
  %4992 = vmatpush1.xpose.msra.mxu0 0.0
  %4993 = vmatprep.subr.mxu0 0.0
  %4994 = vmatpush1.xpose.msra.mxu0 0.0
  %4995 = vmatprep.subr.mxu0 0.0
  %4996 = vmatpush1.xpose.msra.mxu0 0.0
  %4997 = vmatprep.subr.mxu0 0.0
  %4998 = vmatpush1.xpose.msra.mxu0 0.0
  %4999 = vmatprep.subr.mxu0 0.0
  %5000 = vmatpush1.xpose.msra.mxu0 0.0
  %5001 = vmatprep.subr.mxu0 0.0
  %5002 = vmatpush1.xpose.msra.mxu0 0.0
  %5003 = vmatprep.subr.mxu0 0.0
  %5004 = vmatpush1.xpose.msra.mxu0 0.0
  %5005 = vmatprep.subr.mxu0 0.0
  %5006 = vmatpush1.xpose.msra.mxu0 0.0
  %5007 = vmatprep.subr.mxu0 0.0
  %5008 = vmatpush1.xpose.msra.mxu0 0.0
  %5009 = vmatprep.subr.mxu0 0.0
  %5010 = vmatpush1.xpose.msra.mxu0 %v4983
  %5011 = vmatprep.subr.mxu0 0.0
  %5012 = vmatpush1.xpose.msra.mxu0 %v4980
  %5013 = vmatprep.subr.mxu0 0.0
  %5014 = vmatpush1.xpose.msra.mxu0 %v4977
  %5015 = vmatprep.subr.mxu0 0.0
  %5016 = vmatpush1.xpose.msra.mxu0 %v4974
  %5017 = vmatprep.subr.mxu0 0.0
  %5018 = vmatpush2.xpose.msra.mxu0 0.0
  %5019 = vmatprep.subr.mxu0 0.0
  %5020 = vmatpush2.xpose.msra.mxu0 0.0
  %5021 = vmatprep.subr.mxu0 0.0
  %5022 = vmatpush2.xpose.msra.mxu0 0.0
  %5023 = vmatprep.subr.mxu0 0.0
  %5024 = vmatpush2.xpose.msra.mxu0 0.0
  %5025 = vmatprep.subr.mxu0 0.0
  %5026 = vmatpush2.xpose.msra.mxu0 0.0
  %5027 = vmatprep.subr.mxu0 0.0
  %5028 = vmatpush2.xpose.msra.mxu0 0.0
  %5029 = vmatprep.subr.mxu0 0.0
  %5030 = vmatpush2.xpose.msra.mxu0 0.0
  %5031 = vmatprep.subr.mxu0 0.0
  %5032 = vmatpush2.xpose.msra.mxu0 0.0
  %5033 = vmatprep.subr.mxu0 0.0
  %5034 = vmatpush2.xpose.msra.mxu0 0.0
  %5035 = vmatprep.subr.mxu0 0.0
  %5036 = vmatpush2.xpose.msra.mxu0 0.0
  %5037 = vmatprep.subr.mxu0 0.0
  %5038 = vmatpush2.xpose.msra.mxu0 0.0
  %5039 = vmatprep.subr.mxu0 0.0
  %5040 = vmatpush2.xpose.msra.mxu0 0.0
  %5041 = vmatprep.subr.mxu0 0.0
  %5042 = vmatpush2.xpose.msra.mxu0 0.0
  %5043 = vmatprep.subr.mxu0 0.0
  %5044 = vmatpush2.xpose.msra.mxu0 0.0
  %5045 = vmatprep.subr.mxu0 0.0
  %5046 = vmatpush2.xpose.msra.mxu0 0.0
  %5047 = vmatprep.subr.mxu0 0.0
  %5048 = vmatpush2.xpose.msra.mxu0 0.0
  %5049 = vmatprep.mubr.f32.mxu0 0.0
  %5050 = vmatmul.mubr.f32.gmra.mxu0 %v4967
  %v5051 = vpop.f32.mrf.mxu0
  %v5052 = vadd.f32 %v4834, %v5051
  %v5053 = vpop.f32.mrf.mxu0
  %5054 = vmatprep.mubr.f32.mxu0 0.0
  %5055 = vmatmul.mubr.f32.gmra.mxu0 %v4969
  %v5056 = vpop.f32.mrf.mxu0
  %v5057 = vadd.f32 %v4834, %v5056
  %v5058 = vpop.f32.mrf.mxu0
  %5059 = vmatprep.mubr.f32.mxu0 0.0
  %5060 = vmatmul.mubr.f32.gmra.mxu0 %v4971
  %v5061 = vpop.f32.mrf.mxu0
  %v5062 = vadd.f32 %v4834, %v5061
  %v5063 = vpop.f32.mrf.mxu0
  %5064 = vdwg.mxu0
  %v5065 = vmax.f32 %v5052, 0.0
  %v5066 = vmax.f32 %v5057, 0.0
  %v5067 = vmax.f32 %v5062, 0.0
  %v5068 = vld [vmem:[%s11] sm:$0xff]
  %v5069 = vld [vmem:[%s11 + $0x8] sm:$0xff]
  %v5070 = vld [vmem:[%s11 + $0x10] sm:$0xff]
  %v5071 = vld [vmem:[%s11 + $0x18] sm:$0xff]
  %v5072 = vld [vmem:[%s12] sm:$0x1]
  %v5074 = vlaneseq
  %v5075 = vshrl.u32 %v5074, 7
  %v5076 = vsub.s32 0, %v5075
  %v5077 = vrot.slane %v5072, %v5076
  %v5080 = vsel %vm504, %v5065, 0
  %v5083 = vsel %vm504, %v5066, 0
  %v5086 = vsel %vm504, %v5067, 0
  %v5089 = vsel %vm504, %v5068, 0
  %v5092 = vsel %vm504, %v5069, 0
  %v5095 = vsel %vm504, %v5070, 0
  %v5098 = vsel %vm504, %v5071, 0
  %5100 = vmatprep.subr.mxu0 0.0
  %5101 = vmatpush1.xpose.msra.mxu0 0.0
  %5102 = vmatprep.subr.mxu0 0.0
  %5103 = vmatpush1.xpose.msra.mxu0 0.0
  %5104 = vmatprep.subr.mxu0 0.0
  %5105 = vmatpush1.xpose.msra.mxu0 0.0
  %5106 = vmatprep.subr.mxu0 0.0
  %5107 = vmatpush1.xpose.msra.mxu0 0.0
  %5108 = vmatprep.subr.mxu0 0.0
  %5109 = vmatpush1.xpose.msra.mxu0 0.0
  %5110 = vmatprep.subr.mxu0 0.0
  %5111 = vmatpush1.xpose.msra.mxu0 0.0
  %5112 = vmatprep.subr.mxu0 0.0
  %5113 = vmatpush1.xpose.msra.mxu0 0.0
  %5114 = vmatprep.subr.mxu0 0.0
  %5115 = vmatpush1.xpose.msra.mxu0 0.0
  %5116 = vmatprep.subr.mxu0 0.0
  %5117 = vmatpush1.xpose.msra.mxu0 0.0
  %5118 = vmatprep.subr.mxu0 0.0
  %5119 = vmatpush1.xpose.msra.mxu0 0.0
  %5120 = vmatprep.subr.mxu0 0.0
  %5121 = vmatpush1.xpose.msra.mxu0 0.0
  %5122 = vmatprep.subr.mxu0 0.0
  %5123 = vmatpush1.xpose.msra.mxu0 0.0
  %5124 = vmatprep.subr.mxu0 0.0
  %5125 = vmatpush1.xpose.msra.mxu0 %v5098
  %5126 = vmatprep.subr.mxu0 0.0
  %5127 = vmatpush1.xpose.msra.mxu0 %v5095
  %5128 = vmatprep.subr.mxu0 0.0
  %5129 = vmatpush1.xpose.msra.mxu0 %v5092
  %5130 = vmatprep.subr.mxu0 0.0
  %5131 = vmatpush1.xpose.msra.mxu0 %v5089
  %5132 = vmatprep.subr.mxu0 0.0
  %5133 = vmatpush2.xpose.msra.mxu0 0.0
  %5134 = vmatprep.subr.mxu0 0.0
  %5135 = vmatpush2.xpose.msra.mxu0 0.0
  %5136 = vmatprep.subr.mxu0 0.0
  %5137 = vmatpush2.xpose.msra.mxu0 0.0
  %5138 = vmatprep.subr.mxu0 0.0
  %5139 = vmatpush2.xpose.msra.mxu0 0.0
  %5140 = vmatprep.subr.mxu0 0.0
  %5141 = vmatpush2.xpose.msra.mxu0 0.0
  %5142 = vmatprep.subr.mxu0 0.0
  %5143 = vmatpush2.xpose.msra.mxu0 0.0
  %5144 = vmatprep.subr.mxu0 0.0
  %5145 = vmatpush2.xpose.msra.mxu0 0.0
  %5146 = vmatprep.subr.mxu0 0.0
  %5147 = vmatpush2.xpose.msra.mxu0 0.0
  %5148 = vmatprep.subr.mxu0 0.0
  %5149 = vmatpush2.xpose.msra.mxu0 0.0
  %5150 = vmatprep.subr.mxu0 0.0
  %5151 = vmatpush2.xpose.msra.mxu0 0.0
  %5152 = vmatprep.subr.mxu0 0.0
  %5153 = vmatpush2.xpose.msra.mxu0 0.0
  %5154 = vmatprep.subr.mxu0 0.0
  %5155 = vmatpush2.xpose.msra.mxu0 0.0
  %5156 = vmatprep.subr.mxu0 0.0
  %5157 = vmatpush2.xpose.msra.mxu0 0.0
  %5158 = vmatprep.subr.mxu0 0.0
  %5159 = vmatpush2.xpose.msra.mxu0 0.0
  %5160 = vmatprep.subr.mxu0 0.0
  %5161 = vmatpush2.xpose.msra.mxu0 0.0
  %5162 = vmatprep.subr.mxu0 0.0
  %5163 = vmatpush2.xpose.msra.mxu0 0.0
  %5164 = vmatprep.mubr.f32.mxu0 0.0
  %5165 = vmatmul.mubr.f32.gmra.mxu0 %v5080
  %v5166 = vpop.f32.mrf.mxu0
  %v5167 = vadd.f32 %v5077, %v5166
  %v5168 = vpop.f32.mrf.mxu0
  %5169 = vmatprep.mubr.f32.mxu0 0.0
  %5170 = vmatmul.mubr.f32.gmra.mxu0 %v5083
  %v5171 = vpop.f32.mrf.mxu0
  %v5172 = vadd.f32 %v5077, %v5171
  %v5173 = vpop.f32.mrf.mxu0
  %5174 = vmatprep.mubr.f32.mxu0 0.0
  %5175 = vmatmul.mubr.f32.gmra.mxu0 %v5086
  %v5176 = vpop.f32.mrf.mxu0
  %v5177 = vadd.f32 %v5077, %v5176
  %v5178 = vpop.f32.mrf.mxu0
  %5179 = vdwg.mxu0
  %v5183 = vcombine.high %v5167, %v5167
  %v5185 = vunpack.c.l.s4 1966171168
  %v5186 = vunpack.c.0.s8 %v5185
  %v5187 = vlaneseq
  %v5188 = vshrl.u32 %v5187, 7
  %v5189 = vsub.s32 %v5186, %v5188
  %v5190 = vrot.slane %v5167, %v5189
  %v5192 = vunpack.c.l.s4 1966171168
  %v5193 = vunpack.c.0.s8 %v5192
  %v5194 = vlaneseq
  %v5195 = vshrl.u32 %v5194, 7
  %v5196 = vsub.s32 %v5193, %v5195
  %v5197 = vrot.slane %v5183, %v5196
  %v5198 = vcombine.high %v5190, %v5190
  %v5199 = vcombine.high %v5197, %v5197
  %v5201 = vunpack.c.l.s4 1966171168
  %v5202 = vunpack.c.0.s8 %v5201
  %v5203 = vlaneseq
  %v5204 = vshrl.u32 %v5203, 7
  %v5205 = vsub.s32 %v5202, %v5204
  %v5206 = vrot.slane %v5190, %v5205
  %v5208 = vunpack.c.l.s4 1966171168
  %v5209 = vunpack.c.0.s8 %v5208
  %v5210 = vlaneseq
  %v5211 = vshrl.u32 %v5210, 7
  %v5212 = vsub.s32 %v5209, %v5211
  %v5213 = vrot.slane %v5197, %v5212
  %v5215 = vunpack.c.l.s4 1966171168
  %v5216 = vunpack.c.0.s8 %v5215
  %v5217 = vlaneseq
  %v5218 = vshrl.u32 %v5217, 7
  %v5219 = vsub.s32 %v5216, %v5218
  %v5220 = vrot.slane %v5198, %v5219
  %v5222 = vunpack.c.l.s4 1966171168
  %v5223 = vunpack.c.0.s8 %v5222
  %v5224 = vlaneseq
  %v5225 = vshrl.u32 %v5224, 7
  %v5226 = vsub.s32 %v5223, %v5225
  %v5227 = vrot.slane %v5199, %v5226
  %v5228 = vcombine.high %v5206, %v5206
  %v5229 = vcombine.high %v5213, %v5213
  %v5230 = vcombine.high %v5220, %v5220
  %v5231 = vcombine.high %v5227, %v5227
  %v5232 = vcombine.high %v5172, %v5172
  %v5234 = vunpack.c.l.s4 1966171168
  %v5235 = vunpack.c.0.s8 %v5234
  %v5236 = vlaneseq
  %v5237 = vshrl.u32 %v5236, 7
  %v5238 = vsub.s32 %v5235, %v5237
  %v5239 = vrot.slane %v5172, %v5238
  %v5241 = vunpack.c.l.s4 1966171168
  %v5242 = vunpack.c.0.s8 %v5241
  %v5243 = vlaneseq
  %v5244 = vshrl.u32 %v5243, 7
  %v5245 = vsub.s32 %v5242, %v5244
  %v5246 = vrot.slane %v5232, %v5245
  %v5247 = vcombine.high %v5239, %v5239
  %v5248 = vcombine.high %v5246, %v5246
  %v5250 = vunpack.c.l.s4 1966171168
  %v5251 = vunpack.c.0.s8 %v5250
  %v5252 = vlaneseq
  %v5253 = vshrl.u32 %v5252, 7
  %v5254 = vsub.s32 %v5251, %v5253
  %v5255 = vrot.slane %v5239, %v5254
  %v5257 = vunpack.c.l.s4 1966171168
  %v5258 = vunpack.c.0.s8 %v5257
  %v5259 = vlaneseq
  %v5260 = vshrl.u32 %v5259, 7
  %v5261 = vsub.s32 %v5258, %v5260
  %v5262 = vrot.slane %v5246, %v5261
  %v5264 = vunpack.c.l.s4 1966171168
  %v5265 = vunpack.c.0.s8 %v5264
  %v5266 = vlaneseq
  %v5267 = vshrl.u32 %v5266, 7
  %v5268 = vsub.s32 %v5265, %v5267
  %v5269 = vrot.slane %v5247, %v5268
  %v5271 = vunpack.c.l.s4 1966171168
  %v5272 = vunpack.c.0.s8 %v5271
  %v5273 = vlaneseq
  %v5274 = vshrl.u32 %v5273, 7
  %v5275 = vsub.s32 %v5272, %v5274
  %v5276 = vrot.slane %v5248, %v5275
  %v5277 = vcombine.high %v5255, %v5255
  %v5278 = vcombine.high %v5262, %v5262
  %v5279 = vcombine.high %v5269, %v5269
  %v5280 = vcombine.high %v5276, %v5276
  %v5282 = vunpack.c.l.s4 1966171168
  %v5283 = vunpack.c.0.s8 %v5282
  %v5284 = vlaneseq
  %v5285 = vshrl.u32 %v5284, 7
  %v5286 = vsub.s32 %v5283, %v5285
  %v5287 = vrot.slane %v5177, %v5286
  %v5288 = vcombine.high %v5287, %v5287
  %v5290 = vunpack.c.l.s4 1966171168
  %v5291 = vunpack.c.0.s8 %v5290
  %v5292 = vlaneseq
  %v5293 = vshrl.u32 %v5292, 7
  %v5294 = vsub.s32 %v5291, %v5293
  %v5295 = vrot.slane %v5287, %v5294
  %v5297 = vunpack.c.l.s4 1966171168
  %v5298 = vunpack.c.0.s8 %v5297
  %v5299 = vlaneseq
  %v5300 = vshrl.u32 %v5299, 7
  %v5301 = vsub.s32 %v5298, %v5300
  %v5302 = vrot.slane %v5288, %v5301
  %v5321 = vadd.f32 %v4807, %v5206
  %v5322 = vadd.f32 %v4808, %v5220
  %v5323 = vadd.f32 %v4809, %v5228
  %v5324 = vadd.f32 %v4810, %v5230
  %v5325 = vadd.f32 %v4811, %v5213
  %v5326 = vadd.f32 %v4812, %v5227
  %v5327 = vadd.f32 %v4813, %v5229
  %v5328 = vadd.f32 %v4814, %v5231
  %v5329 = vadd.f32 %v4815, %v5255
  %v5330 = vadd.f32 %v4816, %v5269
  %v5331 = vadd.f32 %v4817, %v5277
  %v5332 = vadd.f32 %v4818, %v5279
  %v5333 = vadd.f32 %v4819, %v5262
  %v5334 = vadd.f32 %v4820, %v5276
  %v5335 = vadd.f32 %v4821, %v5278
  %v5336 = vadd.f32 %v4822, %v5280
  %v5337 = vadd.f32 %v4823, %v5295
  %v5338 = vadd.f32 %v4824, %v5302
  %v5339 = vld [vmem:[%s13] sm:$0x1]
  %v5340 = vld [vmem:[%s14] sm:$0x1]
  %v5359 = vcombine.low %v5321, %v5322
  %v5360 = vcombine.low %v5323, %v5324
  %v5361 = vcombine.low %v5325, %v5326
  %v5362 = vcombine.low %v5327, %v5328
  %v5364 = vunpack.c.l.s4 1966171168
  %v5365 = vunpack.c.0.s8 %v5364
  %v5366 = vlaneseq
  %v5367 = vshrl.u32 %v5366, 7
  %v5368 = vsub.s32 %v5365, %v5367
  %v5369 = vrot.slane %v5359, %v5368
  %v5371 = vunpack.c.l.s4 1966171168
  %v5372 = vunpack.c.0.s8 %v5371
  %v5373 = vlaneseq
  %v5374 = vshrl.u32 %v5373, 7
  %v5375 = vsub.s32 %v5372, %v5374
  %v5376 = vrot.slane %v5360, %v5375
  %v5378 = vunpack.c.l.s4 1966171168
  %v5379 = vunpack.c.0.s8 %v5378
  %v5380 = vlaneseq
  %v5381 = vshrl.u32 %v5380, 7
  %v5382 = vsub.s32 %v5379, %v5381
  %v5383 = vrot.slane %v5361, %v5382
  %v5385 = vunpack.c.l.s4 1966171168
  %v5386 = vunpack.c.0.s8 %v5385
  %v5387 = vlaneseq
  %v5388 = vshrl.u32 %v5387, 7
  %v5389 = vsub.s32 %v5386, %v5388
  %v5390 = vrot.slane %v5362, %v5389
  %v5391 = vcombine.low %v5369, %v5376
  %v5392 = vcombine.low %v5383, %v5390
  %v5394 = vunpack.c.l.s4 1966171168
  %v5395 = vunpack.c.0.s8 %v5394
  %v5396 = vlaneseq
  %v5397 = vshrl.u32 %v5396, 7
  %v5398 = vsub.s32 %v5395, %v5397
  %v5399 = vrot.slane %v5391, %v5398
  %v5401 = vunpack.c.l.s4 1966171168
  %v5402 = vunpack.c.0.s8 %v5401
  %v5403 = vlaneseq
  %v5404 = vshrl.u32 %v5403, 7
  %v5405 = vsub.s32 %v5402, %v5404
  %v5406 = vrot.slane %v5392, %v5405
  %v5407 = vcombine.low %v5399, %v5406
  %v5408 = vcombine.low %v5329, %v5330
  %v5409 = vcombine.low %v5331, %v5332
  %v5410 = vcombine.low %v5333, %v5334
  %v5411 = vcombine.low %v5335, %v5336
  %v5413 = vunpack.c.l.s4 1966171168
  %v5414 = vunpack.c.0.s8 %v5413
  %v5415 = vlaneseq
  %v5416 = vshrl.u32 %v5415, 7
  %v5417 = vsub.s32 %v5414, %v5416
  %v5418 = vrot.slane %v5408, %v5417
  %v5420 = vunpack.c.l.s4 1966171168
  %v5421 = vunpack.c.0.s8 %v5420
  %v5422 = vlaneseq
  %v5423 = vshrl.u32 %v5422, 7
  %v5424 = vsub.s32 %v5421, %v5423
  %v5425 = vrot.slane %v5409, %v5424
  %v5427 = vunpack.c.l.s4 1966171168
  %v5428 = vunpack.c.0.s8 %v5427
  %v5429 = vlaneseq
  %v5430 = vshrl.u32 %v5429, 7
  %v5431 = vsub.s32 %v5428, %v5430
  %v5432 = vrot.slane %v5410, %v5431
  %v5434 = vunpack.c.l.s4 1966171168
  %v5435 = vunpack.c.0.s8 %v5434
  %v5436 = vlaneseq
  %v5437 = vshrl.u32 %v5436, 7
  %v5438 = vsub.s32 %v5435, %v5437
  %v5439 = vrot.slane %v5411, %v5438
  %v5440 = vcombine.low %v5418, %v5425
  %v5441 = vcombine.low %v5432, %v5439
  %v5443 = vunpack.c.l.s4 1966171168
  %v5444 = vunpack.c.0.s8 %v5443
  %v5445 = vlaneseq
  %v5446 = vshrl.u32 %v5445, 7
  %v5447 = vsub.s32 %v5444, %v5446
  %v5448 = vrot.slane %v5440, %v5447
  %v5450 = vunpack.c.l.s4 1966171168
  %v5451 = vunpack.c.0.s8 %v5450
  %v5452 = vlaneseq
  %v5453 = vshrl.u32 %v5452, 7
  %v5454 = vsub.s32 %v5451, %v5453
  %v5455 = vrot.slane %v5441, %v5454
  %v5456 = vcombine.low %v5448, %v5455
  %v5457 = vcombine.low %v5337, %v5338
  %v5459 = vunpack.c.l.s4 1966171168
  %v5460 = vunpack.c.0.s8 %v5459
  %v5461 = vlaneseq
  %v5462 = vshrl.u32 %v5461, 7
  %v5463 = vsub.s32 %v5460, %v5462
  %v5464 = vrot.slane %v5457, %v5463
  %v5466 = vunpack.c.l.s4 1966171168
  %v5467 = vunpack.c.0.s8 %v5466
  %v5468 = vlaneseq
  %v5469 = vshrl.u32 %v5468, 7
  %v5470 = vsub.s32 %v5467, %v5469
  %v5471 = vrot.slane %v5464, %v5470
  %v5475 = vsel %vm504, %v5407, 0.0
  %5476 = vadd.xlane.f32.xlu0 %v5475
  %v5477 = vpop.xlane.xlu0 %5476
  %v5478 = vsel %vm504, %v5456, 0.0
  %5479 = vadd.xlane.f32.xlu0 %v5478
  %v5480 = vpop.xlane.xlu0 %5479
  %v5481 = vsel %vm4265, %v5471, 0.0
  %5482 = vadd.xlane.f32.xlu0 %v5481
  %v5483 = vpop.xlane.xlu0 %5482
  %v5484 = vmul.f32 %v5477, %v4269
  %v5485 = vmul.f32 %v5480, %v4269
  %v5486 = vmul.f32 %v5483, %v4269
  %v5490 = vlaneseq
  %v5491 = vshrl.u32 %v5490, 7
  %v5492 = vsub.s32 0, %v5491
  %v5493 = vrot.slane %v5484, %v5492
  %v5494 = vlaneseq
  %v5495 = vshrl.u32 %v5494, 7
  %v5496 = vsub.s32 1, %v5495
  %v5497 = vrot.slane %v5484, %v5496
  %v5498 = vlaneseq
  %v5499 = vshrl.u32 %v5498, 7
  %v5500 = vsub.s32 2, %v5499
  %v5501 = vrot.slane %v5484, %v5500
  %v5502 = vlaneseq
  %v5503 = vshrl.u32 %v5502, 7
  %v5504 = vsub.s32 3, %v5503
  %v5505 = vrot.slane %v5484, %v5504
  %v5506 = vlaneseq
  %v5507 = vshrl.u32 %v5506, 7
  %v5508 = vsub.s32 4, %v5507
  %v5509 = vrot.slane %v5484, %v5508
  %v5510 = vlaneseq
  %v5511 = vshrl.u32 %v5510, 7
  %v5512 = vsub.s32 5, %v5511
  %v5513 = vrot.slane %v5484, %v5512
  %v5514 = vlaneseq
  %v5515 = vshrl.u32 %v5514, 7
  %v5516 = vsub.s32 6, %v5515
  %v5517 = vrot.slane %v5484, %v5516
  %v5518 = vlaneseq
  %v5519 = vshrl.u32 %v5518, 7
  %v5520 = vsub.s32 7, %v5519
  %v5521 = vrot.slane %v5484, %v5520
  %v5522 = vlaneseq
  %v5523 = vshrl.u32 %v5522, 7
  %v5524 = vsub.s32 0, %v5523
  %v5525 = vrot.slane %v5485, %v5524
  %v5526 = vlaneseq
  %v5527 = vshrl.u32 %v5526, 7
  %v5528 = vsub.s32 1, %v5527
  %v5529 = vrot.slane %v5485, %v5528
  %v5530 = vlaneseq
  %v5531 = vshrl.u32 %v5530, 7
  %v5532 = vsub.s32 2, %v5531
  %v5533 = vrot.slane %v5485, %v5532
  %v5534 = vlaneseq
  %v5535 = vshrl.u32 %v5534, 7
  %v5536 = vsub.s32 3, %v5535
  %v5537 = vrot.slane %v5485, %v5536
  %v5538 = vlaneseq
  %v5539 = vshrl.u32 %v5538, 7
  %v5540 = vsub.s32 4, %v5539
  %v5541 = vrot.slane %v5485, %v5540
  %v5542 = vlaneseq
  %v5543 = vshrl.u32 %v5542, 7
  %v5544 = vsub.s32 5, %v5543
  %v5545 = vrot.slane %v5485, %v5544
  %v5546 = vlaneseq
  %v5547 = vshrl.u32 %v5546, 7
  %v5548 = vsub.s32 6, %v5547
  %v5549 = vrot.slane %v5485, %v5548
  %v5550 = vlaneseq
  %v5551 = vshrl.u32 %v5550, 7
  %v5552 = vsub.s32 7, %v5551
  %v5553 = vrot.slane %v5485, %v5552
  %v5554 = vlaneseq
  %v5555 = vshrl.u32 %v5554, 7
  %v5556 = vsub.s32 0, %v5555
  %v5557 = vrot.slane %v5486, %v5556
  %v5558 = vlaneseq
  %v5559 = vshrl.u32 %v5558, 7
  %v5560 = vsub.s32 1, %v5559
  %v5561 = vrot.slane %v5486, %v5560
  %v5580 = vsub.f32 %v5321, %v5493
  %v5581 = vsub.f32 %v5322, %v5497
  %v5582 = vsub.f32 %v5323, %v5501
  %v5583 = vsub.f32 %v5324, %v5505
  %v5584 = vsub.f32 %v5325, %v5509
  %v5585 = vsub.f32 %v5326, %v5513
  %v5586 = vsub.f32 %v5327, %v5517
  %v5587 = vsub.f32 %v5328, %v5521
  %v5588 = vsub.f32 %v5329, %v5525
  %v5589 = vsub.f32 %v5330, %v5529
  %v5590 = vsub.f32 %v5331, %v5533
  %v5591 = vsub.f32 %v5332, %v5537
  %v5592 = vsub.f32 %v5333, %v5541
  %v5593 = vsub.f32 %v5334, %v5545
  %v5594 = vsub.f32 %v5335, %v5549
  %v5595 = vsub.f32 %v5336, %v5553
  %v5596 = vsub.f32 %v5337, %v5557
  %v5597 = vsub.f32 %v5338, %v5561
  %v5598 = vmul.f32 %v5580, %v5580
  %v5599 = vmul.f32 %v5581, %v5581
  %v5600 = vmul.f32 %v5582, %v5582
  %v5601 = vmul.f32 %v5583, %v5583
  %v5602 = vmul.f32 %v5584, %v5584
  %v5603 = vmul.f32 %v5585, %v5585
  %v5604 = vmul.f32 %v5586, %v5586
  %v5605 = vmul.f32 %v5587, %v5587
  %v5606 = vmul.f32 %v5588, %v5588
  %v5607 = vmul.f32 %v5589, %v5589
  %v5608 = vmul.f32 %v5590, %v5590
  %v5609 = vmul.f32 %v5591, %v5591
  %v5610 = vmul.f32 %v5592, %v5592
  %v5611 = vmul.f32 %v5593, %v5593
  %v5612 = vmul.f32 %v5594, %v5594
  %v5613 = vmul.f32 %v5595, %v5595
  %v5614 = vmul.f32 %v5596, %v5596
  %v5615 = vmul.f32 %v5597, %v5597
  %v5634 = vcombine.low %v5598, %v5599
  %v5635 = vcombine.low %v5600, %v5601
  %v5636 = vcombine.low %v5602, %v5603
  %v5637 = vcombine.low %v5604, %v5605
  %v5639 = vunpack.c.l.s4 1966171168
  %v5640 = vunpack.c.0.s8 %v5639
  %v5641 = vlaneseq
  %v5642 = vshrl.u32 %v5641, 7
  %v5643 = vsub.s32 %v5640, %v5642
  %v5644 = vrot.slane %v5634, %v5643
  %v5646 = vunpack.c.l.s4 1966171168
  %v5647 = vunpack.c.0.s8 %v5646
  %v5648 = vlaneseq
  %v5649 = vshrl.u32 %v5648, 7
  %v5650 = vsub.s32 %v5647, %v5649
  %v5651 = vrot.slane %v5635, %v5650
  %v5653 = vunpack.c.l.s4 1966171168
  %v5654 = vunpack.c.0.s8 %v5653
  %v5655 = vlaneseq
  %v5656 = vshrl.u32 %v5655, 7
  %v5657 = vsub.s32 %v5654, %v5656
  %v5658 = vrot.slane %v5636, %v5657
  %v5660 = vunpack.c.l.s4 1966171168
  %v5661 = vunpack.c.0.s8 %v5660
  %v5662 = vlaneseq
  %v5663 = vshrl.u32 %v5662, 7
  %v5664 = vsub.s32 %v5661, %v5663
  %v5665 = vrot.slane %v5637, %v5664
  %v5666 = vcombine.low %v5644, %v5651
  %v5667 = vcombine.low %v5658, %v5665
  %v5669 = vunpack.c.l.s4 1966171168
  %v5670 = vunpack.c.0.s8 %v5669
  %v5671 = vlaneseq
  %v5672 = vshrl.u32 %v5671, 7
  %v5673 = vsub.s32 %v5670, %v5672
  %v5674 = vrot.slane %v5666, %v5673
  %v5676 = vunpack.c.l.s4 1966171168
  %v5677 = vunpack.c.0.s8 %v5676
  %v5678 = vlaneseq
  %v5679 = vshrl.u32 %v5678, 7
  %v5680 = vsub.s32 %v5677, %v5679
  %v5681 = vrot.slane %v5667, %v5680
  %v5682 = vcombine.low %v5674, %v5681
  %v5683 = vcombine.low %v5606, %v5607
  %v5684 = vcombine.low %v5608, %v5609
  %v5685 = vcombine.low %v5610, %v5611
  %v5686 = vcombine.low %v5612, %v5613
  %v5688 = vunpack.c.l.s4 1966171168
  %v5689 = vunpack.c.0.s8 %v5688
  %v5690 = vlaneseq
  %v5691 = vshrl.u32 %v5690, 7
  %v5692 = vsub.s32 %v5689, %v5691
  %v5693 = vrot.slane %v5683, %v5692
  %v5695 = vunpack.c.l.s4 1966171168
  %v5696 = vunpack.c.0.s8 %v5695
  %v5697 = vlaneseq
  %v5698 = vshrl.u32 %v5697, 7
  %v5699 = vsub.s32 %v5696, %v5698
  %v5700 = vrot.slane %v5684, %v5699
  %v5702 = vunpack.c.l.s4 1966171168
  %v5703 = vunpack.c.0.s8 %v5702
  %v5704 = vlaneseq
  %v5705 = vshrl.u32 %v5704, 7
  %v5706 = vsub.s32 %v5703, %v5705
  %v5707 = vrot.slane %v5685, %v5706
  %v5709 = vunpack.c.l.s4 1966171168
  %v5710 = vunpack.c.0.s8 %v5709
  %v5711 = vlaneseq
  %v5712 = vshrl.u32 %v5711, 7
  %v5713 = vsub.s32 %v5710, %v5712
  %v5714 = vrot.slane %v5686, %v5713
  %v5715 = vcombine.low %v5693, %v5700
  %v5716 = vcombine.low %v5707, %v5714
  %v5718 = vunpack.c.l.s4 1966171168
  %v5719 = vunpack.c.0.s8 %v5718
  %v5720 = vlaneseq
  %v5721 = vshrl.u32 %v5720, 7
  %v5722 = vsub.s32 %v5719, %v5721
  %v5723 = vrot.slane %v5715, %v5722
  %v5725 = vunpack.c.l.s4 1966171168
  %v5726 = vunpack.c.0.s8 %v5725
  %v5727 = vlaneseq
  %v5728 = vshrl.u32 %v5727, 7
  %v5729 = vsub.s32 %v5726, %v5728
  %v5730 = vrot.slane %v5716, %v5729
  %v5731 = vcombine.low %v5723, %v5730
  %v5732 = vcombine.low %v5614, %v5615
  %v5734 = vunpack.c.l.s4 1966171168
  %v5735 = vunpack.c.0.s8 %v5734
  %v5736 = vlaneseq
  %v5737 = vshrl.u32 %v5736, 7
  %v5738 = vsub.s32 %v5735, %v5737
  %v5739 = vrot.slane %v5732, %v5738
  %v5741 = vunpack.c.l.s4 1966171168
  %v5742 = vunpack.c.0.s8 %v5741
  %v5743 = vlaneseq
  %v5744 = vshrl.u32 %v5743, 7
  %v5745 = vsub.s32 %v5742, %v5744
  %v5746 = vrot.slane %v5739, %v5745
  %v5750 = vsel %vm504, %v5682, 0.0
  %5751 = vadd.xlane.f32.xlu0 %v5750
  %v5752 = vpop.xlane.xlu0 %5751
  %v5753 = vsel %vm504, %v5731, 0.0
  %5754 = vadd.xlane.f32.xlu0 %v5753
  %v5755 = vpop.xlane.xlu0 %5754
  %v5756 = vsel %vm4265, %v5746, 0.0
  %5757 = vadd.xlane.f32.xlu0 %v5756
  %v5758 = vpop.xlane.xlu0 %5757
  %v5759 = vmul.f32 %v5752, %v4269
  %v5760 = vmul.f32 %v5755, %v4269
  %v5761 = vmul.f32 %v5758, %v4269
  %v5762 = vadd.f32 %v5759, 1e-05
  %v5763 = vadd.f32 %v5760, 1e-05
  %v5764 = vadd.f32 %v5761, 1e-05
  %v5765 = vrsqrt.pop %v5762
  %v5766 = vrsqrt.pop %v5763
  %v5767 = vrsqrt.pop %v5764
  %v5771 = vlaneseq
  %v5772 = vshrl.u32 %v5771, 7
  %v5773 = vsub.s32 0, %v5772
  %v5774 = vrot.slane %v5765, %v5773
  %v5775 = vlaneseq
  %v5776 = vshrl.u32 %v5775, 7
  %v5777 = vsub.s32 1, %v5776
  %v5778 = vrot.slane %v5765, %v5777
  %v5779 = vlaneseq
  %v5780 = vshrl.u32 %v5779, 7
  %v5781 = vsub.s32 2, %v5780
  %v5782 = vrot.slane %v5765, %v5781
  %v5783 = vlaneseq
  %v5784 = vshrl.u32 %v5783, 7
  %v5785 = vsub.s32 3, %v5784
  %v5786 = vrot.slane %v5765, %v5785
  %v5787 = vlaneseq
  %v5788 = vshrl.u32 %v5787, 7
  %v5789 = vsub.s32 4, %v5788
  %v5790 = vrot.slane %v5765, %v5789
  %v5791 = vlaneseq
  %v5792 = vshrl.u32 %v5791, 7
  %v5793 = vsub.s32 5, %v5792
  %v5794 = vrot.slane %v5765, %v5793
  %v5795 = vlaneseq
  %v5796 = vshrl.u32 %v5795, 7
  %v5797 = vsub.s32 6, %v5796
  %v5798 = vrot.slane %v5765, %v5797
  %v5799 = vlaneseq
  %v5800 = vshrl.u32 %v5799, 7
  %v5801 = vsub.s32 7, %v5800
  %v5802 = vrot.slane %v5765, %v5801
  %v5803 = vlaneseq
  %v5804 = vshrl.u32 %v5803, 7
  %v5805 = vsub.s32 0, %v5804
  %v5806 = vrot.slane %v5766, %v5805
  %v5807 = vlaneseq
  %v5808 = vshrl.u32 %v5807, 7
  %v5809 = vsub.s32 1, %v5808
  %v5810 = vrot.slane %v5766, %v5809
  %v5811 = vlaneseq
  %v5812 = vshrl.u32 %v5811, 7
  %v5813 = vsub.s32 2, %v5812
  %v5814 = vrot.slane %v5766, %v5813
  %v5815 = vlaneseq
  %v5816 = vshrl.u32 %v5815, 7
  %v5817 = vsub.s32 3, %v5816
  %v5818 = vrot.slane %v5766, %v5817
  %v5819 = vlaneseq
  %v5820 = vshrl.u32 %v5819, 7
  %v5821 = vsub.s32 4, %v5820
  %v5822 = vrot.slane %v5766, %v5821
  %v5823 = vlaneseq
  %v5824 = vshrl.u32 %v5823, 7
  %v5825 = vsub.s32 5, %v5824
  %v5826 = vrot.slane %v5766, %v5825
  %v5827 = vlaneseq
  %v5828 = vshrl.u32 %v5827, 7
  %v5829 = vsub.s32 6, %v5828
  %v5830 = vrot.slane %v5766, %v5829
  %v5831 = vlaneseq
  %v5832 = vshrl.u32 %v5831, 7
  %v5833 = vsub.s32 7, %v5832
  %v5834 = vrot.slane %v5766, %v5833
  %v5835 = vlaneseq
  %v5836 = vshrl.u32 %v5835, 7
  %v5837 = vsub.s32 0, %v5836
  %v5838 = vrot.slane %v5767, %v5837
  %v5839 = vlaneseq
  %v5840 = vshrl.u32 %v5839, 7
  %v5841 = vsub.s32 1, %v5840
  %v5842 = vrot.slane %v5767, %v5841
  %v5861 = vmul.f32 %v5580, %v5774
  %v5862 = vmul.f32 %v5581, %v5778
  %v5863 = vmul.f32 %v5582, %v5782
  %v5864 = vmul.f32 %v5583, %v5786
  %v5865 = vmul.f32 %v5584, %v5790
  %v5866 = vmul.f32 %v5585, %v5794
  %v5867 = vmul.f32 %v5586, %v5798
  %v5868 = vmul.f32 %v5587, %v5802
  %v5869 = vmul.f32 %v5588, %v5806
  %v5870 = vmul.f32 %v5589, %v5810
  %v5871 = vmul.f32 %v5590, %v5814
  %v5872 = vmul.f32 %v5591, %v5818
  %v5873 = vmul.f32 %v5592, %v5822
  %v5874 = vmul.f32 %v5593, %v5826
  %v5875 = vmul.f32 %v5594, %v5830
  %v5876 = vmul.f32 %v5595, %v5834
  %v5877 = vmul.f32 %v5596, %v5838
  %v5878 = vmul.f32 %v5597, %v5842
  %v5880 = vlaneseq
  %v5881 = vshrl.u32 %v5880, 7
  %v5882 = vsub.s32 0, %v5881
  %v5883 = vrot.slane %v5339, %v5882
  %v5884 = vcombine.high %v5883, %v5883
  %v5886 = vunpack.c.l.s4 1966171168
  %v5887 = vunpack.c.0.s8 %v5886
  %v5888 = vlaneseq
  %v5889 = vshrl.u32 %v5888, 7
  %v5890 = vsub.s32 %v5887, %v5889
  %v5891 = vrot.slane %v5883, %v5890
  %v5893 = vunpack.c.l.s4 1966171168
  %v5894 = vunpack.c.0.s8 %v5893
  %v5895 = vlaneseq
  %v5896 = vshrl.u32 %v5895, 7
  %v5897 = vsub.s32 %v5894, %v5896
  %v5898 = vrot.slane %v5884, %v5897
  %v5899 = vcombine.high %v5891, %v5891
  %v5900 = vcombine.high %v5898, %v5898
  %v5902 = vunpack.c.l.s4 1966171168
  %v5903 = vunpack.c.0.s8 %v5902
  %v5904 = vlaneseq
  %v5905 = vshrl.u32 %v5904, 7
  %v5906 = vsub.s32 %v5903, %v5905
  %v5907 = vrot.slane %v5891, %v5906
  %v5909 = vunpack.c.l.s4 1966171168
  %v5910 = vunpack.c.0.s8 %v5909
  %v5911 = vlaneseq
  %v5912 = vshrl.u32 %v5911, 7
  %v5913 = vsub.s32 %v5910, %v5912
  %v5914 = vrot.slane %v5898, %v5913
  %v5916 = vunpack.c.l.s4 1966171168
  %v5917 = vunpack.c.0.s8 %v5916
  %v5918 = vlaneseq
  %v5919 = vshrl.u32 %v5918, 7
  %v5920 = vsub.s32 %v5917, %v5919
  %v5921 = vrot.slane %v5899, %v5920
  %v5923 = vunpack.c.l.s4 1966171168
  %v5924 = vunpack.c.0.s8 %v5923
  %v5925 = vlaneseq
  %v5926 = vshrl.u32 %v5925, 7
  %v5927 = vsub.s32 %v5924, %v5926
  %v5928 = vrot.slane %v5900, %v5927
  %v5929 = vcombine.high %v5907, %v5907
  %v5930 = vcombine.high %v5914, %v5914
  %v5931 = vcombine.high %v5921, %v5921
  %v5932 = vcombine.high %v5928, %v5928
  %v5941 = vmul.f32 %v5861, %v5907
  %v5942 = vmul.f32 %v5862, %v5921
  %v5943 = vmul.f32 %v5863, %v5929
  %v5944 = vmul.f32 %v5864, %v5931
  %v5945 = vmul.f32 %v5865, %v5914
  %v5946 = vmul.f32 %v5866, %v5928
  %v5947 = vmul.f32 %v5867, %v5930
  %v5948 = vmul.f32 %v5868, %v5932
  %v5949 = vmul.f32 %v5869, %v5907
  %v5950 = vmul.f32 %v5870, %v5921
  %v5951 = vmul.f32 %v5871, %v5929
  %v5952 = vmul.f32 %v5872, %v5931
  %v5953 = vmul.f32 %v5873, %v5914
  %v5954 = vmul.f32 %v5874, %v5928
  %v5955 = vmul.f32 %v5875, %v5930
  %v5956 = vmul.f32 %v5876, %v5932
  %v5957 = vmul.f32 %v5877, %v5907
  %v5958 = vmul.f32 %v5878, %v5921
  %v5960 = vlaneseq
  %v5961 = vshrl.u32 %v5960, 7
  %v5962 = vsub.s32 0, %v5961
  %v5963 = vrot.slane %v5340, %v5962
  %v5964 = vcombine.high %v5963, %v5963
  %v5966 = vunpack.c.l.s4 1966171168
  %v5967 = vunpack.c.0.s8 %v5966
  %v5968 = vlaneseq
  %v5969 = vshrl.u32 %v5968, 7
  %v5970 = vsub.s32 %v5967, %v5969
  %v5971 = vrot.slane %v5963, %v5970
  %v5973 = vunpack.c.l.s4 1966171168
  %v5974 = vunpack.c.0.s8 %v5973
  %v5975 = vlaneseq
  %v5976 = vshrl.u32 %v5975, 7
  %v5977 = vsub.s32 %v5974, %v5976
  %v5978 = vrot.slane %v5964, %v5977
  %v5979 = vcombine.high %v5971, %v5971
  %v5980 = vcombine.high %v5978, %v5978
  %v5982 = vunpack.c.l.s4 1966171168
  %v5983 = vunpack.c.0.s8 %v5982
  %v5984 = vlaneseq
  %v5985 = vshrl.u32 %v5984, 7
  %v5986 = vsub.s32 %v5983, %v5985
  %v5987 = vrot.slane %v5971, %v5986
  %v5989 = vunpack.c.l.s4 1966171168
  %v5990 = vunpack.c.0.s8 %v5989
  %v5991 = vlaneseq
  %v5992 = vshrl.u32 %v5991, 7
  %v5993 = vsub.s32 %v5990, %v5992
  %v5994 = vrot.slane %v5978, %v5993
  %v5996 = vunpack.c.l.s4 1966171168
  %v5997 = vunpack.c.0.s8 %v5996
  %v5998 = vlaneseq
  %v5999 = vshrl.u32 %v5998, 7
  %v6000 = vsub.s32 %v5997, %v5999
  %v6001 = vrot.slane %v5979, %v6000
  %v6003 = vunpack.c.l.s4 1966171168
  %v6004 = vunpack.c.0.s8 %v6003
  %v6005 = vlaneseq
  %v6006 = vshrl.u32 %v6005, 7
  %v6007 = vsub.s32 %v6004, %v6006
  %v6008 = vrot.slane %v5980, %v6007
  %v6009 = vcombine.high %v5987, %v5987
  %v6010 = vcombine.high %v5994, %v5994
  %v6011 = vcombine.high %v6001, %v6001
  %v6012 = vcombine.high %v6008, %v6008
  %v6021 = vadd.f32 %v5941, %v5987
  %v6022 = vadd.f32 %v5942, %v6001
  %v6023 = vadd.f32 %v5943, %v6009
  %v6024 = vadd.f32 %v5944, %v6011
  %v6025 = vadd.f32 %v5945, %v5994
  %v6026 = vadd.f32 %v5946, %v6008
  %v6027 = vadd.f32 %v5947, %v6010
  %v6028 = vadd.f32 %v5948, %v6012
  %v6029 = vadd.f32 %v5949, %v5987
  %v6030 = vadd.f32 %v5950, %v6001
  %v6031 = vadd.f32 %v5951, %v6009
  %v6032 = vadd.f32 %v5952, %v6011
  %v6033 = vadd.f32 %v5953, %v5994
  %v6034 = vadd.f32 %v5954, %v6008
  %v6035 = vadd.f32 %v5955, %v6010
  %v6036 = vadd.f32 %v5956, %v6012
  %v6037 = vadd.f32 %v5957, %v5987
  %v6038 = vadd.f32 %v5958, %v6001
  %s6039 = scalar_lea.vmem %s3, 96
  %v6040 = vld [vmem:[%s6039] sm:$0xff]
  %v6041 = vld [vmem:[%s6039 + $0x8] sm:$0xff]
  %v6042 = vld [vmem:[%s6039 + $0x10] sm:$0xff]
  %v6043 = vld [vmem:[%s6039 + $0x18] sm:$0xff]
  %v6044 = vld [vmem:[%s6039 + $0x20] sm:$0xff]
  %v6045 = vld [vmem:[%s6039 + $0x28] sm:$0xff]
  %v6046 = vld [vmem:[%s6039 + $0x30] sm:$0xff]
  %v6047 = vld [vmem:[%s6039 + $0x38] sm:$0xff]
  %v6048 = vld [vmem:[%s6039 + $0x40] sm:$0xff]
  %v6049 = vld [vmem:[%s6039 + $0x48] sm:$0xff]
  %v6050 = vld [vmem:[%s6039 + $0x50] sm:$0xff]
  %v6051 = vld [vmem:[%s6039 + $0x58] sm:$0xff]
  %s6052 = scalar_lea.vmem %s4, 1
  %v6053 = vld [vmem:[%s6052] sm:$0x1]
  %v6055 = vlaneseq
  %v6056 = vshrl.u32 %v6055, 7
  %v6057 = vsub.s32 0, %v6056
  %v6058 = vrot.slane %v6053, %v6057
  %v6078 = vcombine.low %v6021, %v6022
  %v6079 = vcombine.low %v6023, %v6024
  %v6080 = vcombine.low %v6025, %v6026
  %v6081 = vcombine.low %v6027, %v6028
  %v6083 = vunpack.c.l.s4 1966171168
  %v6084 = vunpack.c.0.s8 %v6083
  %v6085 = vlaneseq
  %v6086 = vshrl.u32 %v6085, 7
  %v6087 = vsub.s32 %v6084, %v6086
  %v6088 = vrot.slane %v6078, %v6087
  %v6090 = vunpack.c.l.s4 1966171168
  %v6091 = vunpack.c.0.s8 %v6090
  %v6092 = vlaneseq
  %v6093 = vshrl.u32 %v6092, 7
  %v6094 = vsub.s32 %v6091, %v6093
  %v6095 = vrot.slane %v6079, %v6094
  %v6097 = vunpack.c.l.s4 1966171168
  %v6098 = vunpack.c.0.s8 %v6097
  %v6099 = vlaneseq
  %v6100 = vshrl.u32 %v6099, 7
  %v6101 = vsub.s32 %v6098, %v6100
  %v6102 = vrot.slane %v6080, %v6101
  %v6104 = vunpack.c.l.s4 1966171168
  %v6105 = vunpack.c.0.s8 %v6104
  %v6106 = vlaneseq
  %v6107 = vshrl.u32 %v6106, 7
  %v6108 = vsub.s32 %v6105, %v6107
  %v6109 = vrot.slane %v6081, %v6108
  %v6110 = vcombine.low %v6088, %v6095
  %v6111 = vcombine.low %v6102, %v6109
  %v6113 = vunpack.c.l.s4 1966171168
  %v6114 = vunpack.c.0.s8 %v6113
  %v6115 = vlaneseq
  %v6116 = vshrl.u32 %v6115, 7
  %v6117 = vsub.s32 %v6114, %v6116
  %v6118 = vrot.slane %v6110, %v6117
  %v6120 = vunpack.c.l.s4 1966171168
  %v6121 = vunpack.c.0.s8 %v6120
  %v6122 = vlaneseq
  %v6123 = vshrl.u32 %v6122, 7
  %v6124 = vsub.s32 %v6121, %v6123
  %v6125 = vrot.slane %v6111, %v6124
  %v6126 = vcombine.low %v6118, %v6125
  %v6127 = vcombine.low %v6029, %v6030
  %v6128 = vcombine.low %v6031, %v6032
  %v6129 = vcombine.low %v6033, %v6034
  %v6130 = vcombine.low %v6035, %v6036
  %v6132 = vunpack.c.l.s4 1966171168
  %v6133 = vunpack.c.0.s8 %v6132
  %v6134 = vlaneseq
  %v6135 = vshrl.u32 %v6134, 7
  %v6136 = vsub.s32 %v6133, %v6135
  %v6137 = vrot.slane %v6127, %v6136
  %v6139 = vunpack.c.l.s4 1966171168
  %v6140 = vunpack.c.0.s8 %v6139
  %v6141 = vlaneseq
  %v6142 = vshrl.u32 %v6141, 7
  %v6143 = vsub.s32 %v6140, %v6142
  %v6144 = vrot.slane %v6128, %v6143
  %v6146 = vunpack.c.l.s4 1966171168
  %v6147 = vunpack.c.0.s8 %v6146
  %v6148 = vlaneseq
  %v6149 = vshrl.u32 %v6148, 7
  %v6150 = vsub.s32 %v6147, %v6149
  %v6151 = vrot.slane %v6129, %v6150
  %v6153 = vunpack.c.l.s4 1966171168
  %v6154 = vunpack.c.0.s8 %v6153
  %v6155 = vlaneseq
  %v6156 = vshrl.u32 %v6155, 7
  %v6157 = vsub.s32 %v6154, %v6156
  %v6158 = vrot.slane %v6130, %v6157
  %v6159 = vcombine.low %v6137, %v6144
  %v6160 = vcombine.low %v6151, %v6158
  %v6162 = vunpack.c.l.s4 1966171168
  %v6163 = vunpack.c.0.s8 %v6162
  %v6164 = vlaneseq
  %v6165 = vshrl.u32 %v6164, 7
  %v6166 = vsub.s32 %v6163, %v6165
  %v6167 = vrot.slane %v6159, %v6166
  %v6169 = vunpack.c.l.s4 1966171168
  %v6170 = vunpack.c.0.s8 %v6169
  %v6171 = vlaneseq
  %v6172 = vshrl.u32 %v6171, 7
  %v6173 = vsub.s32 %v6170, %v6172
  %v6174 = vrot.slane %v6160, %v6173
  %v6175 = vcombine.low %v6167, %v6174
  %v6176 = vcombine.low %v6037, %v6038
  %v6178 = vunpack.c.l.s4 1966171168
  %v6179 = vunpack.c.0.s8 %v6178
  %v6180 = vlaneseq
  %v6181 = vshrl.u32 %v6180, 7
  %v6182 = vsub.s32 %v6179, %v6181
  %v6183 = vrot.slane %v6176, %v6182
  %v6185 = vunpack.c.l.s4 1966171168
  %v6186 = vunpack.c.0.s8 %v6185
  %v6187 = vlaneseq
  %v6188 = vshrl.u32 %v6187, 7
  %v6189 = vsub.s32 %v6186, %v6188
  %v6190 = vrot.slane %v6183, %v6189
  %v6191 = vsel %vm504, %v6126, 0
  %v6193 = vsel %vm504, %v6175, 0
  %v6195 = vsel %vm504, %v6190, 0
  %v6198 = vsel %vm504, %v6040, 0
  %v6201 = vsel %vm504, %v6041, 0
  %v6204 = vsel %vm504, %v6042, 0
  %v6207 = vsel %vm504, %v6043, 0
  %v6210 = vsel %vm504, %v6044, 0
  %v6213 = vsel %vm504, %v6045, 0
  %v6216 = vsel %vm504, %v6046, 0
  %v6219 = vsel %vm504, %v6047, 0
  %v6222 = vsel %vm504, %v6048, 0
  %v6225 = vsel %vm504, %v6049, 0
  %v6228 = vsel %vm504, %v6050, 0
  %v6231 = vsel %vm504, %v6051, 0
  %6233 = vmatprep.subr.mxu0 0.0
  %6234 = vmatpush1.xpose.msra.mxu0 0.0
  %6235 = vmatprep.subr.mxu0 0.0
  %6236 = vmatpush1.xpose.msra.mxu0 0.0
  %6237 = vmatprep.subr.mxu0 0.0
  %6238 = vmatpush1.xpose.msra.mxu0 0.0
  %6239 = vmatprep.subr.mxu0 0.0
  %6240 = vmatpush1.xpose.msra.mxu0 0.0
  %6241 = vmatprep.subr.mxu0 0.0
  %6242 = vmatpush1.xpose.msra.mxu0 %v6231
  %6243 = vmatprep.subr.mxu0 0.0
  %6244 = vmatpush1.xpose.msra.mxu0 %v6228
  %6245 = vmatprep.subr.mxu0 0.0
  %6246 = vmatpush1.xpose.msra.mxu0 %v6225
  %6247 = vmatprep.subr.mxu0 0.0
  %6248 = vmatpush1.xpose.msra.mxu0 %v6222
  %6249 = vmatprep.subr.mxu0 0.0
  %6250 = vmatpush1.xpose.msra.mxu0 %v6219
  %6251 = vmatprep.subr.mxu0 0.0
  %6252 = vmatpush1.xpose.msra.mxu0 %v6216
  %6253 = vmatprep.subr.mxu0 0.0
  %6254 = vmatpush1.xpose.msra.mxu0 %v6213
  %6255 = vmatprep.subr.mxu0 0.0
  %6256 = vmatpush1.xpose.msra.mxu0 %v6210
  %6257 = vmatprep.subr.mxu0 0.0
  %6258 = vmatpush1.xpose.msra.mxu0 %v6207
  %6259 = vmatprep.subr.mxu0 0.0
  %6260 = vmatpush1.xpose.msra.mxu0 %v6204
  %6261 = vmatprep.subr.mxu0 0.0
  %6262 = vmatpush1.xpose.msra.mxu0 %v6201
  %6263 = vmatprep.subr.mxu0 0.0
  %6264 = vmatpush1.xpose.msra.mxu0 %v6198
  %6265 = vmatprep.subr.mxu0 0.0
  %6266 = vmatpush2.xpose.msra.mxu0 0.0
  %6267 = vmatprep.subr.mxu0 0.0
  %6268 = vmatpush2.xpose.msra.mxu0 0.0
  %6269 = vmatprep.subr.mxu0 0.0
  %6270 = vmatpush2.xpose.msra.mxu0 0.0
  %6271 = vmatprep.subr.mxu0 0.0
  %6272 = vmatpush2.xpose.msra.mxu0 0.0
  %6273 = vmatprep.subr.mxu0 0.0
  %6274 = vmatpush2.xpose.msra.mxu0 0.0
  %6275 = vmatprep.subr.mxu0 0.0
  %6276 = vmatpush2.xpose.msra.mxu0 0.0
  %6277 = vmatprep.subr.mxu0 0.0
  %6278 = vmatpush2.xpose.msra.mxu0 0.0
  %6279 = vmatprep.subr.mxu0 0.0
  %6280 = vmatpush2.xpose.msra.mxu0 0.0
  %6281 = vmatprep.subr.mxu0 0.0
  %6282 = vmatpush2.xpose.msra.mxu0 0.0
  %6283 = vmatprep.subr.mxu0 0.0
  %6284 = vmatpush2.xpose.msra.mxu0 0.0
  %6285 = vmatprep.subr.mxu0 0.0
  %6286 = vmatpush2.xpose.msra.mxu0 0.0
  %6287 = vmatprep.subr.mxu0 0.0
  %6288 = vmatpush2.xpose.msra.mxu0 0.0
  %6289 = vmatprep.subr.mxu0 0.0
  %6290 = vmatpush2.xpose.msra.mxu0 0.0
  %6291 = vmatprep.subr.mxu0 0.0
  %6292 = vmatpush2.xpose.msra.mxu0 0.0
  %6293 = vmatprep.subr.mxu0 0.0
  %6294 = vmatpush2.xpose.msra.mxu0 0.0
  %6295 = vmatprep.subr.mxu0 0.0
  %6296 = vmatpush2.xpose.msra.mxu0 0.0
  %6297 = vmatprep.mubr.f32.mxu0 0.0
  %6298 = vmatmul.mubr.f32.gmra.mxu0 %v6191
  %v6299 = vpop.f32.mrf.mxu0
  %v6300 = vadd.f32 %v6058, %v6299
  %v6301 = vpop.f32.mrf.mxu0
  %6302 = vmatprep.mubr.f32.mxu0 0.0
  %6303 = vmatmul.mubr.f32.gmra.mxu0 %v6193
  %v6304 = vpop.f32.mrf.mxu0
  %v6305 = vadd.f32 %v6058, %v6304
  %v6306 = vpop.f32.mrf.mxu0
  %6307 = vmatprep.mubr.f32.mxu0 0.0
  %6308 = vmatmul.mubr.f32.gmra.mxu0 %v6195
  %v6309 = vpop.f32.mrf.mxu0
  %v6310 = vadd.f32 %v6058, %v6309
  %v6311 = vpop.f32.mrf.mxu0
  %6312 = vdwg.mxu0
  %v6316 = vcombine.high %v6300, %v6300
  %v6318 = vunpack.c.l.s4 1966171168
  %v6319 = vunpack.c.0.s8 %v6318
  %v6320 = vlaneseq
  %v6321 = vshrl.u32 %v6320, 7
  %v6322 = vsub.s32 %v6319, %v6321
  %v6323 = vrot.slane %v6300, %v6322
  %v6325 = vunpack.c.l.s4 1966171168
  %v6326 = vunpack.c.0.s8 %v6325
  %v6327 = vlaneseq
  %v6328 = vshrl.u32 %v6327, 7
  %v6329 = vsub.s32 %v6326, %v6328
  %v6330 = vrot.slane %v6316, %v6329
  %v6331 = vcombine.high %v6323, %v6323
  %v6332 = vcombine.high %v6330, %v6330
  %v6334 = vunpack.c.l.s4 1966171168
  %v6335 = vunpack.c.0.s8 %v6334
  %v6336 = vlaneseq
  %v6337 = vshrl.u32 %v6336, 7
  %v6338 = vsub.s32 %v6335, %v6337
  %v6339 = vrot.slane %v6323, %v6338
  %v6341 = vunpack.c.l.s4 1966171168
  %v6342 = vunpack.c.0.s8 %v6341
  %v6343 = vlaneseq
  %v6344 = vshrl.u32 %v6343, 7
  %v6345 = vsub.s32 %v6342, %v6344
  %v6346 = vrot.slane %v6330, %v6345
  %v6348 = vunpack.c.l.s4 1966171168
  %v6349 = vunpack.c.0.s8 %v6348
  %v6350 = vlaneseq
  %v6351 = vshrl.u32 %v6350, 7
  %v6352 = vsub.s32 %v6349, %v6351
  %v6353 = vrot.slane %v6331, %v6352
  %v6355 = vunpack.c.l.s4 1966171168
  %v6356 = vunpack.c.0.s8 %v6355
  %v6357 = vlaneseq
  %v6358 = vshrl.u32 %v6357, 7
  %v6359 = vsub.s32 %v6356, %v6358
  %v6360 = vrot.slane %v6332, %v6359
  %v6361 = vcombine.high %v6339, %v6339
  %v6362 = vcombine.high %v6346, %v6346
  %v6363 = vcombine.high %v6353, %v6353
  %v6364 = vcombine.high %v6360, %v6360
  %v6365 = vcombine.high %v6305, %v6305
  %v6367 = vunpack.c.l.s4 1966171168
  %v6368 = vunpack.c.0.s8 %v6367
  %v6369 = vlaneseq
  %v6370 = vshrl.u32 %v6369, 7
  %v6371 = vsub.s32 %v6368, %v6370
  %v6372 = vrot.slane %v6305, %v6371
  %v6374 = vunpack.c.l.s4 1966171168
  %v6375 = vunpack.c.0.s8 %v6374
  %v6376 = vlaneseq
  %v6377 = vshrl.u32 %v6376, 7
  %v6378 = vsub.s32 %v6375, %v6377
  %v6379 = vrot.slane %v6365, %v6378
  %v6380 = vcombine.high %v6372, %v6372
  %v6381 = vcombine.high %v6379, %v6379
  %v6383 = vunpack.c.l.s4 1966171168
  %v6384 = vunpack.c.0.s8 %v6383
  %v6385 = vlaneseq
  %v6386 = vshrl.u32 %v6385, 7
  %v6387 = vsub.s32 %v6384, %v6386
  %v6388 = vrot.slane %v6372, %v6387
  %v6390 = vunpack.c.l.s4 1966171168
  %v6391 = vunpack.c.0.s8 %v6390
  %v6392 = vlaneseq
  %v6393 = vshrl.u32 %v6392, 7
  %v6394 = vsub.s32 %v6391, %v6393
  %v6395 = vrot.slane %v6379, %v6394
  %v6397 = vunpack.c.l.s4 1966171168
  %v6398 = vunpack.c.0.s8 %v6397
  %v6399 = vlaneseq
  %v6400 = vshrl.u32 %v6399, 7
  %v6401 = vsub.s32 %v6398, %v6400
  %v6402 = vrot.slane %v6380, %v6401
  %v6404 = vunpack.c.l.s4 1966171168
  %v6405 = vunpack.c.0.s8 %v6404
  %v6406 = vlaneseq
  %v6407 = vshrl.u32 %v6406, 7
  %v6408 = vsub.s32 %v6405, %v6407
  %v6409 = vrot.slane %v6381, %v6408
  %v6410 = vcombine.high %v6388, %v6388
  %v6411 = vcombine.high %v6395, %v6395
  %v6412 = vcombine.high %v6402, %v6402
  %v6413 = vcombine.high %v6409, %v6409
  %v6415 = vunpack.c.l.s4 1966171168
  %v6416 = vunpack.c.0.s8 %v6415
  %v6417 = vlaneseq
  %v6418 = vshrl.u32 %v6417, 7
  %v6419 = vsub.s32 %v6416, %v6418
  %v6420 = vrot.slane %v6310, %v6419
  %v6421 = vcombine.high %v6420, %v6420
  %v6423 = vunpack.c.l.s4 1966171168
  %v6424 = vunpack.c.0.s8 %v6423
  %v6425 = vlaneseq
  %v6426 = vshrl.u32 %v6425, 7
  %v6427 = vsub.s32 %v6424, %v6426
  %v6428 = vrot.slane %v6420, %v6427
  %v6430 = vunpack.c.l.s4 1966171168
  %v6431 = vunpack.c.0.s8 %v6430
  %v6432 = vlaneseq
  %v6433 = vshrl.u32 %v6432, 7
  %v6434 = vsub.s32 %v6431, %v6433
  %v6435 = vrot.slane %v6421, %v6434
  %v6454 = vmul.f32 %v6339, 0.35355338
  %v6455 = vmul.f32 %v6353, 0.35355338
  %v6456 = vmul.f32 %v6361, 0.35355338
  %v6457 = vmul.f32 %v6363, 0.35355338
  %v6458 = vmul.f32 %v6346, 0.35355338
  %v6459 = vmul.f32 %v6360, 0.35355338
  %v6460 = vmul.f32 %v6362, 0.35355338
  %v6461 = vmul.f32 %v6364, 0.35355338
  %v6462 = vmul.f32 %v6388, 0.35355338
  %v6463 = vmul.f32 %v6402, 0.35355338
  %v6464 = vmul.f32 %v6410, 0.35355338
  %v6465 = vmul.f32 %v6412, 0.35355338
  %v6466 = vmul.f32 %v6395, 0.35355338
  %v6467 = vmul.f32 %v6409, 0.35355338
  %v6468 = vmul.f32 %v6411, 0.35355338
  %v6469 = vmul.f32 %v6413, 0.35355338
  %v6470 = vmul.f32 %v6428, 0.35355338
  %v6471 = vmul.f32 %v6435, 0.35355338
  %v6481 = vcombine.low %v6454, %v6455
  %v6482 = vcombine.low %v6456, %v6457
  %v6483 = vcombine.low %v6458, %v6459
  %v6484 = vcombine.low %v6460, %v6461
  %v6486 = vunpack.c.l.s4 1966171168
  %v6487 = vunpack.c.0.s8 %v6486
  %v6488 = vlaneseq
  %v6489 = vshrl.u32 %v6488, 7
  %v6490 = vsub.s32 %v6487, %v6489
  %v6491 = vrot.slane %v6481, %v6490
  %v6493 = vunpack.c.l.s4 1966171168
  %v6494 = vunpack.c.0.s8 %v6493
  %v6495 = vlaneseq
  %v6496 = vshrl.u32 %v6495, 7
  %v6497 = vsub.s32 %v6494, %v6496
  %v6498 = vrot.slane %v6482, %v6497
  %v6500 = vunpack.c.l.s4 1966171168
  %v6501 = vunpack.c.0.s8 %v6500
  %v6502 = vlaneseq
  %v6503 = vshrl.u32 %v6502, 7
  %v6504 = vsub.s32 %v6501, %v6503
  %v6505 = vrot.slane %v6483, %v6504
  %v6507 = vunpack.c.l.s4 1966171168
  %v6508 = vunpack.c.0.s8 %v6507
  %v6509 = vlaneseq
  %v6510 = vshrl.u32 %v6509, 7
  %v6511 = vsub.s32 %v6508, %v6510
  %v6512 = vrot.slane %v6484, %v6511
  %v6513 = vcombine.low %v6491, %v6498
  %v6514 = vcombine.low %v6505, %v6512
  %v6516 = vunpack.c.l.s4 1966171168
  %v6517 = vunpack.c.0.s8 %v6516
  %v6518 = vlaneseq
  %v6519 = vshrl.u32 %v6518, 7
  %v6520 = vsub.s32 %v6517, %v6519
  %v6521 = vrot.slane %v6513, %v6520
  %v6523 = vunpack.c.l.s4 1966171168
  %v6524 = vunpack.c.0.s8 %v6523
  %v6525 = vlaneseq
  %v6526 = vshrl.u32 %v6525, 7
  %v6527 = vsub.s32 %v6524, %v6526
  %v6528 = vrot.slane %v6514, %v6527
  %v6529 = vcombine.low %v6521, %v6528
  %v6531 = vunpack.c.l.s4 1966171168
  %v6532 = vunpack.c.0.s8 %v6531
  %v6533 = vlaneseq
  %v6534 = vshrl.u32 %v6533, 7
  %v6535 = vsub.s32 %v6532, %v6534
  %v6536 = vrot.slane %v6462, %v6535
  %v6538 = vunpack.c.l.s4 1966171168
  %v6539 = vunpack.c.0.s8 %v6538
  %v6540 = vlaneseq
  %v6541 = vshrl.u32 %v6540, 7
  %v6542 = vsub.s32 %v6539, %v6541
  %v6543 = vrot.slane %v6536, %v6542
  %v6544 = vcombine.low %v6339, %v6353
  %v6545 = vcombine.low %v6361, %v6363
  %v6546 = vcombine.low %v6346, %v6360
  %v6547 = vcombine.low %v6362, %v6364
  %v6549 = vunpack.c.l.s4 1966171168
  %v6550 = vunpack.c.0.s8 %v6549
  %v6551 = vlaneseq
  %v6552 = vshrl.u32 %v6551, 7
  %v6553 = vsub.s32 %v6550, %v6552
  %v6554 = vrot.slane %v6544, %v6553
  %v6556 = vunpack.c.l.s4 1966171168
  %v6557 = vunpack.c.0.s8 %v6556
  %v6558 = vlaneseq
  %v6559 = vshrl.u32 %v6558, 7
  %v6560 = vsub.s32 %v6557, %v6559
  %v6561 = vrot.slane %v6545, %v6560
  %v6563 = vunpack.c.l.s4 1966171168
  %v6564 = vunpack.c.0.s8 %v6563
  %v6565 = vlaneseq
  %v6566 = vshrl.u32 %v6565, 7
  %v6567 = vsub.s32 %v6564, %v6566
  %v6568 = vrot.slane %v6546, %v6567
  %v6570 = vunpack.c.l.s4 1966171168
  %v6571 = vunpack.c.0.s8 %v6570
  %v6572 = vlaneseq
  %v6573 = vshrl.u32 %v6572, 7
  %v6574 = vsub.s32 %v6571, %v6573
  %v6575 = vrot.slane %v6547, %v6574
  %v6576 = vcombine.low %v6554, %v6561
  %v6577 = vcombine.low %v6568, %v6575
  %v6579 = vunpack.c.l.s4 1966171168
  %v6580 = vunpack.c.0.s8 %v6579
  %v6581 = vlaneseq
  %v6582 = vshrl.u32 %v6581, 7
  %v6583 = vsub.s32 %v6580, %v6582
  %v6584 = vrot.slane %v6576, %v6583
  %v6586 = vunpack.c.l.s4 1966171168
  %v6587 = vunpack.c.0.s8 %v6586
  %v6588 = vlaneseq
  %v6589 = vshrl.u32 %v6588, 7
  %v6590 = vsub.s32 %v6587, %v6589
  %v6591 = vrot.slane %v6577, %v6590
  %v6592 = vcombine.low %v6584, %v6591
  %v6594 = vunpack.c.l.s4 1966171168
  %v6595 = vunpack.c.0.s8 %v6594
  %v6596 = vlaneseq
  %v6597 = vshrl.u32 %v6596, 7
  %v6598 = vsub.s32 %v6595, %v6597
  %v6599 = vrot.slane %v6388, %v6598
  %v6601 = vunpack.c.l.s4 1966171168
  %v6602 = vunpack.c.0.s8 %v6601
  %v6603 = vlaneseq
  %v6604 = vshrl.u32 %v6603, 7
  %v6605 = vsub.s32 %v6602, %v6604
  %v6606 = vrot.slane %v6599, %v6605
  %6607 = vrot.lane.b32.xlu0 %v6592, 96
  %v6608 = vpop.permute.xlu0 %6607
  %6609 = vrot.lane.b32.xlu0 %v6606, 96
  %v6610 = vpop.permute.xlu0 %6609
  %v6611 = vsel %vm925, %v6529, 0
  %v6613 = vsel %vm925, %v6543, 0
  %v6615 = vsel %vm925, %v6608, 0
  %v6617 = vsel %vm925, %v6610, 0
  %6619 = vmatprep.subr.mxu0 0.0
  %6620 = vmatpush1.xpose.msra.mxu0 0.0
  %6621 = vmatprep.subr.mxu0 0.0
  %6622 = vmatpush1.xpose.msra.mxu0 0.0
  %6623 = vmatprep.subr.mxu0 0.0
  %6624 = vmatpush1.xpose.msra.mxu0 0.0
  %6625 = vmatprep.subr.mxu0 0.0
  %6626 = vmatpush1.xpose.msra.mxu0 0.0
  %6627 = vmatprep.subr.mxu0 0.0
  %6628 = vmatpush1.xpose.msra.mxu0 0.0
  %6629 = vmatprep.subr.mxu0 0.0
  %6630 = vmatpush1.xpose.msra.mxu0 0.0
  %6631 = vmatprep.subr.mxu0 0.0
  %6632 = vmatpush1.xpose.msra.mxu0 0.0
  %6633 = vmatprep.subr.mxu0 0.0
  %6634 = vmatpush1.xpose.msra.mxu0 0.0
  %6635 = vmatprep.subr.mxu0 0.0
  %6636 = vmatpush1.xpose.msra.mxu0 0.0
  %6637 = vmatprep.subr.mxu0 0.0
  %6638 = vmatpush1.xpose.msra.mxu0 0.0
  %6639 = vmatprep.subr.mxu0 0.0
  %6640 = vmatpush1.xpose.msra.mxu0 0.0
  %6641 = vmatprep.subr.mxu0 0.0
  %6642 = vmatpush1.xpose.msra.mxu0 0.0
  %6643 = vmatprep.subr.mxu0 0.0
  %6644 = vmatpush1.xpose.msra.mxu0 0.0
  %6645 = vmatprep.subr.mxu0 0.0
  %6646 = vmatpush1.xpose.msra.mxu0 0.0
  %6647 = vmatprep.subr.mxu0 0.0
  %6648 = vmatpush1.xpose.msra.mxu0 %v6617
  %6649 = vmatprep.subr.mxu0 0.0
  %6650 = vmatpush1.xpose.msra.mxu0 %v6615
  %6651 = vmatprep.subr.mxu0 0.0
  %6652 = vmatpush2.xpose.msra.mxu0 0.0
  %6653 = vmatprep.subr.mxu0 0.0
  %6654 = vmatpush2.xpose.msra.mxu0 0.0
  %6655 = vmatprep.subr.mxu0 0.0
  %6656 = vmatpush2.xpose.msra.mxu0 0.0
  %6657 = vmatprep.subr.mxu0 0.0
  %6658 = vmatpush2.xpose.msra.mxu0 0.0
  %6659 = vmatprep.subr.mxu0 0.0
  %6660 = vmatpush2.xpose.msra.mxu0 0.0
  %6661 = vmatprep.subr.mxu0 0.0
  %6662 = vmatpush2.xpose.msra.mxu0 0.0
  %6663 = vmatprep.subr.mxu0 0.0
  %6664 = vmatpush2.xpose.msra.mxu0 0.0
  %6665 = vmatprep.subr.mxu0 0.0
  %6666 = vmatpush2.xpose.msra.mxu0 0.0
  %6667 = vmatprep.subr.mxu0 0.0
  %6668 = vmatpush2.xpose.msra.mxu0 0.0
  %6669 = vmatprep.subr.mxu0 0.0
  %6670 = vmatpush2.xpose.msra.mxu0 0.0
  %6671 = vmatprep.subr.mxu0 0.0
  %6672 = vmatpush2.xpose.msra.mxu0 0.0
  %6673 = vmatprep.subr.mxu0 0.0
  %6674 = vmatpush2.xpose.msra.mxu0 0.0
  %6675 = vmatprep.subr.mxu0 0.0
  %6676 = vmatpush2.xpose.msra.mxu0 0.0
  %6677 = vmatprep.subr.mxu0 0.0
  %6678 = vmatpush2.xpose.msra.mxu0 0.0
  %6679 = vmatprep.subr.mxu0 0.0
  %6680 = vmatpush2.xpose.msra.mxu0 0.0
  %6681 = vmatprep.subr.mxu0 0.0
  %6682 = vmatpush2.xpose.msra.mxu0 0.0
  %6683 = vmatprep.mubr.f32.mxu0 0.0
  %6684 = vmatmul.mubr.f32.gmra.mxu0 %v6611
  %v6685 = vpop.f32.mrf.mxu0
  %v6686 = vadd.f32 %v202, %v6685
  %v6687 = vpop.f32.mrf.mxu0
  %6688 = vmatprep.mubr.f32.mxu0 0.0
  %6689 = vmatmul.mubr.f32.gmra.mxu0 %v6613
  %v6690 = vpop.f32.mrf.mxu0
  %v6691 = vadd.f32 %v203, %v6690
  %v6692 = vpop.f32.mrf.mxu0
  %6693 = vdwg.mxu0
  %v6703 = vcombine.low %v6463, %v6464
  %v6704 = vcombine.low %v6465, %v6466
  %v6705 = vcombine.low %v6467, %v6468
  %v6706 = vcombine.low %v6469, %v6470
  %v6708 = vunpack.c.l.s4 1966171168
  %v6709 = vunpack.c.0.s8 %v6708
  %v6710 = vlaneseq
  %v6711 = vshrl.u32 %v6710, 7
  %v6712 = vsub.s32 %v6709, %v6711
  %v6713 = vrot.slane %v6703, %v6712
  %v6715 = vunpack.c.l.s4 1966171168
  %v6716 = vunpack.c.0.s8 %v6715
  %v6717 = vlaneseq
  %v6718 = vshrl.u32 %v6717, 7
  %v6719 = vsub.s32 %v6716, %v6718
  %v6720 = vrot.slane %v6704, %v6719
  %v6722 = vunpack.c.l.s4 1966171168
  %v6723 = vunpack.c.0.s8 %v6722
  %v6724 = vlaneseq
  %v6725 = vshrl.u32 %v6724, 7
  %v6726 = vsub.s32 %v6723, %v6725
  %v6727 = vrot.slane %v6705, %v6726
  %v6729 = vunpack.c.l.s4 1966171168
  %v6730 = vunpack.c.0.s8 %v6729
  %v6731 = vlaneseq
  %v6732 = vshrl.u32 %v6731, 7
  %v6733 = vsub.s32 %v6730, %v6732
  %v6734 = vrot.slane %v6706, %v6733
  %v6735 = vcombine.low %v6713, %v6720
  %v6736 = vcombine.low %v6727, %v6734
  %v6738 = vunpack.c.l.s4 1966171168
  %v6739 = vunpack.c.0.s8 %v6738
  %v6740 = vlaneseq
  %v6741 = vshrl.u32 %v6740, 7
  %v6742 = vsub.s32 %v6739, %v6741
  %v6743 = vrot.slane %v6735, %v6742
  %v6745 = vunpack.c.l.s4 1966171168
  %v6746 = vunpack.c.0.s8 %v6745
  %v6747 = vlaneseq
  %v6748 = vshrl.u32 %v6747, 7
  %v6749 = vsub.s32 %v6746, %v6748
  %v6750 = vrot.slane %v6736, %v6749
  %v6751 = vcombine.low %v6743, %v6750
  %v6753 = vunpack.c.l.s4 1966171168
  %v6754 = vunpack.c.0.s8 %v6753
  %v6755 = vlaneseq
  %v6756 = vshrl.u32 %v6755, 7
  %v6757 = vsub.s32 %v6754, %v6756
  %v6758 = vrot.slane %v6471, %v6757
  %v6760 = vunpack.c.l.s4 1966171168
  %v6761 = vunpack.c.0.s8 %v6760
  %v6762 = vlaneseq
  %v6763 = vshrl.u32 %v6762, 7
  %v6764 = vsub.s32 %v6761, %v6763
  %v6765 = vrot.slane %v6758, %v6764
  %v6766 = vcombine.low %v6402, %v6410
  %v6767 = vcombine.low %v6412, %v6395
  %v6768 = vcombine.low %v6409, %v6411
  %v6769 = vcombine.low %v6413, %v6428
  %v6771 = vunpack.c.l.s4 1966171168
  %v6772 = vunpack.c.0.s8 %v6771
  %v6773 = vlaneseq
  %v6774 = vshrl.u32 %v6773, 7
  %v6775 = vsub.s32 %v6772, %v6774
  %v6776 = vrot.slane %v6766, %v6775
  %v6778 = vunpack.c.l.s4 1966171168
  %v6779 = vunpack.c.0.s8 %v6778
  %v6780 = vlaneseq
  %v6781 = vshrl.u32 %v6780, 7
  %v6782 = vsub.s32 %v6779, %v6781
  %v6783 = vrot.slane %v6767, %v6782
  %v6785 = vunpack.c.l.s4 1966171168
  %v6786 = vunpack.c.0.s8 %v6785
  %v6787 = vlaneseq
  %v6788 = vshrl.u32 %v6787, 7
  %v6789 = vsub.s32 %v6786, %v6788
  %v6790 = vrot.slane %v6768, %v6789
  %v6792 = vunpack.c.l.s4 1966171168
  %v6793 = vunpack.c.0.s8 %v6792
  %v6794 = vlaneseq
  %v6795 = vshrl.u32 %v6794, 7
  %v6796 = vsub.s32 %v6793, %v6795
  %v6797 = vrot.slane %v6769, %v6796
  %v6798 = vcombine.low %v6776, %v6783
  %v6799 = vcombine.low %v6790, %v6797
  %v6801 = vunpack.c.l.s4 1966171168
  %v6802 = vunpack.c.0.s8 %v6801
  %v6803 = vlaneseq
  %v6804 = vshrl.u32 %v6803, 7
  %v6805 = vsub.s32 %v6802, %v6804
  %v6806 = vrot.slane %v6798, %v6805
  %v6808 = vunpack.c.l.s4 1966171168
  %v6809 = vunpack.c.0.s8 %v6808
  %v6810 = vlaneseq
  %v6811 = vshrl.u32 %v6810, 7
  %v6812 = vsub.s32 %v6809, %v6811
  %v6813 = vrot.slane %v6799, %v6812
  %v6814 = vcombine.low %v6806, %v6813
  %v6816 = vunpack.c.l.s4 1966171168
  %v6817 = vunpack.c.0.s8 %v6816
  %v6818 = vlaneseq
  %v6819 = vshrl.u32 %v6818, 7
  %v6820 = vsub.s32 %v6817, %v6819
  %v6821 = vrot.slane %v6435, %v6820
  %v6823 = vunpack.c.l.s4 1966171168
  %v6824 = vunpack.c.0.s8 %v6823
  %v6825 = vlaneseq
  %v6826 = vshrl.u32 %v6825, 7
  %v6827 = vsub.s32 %v6824, %v6826
  %v6828 = vrot.slane %v6821, %v6827
  %6829 = vrot.lane.b32.xlu0 %v6814, 96
  %v6830 = vpop.permute.xlu0 %6829
  %6831 = vrot.lane.b32.xlu0 %v6828, 96
  %v6832 = vpop.permute.xlu0 %6831
  %v6833 = vsel %vm925, %v6751, 0
  %v6835 = vsel %vm925, %v6765, 0
  %v6837 = vsel %vm925, %v6830, 0
  %v6839 = vsel %vm925, %v6832, 0
  %6841 = vmatprep.subr.mxu0 0.0
  %6842 = vmatpush1.xpose.msra.mxu0 0.0
  %6843 = vmatprep.subr.mxu0 0.0
  %6844 = vmatpush1.xpose.msra.mxu0 0.0
  %6845 = vmatprep.subr.mxu0 0.0
  %6846 = vmatpush1.xpose.msra.mxu0 0.0
  %6847 = vmatprep.subr.mxu0 0.0
  %6848 = vmatpush1.xpose.msra.mxu0 0.0
  %6849 = vmatprep.subr.mxu0 0.0
  %6850 = vmatpush1.xpose.msra.mxu0 0.0
  %6851 = vmatprep.subr.mxu0 0.0
  %6852 = vmatpush1.xpose.msra.mxu0 0.0
  %6853 = vmatprep.subr.mxu0 0.0
  %6854 = vmatpush1.xpose.msra.mxu0 0.0
  %6855 = vmatprep.subr.mxu0 0.0
  %6856 = vmatpush1.xpose.msra.mxu0 0.0
  %6857 = vmatprep.subr.mxu0 0.0
  %6858 = vmatpush1.xpose.msra.mxu0 0.0
  %6859 = vmatprep.subr.mxu0 0.0
  %6860 = vmatpush1.xpose.msra.mxu0 0.0
  %6861 = vmatprep.subr.mxu0 0.0
  %6862 = vmatpush1.xpose.msra.mxu0 0.0
  %6863 = vmatprep.subr.mxu0 0.0
  %6864 = vmatpush1.xpose.msra.mxu0 0.0
  %6865 = vmatprep.subr.mxu0 0.0
  %6866 = vmatpush1.xpose.msra.mxu0 0.0
  %6867 = vmatprep.subr.mxu0 0.0
  %6868 = vmatpush1.xpose.msra.mxu0 0.0
  %6869 = vmatprep.subr.mxu0 0.0
  %6870 = vmatpush1.xpose.msra.mxu0 %v6839
  %6871 = vmatprep.subr.mxu0 0.0
  %6872 = vmatpush1.xpose.msra.mxu0 %v6837
  %6873 = vmatprep.subr.mxu0 0.0
  %6874 = vmatpush2.xpose.msra.mxu0 0.0
  %6875 = vmatprep.subr.mxu0 0.0
  %6876 = vmatpush2.xpose.msra.mxu0 0.0
  %6877 = vmatprep.subr.mxu0 0.0
  %6878 = vmatpush2.xpose.msra.mxu0 0.0
  %6879 = vmatprep.subr.mxu0 0.0
  %6880 = vmatpush2.xpose.msra.mxu0 0.0
  %6881 = vmatprep.subr.mxu0 0.0
  %6882 = vmatpush2.xpose.msra.mxu0 0.0
  %6883 = vmatprep.subr.mxu0 0.0
  %6884 = vmatpush2.xpose.msra.mxu0 0.0
  %6885 = vmatprep.subr.mxu0 0.0
  %6886 = vmatpush2.xpose.msra.mxu0 0.0
  %6887 = vmatprep.subr.mxu0 0.0
  %6888 = vmatpush2.xpose.msra.mxu0 0.0
  %6889 = vmatprep.subr.mxu0 0.0
  %6890 = vmatpush2.xpose.msra.mxu0 0.0
  %6891 = vmatprep.subr.mxu0 0.0
  %6892 = vmatpush2.xpose.msra.mxu0 0.0
  %6893 = vmatprep.subr.mxu0 0.0
  %6894 = vmatpush2.xpose.msra.mxu0 0.0
  %6895 = vmatprep.subr.mxu0 0.0
  %6896 = vmatpush2.xpose.msra.mxu0 0.0
  %6897 = vmatprep.subr.mxu0 0.0
  %6898 = vmatpush2.xpose.msra.mxu0 0.0
  %6899 = vmatprep.subr.mxu0 0.0
  %6900 = vmatpush2.xpose.msra.mxu0 0.0
  %6901 = vmatprep.subr.mxu0 0.0
  %6902 = vmatpush2.xpose.msra.mxu0 0.0
  %6903 = vmatprep.subr.mxu0 0.0
  %6904 = vmatpush2.xpose.msra.mxu0 0.0
  %6905 = vmatprep.mubr.f32.mxu0 0.0
  %6906 = vmatmul.mubr.f32.gmra.mxu0 %v6833
  %v6907 = vpop.f32.mrf.mxu0
  %v6908 = vadd.f32 %v202, %v6907
  %v6909 = vpop.f32.mrf.mxu0
  %6910 = vmatprep.mubr.f32.mxu0 0.0
  %6911 = vmatmul.mubr.f32.gmra.mxu0 %v6835
  %v6912 = vpop.f32.mrf.mxu0
  %v6913 = vadd.f32 %v203, %v6912
  %v6914 = vpop.f32.mrf.mxu0
  %6915 = vdwg.mxu0
  %v6916 = vsel %vm1231, %v6686, -inf
  %6917 = vmax.xlane.f32.xlu0 %v6916
  %v6918 = vpop.xlane.xlu0 %6917
  %v6919 = vsel %vm1235, %v6691, -inf
  %6920 = vmax.xlane.f32.xlu0 %v6919
  %v6921 = vpop.xlane.xlu0 %6920
  %v6922 = vsel %vm1231, %v6908, -inf
  %6923 = vmax.xlane.f32.xlu0 %v6922
  %v6924 = vpop.xlane.xlu0 %6923
  %v6925 = vsel %vm1235, %v6913, -inf
  %6926 = vmax.xlane.f32.xlu0 %v6925
  %v6927 = vpop.xlane.xlu0 %6926
  %v6928 = vsub.f32 %v6686, %v6918
  %v6929 = vsub.f32 %v6691, %v6921
  %v6930 = vsub.f32 %v6908, %v6924
  %v6931 = vsub.f32 %v6913, %v6927
  %v6932 = vmul.f32 %v6928, 1.442695
  %v6933 = vpow.pop %v6932
  %v6934 = vmul.f32 %v6929, 1.442695
  %v6935 = vpow.pop %v6934
  %v6936 = vmul.f32 %v6930, 1.442695
  %v6937 = vpow.pop %v6936
  %v6938 = vmul.f32 %v6931, 1.442695
  %v6939 = vpow.pop %v6938
  %v6940 = vsel %vm1231, %v6933, 0.0
  %6941 = vadd.xlane.f32.xlu0 %v6940
  %v6942 = vpop.xlane.xlu0 %6941
  %v6943 = vsel %vm1235, %v6935, 0.0
  %6944 = vadd.xlane.f32.xlu0 %v6943
  %v6945 = vpop.xlane.xlu0 %6944
  %v6946 = vsel %vm1231, %v6937, 0.0
  %6947 = vadd.xlane.f32.xlu0 %v6946
  %v6948 = vpop.xlane.xlu0 %6947
  %v6949 = vsel %vm1235, %v6939, 0.0
  %6950 = vadd.xlane.f32.xlu0 %v6949
  %v6951 = vpop.xlane.xlu0 %6950
  %v6952 = vrcp.pop %v6942
  %v6953 = vmul.f32 %v6933, %v6952
  %v6954 = vrcp.pop %v6945
  %v6955 = vmul.f32 %v6935, %v6954
  %v6956 = vrcp.pop %v6948
  %v6957 = vmul.f32 %v6937, %v6956
  %v6958 = vrcp.pop %v6951
  %v6959 = vmul.f32 %v6939, %v6958
  %v6960 = vmul.f32 %v6339, %v1328
  %v6961 = vmul.f32 %v6353, %v1330
  %v6962 = vmul.f32 %v6361, %v1332
  %v6963 = vmul.f32 %v6363, %v1334
  %v6964 = vmul.f32 %v6346, %v1336
  %v6965 = vmul.f32 %v6360, %v1338
  %v6966 = vmul.f32 %v6362, %v1340
  %v6967 = vmul.f32 %v6364, %v1342
  %v6968 = vmul.f32 %v6388, %v1328
  %v6969 = vmul.f32 %v6402, %v1328
  %v6970 = vmul.f32 %v6410, %v1330
  %v6971 = vmul.f32 %v6412, %v1332
  %v6972 = vmul.f32 %v6395, %v1334
  %v6973 = vmul.f32 %v6409, %v1336
  %v6974 = vmul.f32 %v6411, %v1338
  %v6975 = vmul.f32 %v6413, %v1340
  %v6976 = vmul.f32 %v6428, %v1342
  %v6977 = vmul.f32 %v6435, %v1328
  %6978 = vrot.lane.b32.xlu0 %v6529, 120
  %v6979 = vpop.permute.xlu0 %6978
  %6980 = vrot.lane.b32.xlu0 %v6543, 120
  %v6981 = vpop.permute.xlu0 %6980
  %6982 = vrot.lane.b32.xlu0 %v6592, 88
  %v6983 = vpop.permute.xlu0 %6982
  %6984 = vrot.lane.b32.xlu0 %v6606, 88
  %v6985 = vpop.permute.xlu0 %6984
  %v6986 = vsel %vm925, %v6979, 0
  %v6988 = vsel %vm925, %v6981, 0
  %v6990 = vsel %vm925, %v6983, 0
  %v6992 = vsel %vm925, %v6985, 0
  %6994 = vmatprep.subr.mxu0 0.0
  %6995 = vmatpush1.xpose.msra.mxu0 0.0
  %6996 = vmatprep.subr.mxu0 0.0
  %6997 = vmatpush1.xpose.msra.mxu0 0.0
  %6998 = vmatprep.subr.mxu0 0.0
  %6999 = vmatpush1.xpose.msra.mxu0 0.0
  %7000 = vmatprep.subr.mxu0 0.0
  %7001 = vmatpush1.xpose.msra.mxu0 0.0
  %7002 = vmatprep.subr.mxu0 0.0
  %7003 = vmatpush1.xpose.msra.mxu0 0.0
  %7004 = vmatprep.subr.mxu0 0.0
  %7005 = vmatpush1.xpose.msra.mxu0 0.0
  %7006 = vmatprep.subr.mxu0 0.0
  %7007 = vmatpush1.xpose.msra.mxu0 0.0
  %7008 = vmatprep.subr.mxu0 0.0
  %7009 = vmatpush1.xpose.msra.mxu0 0.0
  %7010 = vmatprep.subr.mxu0 0.0
  %7011 = vmatpush1.xpose.msra.mxu0 0.0
  %7012 = vmatprep.subr.mxu0 0.0
  %7013 = vmatpush1.xpose.msra.mxu0 0.0
  %7014 = vmatprep.subr.mxu0 0.0
  %7015 = vmatpush1.xpose.msra.mxu0 0.0
  %7016 = vmatprep.subr.mxu0 0.0
  %7017 = vmatpush1.xpose.msra.mxu0 0.0
  %7018 = vmatprep.subr.mxu0 0.0
  %7019 = vmatpush1.xpose.msra.mxu0 0.0
  %7020 = vmatprep.subr.mxu0 0.0
  %7021 = vmatpush1.xpose.msra.mxu0 0.0
  %7022 = vmatprep.subr.mxu0 0.0
  %7023 = vmatpush1.xpose.msra.mxu0 %v6992
  %7024 = vmatprep.subr.mxu0 0.0
  %7025 = vmatpush1.xpose.msra.mxu0 %v6990
  %7026 = vmatprep.subr.mxu0 0.0
  %7027 = vmatpush2.xpose.msra.mxu0 0.0
  %7028 = vmatprep.subr.mxu0 0.0
  %7029 = vmatpush2.xpose.msra.mxu0 0.0
  %7030 = vmatprep.subr.mxu0 0.0
  %7031 = vmatpush2.xpose.msra.mxu0 0.0
  %7032 = vmatprep.subr.mxu0 0.0
  %7033 = vmatpush2.xpose.msra.mxu0 0.0
  %7034 = vmatprep.subr.mxu0 0.0
  %7035 = vmatpush2.xpose.msra.mxu0 0.0
  %7036 = vmatprep.subr.mxu0 0.0
  %7037 = vmatpush2.xpose.msra.mxu0 0.0
  %7038 = vmatprep.subr.mxu0 0.0
  %7039 = vmatpush2.xpose.msra.mxu0 0.0
  %7040 = vmatprep.subr.mxu0 0.0
  %7041 = vmatpush2.xpose.msra.mxu0 0.0
  %7042 = vmatprep.subr.mxu0 0.0
  %7043 = vmatpush2.xpose.msra.mxu0 0.0
  %7044 = vmatprep.subr.mxu0 0.0
  %7045 = vmatpush2.xpose.msra.mxu0 0.0
  %7046 = vmatprep.subr.mxu0 0.0
  %7047 = vmatpush2.xpose.msra.mxu0 0.0
  %7048 = vmatprep.subr.mxu0 0.0
  %7049 = vmatpush2.xpose.msra.mxu0 0.0
  %7050 = vmatprep.subr.mxu0 0.0
  %7051 = vmatpush2.xpose.msra.mxu0 0.0
  %7052 = vmatprep.subr.mxu0 0.0
  %7053 = vmatpush2.xpose.msra.mxu0 0.0
  %7054 = vmatprep.subr.mxu0 0.0
  %7055 = vmatpush2.xpose.msra.mxu0 0.0
  %7056 = vmatprep.subr.mxu0 0.0
  %7057 = vmatpush2.xpose.msra.mxu0 0.0
  %7058 = vmatprep.mubr.f32.mxu0 0.0
  %7059 = vmatmul.mubr.f32.gmra.mxu0 %v6986
  %v7060 = vpop.f32.mrf.mxu0
  %v7061 = vadd.f32 %v202, %v7060
  %v7062 = vpop.f32.mrf.mxu0
  %7063 = vmatprep.mubr.f32.mxu0 0.0
  %7064 = vmatmul.mubr.f32.gmra.mxu0 %v6988
  %v7065 = vpop.f32.mrf.mxu0
  %v7066 = vadd.f32 %v203, %v7065
  %v7067 = vpop.f32.mrf.mxu0
  %7068 = vdwg.mxu0
  %7069 = vrot.lane.b32.xlu0 %v6751, 120
  %v7070 = vpop.permute.xlu0 %7069
  %7071 = vrot.lane.b32.xlu0 %v6765, 120
  %v7072 = vpop.permute.xlu0 %7071
  %7073 = vrot.lane.b32.xlu0 %v6814, 88
  %v7074 = vpop.permute.xlu0 %7073
  %7075 = vrot.lane.b32.xlu0 %v6828, 88
  %v7076 = vpop.permute.xlu0 %7075
  %v7077 = vsel %vm925, %v7070, 0
  %v7079 = vsel %vm925, %v7072, 0
  %v7081 = vsel %vm925, %v7074, 0
  %v7083 = vsel %vm925, %v7076, 0
  %7085 = vmatprep.subr.mxu0 0.0
  %7086 = vmatpush1.xpose.msra.mxu0 0.0
  %7087 = vmatprep.subr.mxu0 0.0
  %7088 = vmatpush1.xpose.msra.mxu0 0.0
  %7089 = vmatprep.subr.mxu0 0.0
  %7090 = vmatpush1.xpose.msra.mxu0 0.0
  %7091 = vmatprep.subr.mxu0 0.0
  %7092 = vmatpush1.xpose.msra.mxu0 0.0
  %7093 = vmatprep.subr.mxu0 0.0
  %7094 = vmatpush1.xpose.msra.mxu0 0.0
  %7095 = vmatprep.subr.mxu0 0.0
  %7096 = vmatpush1.xpose.msra.mxu0 0.0
  %7097 = vmatprep.subr.mxu0 0.0
  %7098 = vmatpush1.xpose.msra.mxu0 0.0
  %7099 = vmatprep.subr.mxu0 0.0
  %7100 = vmatpush1.xpose.msra.mxu0 0.0
  %7101 = vmatprep.subr.mxu0 0.0
  %7102 = vmatpush1.xpose.msra.mxu0 0.0
  %7103 = vmatprep.subr.mxu0 0.0
  %7104 = vmatpush1.xpose.msra.mxu0 0.0
  %7105 = vmatprep.subr.mxu0 0.0
  %7106 = vmatpush1.xpose.msra.mxu0 0.0
  %7107 = vmatprep.subr.mxu0 0.0
  %7108 = vmatpush1.xpose.msra.mxu0 0.0
  %7109 = vmatprep.subr.mxu0 0.0
  %7110 = vmatpush1.xpose.msra.mxu0 0.0
  %7111 = vmatprep.subr.mxu0 0.0
  %7112 = vmatpush1.xpose.msra.mxu0 0.0
  %7113 = vmatprep.subr.mxu0 0.0
  %7114 = vmatpush1.xpose.msra.mxu0 %v7083
  %7115 = vmatprep.subr.mxu0 0.0
  %7116 = vmatpush1.xpose.msra.mxu0 %v7081
  %7117 = vmatprep.subr.mxu0 0.0
  %7118 = vmatpush2.xpose.msra.mxu0 0.0
  %7119 = vmatprep.subr.mxu0 0.0
  %7120 = vmatpush2.xpose.msra.mxu0 0.0
  %7121 = vmatprep.subr.mxu0 0.0
  %7122 = vmatpush2.xpose.msra.mxu0 0.0
  %7123 = vmatprep.subr.mxu0 0.0
  %7124 = vmatpush2.xpose.msra.mxu0 0.0
  %7125 = vmatprep.subr.mxu0 0.0
  %7126 = vmatpush2.xpose.msra.mxu0 0.0
  %7127 = vmatprep.subr.mxu0 0.0
  %7128 = vmatpush2.xpose.msra.mxu0 0.0
  %7129 = vmatprep.subr.mxu0 0.0
  %7130 = vmatpush2.xpose.msra.mxu0 0.0
  %7131 = vmatprep.subr.mxu0 0.0
  %7132 = vmatpush2.xpose.msra.mxu0 0.0
  %7133 = vmatprep.subr.mxu0 0.0
  %7134 = vmatpush2.xpose.msra.mxu0 0.0
  %7135 = vmatprep.subr.mxu0 0.0
  %7136 = vmatpush2.xpose.msra.mxu0 0.0
  %7137 = vmatprep.subr.mxu0 0.0
  %7138 = vmatpush2.xpose.msra.mxu0 0.0
  %7139 = vmatprep.subr.mxu0 0.0
  %7140 = vmatpush2.xpose.msra.mxu0 0.0
  %7141 = vmatprep.subr.mxu0 0.0
  %7142 = vmatpush2.xpose.msra.mxu0 0.0
  %7143 = vmatprep.subr.mxu0 0.0
  %7144 = vmatpush2.xpose.msra.mxu0 0.0
  %7145 = vmatprep.subr.mxu0 0.0
  %7146 = vmatpush2.xpose.msra.mxu0 0.0
  %7147 = vmatprep.subr.mxu0 0.0
  %7148 = vmatpush2.xpose.msra.mxu0 0.0
  %7149 = vmatprep.mubr.f32.mxu0 0.0
  %7150 = vmatmul.mubr.f32.gmra.mxu0 %v7077
  %v7151 = vpop.f32.mrf.mxu0
  %v7152 = vadd.f32 %v202, %v7151
  %v7153 = vpop.f32.mrf.mxu0
  %7154 = vmatprep.mubr.f32.mxu0 0.0
  %7155 = vmatmul.mubr.f32.gmra.mxu0 %v7079
  %v7156 = vpop.f32.mrf.mxu0
  %v7157 = vadd.f32 %v203, %v7156
  %v7158 = vpop.f32.mrf.mxu0
  %7159 = vdwg.mxu0
  %v7160 = vsel %vm1231, %v7061, -inf
  %7161 = vmax.xlane.f32.xlu0 %v7160
  %v7162 = vpop.xlane.xlu0 %7161
  %v7163 = vsel %vm1235, %v7066, -inf
  %7164 = vmax.xlane.f32.xlu0 %v7163
  %v7165 = vpop.xlane.xlu0 %7164
  %v7166 = vsel %vm1231, %v7152, -inf
  %7167 = vmax.xlane.f32.xlu0 %v7166
  %v7168 = vpop.xlane.xlu0 %7167
  %v7169 = vsel %vm1235, %v7157, -inf
  %7170 = vmax.xlane.f32.xlu0 %v7169
  %v7171 = vpop.xlane.xlu0 %7170
  %v7172 = vsub.f32 %v7061, %v7162
  %v7173 = vsub.f32 %v7066, %v7165
  %v7174 = vsub.f32 %v7152, %v7168
  %v7175 = vsub.f32 %v7157, %v7171
  %v7176 = vmul.f32 %v7172, 1.442695
  %v7177 = vpow.pop %v7176
  %v7178 = vmul.f32 %v7173, 1.442695
  %v7179 = vpow.pop %v7178
  %v7180 = vmul.f32 %v7174, 1.442695
  %v7181 = vpow.pop %v7180
  %v7182 = vmul.f32 %v7175, 1.442695
  %v7183 = vpow.pop %v7182
  %v7184 = vsel %vm1231, %v7177, 0.0
  %7185 = vadd.xlane.f32.xlu0 %v7184
  %v7186 = vpop.xlane.xlu0 %7185
  %v7187 = vsel %vm1235, %v7179, 0.0
  %7188 = vadd.xlane.f32.xlu0 %v7187
  %v7189 = vpop.xlane.xlu0 %7188
  %v7190 = vsel %vm1231, %v7181, 0.0
  %7191 = vadd.xlane.f32.xlu0 %v7190
  %v7192 = vpop.xlane.xlu0 %7191
  %v7193 = vsel %vm1235, %v7183, 0.0
  %7194 = vadd.xlane.f32.xlu0 %v7193
  %v7195 = vpop.xlane.xlu0 %7194
  %v7196 = vrcp.pop %v7186
  %v7197 = vmul.f32 %v7177, %v7196
  %v7198 = vrcp.pop %v7189
  %v7199 = vmul.f32 %v7179, %v7198
  %v7200 = vrcp.pop %v7192
  %v7201 = vmul.f32 %v7181, %v7200
  %v7202 = vrcp.pop %v7195
  %v7203 = vmul.f32 %v7183, %v7202
  %v7204 = vmul.f32 %v6339, %v1646
  %v7205 = vmul.f32 %v6353, %v1648
  %v7206 = vmul.f32 %v6361, %v1650
  %v7207 = vmul.f32 %v6363, %v1652
  %v7208 = vmul.f32 %v6346, %v1654
  %v7209 = vmul.f32 %v6360, %v1656
  %v7210 = vmul.f32 %v6362, %v1658
  %v7211 = vmul.f32 %v6364, %v1660
  %v7212 = vmul.f32 %v6388, %v1646
  %v7213 = vmul.f32 %v6402, %v1646
  %v7214 = vmul.f32 %v6410, %v1648
  %v7215 = vmul.f32 %v6412, %v1650
  %v7216 = vmul.f32 %v6395, %v1652
  %v7217 = vmul.f32 %v6409, %v1654
  %v7218 = vmul.f32 %v6411, %v1656
  %v7219 = vmul.f32 %v6413, %v1658
  %v7220 = vmul.f32 %v6428, %v1660
  %v7221 = vmul.f32 %v6435, %v1646
  %v7231 = vcombine.low %v7204, %v7205
  %v7232 = vcombine.low %v7206, %v7207
  %v7233 = vcombine.low %v7208, %v7209
  %v7234 = vcombine.low %v7210, %v7211
  %v7236 = vunpack.c.l.s4 1966171168
  %v7237 = vunpack.c.0.s8 %v7236
  %v7238 = vlaneseq
  %v7239 = vshrl.u32 %v7238, 7
  %v7240 = vsub.s32 %v7237, %v7239
  %v7241 = vrot.slane %v7231, %v7240
  %v7243 = vunpack.c.l.s4 1966171168
  %v7244 = vunpack.c.0.s8 %v7243
  %v7245 = vlaneseq
  %v7246 = vshrl.u32 %v7245, 7
  %v7247 = vsub.s32 %v7244, %v7246
  %v7248 = vrot.slane %v7232, %v7247
  %v7250 = vunpack.c.l.s4 1966171168
  %v7251 = vunpack.c.0.s8 %v7250
  %v7252 = vlaneseq
  %v7253 = vshrl.u32 %v7252, 7
  %v7254 = vsub.s32 %v7251, %v7253
  %v7255 = vrot.slane %v7233, %v7254
  %v7257 = vunpack.c.l.s4 1966171168
  %v7258 = vunpack.c.0.s8 %v7257
  %v7259 = vlaneseq
  %v7260 = vshrl.u32 %v7259, 7
  %v7261 = vsub.s32 %v7258, %v7260
  %v7262 = vrot.slane %v7234, %v7261
  %v7263 = vcombine.low %v7241, %v7248
  %v7264 = vcombine.low %v7255, %v7262
  %v7266 = vunpack.c.l.s4 1966171168
  %v7267 = vunpack.c.0.s8 %v7266
  %v7268 = vlaneseq
  %v7269 = vshrl.u32 %v7268, 7
  %v7270 = vsub.s32 %v7267, %v7269
  %v7271 = vrot.slane %v7263, %v7270
  %v7273 = vunpack.c.l.s4 1966171168
  %v7274 = vunpack.c.0.s8 %v7273
  %v7275 = vlaneseq
  %v7276 = vshrl.u32 %v7275, 7
  %v7277 = vsub.s32 %v7274, %v7276
  %v7278 = vrot.slane %v7264, %v7277
  %v7279 = vcombine.low %v7271, %v7278
  %v7281 = vunpack.c.l.s4 1966171168
  %v7282 = vunpack.c.0.s8 %v7281
  %v7283 = vlaneseq
  %v7284 = vshrl.u32 %v7283, 7
  %v7285 = vsub.s32 %v7282, %v7284
  %v7286 = vrot.slane %v7212, %v7285
  %v7288 = vunpack.c.l.s4 1966171168
  %v7289 = vunpack.c.0.s8 %v7288
  %v7290 = vlaneseq
  %v7291 = vshrl.u32 %v7290, 7
  %v7292 = vsub.s32 %v7289, %v7291
  %v7293 = vrot.slane %v7286, %v7292
  %7294 = vrot.lane.b32.xlu0 %v7279, 64
  %v7295 = vpop.permute.xlu0 %7294
  %7296 = vrot.lane.b32.xlu0 %v7293, 64
  %v7297 = vpop.permute.xlu0 %7296
  %v7300 = vsel %vm1231, %v7197, 0
  %v7303 = vsel %vm1231, %v7199, 0
  %v7305 = vsel %vm1770, %v7297, 0
  %7307 = vmatprep.subr.mxu0 0.0
  %7308 = vmatpush1.msra.mxu0 0.0
  %7309 = vmatprep.subr.mxu0 0.0
  %7310 = vmatpush1.msra.mxu0 0.0
  %7311 = vmatprep.subr.mxu0 0.0
  %7312 = vmatpush1.msra.mxu0 0.0
  %7313 = vmatprep.subr.mxu0 0.0
  %7314 = vmatpush1.msra.mxu0 0.0
  %7315 = vmatprep.subr.mxu0 0.0
  %7316 = vmatpush1.msra.mxu0 0.0
  %7317 = vmatprep.subr.mxu0 0.0
  %7318 = vmatpush1.msra.mxu0 0.0
  %7319 = vmatprep.subr.mxu0 0.0
  %7320 = vmatpush1.msra.mxu0 0.0
  %7321 = vmatprep.subr.mxu0 0.0
  %7322 = vmatpush1.msra.mxu0 0.0
  %7323 = vmatprep.subr.mxu0 0.0
  %7324 = vmatpush1.msra.mxu0 0.0
  %7325 = vmatprep.subr.mxu0 0.0
  %7326 = vmatpush1.msra.mxu0 0.0
  %7327 = vmatprep.subr.mxu0 0.0
  %7328 = vmatpush1.msra.mxu0 0.0
  %7329 = vmatprep.subr.mxu0 0.0
  %7330 = vmatpush1.msra.mxu0 0.0
  %7331 = vmatprep.subr.mxu0 0.0
  %7332 = vmatpush1.msra.mxu0 0.0
  %7333 = vmatprep.subr.mxu0 0.0
  %7334 = vmatpush1.msra.mxu0 0.0
  %7335 = vmatprep.subr.mxu0 0.0
  %7336 = vmatpush1.msra.mxu0 %v7305
  %7337 = vmatprep.subr.mxu0 0.0
  %7338 = vmatpush1.msra.mxu0 %v7295
  %7339 = vmatprep.subr.mxu0 0.0
  %7340 = vmatpush2.msra.mxu0 0.0
  %7341 = vmatprep.subr.mxu0 0.0
  %7342 = vmatpush2.msra.mxu0 0.0
  %7343 = vmatprep.subr.mxu0 0.0
  %7344 = vmatpush2.msra.mxu0 0.0
  %7345 = vmatprep.subr.mxu0 0.0
  %7346 = vmatpush2.msra.mxu0 0.0
  %7347 = vmatprep.subr.mxu0 0.0
  %7348 = vmatpush2.msra.mxu0 0.0
  %7349 = vmatprep.subr.mxu0 0.0
  %7350 = vmatpush2.msra.mxu0 0.0
  %7351 = vmatprep.subr.mxu0 0.0
  %7352 = vmatpush2.msra.mxu0 0.0
  %7353 = vmatprep.subr.mxu0 0.0
  %7354 = vmatpush2.msra.mxu0 0.0
  %7355 = vmatprep.subr.mxu0 0.0
  %7356 = vmatpush2.msra.mxu0 0.0
  %7357 = vmatprep.subr.mxu0 0.0
  %7358 = vmatpush2.msra.mxu0 0.0
  %7359 = vmatprep.subr.mxu0 0.0
  %7360 = vmatpush2.msra.mxu0 0.0
  %7361 = vmatprep.subr.mxu0 0.0
  %7362 = vmatpush2.msra.mxu0 0.0
  %7363 = vmatprep.subr.mxu0 0.0
  %7364 = vmatpush2.msra.mxu0 0.0
  %7365 = vmatprep.subr.mxu0 0.0
  %7366 = vmatpush2.msra.mxu0 0.0
  %7367 = vmatprep.subr.mxu0 0.0
  %7368 = vmatpush2.msra.mxu0 0.0
  %7369 = vmatprep.subr.mxu0 0.0
  %7370 = vmatpush2.msra.mxu0 0.0
  %7371 = vmatprep.mubr.f32.mxu0 0.0
  %7372 = vmatmul.mubr.f32.gmra.mxu0 %v7300
  %v7373 = vpop.f32.mrf.mxu0
  %v7374 = vadd.f32 0.0, %v7373
  %v7375 = vpop.f32.mrf.mxu0
  %7376 = vmatprep.mubr.f32.mxu0 0.0
  %7377 = vmatmul.mubr.f32.gmra.mxu0 %v7303
  %v7378 = vpop.f32.mrf.mxu0
  %v7379 = vadd.f32 0.0, %v7378
  %v7380 = vpop.f32.mrf.mxu0
  %7381 = vdwg.mxu0
  %v7391 = vcombine.low %v7213, %v7214
  %v7392 = vcombine.low %v7215, %v7216
  %v7393 = vcombine.low %v7217, %v7218
  %v7394 = vcombine.low %v7219, %v7220
  %v7396 = vunpack.c.l.s4 1966171168
  %v7397 = vunpack.c.0.s8 %v7396
  %v7398 = vlaneseq
  %v7399 = vshrl.u32 %v7398, 7
  %v7400 = vsub.s32 %v7397, %v7399
  %v7401 = vrot.slane %v7391, %v7400
  %v7403 = vunpack.c.l.s4 1966171168
  %v7404 = vunpack.c.0.s8 %v7403
  %v7405 = vlaneseq
  %v7406 = vshrl.u32 %v7405, 7
  %v7407 = vsub.s32 %v7404, %v7406
  %v7408 = vrot.slane %v7392, %v7407
  %v7410 = vunpack.c.l.s4 1966171168
  %v7411 = vunpack.c.0.s8 %v7410
  %v7412 = vlaneseq
  %v7413 = vshrl.u32 %v7412, 7
  %v7414 = vsub.s32 %v7411, %v7413
  %v7415 = vrot.slane %v7393, %v7414
  %v7417 = vunpack.c.l.s4 1966171168
  %v7418 = vunpack.c.0.s8 %v7417
  %v7419 = vlaneseq
  %v7420 = vshrl.u32 %v7419, 7
  %v7421 = vsub.s32 %v7418, %v7420
  %v7422 = vrot.slane %v7394, %v7421
  %v7423 = vcombine.low %v7401, %v7408
  %v7424 = vcombine.low %v7415, %v7422
  %v7426 = vunpack.c.l.s4 1966171168
  %v7427 = vunpack.c.0.s8 %v7426
  %v7428 = vlaneseq
  %v7429 = vshrl.u32 %v7428, 7
  %v7430 = vsub.s32 %v7427, %v7429
  %v7431 = vrot.slane %v7423, %v7430
  %v7433 = vunpack.c.l.s4 1966171168
  %v7434 = vunpack.c.0.s8 %v7433
  %v7435 = vlaneseq
  %v7436 = vshrl.u32 %v7435, 7
  %v7437 = vsub.s32 %v7434, %v7436
  %v7438 = vrot.slane %v7424, %v7437
  %v7439 = vcombine.low %v7431, %v7438
  %v7441 = vunpack.c.l.s4 1966171168
  %v7442 = vunpack.c.0.s8 %v7441
  %v7443 = vlaneseq
  %v7444 = vshrl.u32 %v7443, 7
  %v7445 = vsub.s32 %v7442, %v7444
  %v7446 = vrot.slane %v7221, %v7445
  %v7448 = vunpack.c.l.s4 1966171168
  %v7449 = vunpack.c.0.s8 %v7448
  %v7450 = vlaneseq
  %v7451 = vshrl.u32 %v7450, 7
  %v7452 = vsub.s32 %v7449, %v7451
  %v7453 = vrot.slane %v7446, %v7452
  %7454 = vrot.lane.b32.xlu0 %v7439, 64
  %v7455 = vpop.permute.xlu0 %7454
  %7456 = vrot.lane.b32.xlu0 %v7453, 64
  %v7457 = vpop.permute.xlu0 %7456
  %v7460 = vsel %vm1231, %v7201, 0
  %v7463 = vsel %vm1231, %v7203, 0
  %v7465 = vsel %vm1770, %v7457, 0
  %7467 = vmatprep.subr.mxu0 0.0
  %7468 = vmatpush1.msra.mxu0 0.0
  %7469 = vmatprep.subr.mxu0 0.0
  %7470 = vmatpush1.msra.mxu0 0.0
  %7471 = vmatprep.subr.mxu0 0.0
  %7472 = vmatpush1.msra.mxu0 0.0
  %7473 = vmatprep.subr.mxu0 0.0
  %7474 = vmatpush1.msra.mxu0 0.0
  %7475 = vmatprep.subr.mxu0 0.0
  %7476 = vmatpush1.msra.mxu0 0.0
  %7477 = vmatprep.subr.mxu0 0.0
  %7478 = vmatpush1.msra.mxu0 0.0
  %7479 = vmatprep.subr.mxu0 0.0
  %7480 = vmatpush1.msra.mxu0 0.0
  %7481 = vmatprep.subr.mxu0 0.0
  %7482 = vmatpush1.msra.mxu0 0.0
  %7483 = vmatprep.subr.mxu0 0.0
  %7484 = vmatpush1.msra.mxu0 0.0
  %7485 = vmatprep.subr.mxu0 0.0
  %7486 = vmatpush1.msra.mxu0 0.0
  %7487 = vmatprep.subr.mxu0 0.0
  %7488 = vmatpush1.msra.mxu0 0.0
  %7489 = vmatprep.subr.mxu0 0.0
  %7490 = vmatpush1.msra.mxu0 0.0
  %7491 = vmatprep.subr.mxu0 0.0
  %7492 = vmatpush1.msra.mxu0 0.0
  %7493 = vmatprep.subr.mxu0 0.0
  %7494 = vmatpush1.msra.mxu0 0.0
  %7495 = vmatprep.subr.mxu0 0.0
  %7496 = vmatpush1.msra.mxu0 %v7465
  %7497 = vmatprep.subr.mxu0 0.0
  %7498 = vmatpush1.msra.mxu0 %v7455
  %7499 = vmatprep.subr.mxu0 0.0
  %7500 = vmatpush2.msra.mxu0 0.0
  %7501 = vmatprep.subr.mxu0 0.0
  %7502 = vmatpush2.msra.mxu0 0.0
  %7503 = vmatprep.subr.mxu0 0.0
  %7504 = vmatpush2.msra.mxu0 0.0
  %7505 = vmatprep.subr.mxu0 0.0
  %7506 = vmatpush2.msra.mxu0 0.0
  %7507 = vmatprep.subr.mxu0 0.0
  %7508 = vmatpush2.msra.mxu0 0.0
  %7509 = vmatprep.subr.mxu0 0.0
  %7510 = vmatpush2.msra.mxu0 0.0
  %7511 = vmatprep.subr.mxu0 0.0
  %7512 = vmatpush2.msra.mxu0 0.0
  %7513 = vmatprep.subr.mxu0 0.0
  %7514 = vmatpush2.msra.mxu0 0.0
  %7515 = vmatprep.subr.mxu0 0.0
  %7516 = vmatpush2.msra.mxu0 0.0
  %7517 = vmatprep.subr.mxu0 0.0
  %7518 = vmatpush2.msra.mxu0 0.0
  %7519 = vmatprep.subr.mxu0 0.0
  %7520 = vmatpush2.msra.mxu0 0.0
  %7521 = vmatprep.subr.mxu0 0.0
  %7522 = vmatpush2.msra.mxu0 0.0
  %7523 = vmatprep.subr.mxu0 0.0
  %7524 = vmatpush2.msra.mxu0 0.0
  %7525 = vmatprep.subr.mxu0 0.0
  %7526 = vmatpush2.msra.mxu0 0.0
  %7527 = vmatprep.subr.mxu0 0.0
  %7528 = vmatpush2.msra.mxu0 0.0
  %7529 = vmatprep.subr.mxu0 0.0
  %7530 = vmatpush2.msra.mxu0 0.0
  %7531 = vmatprep.mubr.f32.mxu0 0.0
  %7532 = vmatmul.mubr.f32.gmra.mxu0 %v7460
  %v7533 = vpop.f32.mrf.mxu0
  %v7534 = vadd.f32 0.0, %v7533
  %v7535 = vpop.f32.mrf.mxu0
  %7536 = vmatprep.mubr.f32.mxu0 0.0
  %7537 = vmatmul.mubr.f32.gmra.mxu0 %v7463
  %v7538 = vpop.f32.mrf.mxu0
  %v7539 = vadd.f32 0.0, %v7538
  %v7540 = vpop.f32.mrf.mxu0
  %7541 = vdwg.mxu0
  %v7551 = vcombine.low %v6960, %v6961
  %v7552 = vcombine.low %v6962, %v6963
  %v7553 = vcombine.low %v6964, %v6965
  %v7554 = vcombine.low %v6966, %v6967
  %v7556 = vunpack.c.l.s4 1966171168
  %v7557 = vunpack.c.0.s8 %v7556
  %v7558 = vlaneseq
  %v7559 = vshrl.u32 %v7558, 7
  %v7560 = vsub.s32 %v7557, %v7559
  %v7561 = vrot.slane %v7551, %v7560
  %v7563 = vunpack.c.l.s4 1966171168
  %v7564 = vunpack.c.0.s8 %v7563
  %v7565 = vlaneseq
  %v7566 = vshrl.u32 %v7565, 7
  %v7567 = vsub.s32 %v7564, %v7566
  %v7568 = vrot.slane %v7552, %v7567
  %v7570 = vunpack.c.l.s4 1966171168
  %v7571 = vunpack.c.0.s8 %v7570
  %v7572 = vlaneseq
  %v7573 = vshrl.u32 %v7572, 7
  %v7574 = vsub.s32 %v7571, %v7573
  %v7575 = vrot.slane %v7553, %v7574
  %v7577 = vunpack.c.l.s4 1966171168
  %v7578 = vunpack.c.0.s8 %v7577
  %v7579 = vlaneseq
  %v7580 = vshrl.u32 %v7579, 7
  %v7581 = vsub.s32 %v7578, %v7580
  %v7582 = vrot.slane %v7554, %v7581
  %v7583 = vcombine.low %v7561, %v7568
  %v7584 = vcombine.low %v7575, %v7582
  %v7586 = vunpack.c.l.s4 1966171168
  %v7587 = vunpack.c.0.s8 %v7586
  %v7588 = vlaneseq
  %v7589 = vshrl.u32 %v7588, 7
  %v7590 = vsub.s32 %v7587, %v7589
  %v7591 = vrot.slane %v7583, %v7590
  %v7593 = vunpack.c.l.s4 1966171168
  %v7594 = vunpack.c.0.s8 %v7593
  %v7595 = vlaneseq
  %v7596 = vshrl.u32 %v7595, 7
  %v7597 = vsub.s32 %v7594, %v7596
  %v7598 = vrot.slane %v7584, %v7597
  %v7599 = vcombine.low %v7591, %v7598
  %v7601 = vunpack.c.l.s4 1966171168
  %v7602 = vunpack.c.0.s8 %v7601
  %v7603 = vlaneseq
  %v7604 = vshrl.u32 %v7603, 7
  %v7605 = vsub.s32 %v7602, %v7604
  %v7606 = vrot.slane %v6968, %v7605
  %v7608 = vunpack.c.l.s4 1966171168
  %v7609 = vunpack.c.0.s8 %v7608
  %v7610 = vlaneseq
  %v7611 = vshrl.u32 %v7610, 7
  %v7612 = vsub.s32 %v7609, %v7611
  %v7613 = vrot.slane %v7606, %v7612
  %7614 = vrot.lane.b32.xlu0 %v7599, 64
  %v7615 = vpop.permute.xlu0 %7614
  %7616 = vrot.lane.b32.xlu0 %v7613, 64
  %v7617 = vpop.permute.xlu0 %7616
  %v7620 = vsel %vm1231, %v6953, 0
  %v7623 = vsel %vm1231, %v6955, 0
  %v7625 = vsel %vm1770, %v7617, 0
  %7627 = vmatprep.subr.mxu0 0.0
  %7628 = vmatpush1.msra.mxu0 0.0
  %7629 = vmatprep.subr.mxu0 0.0
  %7630 = vmatpush1.msra.mxu0 0.0
  %7631 = vmatprep.subr.mxu0 0.0
  %7632 = vmatpush1.msra.mxu0 0.0
  %7633 = vmatprep.subr.mxu0 0.0
  %7634 = vmatpush1.msra.mxu0 0.0
  %7635 = vmatprep.subr.mxu0 0.0
  %7636 = vmatpush1.msra.mxu0 0.0
  %7637 = vmatprep.subr.mxu0 0.0
  %7638 = vmatpush1.msra.mxu0 0.0
  %7639 = vmatprep.subr.mxu0 0.0
  %7640 = vmatpush1.msra.mxu0 0.0
  %7641 = vmatprep.subr.mxu0 0.0
  %7642 = vmatpush1.msra.mxu0 0.0
  %7643 = vmatprep.subr.mxu0 0.0
  %7644 = vmatpush1.msra.mxu0 0.0
  %7645 = vmatprep.subr.mxu0 0.0
  %7646 = vmatpush1.msra.mxu0 0.0
  %7647 = vmatprep.subr.mxu0 0.0
  %7648 = vmatpush1.msra.mxu0 0.0
  %7649 = vmatprep.subr.mxu0 0.0
  %7650 = vmatpush1.msra.mxu0 0.0
  %7651 = vmatprep.subr.mxu0 0.0
  %7652 = vmatpush1.msra.mxu0 0.0
  %7653 = vmatprep.subr.mxu0 0.0
  %7654 = vmatpush1.msra.mxu0 0.0
  %7655 = vmatprep.subr.mxu0 0.0
  %7656 = vmatpush1.msra.mxu0 %v7625
  %7657 = vmatprep.subr.mxu0 0.0
  %7658 = vmatpush1.msra.mxu0 %v7615
  %7659 = vmatprep.subr.mxu0 0.0
  %7660 = vmatpush2.msra.mxu0 0.0
  %7661 = vmatprep.subr.mxu0 0.0
  %7662 = vmatpush2.msra.mxu0 0.0
  %7663 = vmatprep.subr.mxu0 0.0
  %7664 = vmatpush2.msra.mxu0 0.0
  %7665 = vmatprep.subr.mxu0 0.0
  %7666 = vmatpush2.msra.mxu0 0.0
  %7667 = vmatprep.subr.mxu0 0.0
  %7668 = vmatpush2.msra.mxu0 0.0
  %7669 = vmatprep.subr.mxu0 0.0
  %7670 = vmatpush2.msra.mxu0 0.0
  %7671 = vmatprep.subr.mxu0 0.0
  %7672 = vmatpush2.msra.mxu0 0.0
  %7673 = vmatprep.subr.mxu0 0.0
  %7674 = vmatpush2.msra.mxu0 0.0
  %7675 = vmatprep.subr.mxu0 0.0
  %7676 = vmatpush2.msra.mxu0 0.0
  %7677 = vmatprep.subr.mxu0 0.0
  %7678 = vmatpush2.msra.mxu0 0.0
  %7679 = vmatprep.subr.mxu0 0.0
  %7680 = vmatpush2.msra.mxu0 0.0
  %7681 = vmatprep.subr.mxu0 0.0
  %7682 = vmatpush2.msra.mxu0 0.0
  %7683 = vmatprep.subr.mxu0 0.0
  %7684 = vmatpush2.msra.mxu0 0.0
  %7685 = vmatprep.subr.mxu0 0.0
  %7686 = vmatpush2.msra.mxu0 0.0
  %7687 = vmatprep.subr.mxu0 0.0
  %7688 = vmatpush2.msra.mxu0 0.0
  %7689 = vmatprep.subr.mxu0 0.0
  %7690 = vmatpush2.msra.mxu0 0.0
  %7691 = vmatprep.mubr.f32.mxu0 0.0
  %7692 = vmatmul.mubr.f32.gmra.mxu0 %v7620
  %v7693 = vpop.f32.mrf.mxu0
  %v7694 = vadd.f32 %v7374, %v7693
  %v7695 = vpop.f32.mrf.mxu0
  %7696 = vmatprep.mubr.f32.mxu0 0.0
  %7697 = vmatmul.mubr.f32.gmra.mxu0 %v7623
  %v7698 = vpop.f32.mrf.mxu0
  %v7699 = vadd.f32 %v7379, %v7698
  %v7700 = vpop.f32.mrf.mxu0
  %7701 = vdwg.mxu0
  %v7711 = vcombine.low %v6969, %v6970
  %v7712 = vcombine.low %v6971, %v6972
  %v7713 = vcombine.low %v6973, %v6974
  %v7714 = vcombine.low %v6975, %v6976
  %v7716 = vunpack.c.l.s4 1966171168
  %v7717 = vunpack.c.0.s8 %v7716
  %v7718 = vlaneseq
  %v7719 = vshrl.u32 %v7718, 7
  %v7720 = vsub.s32 %v7717, %v7719
  %v7721 = vrot.slane %v7711, %v7720
  %v7723 = vunpack.c.l.s4 1966171168
  %v7724 = vunpack.c.0.s8 %v7723
  %v7725 = vlaneseq
  %v7726 = vshrl.u32 %v7725, 7
  %v7727 = vsub.s32 %v7724, %v7726
  %v7728 = vrot.slane %v7712, %v7727
  %v7730 = vunpack.c.l.s4 1966171168
  %v7731 = vunpack.c.0.s8 %v7730
  %v7732 = vlaneseq
  %v7733 = vshrl.u32 %v7732, 7
  %v7734 = vsub.s32 %v7731, %v7733
  %v7735 = vrot.slane %v7713, %v7734
  %v7737 = vunpack.c.l.s4 1966171168
  %v7738 = vunpack.c.0.s8 %v7737
  %v7739 = vlaneseq
  %v7740 = vshrl.u32 %v7739, 7
  %v7741 = vsub.s32 %v7738, %v7740
  %v7742 = vrot.slane %v7714, %v7741
  %v7743 = vcombine.low %v7721, %v7728
  %v7744 = vcombine.low %v7735, %v7742
  %v7746 = vunpack.c.l.s4 1966171168
  %v7747 = vunpack.c.0.s8 %v7746
  %v7748 = vlaneseq
  %v7749 = vshrl.u32 %v7748, 7
  %v7750 = vsub.s32 %v7747, %v7749
  %v7751 = vrot.slane %v7743, %v7750
  %v7753 = vunpack.c.l.s4 1966171168
  %v7754 = vunpack.c.0.s8 %v7753
  %v7755 = vlaneseq
  %v7756 = vshrl.u32 %v7755, 7
  %v7757 = vsub.s32 %v7754, %v7756
  %v7758 = vrot.slane %v7744, %v7757
  %v7759 = vcombine.low %v7751, %v7758
  %v7761 = vunpack.c.l.s4 1966171168
  %v7762 = vunpack.c.0.s8 %v7761
  %v7763 = vlaneseq
  %v7764 = vshrl.u32 %v7763, 7
  %v7765 = vsub.s32 %v7762, %v7764
  %v7766 = vrot.slane %v6977, %v7765
  %v7768 = vunpack.c.l.s4 1966171168
  %v7769 = vunpack.c.0.s8 %v7768
  %v7770 = vlaneseq
  %v7771 = vshrl.u32 %v7770, 7
  %v7772 = vsub.s32 %v7769, %v7771
  %v7773 = vrot.slane %v7766, %v7772
  %7774 = vrot.lane.b32.xlu0 %v7759, 64
  %v7775 = vpop.permute.xlu0 %7774
  %7776 = vrot.lane.b32.xlu0 %v7773, 64
  %v7777 = vpop.permute.xlu0 %7776
  %v7780 = vsel %vm1231, %v6957, 0
  %v7783 = vsel %vm1231, %v6959, 0
  %v7785 = vsel %vm1770, %v7777, 0
  %7787 = vmatprep.subr.mxu0 0.0
  %7788 = vmatpush1.msra.mxu0 0.0
  %7789 = vmatprep.subr.mxu0 0.0
  %7790 = vmatpush1.msra.mxu0 0.0
  %7791 = vmatprep.subr.mxu0 0.0
  %7792 = vmatpush1.msra.mxu0 0.0
  %7793 = vmatprep.subr.mxu0 0.0
  %7794 = vmatpush1.msra.mxu0 0.0
  %7795 = vmatprep.subr.mxu0 0.0
  %7796 = vmatpush1.msra.mxu0 0.0
  %7797 = vmatprep.subr.mxu0 0.0
  %7798 = vmatpush1.msra.mxu0 0.0
  %7799 = vmatprep.subr.mxu0 0.0
  %7800 = vmatpush1.msra.mxu0 0.0
  %7801 = vmatprep.subr.mxu0 0.0
  %7802 = vmatpush1.msra.mxu0 0.0
  %7803 = vmatprep.subr.mxu0 0.0
  %7804 = vmatpush1.msra.mxu0 0.0
  %7805 = vmatprep.subr.mxu0 0.0
  %7806 = vmatpush1.msra.mxu0 0.0
  %7807 = vmatprep.subr.mxu0 0.0
  %7808 = vmatpush1.msra.mxu0 0.0
  %7809 = vmatprep.subr.mxu0 0.0
  %7810 = vmatpush1.msra.mxu0 0.0
  %7811 = vmatprep.subr.mxu0 0.0
  %7812 = vmatpush1.msra.mxu0 0.0
  %7813 = vmatprep.subr.mxu0 0.0
  %7814 = vmatpush1.msra.mxu0 0.0
  %7815 = vmatprep.subr.mxu0 0.0
  %7816 = vmatpush1.msra.mxu0 %v7785
  %7817 = vmatprep.subr.mxu0 0.0
  %7818 = vmatpush1.msra.mxu0 %v7775
  %7819 = vmatprep.subr.mxu0 0.0
  %7820 = vmatpush2.msra.mxu0 0.0
  %7821 = vmatprep.subr.mxu0 0.0
  %7822 = vmatpush2.msra.mxu0 0.0
  %7823 = vmatprep.subr.mxu0 0.0
  %7824 = vmatpush2.msra.mxu0 0.0
  %7825 = vmatprep.subr.mxu0 0.0
  %7826 = vmatpush2.msra.mxu0 0.0
  %7827 = vmatprep.subr.mxu0 0.0
  %7828 = vmatpush2.msra.mxu0 0.0
  %7829 = vmatprep.subr.mxu0 0.0
  %7830 = vmatpush2.msra.mxu0 0.0
  %7831 = vmatprep.subr.mxu0 0.0
  %7832 = vmatpush2.msra.mxu0 0.0
  %7833 = vmatprep.subr.mxu0 0.0
  %7834 = vmatpush2.msra.mxu0 0.0
  %7835 = vmatprep.subr.mxu0 0.0
  %7836 = vmatpush2.msra.mxu0 0.0
  %7837 = vmatprep.subr.mxu0 0.0
  %7838 = vmatpush2.msra.mxu0 0.0
  %7839 = vmatprep.subr.mxu0 0.0
  %7840 = vmatpush2.msra.mxu0 0.0
  %7841 = vmatprep.subr.mxu0 0.0
  %7842 = vmatpush2.msra.mxu0 0.0
  %7843 = vmatprep.subr.mxu0 0.0
  %7844 = vmatpush2.msra.mxu0 0.0
  %7845 = vmatprep.subr.mxu0 0.0
  %7846 = vmatpush2.msra.mxu0 0.0
  %7847 = vmatprep.subr.mxu0 0.0
  %7848 = vmatpush2.msra.mxu0 0.0
  %7849 = vmatprep.subr.mxu0 0.0
  %7850 = vmatpush2.msra.mxu0 0.0
  %7851 = vmatprep.mubr.f32.mxu0 0.0
  %7852 = vmatmul.mubr.f32.gmra.mxu0 %v7780
  %v7853 = vpop.f32.mrf.mxu0
  %v7854 = vadd.f32 %v7534, %v7853
  %v7855 = vpop.f32.mrf.mxu0
  %7856 = vmatprep.mubr.f32.mxu0 0.0
  %7857 = vmatmul.mubr.f32.gmra.mxu0 %v7783
  %v7858 = vpop.f32.mrf.mxu0
  %v7859 = vadd.f32 %v7539, %v7858
  %v7860 = vpop.f32.mrf.mxu0
  %7861 = vdwg.mxu0
  %7862 = vrot.lane.b32.xlu0 %v6529, 112
  %v7863 = vpop.permute.xlu0 %7862
  %7864 = vrot.lane.b32.xlu0 %v6543, 112
  %v7865 = vpop.permute.xlu0 %7864
  %7866 = vrot.lane.b32.xlu0 %v6592, 80
  %v7867 = vpop.permute.xlu0 %7866
  %7868 = vrot.lane.b32.xlu0 %v6606, 80
  %v7869 = vpop.permute.xlu0 %7868
  %v7870 = vsel %vm925, %v7863, 0
  %v7872 = vsel %vm925, %v7865, 0
  %v7874 = vsel %vm925, %v7867, 0
  %v7876 = vsel %vm925, %v7869, 0
  %7878 = vmatprep.subr.mxu0 0.0
  %7879 = vmatpush1.xpose.msra.mxu0 0.0
  %7880 = vmatprep.subr.mxu0 0.0
  %7881 = vmatpush1.xpose.msra.mxu0 0.0
  %7882 = vmatprep.subr.mxu0 0.0
  %7883 = vmatpush1.xpose.msra.mxu0 0.0
  %7884 = vmatprep.subr.mxu0 0.0
  %7885 = vmatpush1.xpose.msra.mxu0 0.0
  %7886 = vmatprep.subr.mxu0 0.0
  %7887 = vmatpush1.xpose.msra.mxu0 0.0
  %7888 = vmatprep.subr.mxu0 0.0
  %7889 = vmatpush1.xpose.msra.mxu0 0.0
  %7890 = vmatprep.subr.mxu0 0.0
  %7891 = vmatpush1.xpose.msra.mxu0 0.0
  %7892 = vmatprep.subr.mxu0 0.0
  %7893 = vmatpush1.xpose.msra.mxu0 0.0
  %7894 = vmatprep.subr.mxu0 0.0
  %7895 = vmatpush1.xpose.msra.mxu0 0.0
  %7896 = vmatprep.subr.mxu0 0.0
  %7897 = vmatpush1.xpose.msra.mxu0 0.0
  %7898 = vmatprep.subr.mxu0 0.0
  %7899 = vmatpush1.xpose.msra.mxu0 0.0
  %7900 = vmatprep.subr.mxu0 0.0
  %7901 = vmatpush1.xpose.msra.mxu0 0.0
  %7902 = vmatprep.subr.mxu0 0.0
  %7903 = vmatpush1.xpose.msra.mxu0 0.0
  %7904 = vmatprep.subr.mxu0 0.0
  %7905 = vmatpush1.xpose.msra.mxu0 0.0
  %7906 = vmatprep.subr.mxu0 0.0
  %7907 = vmatpush1.xpose.msra.mxu0 %v7876
  %7908 = vmatprep.subr.mxu0 0.0
  %7909 = vmatpush1.xpose.msra.mxu0 %v7874
  %7910 = vmatprep.subr.mxu0 0.0
  %7911 = vmatpush2.xpose.msra.mxu0 0.0
  %7912 = vmatprep.subr.mxu0 0.0
  %7913 = vmatpush2.xpose.msra.mxu0 0.0
  %7914 = vmatprep.subr.mxu0 0.0
  %7915 = vmatpush2.xpose.msra.mxu0 0.0
  %7916 = vmatprep.subr.mxu0 0.0
  %7917 = vmatpush2.xpose.msra.mxu0 0.0
  %7918 = vmatprep.subr.mxu0 0.0
  %7919 = vmatpush2.xpose.msra.mxu0 0.0
  %7920 = vmatprep.subr.mxu0 0.0
  %7921 = vmatpush2.xpose.msra.mxu0 0.0
  %7922 = vmatprep.subr.mxu0 0.0
  %7923 = vmatpush2.xpose.msra.mxu0 0.0
  %7924 = vmatprep.subr.mxu0 0.0
  %7925 = vmatpush2.xpose.msra.mxu0 0.0
  %7926 = vmatprep.subr.mxu0 0.0
  %7927 = vmatpush2.xpose.msra.mxu0 0.0
  %7928 = vmatprep.subr.mxu0 0.0
  %7929 = vmatpush2.xpose.msra.mxu0 0.0
  %7930 = vmatprep.subr.mxu0 0.0
  %7931 = vmatpush2.xpose.msra.mxu0 0.0
  %7932 = vmatprep.subr.mxu0 0.0
  %7933 = vmatpush2.xpose.msra.mxu0 0.0
  %7934 = vmatprep.subr.mxu0 0.0
  %7935 = vmatpush2.xpose.msra.mxu0 0.0
  %7936 = vmatprep.subr.mxu0 0.0
  %7937 = vmatpush2.xpose.msra.mxu0 0.0
  %7938 = vmatprep.subr.mxu0 0.0
  %7939 = vmatpush2.xpose.msra.mxu0 0.0
  %7940 = vmatprep.subr.mxu0 0.0
  %7941 = vmatpush2.xpose.msra.mxu0 0.0
  %7942 = vmatprep.mubr.f32.mxu0 0.0
  %7943 = vmatmul.mubr.f32.gmra.mxu0 %v7870
  %v7944 = vpop.f32.mrf.mxu0
  %v7945 = vadd.f32 %v202, %v7944
  %v7946 = vpop.f32.mrf.mxu0
  %7947 = vmatprep.mubr.f32.mxu0 0.0
  %7948 = vmatmul.mubr.f32.gmra.mxu0 %v7872
  %v7949 = vpop.f32.mrf.mxu0
  %v7950 = vadd.f32 %v203, %v7949
  %v7951 = vpop.f32.mrf.mxu0
  %7952 = vdwg.mxu0
  %7953 = vrot.lane.b32.xlu0 %v6751, 112
  %v7954 = vpop.permute.xlu0 %7953
  %7955 = vrot.lane.b32.xlu0 %v6765, 112
  %v7956 = vpop.permute.xlu0 %7955
  %7957 = vrot.lane.b32.xlu0 %v6814, 80
  %v7958 = vpop.permute.xlu0 %7957
  %7959 = vrot.lane.b32.xlu0 %v6828, 80
  %v7960 = vpop.permute.xlu0 %7959
  %v7961 = vsel %vm925, %v7954, 0
  %v7963 = vsel %vm925, %v7956, 0
  %v7965 = vsel %vm925, %v7958, 0
  %v7967 = vsel %vm925, %v7960, 0
  %7969 = vmatprep.subr.mxu0 0.0
  %7970 = vmatpush1.xpose.msra.mxu0 0.0
  %7971 = vmatprep.subr.mxu0 0.0
  %7972 = vmatpush1.xpose.msra.mxu0 0.0
  %7973 = vmatprep.subr.mxu0 0.0
  %7974 = vmatpush1.xpose.msra.mxu0 0.0
  %7975 = vmatprep.subr.mxu0 0.0
  %7976 = vmatpush1.xpose.msra.mxu0 0.0
  %7977 = vmatprep.subr.mxu0 0.0
  %7978 = vmatpush1.xpose.msra.mxu0 0.0
  %7979 = vmatprep.subr.mxu0 0.0
  %7980 = vmatpush1.xpose.msra.mxu0 0.0
  %7981 = vmatprep.subr.mxu0 0.0
  %7982 = vmatpush1.xpose.msra.mxu0 0.0
  %7983 = vmatprep.subr.mxu0 0.0
  %7984 = vmatpush1.xpose.msra.mxu0 0.0
  %7985 = vmatprep.subr.mxu0 0.0
  %7986 = vmatpush1.xpose.msra.mxu0 0.0
  %7987 = vmatprep.subr.mxu0 0.0
  %7988 = vmatpush1.xpose.msra.mxu0 0.0
  %7989 = vmatprep.subr.mxu0 0.0
  %7990 = vmatpush1.xpose.msra.mxu0 0.0
  %7991 = vmatprep.subr.mxu0 0.0
  %7992 = vmatpush1.xpose.msra.mxu0 0.0
  %7993 = vmatprep.subr.mxu0 0.0
  %7994 = vmatpush1.xpose.msra.mxu0 0.0
  %7995 = vmatprep.subr.mxu0 0.0
  %7996 = vmatpush1.xpose.msra.mxu0 0.0
  %7997 = vmatprep.subr.mxu0 0.0
  %7998 = vmatpush1.xpose.msra.mxu0 %v7967
  %7999 = vmatprep.subr.mxu0 0.0
  %8000 = vmatpush1.xpose.msra.mxu0 %v7965
  %8001 = vmatprep.subr.mxu0 0.0
  %8002 = vmatpush2.xpose.msra.mxu0 0.0
  %8003 = vmatprep.subr.mxu0 0.0
  %8004 = vmatpush2.xpose.msra.mxu0 0.0
  %8005 = vmatprep.subr.mxu0 0.0
  %8006 = vmatpush2.xpose.msra.mxu0 0.0
  %8007 = vmatprep.subr.mxu0 0.0
  %8008 = vmatpush2.xpose.msra.mxu0 0.0
  %8009 = vmatprep.subr.mxu0 0.0
  %8010 = vmatpush2.xpose.msra.mxu0 0.0
  %8011 = vmatprep.subr.mxu0 0.0
  %8012 = vmatpush2.xpose.msra.mxu0 0.0
  %8013 = vmatprep.subr.mxu0 0.0
  %8014 = vmatpush2.xpose.msra.mxu0 0.0
  %8015 = vmatprep.subr.mxu0 0.0
  %8016 = vmatpush2.xpose.msra.mxu0 0.0
  %8017 = vmatprep.subr.mxu0 0.0
  %8018 = vmatpush2.xpose.msra.mxu0 0.0
  %8019 = vmatprep.subr.mxu0 0.0
  %8020 = vmatpush2.xpose.msra.mxu0 0.0
  %8021 = vmatprep.subr.mxu0 0.0
  %8022 = vmatpush2.xpose.msra.mxu0 0.0
  %8023 = vmatprep.subr.mxu0 0.0
  %8024 = vmatpush2.xpose.msra.mxu0 0.0
  %8025 = vmatprep.subr.mxu0 0.0
  %8026 = vmatpush2.xpose.msra.mxu0 0.0
  %8027 = vmatprep.subr.mxu0 0.0
  %8028 = vmatpush2.xpose.msra.mxu0 0.0
  %8029 = vmatprep.subr.mxu0 0.0
  %8030 = vmatpush2.xpose.msra.mxu0 0.0
  %8031 = vmatprep.subr.mxu0 0.0
  %8032 = vmatpush2.xpose.msra.mxu0 0.0
  %8033 = vmatprep.mubr.f32.mxu0 0.0
  %8034 = vmatmul.mubr.f32.gmra.mxu0 %v7961
  %v8035 = vpop.f32.mrf.mxu0
  %v8036 = vadd.f32 %v202, %v8035
  %v8037 = vpop.f32.mrf.mxu0
  %8038 = vmatprep.mubr.f32.mxu0 0.0
  %8039 = vmatmul.mubr.f32.gmra.mxu0 %v7963
  %v8040 = vpop.f32.mrf.mxu0
  %v8041 = vadd.f32 %v203, %v8040
  %v8042 = vpop.f32.mrf.mxu0
  %8043 = vdwg.mxu0
  %v8044 = vsel %vm1231, %v7945, -inf
  %8045 = vmax.xlane.f32.xlu0 %v8044
  %v8046 = vpop.xlane.xlu0 %8045
  %v8047 = vsel %vm1235, %v7950, -inf
  %8048 = vmax.xlane.f32.xlu0 %v8047
  %v8049 = vpop.xlane.xlu0 %8048
  %v8050 = vsel %vm1231, %v8036, -inf
  %8051 = vmax.xlane.f32.xlu0 %v8050
  %v8052 = vpop.xlane.xlu0 %8051
  %v8053 = vsel %vm1235, %v8041, -inf
  %8054 = vmax.xlane.f32.xlu0 %v8053
  %v8055 = vpop.xlane.xlu0 %8054
  %v8056 = vsub.f32 %v7945, %v8046
  %v8057 = vsub.f32 %v7950, %v8049
  %v8058 = vsub.f32 %v8036, %v8052
  %v8059 = vsub.f32 %v8041, %v8055
  %v8060 = vmul.f32 %v8056, 1.442695
  %v8061 = vpow.pop %v8060
  %v8062 = vmul.f32 %v8057, 1.442695
  %v8063 = vpow.pop %v8062
  %v8064 = vmul.f32 %v8058, 1.442695
  %v8065 = vpow.pop %v8064
  %v8066 = vmul.f32 %v8059, 1.442695
  %v8067 = vpow.pop %v8066
  %v8068 = vsel %vm1231, %v8061, 0.0
  %8069 = vadd.xlane.f32.xlu0 %v8068
  %v8070 = vpop.xlane.xlu0 %8069
  %v8071 = vsel %vm1235, %v8063, 0.0
  %8072 = vadd.xlane.f32.xlu0 %v8071
  %v8073 = vpop.xlane.xlu0 %8072
  %v8074 = vsel %vm1231, %v8065, 0.0
  %8075 = vadd.xlane.f32.xlu0 %v8074
  %v8076 = vpop.xlane.xlu0 %8075
  %v8077 = vsel %vm1235, %v8067, 0.0
  %8078 = vadd.xlane.f32.xlu0 %v8077
  %v8079 = vpop.xlane.xlu0 %8078
  %v8080 = vrcp.pop %v8070
  %v8081 = vmul.f32 %v8061, %v8080
  %v8082 = vrcp.pop %v8073
  %v8083 = vmul.f32 %v8063, %v8082
  %v8084 = vrcp.pop %v8076
  %v8085 = vmul.f32 %v8065, %v8084
  %v8086 = vrcp.pop %v8079
  %v8087 = vmul.f32 %v8067, %v8086
  %v8088 = vmul.f32 %v6339, %v2605
  %v8089 = vmul.f32 %v6353, %v2607
  %v8090 = vmul.f32 %v6361, %v2609
  %v8091 = vmul.f32 %v6363, %v2611
  %v8092 = vmul.f32 %v6346, %v2613
  %v8093 = vmul.f32 %v6360, %v2615
  %v8094 = vmul.f32 %v6362, %v2617
  %v8095 = vmul.f32 %v6364, %v2619
  %v8096 = vmul.f32 %v6388, %v2605
  %v8097 = vmul.f32 %v6402, %v2605
  %v8098 = vmul.f32 %v6410, %v2607
  %v8099 = vmul.f32 %v6412, %v2609
  %v8100 = vmul.f32 %v6395, %v2611
  %v8101 = vmul.f32 %v6409, %v2613
  %v8102 = vmul.f32 %v6411, %v2615
  %v8103 = vmul.f32 %v6413, %v2617
  %v8104 = vmul.f32 %v6428, %v2619
  %v8105 = vmul.f32 %v6435, %v2605
  %v8115 = vcombine.low %v8088, %v8089
  %v8116 = vcombine.low %v8090, %v8091
  %v8117 = vcombine.low %v8092, %v8093
  %v8118 = vcombine.low %v8094, %v8095
  %v8120 = vunpack.c.l.s4 1966171168
  %v8121 = vunpack.c.0.s8 %v8120
  %v8122 = vlaneseq
  %v8123 = vshrl.u32 %v8122, 7
  %v8124 = vsub.s32 %v8121, %v8123
  %v8125 = vrot.slane %v8115, %v8124
  %v8127 = vunpack.c.l.s4 1966171168
  %v8128 = vunpack.c.0.s8 %v8127
  %v8129 = vlaneseq
  %v8130 = vshrl.u32 %v8129, 7
  %v8131 = vsub.s32 %v8128, %v8130
  %v8132 = vrot.slane %v8116, %v8131
  %v8134 = vunpack.c.l.s4 1966171168
  %v8135 = vunpack.c.0.s8 %v8134
  %v8136 = vlaneseq
  %v8137 = vshrl.u32 %v8136, 7
  %v8138 = vsub.s32 %v8135, %v8137
  %v8139 = vrot.slane %v8117, %v8138
  %v8141 = vunpack.c.l.s4 1966171168
  %v8142 = vunpack.c.0.s8 %v8141
  %v8143 = vlaneseq
  %v8144 = vshrl.u32 %v8143, 7
  %v8145 = vsub.s32 %v8142, %v8144
  %v8146 = vrot.slane %v8118, %v8145
  %v8147 = vcombine.low %v8125, %v8132
  %v8148 = vcombine.low %v8139, %v8146
  %v8150 = vunpack.c.l.s4 1966171168
  %v8151 = vunpack.c.0.s8 %v8150
  %v8152 = vlaneseq
  %v8153 = vshrl.u32 %v8152, 7
  %v8154 = vsub.s32 %v8151, %v8153
  %v8155 = vrot.slane %v8147, %v8154
  %v8157 = vunpack.c.l.s4 1966171168
  %v8158 = vunpack.c.0.s8 %v8157
  %v8159 = vlaneseq
  %v8160 = vshrl.u32 %v8159, 7
  %v8161 = vsub.s32 %v8158, %v8160
  %v8162 = vrot.slane %v8148, %v8161
  %v8163 = vcombine.low %v8155, %v8162
  %v8165 = vunpack.c.l.s4 1966171168
  %v8166 = vunpack.c.0.s8 %v8165
  %v8167 = vlaneseq
  %v8168 = vshrl.u32 %v8167, 7
  %v8169 = vsub.s32 %v8166, %v8168
  %v8170 = vrot.slane %v8096, %v8169
  %v8172 = vunpack.c.l.s4 1966171168
  %v8173 = vunpack.c.0.s8 %v8172
  %v8174 = vlaneseq
  %v8175 = vshrl.u32 %v8174, 7
  %v8176 = vsub.s32 %v8173, %v8175
  %v8177 = vrot.slane %v8170, %v8176
  %8178 = vrot.lane.b32.xlu0 %v8163, 64
  %v8179 = vpop.permute.xlu0 %8178
  %8180 = vrot.lane.b32.xlu0 %v8177, 64
  %v8181 = vpop.permute.xlu0 %8180
  %v8184 = vsel %vm1231, %v8081, 0
  %v8187 = vsel %vm1231, %v8083, 0
  %v8189 = vsel %vm1770, %v8181, 0
  %8191 = vmatprep.subr.mxu0 0.0
  %8192 = vmatpush1.msra.mxu0 0.0
  %8193 = vmatprep.subr.mxu0 0.0
  %8194 = vmatpush1.msra.mxu0 0.0
  %8195 = vmatprep.subr.mxu0 0.0
  %8196 = vmatpush1.msra.mxu0 0.0
  %8197 = vmatprep.subr.mxu0 0.0
  %8198 = vmatpush1.msra.mxu0 0.0
  %8199 = vmatprep.subr.mxu0 0.0
  %8200 = vmatpush1.msra.mxu0 0.0
  %8201 = vmatprep.subr.mxu0 0.0
  %8202 = vmatpush1.msra.mxu0 0.0
  %8203 = vmatprep.subr.mxu0 0.0
  %8204 = vmatpush1.msra.mxu0 0.0
  %8205 = vmatprep.subr.mxu0 0.0
  %8206 = vmatpush1.msra.mxu0 0.0
  %8207 = vmatprep.subr.mxu0 0.0
  %8208 = vmatpush1.msra.mxu0 0.0
  %8209 = vmatprep.subr.mxu0 0.0
  %8210 = vmatpush1.msra.mxu0 0.0
  %8211 = vmatprep.subr.mxu0 0.0
  %8212 = vmatpush1.msra.mxu0 0.0
  %8213 = vmatprep.subr.mxu0 0.0
  %8214 = vmatpush1.msra.mxu0 0.0
  %8215 = vmatprep.subr.mxu0 0.0
  %8216 = vmatpush1.msra.mxu0 0.0
  %8217 = vmatprep.subr.mxu0 0.0
  %8218 = vmatpush1.msra.mxu0 0.0
  %8219 = vmatprep.subr.mxu0 0.0
  %8220 = vmatpush1.msra.mxu0 %v8189
  %8221 = vmatprep.subr.mxu0 0.0
  %8222 = vmatpush1.msra.mxu0 %v8179
  %8223 = vmatprep.subr.mxu0 0.0
  %8224 = vmatpush2.msra.mxu0 0.0
  %8225 = vmatprep.subr.mxu0 0.0
  %8226 = vmatpush2.msra.mxu0 0.0
  %8227 = vmatprep.subr.mxu0 0.0
  %8228 = vmatpush2.msra.mxu0 0.0
  %8229 = vmatprep.subr.mxu0 0.0
  %8230 = vmatpush2.msra.mxu0 0.0
  %8231 = vmatprep.subr.mxu0 0.0
  %8232 = vmatpush2.msra.mxu0 0.0
  %8233 = vmatprep.subr.mxu0 0.0
  %8234 = vmatpush2.msra.mxu0 0.0
  %8235 = vmatprep.subr.mxu0 0.0
  %8236 = vmatpush2.msra.mxu0 0.0
  %8237 = vmatprep.subr.mxu0 0.0
  %8238 = vmatpush2.msra.mxu0 0.0
  %8239 = vmatprep.subr.mxu0 0.0
  %8240 = vmatpush2.msra.mxu0 0.0
  %8241 = vmatprep.subr.mxu0 0.0
  %8242 = vmatpush2.msra.mxu0 0.0
  %8243 = vmatprep.subr.mxu0 0.0
  %8244 = vmatpush2.msra.mxu0 0.0
  %8245 = vmatprep.subr.mxu0 0.0
  %8246 = vmatpush2.msra.mxu0 0.0
  %8247 = vmatprep.subr.mxu0 0.0
  %8248 = vmatpush2.msra.mxu0 0.0
  %8249 = vmatprep.subr.mxu0 0.0
  %8250 = vmatpush2.msra.mxu0 0.0
  %8251 = vmatprep.subr.mxu0 0.0
  %8252 = vmatpush2.msra.mxu0 0.0
  %8253 = vmatprep.subr.mxu0 0.0
  %8254 = vmatpush2.msra.mxu0 0.0
  %8255 = vmatprep.mubr.f32.mxu0 0.0
  %8256 = vmatmul.mubr.f32.gmra.mxu0 %v8184
  %v8257 = vpop.f32.mrf.mxu0
  %v8258 = vadd.f32 0.0, %v8257
  %v8259 = vpop.f32.mrf.mxu0
  %8260 = vmatprep.mubr.f32.mxu0 0.0
  %8261 = vmatmul.mubr.f32.gmra.mxu0 %v8187
  %v8262 = vpop.f32.mrf.mxu0
  %v8263 = vadd.f32 0.0, %v8262
  %v8264 = vpop.f32.mrf.mxu0
  %8265 = vdwg.mxu0
  %v8275 = vcombine.low %v8097, %v8098
  %v8276 = vcombine.low %v8099, %v8100
  %v8277 = vcombine.low %v8101, %v8102
  %v8278 = vcombine.low %v8103, %v8104
  %v8280 = vunpack.c.l.s4 1966171168
  %v8281 = vunpack.c.0.s8 %v8280
  %v8282 = vlaneseq
  %v8283 = vshrl.u32 %v8282, 7
  %v8284 = vsub.s32 %v8281, %v8283
  %v8285 = vrot.slane %v8275, %v8284
  %v8287 = vunpack.c.l.s4 1966171168
  %v8288 = vunpack.c.0.s8 %v8287
  %v8289 = vlaneseq
  %v8290 = vshrl.u32 %v8289, 7
  %v8291 = vsub.s32 %v8288, %v8290
  %v8292 = vrot.slane %v8276, %v8291
  %v8294 = vunpack.c.l.s4 1966171168
  %v8295 = vunpack.c.0.s8 %v8294
  %v8296 = vlaneseq
  %v8297 = vshrl.u32 %v8296, 7
  %v8298 = vsub.s32 %v8295, %v8297
  %v8299 = vrot.slane %v8277, %v8298
  %v8301 = vunpack.c.l.s4 1966171168
  %v8302 = vunpack.c.0.s8 %v8301
  %v8303 = vlaneseq
  %v8304 = vshrl.u32 %v8303, 7
  %v8305 = vsub.s32 %v8302, %v8304
  %v8306 = vrot.slane %v8278, %v8305
  %v8307 = vcombine.low %v8285, %v8292
  %v8308 = vcombine.low %v8299, %v8306
  %v8310 = vunpack.c.l.s4 1966171168
  %v8311 = vunpack.c.0.s8 %v8310
  %v8312 = vlaneseq
  %v8313 = vshrl.u32 %v8312, 7
  %v8314 = vsub.s32 %v8311, %v8313
  %v8315 = vrot.slane %v8307, %v8314
  %v8317 = vunpack.c.l.s4 1966171168
  %v8318 = vunpack.c.0.s8 %v8317
  %v8319 = vlaneseq
  %v8320 = vshrl.u32 %v8319, 7
  %v8321 = vsub.s32 %v8318, %v8320
  %v8322 = vrot.slane %v8308, %v8321
  %v8323 = vcombine.low %v8315, %v8322
  %v8325 = vunpack.c.l.s4 1966171168
  %v8326 = vunpack.c.0.s8 %v8325
  %v8327 = vlaneseq
  %v8328 = vshrl.u32 %v8327, 7
  %v8329 = vsub.s32 %v8326, %v8328
  %v8330 = vrot.slane %v8105, %v8329
  %v8332 = vunpack.c.l.s4 1966171168
  %v8333 = vunpack.c.0.s8 %v8332
  %v8334 = vlaneseq
  %v8335 = vshrl.u32 %v8334, 7
  %v8336 = vsub.s32 %v8333, %v8335
  %v8337 = vrot.slane %v8330, %v8336
  %8338 = vrot.lane.b32.xlu0 %v8323, 64
  %v8339 = vpop.permute.xlu0 %8338
  %8340 = vrot.lane.b32.xlu0 %v8337, 64
  %v8341 = vpop.permute.xlu0 %8340
  %v8344 = vsel %vm1231, %v8085, 0
  %v8347 = vsel %vm1231, %v8087, 0
  %v8349 = vsel %vm1770, %v8341, 0
  %8351 = vmatprep.subr.mxu0 0.0
  %8352 = vmatpush1.msra.mxu0 0.0
  %8353 = vmatprep.subr.mxu0 0.0
  %8354 = vmatpush1.msra.mxu0 0.0
  %8355 = vmatprep.subr.mxu0 0.0
  %8356 = vmatpush1.msra.mxu0 0.0
  %8357 = vmatprep.subr.mxu0 0.0
  %8358 = vmatpush1.msra.mxu0 0.0
  %8359 = vmatprep.subr.mxu0 0.0
  %8360 = vmatpush1.msra.mxu0 0.0
  %8361 = vmatprep.subr.mxu0 0.0
  %8362 = vmatpush1.msra.mxu0 0.0
  %8363 = vmatprep.subr.mxu0 0.0
  %8364 = vmatpush1.msra.mxu0 0.0
  %8365 = vmatprep.subr.mxu0 0.0
  %8366 = vmatpush1.msra.mxu0 0.0
  %8367 = vmatprep.subr.mxu0 0.0
  %8368 = vmatpush1.msra.mxu0 0.0
  %8369 = vmatprep.subr.mxu0 0.0
  %8370 = vmatpush1.msra.mxu0 0.0
  %8371 = vmatprep.subr.mxu0 0.0
  %8372 = vmatpush1.msra.mxu0 0.0
  %8373 = vmatprep.subr.mxu0 0.0
  %8374 = vmatpush1.msra.mxu0 0.0
  %8375 = vmatprep.subr.mxu0 0.0
  %8376 = vmatpush1.msra.mxu0 0.0
  %8377 = vmatprep.subr.mxu0 0.0
  %8378 = vmatpush1.msra.mxu0 0.0
  %8379 = vmatprep.subr.mxu0 0.0
  %8380 = vmatpush1.msra.mxu0 %v8349
  %8381 = vmatprep.subr.mxu0 0.0
  %8382 = vmatpush1.msra.mxu0 %v8339
  %8383 = vmatprep.subr.mxu0 0.0
  %8384 = vmatpush2.msra.mxu0 0.0
  %8385 = vmatprep.subr.mxu0 0.0
  %8386 = vmatpush2.msra.mxu0 0.0
  %8387 = vmatprep.subr.mxu0 0.0
  %8388 = vmatpush2.msra.mxu0 0.0
  %8389 = vmatprep.subr.mxu0 0.0
  %8390 = vmatpush2.msra.mxu0 0.0
  %8391 = vmatprep.subr.mxu0 0.0
  %8392 = vmatpush2.msra.mxu0 0.0
  %8393 = vmatprep.subr.mxu0 0.0
  %8394 = vmatpush2.msra.mxu0 0.0
  %8395 = vmatprep.subr.mxu0 0.0
  %8396 = vmatpush2.msra.mxu0 0.0
  %8397 = vmatprep.subr.mxu0 0.0
  %8398 = vmatpush2.msra.mxu0 0.0
  %8399 = vmatprep.subr.mxu0 0.0
  %8400 = vmatpush2.msra.mxu0 0.0
  %8401 = vmatprep.subr.mxu0 0.0
  %8402 = vmatpush2.msra.mxu0 0.0
  %8403 = vmatprep.subr.mxu0 0.0
  %8404 = vmatpush2.msra.mxu0 0.0
  %8405 = vmatprep.subr.mxu0 0.0
  %8406 = vmatpush2.msra.mxu0 0.0
  %8407 = vmatprep.subr.mxu0 0.0
  %8408 = vmatpush2.msra.mxu0 0.0
  %8409 = vmatprep.subr.mxu0 0.0
  %8410 = vmatpush2.msra.mxu0 0.0
  %8411 = vmatprep.subr.mxu0 0.0
  %8412 = vmatpush2.msra.mxu0 0.0
  %8413 = vmatprep.subr.mxu0 0.0
  %8414 = vmatpush2.msra.mxu0 0.0
  %8415 = vmatprep.mubr.f32.mxu0 0.0
  %8416 = vmatmul.mubr.f32.gmra.mxu0 %v8344
  %v8417 = vpop.f32.mrf.mxu0
  %v8418 = vadd.f32 0.0, %v8417
  %v8419 = vpop.f32.mrf.mxu0
  %8420 = vmatprep.mubr.f32.mxu0 0.0
  %8421 = vmatmul.mubr.f32.gmra.mxu0 %v8347
  %v8422 = vpop.f32.mrf.mxu0
  %v8423 = vadd.f32 0.0, %v8422
  %v8424 = vpop.f32.mrf.mxu0
  %8425 = vdwg.mxu0
  %v8426 = vadd.f32 %v7694, %v8258
  %v8427 = vadd.f32 %v7699, %v8263
  %v8428 = vadd.f32 %v7854, %v8418
  %v8429 = vadd.f32 %v7859, %v8423
  %8430 = vrot.lane.b32.xlu0 %v6529, 104
  %v8431 = vpop.permute.xlu0 %8430
  %8432 = vrot.lane.b32.xlu0 %v6543, 104
  %v8433 = vpop.permute.xlu0 %8432
  %8434 = vrot.lane.b32.xlu0 %v6592, 72
  %v8435 = vpop.permute.xlu0 %8434
  %8436 = vrot.lane.b32.xlu0 %v6606, 72
  %v8437 = vpop.permute.xlu0 %8436
  %v8438 = vsel %vm925, %v8431, 0
  %v8440 = vsel %vm925, %v8433, 0
  %v8442 = vsel %vm925, %v8435, 0
  %v8444 = vsel %vm925, %v8437, 0
  %8446 = vmatprep.subr.mxu0 0.0
  %8447 = vmatpush1.xpose.msra.mxu0 0.0
  %8448 = vmatprep.subr.mxu0 0.0
  %8449 = vmatpush1.xpose.msra.mxu0 0.0
  %8450 = vmatprep.subr.mxu0 0.0
  %8451 = vmatpush1.xpose.msra.mxu0 0.0
  %8452 = vmatprep.subr.mxu0 0.0
  %8453 = vmatpush1.xpose.msra.mxu0 0.0
  %8454 = vmatprep.subr.mxu0 0.0
  %8455 = vmatpush1.xpose.msra.mxu0 0.0
  %8456 = vmatprep.subr.mxu0 0.0
  %8457 = vmatpush1.xpose.msra.mxu0 0.0
  %8458 = vmatprep.subr.mxu0 0.0
  %8459 = vmatpush1.xpose.msra.mxu0 0.0
  %8460 = vmatprep.subr.mxu0 0.0
  %8461 = vmatpush1.xpose.msra.mxu0 0.0
  %8462 = vmatprep.subr.mxu0 0.0
  %8463 = vmatpush1.xpose.msra.mxu0 0.0
  %8464 = vmatprep.subr.mxu0 0.0
  %8465 = vmatpush1.xpose.msra.mxu0 0.0
  %8466 = vmatprep.subr.mxu0 0.0
  %8467 = vmatpush1.xpose.msra.mxu0 0.0
  %8468 = vmatprep.subr.mxu0 0.0
  %8469 = vmatpush1.xpose.msra.mxu0 0.0
  %8470 = vmatprep.subr.mxu0 0.0
  %8471 = vmatpush1.xpose.msra.mxu0 0.0
  %8472 = vmatprep.subr.mxu0 0.0
  %8473 = vmatpush1.xpose.msra.mxu0 0.0
  %8474 = vmatprep.subr.mxu0 0.0
  %8475 = vmatpush1.xpose.msra.mxu0 %v8444
  %8476 = vmatprep.subr.mxu0 0.0
  %8477 = vmatpush1.xpose.msra.mxu0 %v8442
  %8478 = vmatprep.subr.mxu0 0.0
  %8479 = vmatpush2.xpose.msra.mxu0 0.0
  %8480 = vmatprep.subr.mxu0 0.0
  %8481 = vmatpush2.xpose.msra.mxu0 0.0
  %8482 = vmatprep.subr.mxu0 0.0
  %8483 = vmatpush2.xpose.msra.mxu0 0.0
  %8484 = vmatprep.subr.mxu0 0.0
  %8485 = vmatpush2.xpose.msra.mxu0 0.0
  %8486 = vmatprep.subr.mxu0 0.0
  %8487 = vmatpush2.xpose.msra.mxu0 0.0
  %8488 = vmatprep.subr.mxu0 0.0
  %8489 = vmatpush2.xpose.msra.mxu0 0.0
  %8490 = vmatprep.subr.mxu0 0.0
  %8491 = vmatpush2.xpose.msra.mxu0 0.0
  %8492 = vmatprep.subr.mxu0 0.0
  %8493 = vmatpush2.xpose.msra.mxu0 0.0
  %8494 = vmatprep.subr.mxu0 0.0
  %8495 = vmatpush2.xpose.msra.mxu0 0.0
  %8496 = vmatprep.subr.mxu0 0.0
  %8497 = vmatpush2.xpose.msra.mxu0 0.0
  %8498 = vmatprep.subr.mxu0 0.0
  %8499 = vmatpush2.xpose.msra.mxu0 0.0
  %8500 = vmatprep.subr.mxu0 0.0
  %8501 = vmatpush2.xpose.msra.mxu0 0.0
  %8502 = vmatprep.subr.mxu0 0.0
  %8503 = vmatpush2.xpose.msra.mxu0 0.0
  %8504 = vmatprep.subr.mxu0 0.0
  %8505 = vmatpush2.xpose.msra.mxu0 0.0
  %8506 = vmatprep.subr.mxu0 0.0
  %8507 = vmatpush2.xpose.msra.mxu0 0.0
  %8508 = vmatprep.subr.mxu0 0.0
  %8509 = vmatpush2.xpose.msra.mxu0 0.0
  %8510 = vmatprep.mubr.f32.mxu0 0.0
  %8511 = vmatmul.mubr.f32.gmra.mxu0 %v8438
  %v8512 = vpop.f32.mrf.mxu0
  %v8513 = vadd.f32 %v202, %v8512
  %v8514 = vpop.f32.mrf.mxu0
  %8515 = vmatprep.mubr.f32.mxu0 0.0
  %8516 = vmatmul.mubr.f32.gmra.mxu0 %v8440
  %v8517 = vpop.f32.mrf.mxu0
  %v8518 = vadd.f32 %v203, %v8517
  %v8519 = vpop.f32.mrf.mxu0
  %8520 = vdwg.mxu0
  %8521 = vrot.lane.b32.xlu0 %v6751, 104
  %v8522 = vpop.permute.xlu0 %8521
  %8523 = vrot.lane.b32.xlu0 %v6765, 104
  %v8524 = vpop.permute.xlu0 %8523
  %8525 = vrot.lane.b32.xlu0 %v6814, 72
  %v8526 = vpop.permute.xlu0 %8525
  %8527 = vrot.lane.b32.xlu0 %v6828, 72
  %v8528 = vpop.permute.xlu0 %8527
  %v8529 = vsel %vm925, %v8522, 0
  %v8531 = vsel %vm925, %v8524, 0
  %v8533 = vsel %vm925, %v8526, 0
  %v8535 = vsel %vm925, %v8528, 0
  %8537 = vmatprep.subr.mxu0 0.0
  %8538 = vmatpush1.xpose.msra.mxu0 0.0
  %8539 = vmatprep.subr.mxu0 0.0
  %8540 = vmatpush1.xpose.msra.mxu0 0.0
  %8541 = vmatprep.subr.mxu0 0.0
  %8542 = vmatpush1.xpose.msra.mxu0 0.0
  %8543 = vmatprep.subr.mxu0 0.0
  %8544 = vmatpush1.xpose.msra.mxu0 0.0
  %8545 = vmatprep.subr.mxu0 0.0
  %8546 = vmatpush1.xpose.msra.mxu0 0.0
  %8547 = vmatprep.subr.mxu0 0.0
  %8548 = vmatpush1.xpose.msra.mxu0 0.0
  %8549 = vmatprep.subr.mxu0 0.0
  %8550 = vmatpush1.xpose.msra.mxu0 0.0
  %8551 = vmatprep.subr.mxu0 0.0
  %8552 = vmatpush1.xpose.msra.mxu0 0.0
  %8553 = vmatprep.subr.mxu0 0.0
  %8554 = vmatpush1.xpose.msra.mxu0 0.0
  %8555 = vmatprep.subr.mxu0 0.0
  %8556 = vmatpush1.xpose.msra.mxu0 0.0
  %8557 = vmatprep.subr.mxu0 0.0
  %8558 = vmatpush1.xpose.msra.mxu0 0.0
  %8559 = vmatprep.subr.mxu0 0.0
  %8560 = vmatpush1.xpose.msra.mxu0 0.0
  %8561 = vmatprep.subr.mxu0 0.0
  %8562 = vmatpush1.xpose.msra.mxu0 0.0
  %8563 = vmatprep.subr.mxu0 0.0
  %8564 = vmatpush1.xpose.msra.mxu0 0.0
  %8565 = vmatprep.subr.mxu0 0.0
  %8566 = vmatpush1.xpose.msra.mxu0 %v8535
  %8567 = vmatprep.subr.mxu0 0.0
  %8568 = vmatpush1.xpose.msra.mxu0 %v8533
  %8569 = vmatprep.subr.mxu0 0.0
  %8570 = vmatpush2.xpose.msra.mxu0 0.0
  %8571 = vmatprep.subr.mxu0 0.0
  %8572 = vmatpush2.xpose.msra.mxu0 0.0
  %8573 = vmatprep.subr.mxu0 0.0
  %8574 = vmatpush2.xpose.msra.mxu0 0.0
  %8575 = vmatprep.subr.mxu0 0.0
  %8576 = vmatpush2.xpose.msra.mxu0 0.0
  %8577 = vmatprep.subr.mxu0 0.0
  %8578 = vmatpush2.xpose.msra.mxu0 0.0
  %8579 = vmatprep.subr.mxu0 0.0
  %8580 = vmatpush2.xpose.msra.mxu0 0.0
  %8581 = vmatprep.subr.mxu0 0.0
  %8582 = vmatpush2.xpose.msra.mxu0 0.0
  %8583 = vmatprep.subr.mxu0 0.0
  %8584 = vmatpush2.xpose.msra.mxu0 0.0
  %8585 = vmatprep.subr.mxu0 0.0
  %8586 = vmatpush2.xpose.msra.mxu0 0.0
  %8587 = vmatprep.subr.mxu0 0.0
  %8588 = vmatpush2.xpose.msra.mxu0 0.0
  %8589 = vmatprep.subr.mxu0 0.0
  %8590 = vmatpush2.xpose.msra.mxu0 0.0
  %8591 = vmatprep.subr.mxu0 0.0
  %8592 = vmatpush2.xpose.msra.mxu0 0.0
  %8593 = vmatprep.subr.mxu0 0.0
  %8594 = vmatpush2.xpose.msra.mxu0 0.0
  %8595 = vmatprep.subr.mxu0 0.0
  %8596 = vmatpush2.xpose.msra.mxu0 0.0
  %8597 = vmatprep.subr.mxu0 0.0
  %8598 = vmatpush2.xpose.msra.mxu0 0.0
  %8599 = vmatprep.subr.mxu0 0.0
  %8600 = vmatpush2.xpose.msra.mxu0 0.0
  %8601 = vmatprep.mubr.f32.mxu0 0.0
  %8602 = vmatmul.mubr.f32.gmra.mxu0 %v8529
  %v8603 = vpop.f32.mrf.mxu0
  %v8604 = vadd.f32 %v202, %v8603
  %v8605 = vpop.f32.mrf.mxu0
  %8606 = vmatprep.mubr.f32.mxu0 0.0
  %8607 = vmatmul.mubr.f32.gmra.mxu0 %v8531
  %v8608 = vpop.f32.mrf.mxu0
  %v8609 = vadd.f32 %v203, %v8608
  %v8610 = vpop.f32.mrf.mxu0
  %8611 = vdwg.mxu0
  %v8612 = vsel %vm1231, %v8513, -inf
  %8613 = vmax.xlane.f32.xlu0 %v8612
  %v8614 = vpop.xlane.xlu0 %8613
  %v8615 = vsel %vm1235, %v8518, -inf
  %8616 = vmax.xlane.f32.xlu0 %v8615
  %v8617 = vpop.xlane.xlu0 %8616
  %v8618 = vsel %vm1231, %v8604, -inf
  %8619 = vmax.xlane.f32.xlu0 %v8618
  %v8620 = vpop.xlane.xlu0 %8619
  %v8621 = vsel %vm1235, %v8609, -inf
  %8622 = vmax.xlane.f32.xlu0 %v8621
  %v8623 = vpop.xlane.xlu0 %8622
  %v8624 = vsub.f32 %v8513, %v8614
  %v8625 = vsub.f32 %v8518, %v8617
  %v8626 = vsub.f32 %v8604, %v8620
  %v8627 = vsub.f32 %v8609, %v8623
  %v8628 = vmul.f32 %v8624, 1.442695
  %v8629 = vpow.pop %v8628
  %v8630 = vmul.f32 %v8625, 1.442695
  %v8631 = vpow.pop %v8630
  %v8632 = vmul.f32 %v8626, 1.442695
  %v8633 = vpow.pop %v8632
  %v8634 = vmul.f32 %v8627, 1.442695
  %v8635 = vpow.pop %v8634
  %v8636 = vsel %vm1231, %v8629, 0.0
  %8637 = vadd.xlane.f32.xlu0 %v8636
  %v8638 = vpop.xlane.xlu0 %8637
  %v8639 = vsel %vm1235, %v8631, 0.0
  %8640 = vadd.xlane.f32.xlu0 %v8639
  %v8641 = vpop.xlane.xlu0 %8640
  %v8642 = vsel %vm1231, %v8633, 0.0
  %8643 = vadd.xlane.f32.xlu0 %v8642
  %v8644 = vpop.xlane.xlu0 %8643
  %v8645 = vsel %vm1235, %v8635, 0.0
  %8646 = vadd.xlane.f32.xlu0 %v8645
  %v8647 = vpop.xlane.xlu0 %8646
  %v8648 = vrcp.pop %v8638
  %v8649 = vmul.f32 %v8629, %v8648
  %v8650 = vrcp.pop %v8641
  %v8651 = vmul.f32 %v8631, %v8650
  %v8652 = vrcp.pop %v8644
  %v8653 = vmul.f32 %v8633, %v8652
  %v8654 = vrcp.pop %v8647
  %v8655 = vmul.f32 %v8635, %v8654
  %v8656 = vmul.f32 %v6339, %v3247
  %v8657 = vmul.f32 %v6353, %v3249
  %v8658 = vmul.f32 %v6361, %v3251
  %v8659 = vmul.f32 %v6363, %v3253
  %v8660 = vmul.f32 %v6346, %v3255
  %v8661 = vmul.f32 %v6360, %v3257
  %v8662 = vmul.f32 %v6362, %v3259
  %v8663 = vmul.f32 %v6364, %v3261
  %v8664 = vmul.f32 %v6388, %v3247
  %v8665 = vmul.f32 %v6402, %v3247
  %v8666 = vmul.f32 %v6410, %v3249
  %v8667 = vmul.f32 %v6412, %v3251
  %v8668 = vmul.f32 %v6395, %v3253
  %v8669 = vmul.f32 %v6409, %v3255
  %v8670 = vmul.f32 %v6411, %v3257
  %v8671 = vmul.f32 %v6413, %v3259
  %v8672 = vmul.f32 %v6428, %v3261
  %v8673 = vmul.f32 %v6435, %v3247
  %v8683 = vcombine.low %v8656, %v8657
  %v8684 = vcombine.low %v8658, %v8659
  %v8685 = vcombine.low %v8660, %v8661
  %v8686 = vcombine.low %v8662, %v8663
  %v8688 = vunpack.c.l.s4 1966171168
  %v8689 = vunpack.c.0.s8 %v8688
  %v8690 = vlaneseq
  %v8691 = vshrl.u32 %v8690, 7
  %v8692 = vsub.s32 %v8689, %v8691
  %v8693 = vrot.slane %v8683, %v8692
  %v8695 = vunpack.c.l.s4 1966171168
  %v8696 = vunpack.c.0.s8 %v8695
  %v8697 = vlaneseq
  %v8698 = vshrl.u32 %v8697, 7
  %v8699 = vsub.s32 %v8696, %v8698
  %v8700 = vrot.slane %v8684, %v8699
  %v8702 = vunpack.c.l.s4 1966171168
  %v8703 = vunpack.c.0.s8 %v8702
  %v8704 = vlaneseq
  %v8705 = vshrl.u32 %v8704, 7
  %v8706 = vsub.s32 %v8703, %v8705
  %v8707 = vrot.slane %v8685, %v8706
  %v8709 = vunpack.c.l.s4 1966171168
  %v8710 = vunpack.c.0.s8 %v8709
  %v8711 = vlaneseq
  %v8712 = vshrl.u32 %v8711, 7
  %v8713 = vsub.s32 %v8710, %v8712
  %v8714 = vrot.slane %v8686, %v8713
  %v8715 = vcombine.low %v8693, %v8700
  %v8716 = vcombine.low %v8707, %v8714
  %v8718 = vunpack.c.l.s4 1966171168
  %v8719 = vunpack.c.0.s8 %v8718
  %v8720 = vlaneseq
  %v8721 = vshrl.u32 %v8720, 7
  %v8722 = vsub.s32 %v8719, %v8721
  %v8723 = vrot.slane %v8715, %v8722
  %v8725 = vunpack.c.l.s4 1966171168
  %v8726 = vunpack.c.0.s8 %v8725
  %v8727 = vlaneseq
  %v8728 = vshrl.u32 %v8727, 7
  %v8729 = vsub.s32 %v8726, %v8728
  %v8730 = vrot.slane %v8716, %v8729
  %v8731 = vcombine.low %v8723, %v8730
  %v8733 = vunpack.c.l.s4 1966171168
  %v8734 = vunpack.c.0.s8 %v8733
  %v8735 = vlaneseq
  %v8736 = vshrl.u32 %v8735, 7
  %v8737 = vsub.s32 %v8734, %v8736
  %v8738 = vrot.slane %v8664, %v8737
  %v8740 = vunpack.c.l.s4 1966171168
  %v8741 = vunpack.c.0.s8 %v8740
  %v8742 = vlaneseq
  %v8743 = vshrl.u32 %v8742, 7
  %v8744 = vsub.s32 %v8741, %v8743
  %v8745 = vrot.slane %v8738, %v8744
  %8746 = vrot.lane.b32.xlu0 %v8731, 64
  %v8747 = vpop.permute.xlu0 %8746
  %8748 = vrot.lane.b32.xlu0 %v8745, 64
  %v8749 = vpop.permute.xlu0 %8748
  %v8752 = vsel %vm1231, %v8649, 0
  %v8755 = vsel %vm1231, %v8651, 0
  %v8757 = vsel %vm1770, %v8749, 0
  %8759 = vmatprep.subr.mxu0 0.0
  %8760 = vmatpush1.msra.mxu0 0.0
  %8761 = vmatprep.subr.mxu0 0.0
  %8762 = vmatpush1.msra.mxu0 0.0
  %8763 = vmatprep.subr.mxu0 0.0
  %8764 = vmatpush1.msra.mxu0 0.0
  %8765 = vmatprep.subr.mxu0 0.0
  %8766 = vmatpush1.msra.mxu0 0.0
  %8767 = vmatprep.subr.mxu0 0.0
  %8768 = vmatpush1.msra.mxu0 0.0
  %8769 = vmatprep.subr.mxu0 0.0
  %8770 = vmatpush1.msra.mxu0 0.0
  %8771 = vmatprep.subr.mxu0 0.0
  %8772 = vmatpush1.msra.mxu0 0.0
  %8773 = vmatprep.subr.mxu0 0.0
  %8774 = vmatpush1.msra.mxu0 0.0
  %8775 = vmatprep.subr.mxu0 0.0
  %8776 = vmatpush1.msra.mxu0 0.0
  %8777 = vmatprep.subr.mxu0 0.0
  %8778 = vmatpush1.msra.mxu0 0.0
  %8779 = vmatprep.subr.mxu0 0.0
  %8780 = vmatpush1.msra.mxu0 0.0
  %8781 = vmatprep.subr.mxu0 0.0
  %8782 = vmatpush1.msra.mxu0 0.0
  %8783 = vmatprep.subr.mxu0 0.0
  %8784 = vmatpush1.msra.mxu0 0.0
  %8785 = vmatprep.subr.mxu0 0.0
  %8786 = vmatpush1.msra.mxu0 0.0
  %8787 = vmatprep.subr.mxu0 0.0
  %8788 = vmatpush1.msra.mxu0 %v8757
  %8789 = vmatprep.subr.mxu0 0.0
  %8790 = vmatpush1.msra.mxu0 %v8747
  %8791 = vmatprep.subr.mxu0 0.0
  %8792 = vmatpush2.msra.mxu0 0.0
  %8793 = vmatprep.subr.mxu0 0.0
  %8794 = vmatpush2.msra.mxu0 0.0
  %8795 = vmatprep.subr.mxu0 0.0
  %8796 = vmatpush2.msra.mxu0 0.0
  %8797 = vmatprep.subr.mxu0 0.0
  %8798 = vmatpush2.msra.mxu0 0.0
  %8799 = vmatprep.subr.mxu0 0.0
  %8800 = vmatpush2.msra.mxu0 0.0
  %8801 = vmatprep.subr.mxu0 0.0
  %8802 = vmatpush2.msra.mxu0 0.0
  %8803 = vmatprep.subr.mxu0 0.0
  %8804 = vmatpush2.msra.mxu0 0.0
  %8805 = vmatprep.subr.mxu0 0.0
  %8806 = vmatpush2.msra.mxu0 0.0
  %8807 = vmatprep.subr.mxu0 0.0
  %8808 = vmatpush2.msra.mxu0 0.0
  %8809 = vmatprep.subr.mxu0 0.0
  %8810 = vmatpush2.msra.mxu0 0.0
  %8811 = vmatprep.subr.mxu0 0.0
  %8812 = vmatpush2.msra.mxu0 0.0
  %8813 = vmatprep.subr.mxu0 0.0
  %8814 = vmatpush2.msra.mxu0 0.0
  %8815 = vmatprep.subr.mxu0 0.0
  %8816 = vmatpush2.msra.mxu0 0.0
  %8817 = vmatprep.subr.mxu0 0.0
  %8818 = vmatpush2.msra.mxu0 0.0
  %8819 = vmatprep.subr.mxu0 0.0
  %8820 = vmatpush2.msra.mxu0 0.0
  %8821 = vmatprep.subr.mxu0 0.0
  %8822 = vmatpush2.msra.mxu0 0.0
  %8823 = vmatprep.mubr.f32.mxu0 0.0
  %8824 = vmatmul.mubr.f32.gmra.mxu0 %v8752
  %v8825 = vpop.f32.mrf.mxu0
  %v8826 = vadd.f32 0.0, %v8825
  %v8827 = vpop.f32.mrf.mxu0
  %8828 = vmatprep.mubr.f32.mxu0 0.0
  %8829 = vmatmul.mubr.f32.gmra.mxu0 %v8755
  %v8830 = vpop.f32.mrf.mxu0
  %v8831 = vadd.f32 0.0, %v8830
  %v8832 = vpop.f32.mrf.mxu0
  %8833 = vdwg.mxu0
  %v8843 = vcombine.low %v8665, %v8666
  %v8844 = vcombine.low %v8667, %v8668
  %v8845 = vcombine.low %v8669, %v8670
  %v8846 = vcombine.low %v8671, %v8672
  %v8848 = vunpack.c.l.s4 1966171168
  %v8849 = vunpack.c.0.s8 %v8848
  %v8850 = vlaneseq
  %v8851 = vshrl.u32 %v8850, 7
  %v8852 = vsub.s32 %v8849, %v8851
  %v8853 = vrot.slane %v8843, %v8852
  %v8855 = vunpack.c.l.s4 1966171168
  %v8856 = vunpack.c.0.s8 %v8855
  %v8857 = vlaneseq
  %v8858 = vshrl.u32 %v8857, 7
  %v8859 = vsub.s32 %v8856, %v8858
  %v8860 = vrot.slane %v8844, %v8859
  %v8862 = vunpack.c.l.s4 1966171168
  %v8863 = vunpack.c.0.s8 %v8862
  %v8864 = vlaneseq
  %v8865 = vshrl.u32 %v8864, 7
  %v8866 = vsub.s32 %v8863, %v8865
  %v8867 = vrot.slane %v8845, %v8866
  %v8869 = vunpack.c.l.s4 1966171168
  %v8870 = vunpack.c.0.s8 %v8869
  %v8871 = vlaneseq
  %v8872 = vshrl.u32 %v8871, 7
  %v8873 = vsub.s32 %v8870, %v8872
  %v8874 = vrot.slane %v8846, %v8873
  %v8875 = vcombine.low %v8853, %v8860
  %v8876 = vcombine.low %v8867, %v8874
  %v8878 = vunpack.c.l.s4 1966171168
  %v8879 = vunpack.c.0.s8 %v8878
  %v8880 = vlaneseq
  %v8881 = vshrl.u32 %v8880, 7
  %v8882 = vsub.s32 %v8879, %v8881
  %v8883 = vrot.slane %v8875, %v8882
  %v8885 = vunpack.c.l.s4 1966171168
  %v8886 = vunpack.c.0.s8 %v8885
  %v8887 = vlaneseq
  %v8888 = vshrl.u32 %v8887, 7
  %v8889 = vsub.s32 %v8886, %v8888
  %v8890 = vrot.slane %v8876, %v8889
  %v8891 = vcombine.low %v8883, %v8890
  %v8893 = vunpack.c.l.s4 1966171168
  %v8894 = vunpack.c.0.s8 %v8893
  %v8895 = vlaneseq
  %v8896 = vshrl.u32 %v8895, 7
  %v8897 = vsub.s32 %v8894, %v8896
  %v8898 = vrot.slane %v8673, %v8897
  %v8900 = vunpack.c.l.s4 1966171168
  %v8901 = vunpack.c.0.s8 %v8900
  %v8902 = vlaneseq
  %v8903 = vshrl.u32 %v8902, 7
  %v8904 = vsub.s32 %v8901, %v8903
  %v8905 = vrot.slane %v8898, %v8904
  %8906 = vrot.lane.b32.xlu0 %v8891, 64
  %v8907 = vpop.permute.xlu0 %8906
  %8908 = vrot.lane.b32.xlu0 %v8905, 64
  %v8909 = vpop.permute.xlu0 %8908
  %v8912 = vsel %vm1231, %v8653, 0
  %v8915 = vsel %vm1231, %v8655, 0
  %v8917 = vsel %vm1770, %v8909, 0
  %8919 = vmatprep.subr.mxu0 0.0
  %8920 = vmatpush1.msra.mxu0 0.0
  %8921 = vmatprep.subr.mxu0 0.0
  %8922 = vmatpush1.msra.mxu0 0.0
  %8923 = vmatprep.subr.mxu0 0.0
  %8924 = vmatpush1.msra.mxu0 0.0
  %8925 = vmatprep.subr.mxu0 0.0
  %8926 = vmatpush1.msra.mxu0 0.0
  %8927 = vmatprep.subr.mxu0 0.0
  %8928 = vmatpush1.msra.mxu0 0.0
  %8929 = vmatprep.subr.mxu0 0.0
  %8930 = vmatpush1.msra.mxu0 0.0
  %8931 = vmatprep.subr.mxu0 0.0
  %8932 = vmatpush1.msra.mxu0 0.0
  %8933 = vmatprep.subr.mxu0 0.0
  %8934 = vmatpush1.msra.mxu0 0.0
  %8935 = vmatprep.subr.mxu0 0.0
  %8936 = vmatpush1.msra.mxu0 0.0
  %8937 = vmatprep.subr.mxu0 0.0
  %8938 = vmatpush1.msra.mxu0 0.0
  %8939 = vmatprep.subr.mxu0 0.0
  %8940 = vmatpush1.msra.mxu0 0.0
  %8941 = vmatprep.subr.mxu0 0.0
  %8942 = vmatpush1.msra.mxu0 0.0
  %8943 = vmatprep.subr.mxu0 0.0
  %8944 = vmatpush1.msra.mxu0 0.0
  %8945 = vmatprep.subr.mxu0 0.0
  %8946 = vmatpush1.msra.mxu0 0.0
  %8947 = vmatprep.subr.mxu0 0.0
  %8948 = vmatpush1.msra.mxu0 %v8917
  %8949 = vmatprep.subr.mxu0 0.0
  %8950 = vmatpush1.msra.mxu0 %v8907
  %8951 = vmatprep.subr.mxu0 0.0
  %8952 = vmatpush2.msra.mxu0 0.0
  %8953 = vmatprep.subr.mxu0 0.0
  %8954 = vmatpush2.msra.mxu0 0.0
  %8955 = vmatprep.subr.mxu0 0.0
  %8956 = vmatpush2.msra.mxu0 0.0
  %8957 = vmatprep.subr.mxu0 0.0
  %8958 = vmatpush2.msra.mxu0 0.0
  %8959 = vmatprep.subr.mxu0 0.0
  %8960 = vmatpush2.msra.mxu0 0.0
  %8961 = vmatprep.subr.mxu0 0.0
  %8962 = vmatpush2.msra.mxu0 0.0
  %8963 = vmatprep.subr.mxu0 0.0
  %8964 = vmatpush2.msra.mxu0 0.0
  %8965 = vmatprep.subr.mxu0 0.0
  %8966 = vmatpush2.msra.mxu0 0.0
  %8967 = vmatprep.subr.mxu0 0.0
  %8968 = vmatpush2.msra.mxu0 0.0
  %8969 = vmatprep.subr.mxu0 0.0
  %8970 = vmatpush2.msra.mxu0 0.0
  %8971 = vmatprep.subr.mxu0 0.0
  %8972 = vmatpush2.msra.mxu0 0.0
  %8973 = vmatprep.subr.mxu0 0.0
  %8974 = vmatpush2.msra.mxu0 0.0
  %8975 = vmatprep.subr.mxu0 0.0
  %8976 = vmatpush2.msra.mxu0 0.0
  %8977 = vmatprep.subr.mxu0 0.0
  %8978 = vmatpush2.msra.mxu0 0.0
  %8979 = vmatprep.subr.mxu0 0.0
  %8980 = vmatpush2.msra.mxu0 0.0
  %8981 = vmatprep.subr.mxu0 0.0
  %8982 = vmatpush2.msra.mxu0 0.0
  %8983 = vmatprep.mubr.f32.mxu0 0.0
  %8984 = vmatmul.mubr.f32.gmra.mxu0 %v8912
  %v8985 = vpop.f32.mrf.mxu0
  %v8986 = vadd.f32 0.0, %v8985
  %v8987 = vpop.f32.mrf.mxu0
  %8988 = vmatprep.mubr.f32.mxu0 0.0
  %8989 = vmatmul.mubr.f32.gmra.mxu0 %v8915
  %v8990 = vpop.f32.mrf.mxu0
  %v8991 = vadd.f32 0.0, %v8990
  %v8992 = vpop.f32.mrf.mxu0
  %8993 = vdwg.mxu0
  %v8994 = vadd.f32 %v8426, %v8826
  %v8995 = vadd.f32 %v8427, %v8831
  %v8996 = vadd.f32 %v8428, %v8986
  %v8997 = vadd.f32 %v8429, %v8991
  %v9002 = vcombine.high %v8994, %v8994
  %v9004 = vunpack.c.l.s4 1966171168
  %v9005 = vunpack.c.0.s8 %v9004
  %v9006 = vlaneseq
  %v9007 = vshrl.u32 %v9006, 7
  %v9008 = vsub.s32 %v9005, %v9007
  %v9009 = vrot.slane %v8994, %v9008
  %v9011 = vunpack.c.l.s4 1966171168
  %v9012 = vunpack.c.0.s8 %v9011
  %v9013 = vlaneseq
  %v9014 = vshrl.u32 %v9013, 7
  %v9015 = vsub.s32 %v9012, %v9014
  %v9016 = vrot.slane %v9002, %v9015
  %v9017 = vcombine.high %v9009, %v9009
  %v9018 = vcombine.high %v9016, %v9016
  %v9020 = vunpack.c.l.s4 1966171168
  %v9021 = vunpack.c.0.s8 %v9020
  %v9022 = vlaneseq
  %v9023 = vshrl.u32 %v9022, 7
  %v9024 = vsub.s32 %v9021, %v9023
  %v9025 = vrot.slane %v9009, %v9024
  %v9027 = vunpack.c.l.s4 1966171168
  %v9028 = vunpack.c.0.s8 %v9027
  %v9029 = vlaneseq
  %v9030 = vshrl.u32 %v9029, 7
  %v9031 = vsub.s32 %v9028, %v9030
  %v9032 = vrot.slane %v9016, %v9031
  %v9034 = vunpack.c.l.s4 1966171168
  %v9035 = vunpack.c.0.s8 %v9034
  %v9036 = vlaneseq
  %v9037 = vshrl.u32 %v9036, 7
  %v9038 = vsub.s32 %v9035, %v9037
  %v9039 = vrot.slane %v9017, %v9038
  %v9041 = vunpack.c.l.s4 1966171168
  %v9042 = vunpack.c.0.s8 %v9041
  %v9043 = vlaneseq
  %v9044 = vshrl.u32 %v9043, 7
  %v9045 = vsub.s32 %v9042, %v9044
  %v9046 = vrot.slane %v9018, %v9045
  %v9047 = vcombine.high %v9025, %v9025
  %v9048 = vcombine.high %v9032, %v9032
  %v9049 = vcombine.high %v9039, %v9039
  %v9050 = vcombine.high %v9046, %v9046
  %v9052 = vunpack.c.l.s4 1966171168
  %v9053 = vunpack.c.0.s8 %v9052
  %v9054 = vlaneseq
  %v9055 = vshrl.u32 %v9054, 7
  %v9056 = vsub.s32 %v9053, %v9055
  %v9057 = vrot.slane %v8995, %v9056
  %v9059 = vunpack.c.l.s4 1966171168
  %v9060 = vunpack.c.0.s8 %v9059
  %v9061 = vlaneseq
  %v9062 = vshrl.u32 %v9061, 7
  %v9063 = vsub.s32 %v9060, %v9062
  %v9064 = vrot.slane %v9057, %v9063
  %v9065 = vcombine.high %v8996, %v8996
  %v9067 = vunpack.c.l.s4 1966171168
  %v9068 = vunpack.c.0.s8 %v9067
  %v9069 = vlaneseq
  %v9070 = vshrl.u32 %v9069, 7
  %v9071 = vsub.s32 %v9068, %v9070
  %v9072 = vrot.slane %v8996, %v9071
  %v9074 = vunpack.c.l.s4 1966171168
  %v9075 = vunpack.c.0.s8 %v9074
  %v9076 = vlaneseq
  %v9077 = vshrl.u32 %v9076, 7
  %v9078 = vsub.s32 %v9075, %v9077
  %v9079 = vrot.slane %v9065, %v9078
  %v9080 = vcombine.high %v9072, %v9072
  %v9081 = vcombine.high %v9079, %v9079
  %v9083 = vunpack.c.l.s4 1966171168
  %v9084 = vunpack.c.0.s8 %v9083
  %v9085 = vlaneseq
  %v9086 = vshrl.u32 %v9085, 7
  %v9087 = vsub.s32 %v9084, %v9086
  %v9088 = vrot.slane %v9072, %v9087
  %v9090 = vunpack.c.l.s4 1966171168
  %v9091 = vunpack.c.0.s8 %v9090
  %v9092 = vlaneseq
  %v9093 = vshrl.u32 %v9092, 7
  %v9094 = vsub.s32 %v9091, %v9093
  %v9095 = vrot.slane %v9079, %v9094
  %v9097 = vunpack.c.l.s4 1966171168
  %v9098 = vunpack.c.0.s8 %v9097
  %v9099 = vlaneseq
  %v9100 = vshrl.u32 %v9099, 7
  %v9101 = vsub.s32 %v9098, %v9100
  %v9102 = vrot.slane %v9080, %v9101
  %v9104 = vunpack.c.l.s4 1966171168
  %v9105 = vunpack.c.0.s8 %v9104
  %v9106 = vlaneseq
  %v9107 = vshrl.u32 %v9106, 7
  %v9108 = vsub.s32 %v9105, %v9107
  %v9109 = vrot.slane %v9081, %v9108
  %v9110 = vcombine.high %v9088, %v9088
  %v9111 = vcombine.high %v9095, %v9095
  %v9112 = vcombine.high %v9102, %v9102
  %v9113 = vcombine.high %v9109, %v9109
  %v9115 = vunpack.c.l.s4 1966171168
  %v9116 = vunpack.c.0.s8 %v9115
  %v9117 = vlaneseq
  %v9118 = vshrl.u32 %v9117, 7
  %v9119 = vsub.s32 %v9116, %v9118
  %v9120 = vrot.slane %v8997, %v9119
  %v9122 = vunpack.c.l.s4 1966171168
  %v9123 = vunpack.c.0.s8 %v9122
  %v9124 = vlaneseq
  %v9125 = vshrl.u32 %v9124, 7
  %v9126 = vsub.s32 %v9123, %v9125
  %v9127 = vrot.slane %v9120, %v9126
  %s9128 = scalar_lea.vmem %s5, 32
  %v9129 = vld [vmem:[%s9128] sm:$0xff]
  %v9130 = vld [vmem:[%s9128 + $0x8] sm:$0xff]
  %v9131 = vld [vmem:[%s9128 + $0x10] sm:$0xff]
  %v9132 = vld [vmem:[%s9128 + $0x18] sm:$0xff]
  %s9133 = scalar_lea.vmem %s6, 1
  %v9134 = vld [vmem:[%s9133] sm:$0x1]
  %v9136 = vlaneseq
  %v9137 = vshrl.u32 %v9136, 7
  %v9138 = vsub.s32 0, %v9137
  %v9139 = vrot.slane %v9134, %v9138
  %v9141 = vcombine.low %v9025, %v9039
  %v9142 = vcombine.low %v9047, %v9049
  %v9143 = vcombine.low %v9032, %v9046
  %v9144 = vcombine.low %v9048, %v9050
  %v9146 = vunpack.c.l.s4 1966171168
  %v9147 = vunpack.c.0.s8 %v9146
  %v9148 = vlaneseq
  %v9149 = vshrl.u32 %v9148, 7
  %v9150 = vsub.s32 %v9147, %v9149
  %v9151 = vrot.slane %v9141, %v9150
  %v9153 = vunpack.c.l.s4 1966171168
  %v9154 = vunpack.c.0.s8 %v9153
  %v9155 = vlaneseq
  %v9156 = vshrl.u32 %v9155, 7
  %v9157 = vsub.s32 %v9154, %v9156
  %v9158 = vrot.slane %v9142, %v9157
  %v9160 = vunpack.c.l.s4 1966171168
  %v9161 = vunpack.c.0.s8 %v9160
  %v9162 = vlaneseq
  %v9163 = vshrl.u32 %v9162, 7
  %v9164 = vsub.s32 %v9161, %v9163
  %v9165 = vrot.slane %v9143, %v9164
  %v9167 = vunpack.c.l.s4 1966171168
  %v9168 = vunpack.c.0.s8 %v9167
  %v9169 = vlaneseq
  %v9170 = vshrl.u32 %v9169, 7
  %v9171 = vsub.s32 %v9168, %v9170
  %v9172 = vrot.slane %v9144, %v9171
  %v9173 = vcombine.low %v9151, %v9158
  %v9174 = vcombine.low %v9165, %v9172
  %v9176 = vunpack.c.l.s4 1966171168
  %v9177 = vunpack.c.0.s8 %v9176
  %v9178 = vlaneseq
  %v9179 = vshrl.u32 %v9178, 7
  %v9180 = vsub.s32 %v9177, %v9179
  %v9181 = vrot.slane %v9173, %v9180
  %v9183 = vunpack.c.l.s4 1966171168
  %v9184 = vunpack.c.0.s8 %v9183
  %v9185 = vlaneseq
  %v9186 = vshrl.u32 %v9185, 7
  %v9187 = vsub.s32 %v9184, %v9186
  %v9188 = vrot.slane %v9174, %v9187
  %v9189 = vcombine.low %v9181, %v9188
  %v9190 = vcombine.low %v9064, %v9088
  %v9191 = vcombine.low %v9102, %v9110
  %v9192 = vcombine.low %v9112, %v9095
  %v9193 = vcombine.low %v9109, %v9111
  %v9195 = vunpack.c.l.s4 1966171168
  %v9196 = vunpack.c.0.s8 %v9195
  %v9197 = vlaneseq
  %v9198 = vshrl.u32 %v9197, 7
  %v9199 = vsub.s32 %v9196, %v9198
  %v9200 = vrot.slane %v9190, %v9199
  %v9202 = vunpack.c.l.s4 1966171168
  %v9203 = vunpack.c.0.s8 %v9202
  %v9204 = vlaneseq
  %v9205 = vshrl.u32 %v9204, 7
  %v9206 = vsub.s32 %v9203, %v9205
  %v9207 = vrot.slane %v9191, %v9206
  %v9209 = vunpack.c.l.s4 1966171168
  %v9210 = vunpack.c.0.s8 %v9209
  %v9211 = vlaneseq
  %v9212 = vshrl.u32 %v9211, 7
  %v9213 = vsub.s32 %v9210, %v9212
  %v9214 = vrot.slane %v9192, %v9213
  %v9216 = vunpack.c.l.s4 1966171168
  %v9217 = vunpack.c.0.s8 %v9216
  %v9218 = vlaneseq
  %v9219 = vshrl.u32 %v9218, 7
  %v9220 = vsub.s32 %v9217, %v9219
  %v9221 = vrot.slane %v9193, %v9220
  %v9222 = vcombine.low %v9200, %v9207
  %v9223 = vcombine.low %v9214, %v9221
  %v9225 = vunpack.c.l.s4 1966171168
  %v9226 = vunpack.c.0.s8 %v9225
  %v9227 = vlaneseq
  %v9228 = vshrl.u32 %v9227, 7
  %v9229 = vsub.s32 %v9226, %v9228
  %v9230 = vrot.slane %v9222, %v9229
  %v9232 = vunpack.c.l.s4 1966171168
  %v9233 = vunpack.c.0.s8 %v9232
  %v9234 = vlaneseq
  %v9235 = vshrl.u32 %v9234, 7
  %v9236 = vsub.s32 %v9233, %v9235
  %v9237 = vrot.slane %v9223, %v9236
  %v9238 = vcombine.low %v9230, %v9237
  %v9239 = vcombine.low %v9113, %v9127
  %v9241 = vunpack.c.l.s4 1966171168
  %v9242 = vunpack.c.0.s8 %v9241
  %v9243 = vlaneseq
  %v9244 = vshrl.u32 %v9243, 7
  %v9245 = vsub.s32 %v9242, %v9244
  %v9246 = vrot.slane %v9239, %v9245
  %v9248 = vunpack.c.l.s4 1966171168
  %v9249 = vunpack.c.0.s8 %v9248
  %v9250 = vlaneseq
  %v9251 = vshrl.u32 %v9250, 7
  %v9252 = vsub.s32 %v9249, %v9251
  %v9253 = vrot.slane %v9246, %v9252
  %v9254 = vsel %vm504, %v9189, 0
  %v9256 = vsel %vm504, %v9238, 0
  %v9258 = vsel %vm504, %v9253, 0
  %v9261 = vsel %vm504, %v9129, 0
  %v9264 = vsel %vm504, %v9130, 0
  %v9267 = vsel %vm504, %v9131, 0
  %v9270 = vsel %vm504, %v9132, 0
  %9272 = vmatprep.subr.mxu0 0.0
  %9273 = vmatpush1.xpose.msra.mxu0 0.0
  %9274 = vmatprep.subr.mxu0 0.0
  %9275 = vmatpush1.xpose.msra.mxu0 0.0
  %9276 = vmatprep.subr.mxu0 0.0
  %9277 = vmatpush1.xpose.msra.mxu0 0.0
  %9278 = vmatprep.subr.mxu0 0.0
  %9279 = vmatpush1.xpose.msra.mxu0 0.0
  %9280 = vmatprep.subr.mxu0 0.0
  %9281 = vmatpush1.xpose.msra.mxu0 0.0
  %9282 = vmatprep.subr.mxu0 0.0
  %9283 = vmatpush1.xpose.msra.mxu0 0.0
  %9284 = vmatprep.subr.mxu0 0.0
  %9285 = vmatpush1.xpose.msra.mxu0 0.0
  %9286 = vmatprep.subr.mxu0 0.0
  %9287 = vmatpush1.xpose.msra.mxu0 0.0
  %9288 = vmatprep.subr.mxu0 0.0
  %9289 = vmatpush1.xpose.msra.mxu0 0.0
  %9290 = vmatprep.subr.mxu0 0.0
  %9291 = vmatpush1.xpose.msra.mxu0 0.0
  %9292 = vmatprep.subr.mxu0 0.0
  %9293 = vmatpush1.xpose.msra.mxu0 0.0
  %9294 = vmatprep.subr.mxu0 0.0
  %9295 = vmatpush1.xpose.msra.mxu0 0.0
  %9296 = vmatprep.subr.mxu0 0.0
  %9297 = vmatpush1.xpose.msra.mxu0 %v9270
  %9298 = vmatprep.subr.mxu0 0.0
  %9299 = vmatpush1.xpose.msra.mxu0 %v9267
  %9300 = vmatprep.subr.mxu0 0.0
  %9301 = vmatpush1.xpose.msra.mxu0 %v9264
  %9302 = vmatprep.subr.mxu0 0.0
  %9303 = vmatpush1.xpose.msra.mxu0 %v9261
  %9304 = vmatprep.subr.mxu0 0.0
  %9305 = vmatpush2.xpose.msra.mxu0 0.0
  %9306 = vmatprep.subr.mxu0 0.0
  %9307 = vmatpush2.xpose.msra.mxu0 0.0
  %9308 = vmatprep.subr.mxu0 0.0
  %9309 = vmatpush2.xpose.msra.mxu0 0.0
  %9310 = vmatprep.subr.mxu0 0.0
  %9311 = vmatpush2.xpose.msra.mxu0 0.0
  %9312 = vmatprep.subr.mxu0 0.0
  %9313 = vmatpush2.xpose.msra.mxu0 0.0
  %9314 = vmatprep.subr.mxu0 0.0
  %9315 = vmatpush2.xpose.msra.mxu0 0.0
  %9316 = vmatprep.subr.mxu0 0.0
  %9317 = vmatpush2.xpose.msra.mxu0 0.0
  %9318 = vmatprep.subr.mxu0 0.0
  %9319 = vmatpush2.xpose.msra.mxu0 0.0
  %9320 = vmatprep.subr.mxu0 0.0
  %9321 = vmatpush2.xpose.msra.mxu0 0.0
  %9322 = vmatprep.subr.mxu0 0.0
  %9323 = vmatpush2.xpose.msra.mxu0 0.0
  %9324 = vmatprep.subr.mxu0 0.0
  %9325 = vmatpush2.xpose.msra.mxu0 0.0
  %9326 = vmatprep.subr.mxu0 0.0
  %9327 = vmatpush2.xpose.msra.mxu0 0.0
  %9328 = vmatprep.subr.mxu0 0.0
  %9329 = vmatpush2.xpose.msra.mxu0 0.0
  %9330 = vmatprep.subr.mxu0 0.0
  %9331 = vmatpush2.xpose.msra.mxu0 0.0
  %9332 = vmatprep.subr.mxu0 0.0
  %9333 = vmatpush2.xpose.msra.mxu0 0.0
  %9334 = vmatprep.subr.mxu0 0.0
  %9335 = vmatpush2.xpose.msra.mxu0 0.0
  %9336 = vmatprep.mubr.f32.mxu0 0.0
  %9337 = vmatmul.mubr.f32.gmra.mxu0 %v9254
  %v9338 = vpop.f32.mrf.mxu0
  %v9339 = vadd.f32 %v9139, %v9338
  %v9340 = vpop.f32.mrf.mxu0
  %9341 = vmatprep.mubr.f32.mxu0 0.0
  %9342 = vmatmul.mubr.f32.gmra.mxu0 %v9256
  %v9343 = vpop.f32.mrf.mxu0
  %v9344 = vadd.f32 %v9139, %v9343
  %v9345 = vpop.f32.mrf.mxu0
  %9346 = vmatprep.mubr.f32.mxu0 0.0
  %9347 = vmatmul.mubr.f32.gmra.mxu0 %v9258
  %v9348 = vpop.f32.mrf.mxu0
  %v9349 = vadd.f32 %v9139, %v9348
  %v9350 = vpop.f32.mrf.mxu0
  %9351 = vdwg.mxu0
  %v9355 = vcombine.high %v9339, %v9339
  %v9357 = vunpack.c.l.s4 1966171168
  %v9358 = vunpack.c.0.s8 %v9357
  %v9359 = vlaneseq
  %v9360 = vshrl.u32 %v9359, 7
  %v9361 = vsub.s32 %v9358, %v9360
  %v9362 = vrot.slane %v9339, %v9361
  %v9364 = vunpack.c.l.s4 1966171168
  %v9365 = vunpack.c.0.s8 %v9364
  %v9366 = vlaneseq
  %v9367 = vshrl.u32 %v9366, 7
  %v9368 = vsub.s32 %v9365, %v9367
  %v9369 = vrot.slane %v9355, %v9368
  %v9370 = vcombine.high %v9362, %v9362
  %v9371 = vcombine.high %v9369, %v9369
  %v9373 = vunpack.c.l.s4 1966171168
  %v9374 = vunpack.c.0.s8 %v9373
  %v9375 = vlaneseq
  %v9376 = vshrl.u32 %v9375, 7
  %v9377 = vsub.s32 %v9374, %v9376
  %v9378 = vrot.slane %v9362, %v9377
  %v9380 = vunpack.c.l.s4 1966171168
  %v9381 = vunpack.c.0.s8 %v9380
  %v9382 = vlaneseq
  %v9383 = vshrl.u32 %v9382, 7
  %v9384 = vsub.s32 %v9381, %v9383
  %v9385 = vrot.slane %v9369, %v9384
  %v9387 = vunpack.c.l.s4 1966171168
  %v9388 = vunpack.c.0.s8 %v9387
  %v9389 = vlaneseq
  %v9390 = vshrl.u32 %v9389, 7
  %v9391 = vsub.s32 %v9388, %v9390
  %v9392 = vrot.slane %v9370, %v9391
  %v9394 = vunpack.c.l.s4 1966171168
  %v9395 = vunpack.c.0.s8 %v9394
  %v9396 = vlaneseq
  %v9397 = vshrl.u32 %v9396, 7
  %v9398 = vsub.s32 %v9395, %v9397
  %v9399 = vrot.slane %v9371, %v9398
  %v9400 = vcombine.high %v9378, %v9378
  %v9401 = vcombine.high %v9385, %v9385
  %v9402 = vcombine.high %v9392, %v9392
  %v9403 = vcombine.high %v9399, %v9399
  %v9404 = vcombine.high %v9344, %v9344
  %v9406 = vunpack.c.l.s4 1966171168
  %v9407 = vunpack.c.0.s8 %v9406
  %v9408 = vlaneseq
  %v9409 = vshrl.u32 %v9408, 7
  %v9410 = vsub.s32 %v9407, %v9409
  %v9411 = vrot.slane %v9344, %v9410
  %v9413 = vunpack.c.l.s4 1966171168
  %v9414 = vunpack.c.0.s8 %v9413
  %v9415 = vlaneseq
  %v9416 = vshrl.u32 %v9415, 7
  %v9417 = vsub.s32 %v9414, %v9416
  %v9418 = vrot.slane %v9404, %v9417
  %v9419 = vcombine.high %v9411, %v9411
  %v9420 = vcombine.high %v9418, %v9418
  %v9422 = vunpack.c.l.s4 1966171168
  %v9423 = vunpack.c.0.s8 %v9422
  %v9424 = vlaneseq
  %v9425 = vshrl.u32 %v9424, 7
  %v9426 = vsub.s32 %v9423, %v9425
  %v9427 = vrot.slane %v9411, %v9426
  %v9429 = vunpack.c.l.s4 1966171168
  %v9430 = vunpack.c.0.s8 %v9429
  %v9431 = vlaneseq
  %v9432 = vshrl.u32 %v9431, 7
  %v9433 = vsub.s32 %v9430, %v9432
  %v9434 = vrot.slane %v9418, %v9433
  %v9436 = vunpack.c.l.s4 1966171168
  %v9437 = vunpack.c.0.s8 %v9436
  %v9438 = vlaneseq
  %v9439 = vshrl.u32 %v9438, 7
  %v9440 = vsub.s32 %v9437, %v9439
  %v9441 = vrot.slane %v9419, %v9440
  %v9443 = vunpack.c.l.s4 1966171168
  %v9444 = vunpack.c.0.s8 %v9443
  %v9445 = vlaneseq
  %v9446 = vshrl.u32 %v9445, 7
  %v9447 = vsub.s32 %v9444, %v9446
  %v9448 = vrot.slane %v9420, %v9447
  %v9449 = vcombine.high %v9427, %v9427
  %v9450 = vcombine.high %v9434, %v9434
  %v9451 = vcombine.high %v9441, %v9441
  %v9452 = vcombine.high %v9448, %v9448
  %v9454 = vunpack.c.l.s4 1966171168
  %v9455 = vunpack.c.0.s8 %v9454
  %v9456 = vlaneseq
  %v9457 = vshrl.u32 %v9456, 7
  %v9458 = vsub.s32 %v9455, %v9457
  %v9459 = vrot.slane %v9349, %v9458
  %v9460 = vcombine.high %v9459, %v9459
  %v9462 = vunpack.c.l.s4 1966171168
  %v9463 = vunpack.c.0.s8 %v9462
  %v9464 = vlaneseq
  %v9465 = vshrl.u32 %v9464, 7
  %v9466 = vsub.s32 %v9463, %v9465
  %v9467 = vrot.slane %v9459, %v9466
  %v9469 = vunpack.c.l.s4 1966171168
  %v9470 = vunpack.c.0.s8 %v9469
  %v9471 = vlaneseq
  %v9472 = vshrl.u32 %v9471, 7
  %v9473 = vsub.s32 %v9470, %v9472
  %v9474 = vrot.slane %v9460, %v9473
  %v9493 = vadd.f32 %v6021, %v9378
  %v9494 = vadd.f32 %v6022, %v9392
  %v9495 = vadd.f32 %v6023, %v9400
  %v9496 = vadd.f32 %v6024, %v9402
  %v9497 = vadd.f32 %v6025, %v9385
  %v9498 = vadd.f32 %v6026, %v9399
  %v9499 = vadd.f32 %v6027, %v9401
  %v9500 = vadd.f32 %v6028, %v9403
  %v9501 = vadd.f32 %v6029, %v9427
  %v9502 = vadd.f32 %v6030, %v9441
  %v9503 = vadd.f32 %v6031, %v9449
  %v9504 = vadd.f32 %v6032, %v9451
  %v9505 = vadd.f32 %v6033, %v9434
  %v9506 = vadd.f32 %v6034, %v9448
  %v9507 = vadd.f32 %v6035, %v9450
  %v9508 = vadd.f32 %v6036, %v9452
  %v9509 = vadd.f32 %v6037, %v9467
  %v9510 = vadd.f32 %v6038, %v9474
  %s9511 = scalar_lea.vmem %s7, 1
  %v9512 = vld [vmem:[%s9511] sm:$0x1]
  %s9513 = scalar_lea.vmem %s8, 1
  %v9514 = vld [vmem:[%s9513] sm:$0x1]
  %v9533 = vcombine.low %v9493, %v9494
  %v9534 = vcombine.low %v9495, %v9496
  %v9535 = vcombine.low %v9497, %v9498
  %v9536 = vcombine.low %v9499, %v9500
  %v9538 = vunpack.c.l.s4 1966171168
  %v9539 = vunpack.c.0.s8 %v9538
  %v9540 = vlaneseq
  %v9541 = vshrl.u32 %v9540, 7
  %v9542 = vsub.s32 %v9539, %v9541
  %v9543 = vrot.slane %v9533, %v9542
  %v9545 = vunpack.c.l.s4 1966171168
  %v9546 = vunpack.c.0.s8 %v9545
  %v9547 = vlaneseq
  %v9548 = vshrl.u32 %v9547, 7
  %v9549 = vsub.s32 %v9546, %v9548
  %v9550 = vrot.slane %v9534, %v9549
  %v9552 = vunpack.c.l.s4 1966171168
  %v9553 = vunpack.c.0.s8 %v9552
  %v9554 = vlaneseq
  %v9555 = vshrl.u32 %v9554, 7
  %v9556 = vsub.s32 %v9553, %v9555
  %v9557 = vrot.slane %v9535, %v9556
  %v9559 = vunpack.c.l.s4 1966171168
  %v9560 = vunpack.c.0.s8 %v9559
  %v9561 = vlaneseq
  %v9562 = vshrl.u32 %v9561, 7
  %v9563 = vsub.s32 %v9560, %v9562
  %v9564 = vrot.slane %v9536, %v9563
  %v9565 = vcombine.low %v9543, %v9550
  %v9566 = vcombine.low %v9557, %v9564
  %v9568 = vunpack.c.l.s4 1966171168
  %v9569 = vunpack.c.0.s8 %v9568
  %v9570 = vlaneseq
  %v9571 = vshrl.u32 %v9570, 7
  %v9572 = vsub.s32 %v9569, %v9571
  %v9573 = vrot.slane %v9565, %v9572
  %v9575 = vunpack.c.l.s4 1966171168
  %v9576 = vunpack.c.0.s8 %v9575
  %v9577 = vlaneseq
  %v9578 = vshrl.u32 %v9577, 7
  %v9579 = vsub.s32 %v9576, %v9578
  %v9580 = vrot.slane %v9566, %v9579
  %v9581 = vcombine.low %v9573, %v9580
  %v9582 = vcombine.low %v9501, %v9502
  %v9583 = vcombine.low %v9503, %v9504
  %v9584 = vcombine.low %v9505, %v9506
  %v9585 = vcombine.low %v9507, %v9508
  %v9587 = vunpack.c.l.s4 1966171168
  %v9588 = vunpack.c.0.s8 %v9587
  %v9589 = vlaneseq
  %v9590 = vshrl.u32 %v9589, 7
  %v9591 = vsub.s32 %v9588, %v9590
  %v9592 = vrot.slane %v9582, %v9591
  %v9594 = vunpack.c.l.s4 1966171168
  %v9595 = vunpack.c.0.s8 %v9594
  %v9596 = vlaneseq
  %v9597 = vshrl.u32 %v9596, 7
  %v9598 = vsub.s32 %v9595, %v9597
  %v9599 = vrot.slane %v9583, %v9598
  %v9601 = vunpack.c.l.s4 1966171168
  %v9602 = vunpack.c.0.s8 %v9601
  %v9603 = vlaneseq
  %v9604 = vshrl.u32 %v9603, 7
  %v9605 = vsub.s32 %v9602, %v9604
  %v9606 = vrot.slane %v9584, %v9605
  %v9608 = vunpack.c.l.s4 1966171168
  %v9609 = vunpack.c.0.s8 %v9608
  %v9610 = vlaneseq
  %v9611 = vshrl.u32 %v9610, 7
  %v9612 = vsub.s32 %v9609, %v9611
  %v9613 = vrot.slane %v9585, %v9612
  %v9614 = vcombine.low %v9592, %v9599
  %v9615 = vcombine.low %v9606, %v9613
  %v9617 = vunpack.c.l.s4 1966171168
  %v9618 = vunpack.c.0.s8 %v9617
  %v9619 = vlaneseq
  %v9620 = vshrl.u32 %v9619, 7
  %v9621 = vsub.s32 %v9618, %v9620
  %v9622 = vrot.slane %v9614, %v9621
  %v9624 = vunpack.c.l.s4 1966171168
  %v9625 = vunpack.c.0.s8 %v9624
  %v9626 = vlaneseq
  %v9627 = vshrl.u32 %v9626, 7
  %v9628 = vsub.s32 %v9625, %v9627
  %v9629 = vrot.slane %v9615, %v9628
  %v9630 = vcombine.low %v9622, %v9629
  %v9631 = vcombine.low %v9509, %v9510
  %v9633 = vunpack.c.l.s4 1966171168
  %v9634 = vunpack.c.0.s8 %v9633
  %v9635 = vlaneseq
  %v9636 = vshrl.u32 %v9635, 7
  %v9637 = vsub.s32 %v9634, %v9636
  %v9638 = vrot.slane %v9631, %v9637
  %v9640 = vunpack.c.l.s4 1966171168
  %v9641 = vunpack.c.0.s8 %v9640
  %v9642 = vlaneseq
  %v9643 = vshrl.u32 %v9642, 7
  %v9644 = vsub.s32 %v9641, %v9643
  %v9645 = vrot.slane %v9638, %v9644
  %v9649 = vsel %vm504, %v9581, 0.0
  %9650 = vadd.xlane.f32.xlu0 %v9649
  %v9651 = vpop.xlane.xlu0 %9650
  %v9652 = vsel %vm504, %v9630, 0.0
  %9653 = vadd.xlane.f32.xlu0 %v9652
  %v9654 = vpop.xlane.xlu0 %9653
  %v9655 = vsel %vm4265, %v9645, 0.0
  %9656 = vadd.xlane.f32.xlu0 %v9655
  %v9657 = vpop.xlane.xlu0 %9656
  %v9658 = vmul.f32 %v9651, %v4269
  %v9659 = vmul.f32 %v9654, %v4269
  %v9660 = vmul.f32 %v9657, %v4269
  %v9664 = vlaneseq
  %v9665 = vshrl.u32 %v9664, 7
  %v9666 = vsub.s32 0, %v9665
  %v9667 = vrot.slane %v9658, %v9666
  %v9668 = vlaneseq
  %v9669 = vshrl.u32 %v9668, 7
  %v9670 = vsub.s32 1, %v9669
  %v9671 = vrot.slane %v9658, %v9670
  %v9672 = vlaneseq
  %v9673 = vshrl.u32 %v9672, 7
  %v9674 = vsub.s32 2, %v9673
  %v9675 = vrot.slane %v9658, %v9674
  %v9676 = vlaneseq
  %v9677 = vshrl.u32 %v9676, 7
  %v9678 = vsub.s32 3, %v9677
  %v9679 = vrot.slane %v9658, %v9678
  %v9680 = vlaneseq
  %v9681 = vshrl.u32 %v9680, 7
  %v9682 = vsub.s32 4, %v9681
  %v9683 = vrot.slane %v9658, %v9682
  %v9684 = vlaneseq
  %v9685 = vshrl.u32 %v9684, 7
  %v9686 = vsub.s32 5, %v9685
  %v9687 = vrot.slane %v9658, %v9686
  %v9688 = vlaneseq
  %v9689 = vshrl.u32 %v9688, 7
  %v9690 = vsub.s32 6, %v9689
  %v9691 = vrot.slane %v9658, %v9690
  %v9692 = vlaneseq
  %v9693 = vshrl.u32 %v9692, 7
  %v9694 = vsub.s32 7, %v9693
  %v9695 = vrot.slane %v9658, %v9694
  %v9696 = vlaneseq
  %v9697 = vshrl.u32 %v9696, 7
  %v9698 = vsub.s32 0, %v9697
  %v9699 = vrot.slane %v9659, %v9698
  %v9700 = vlaneseq
  %v9701 = vshrl.u32 %v9700, 7
  %v9702 = vsub.s32 1, %v9701
  %v9703 = vrot.slane %v9659, %v9702
  %v9704 = vlaneseq
  %v9705 = vshrl.u32 %v9704, 7
  %v9706 = vsub.s32 2, %v9705
  %v9707 = vrot.slane %v9659, %v9706
  %v9708 = vlaneseq
  %v9709 = vshrl.u32 %v9708, 7
  %v9710 = vsub.s32 3, %v9709
  %v9711 = vrot.slane %v9659, %v9710
  %v9712 = vlaneseq
  %v9713 = vshrl.u32 %v9712, 7
  %v9714 = vsub.s32 4, %v9713
  %v9715 = vrot.slane %v9659, %v9714
  %v9716 = vlaneseq
  %v9717 = vshrl.u32 %v9716, 7
  %v9718 = vsub.s32 5, %v9717
  %v9719 = vrot.slane %v9659, %v9718
  %v9720 = vlaneseq
  %v9721 = vshrl.u32 %v9720, 7
  %v9722 = vsub.s32 6, %v9721
  %v9723 = vrot.slane %v9659, %v9722
  %v9724 = vlaneseq
  %v9725 = vshrl.u32 %v9724, 7
  %v9726 = vsub.s32 7, %v9725
  %v9727 = vrot.slane %v9659, %v9726
  %v9728 = vlaneseq
  %v9729 = vshrl.u32 %v9728, 7
  %v9730 = vsub.s32 0, %v9729
  %v9731 = vrot.slane %v9660, %v9730
  %v9732 = vlaneseq
  %v9733 = vshrl.u32 %v9732, 7
  %v9734 = vsub.s32 1, %v9733
  %v9735 = vrot.slane %v9660, %v9734
  %v9754 = vsub.f32 %v9493, %v9667
  %v9755 = vsub.f32 %v9494, %v9671
  %v9756 = vsub.f32 %v9495, %v9675
  %v9757 = vsub.f32 %v9496, %v9679
  %v9758 = vsub.f32 %v9497, %v9683
  %v9759 = vsub.f32 %v9498, %v9687
  %v9760 = vsub.f32 %v9499, %v9691
  %v9761 = vsub.f32 %v9500, %v9695
  %v9762 = vsub.f32 %v9501, %v9699
  %v9763 = vsub.f32 %v9502, %v9703
  %v9764 = vsub.f32 %v9503, %v9707
  %v9765 = vsub.f32 %v9504, %v9711
  %v9766 = vsub.f32 %v9505, %v9715
  %v9767 = vsub.f32 %v9506, %v9719
  %v9768 = vsub.f32 %v9507, %v9723
  %v9769 = vsub.f32 %v9508, %v9727
  %v9770 = vsub.f32 %v9509, %v9731
  %v9771 = vsub.f32 %v9510, %v9735
  %v9772 = vmul.f32 %v9754, %v9754
  %v9773 = vmul.f32 %v9755, %v9755
  %v9774 = vmul.f32 %v9756, %v9756
  %v9775 = vmul.f32 %v9757, %v9757
  %v9776 = vmul.f32 %v9758, %v9758
  %v9777 = vmul.f32 %v9759, %v9759
  %v9778 = vmul.f32 %v9760, %v9760
  %v9779 = vmul.f32 %v9761, %v9761
  %v9780 = vmul.f32 %v9762, %v9762
  %v9781 = vmul.f32 %v9763, %v9763
  %v9782 = vmul.f32 %v9764, %v9764
  %v9783 = vmul.f32 %v9765, %v9765
  %v9784 = vmul.f32 %v9766, %v9766
  %v9785 = vmul.f32 %v9767, %v9767
  %v9786 = vmul.f32 %v9768, %v9768
  %v9787 = vmul.f32 %v9769, %v9769
  %v9788 = vmul.f32 %v9770, %v9770
  %v9789 = vmul.f32 %v9771, %v9771
  %v9808 = vcombine.low %v9772, %v9773
  %v9809 = vcombine.low %v9774, %v9775
  %v9810 = vcombine.low %v9776, %v9777
  %v9811 = vcombine.low %v9778, %v9779
  %v9813 = vunpack.c.l.s4 1966171168
  %v9814 = vunpack.c.0.s8 %v9813
  %v9815 = vlaneseq
  %v9816 = vshrl.u32 %v9815, 7
  %v9817 = vsub.s32 %v9814, %v9816
  %v9818 = vrot.slane %v9808, %v9817
  %v9820 = vunpack.c.l.s4 1966171168
  %v9821 = vunpack.c.0.s8 %v9820
  %v9822 = vlaneseq
  %v9823 = vshrl.u32 %v9822, 7
  %v9824 = vsub.s32 %v9821, %v9823
  %v9825 = vrot.slane %v9809, %v9824
  %v9827 = vunpack.c.l.s4 1966171168
  %v9828 = vunpack.c.0.s8 %v9827
  %v9829 = vlaneseq
  %v9830 = vshrl.u32 %v9829, 7
  %v9831 = vsub.s32 %v9828, %v9830
  %v9832 = vrot.slane %v9810, %v9831
  %v9834 = vunpack.c.l.s4 1966171168
  %v9835 = vunpack.c.0.s8 %v9834
  %v9836 = vlaneseq
  %v9837 = vshrl.u32 %v9836, 7
  %v9838 = vsub.s32 %v9835, %v9837
  %v9839 = vrot.slane %v9811, %v9838
  %v9840 = vcombine.low %v9818, %v9825
  %v9841 = vcombine.low %v9832, %v9839
  %v9843 = vunpack.c.l.s4 1966171168
  %v9844 = vunpack.c.0.s8 %v9843
  %v9845 = vlaneseq
  %v9846 = vshrl.u32 %v9845, 7
  %v9847 = vsub.s32 %v9844, %v9846
  %v9848 = vrot.slane %v9840, %v9847
  %v9850 = vunpack.c.l.s4 1966171168
  %v9851 = vunpack.c.0.s8 %v9850
  %v9852 = vlaneseq
  %v9853 = vshrl.u32 %v9852, 7
  %v9854 = vsub.s32 %v9851, %v9853
  %v9855 = vrot.slane %v9841, %v9854
  %v9856 = vcombine.low %v9848, %v9855
  %v9857 = vcombine.low %v9780, %v9781
  %v9858 = vcombine.low %v9782, %v9783
  %v9859 = vcombine.low %v9784, %v9785
  %v9860 = vcombine.low %v9786, %v9787
  %v9862 = vunpack.c.l.s4 1966171168
  %v9863 = vunpack.c.0.s8 %v9862
  %v9864 = vlaneseq
  %v9865 = vshrl.u32 %v9864, 7
  %v9866 = vsub.s32 %v9863, %v9865
  %v9867 = vrot.slane %v9857, %v9866
  %v9869 = vunpack.c.l.s4 1966171168
  %v9870 = vunpack.c.0.s8 %v9869
  %v9871 = vlaneseq
  %v9872 = vshrl.u32 %v9871, 7
  %v9873 = vsub.s32 %v9870, %v9872
  %v9874 = vrot.slane %v9858, %v9873
  %v9876 = vunpack.c.l.s4 1966171168
  %v9877 = vunpack.c.0.s8 %v9876
  %v9878 = vlaneseq
  %v9879 = vshrl.u32 %v9878, 7
  %v9880 = vsub.s32 %v9877, %v9879
  %v9881 = vrot.slane %v9859, %v9880
  %v9883 = vunpack.c.l.s4 1966171168
  %v9884 = vunpack.c.0.s8 %v9883
  %v9885 = vlaneseq
  %v9886 = vshrl.u32 %v9885, 7
  %v9887 = vsub.s32 %v9884, %v9886
  %v9888 = vrot.slane %v9860, %v9887
  %v9889 = vcombine.low %v9867, %v9874
  %v9890 = vcombine.low %v9881, %v9888
  %v9892 = vunpack.c.l.s4 1966171168
  %v9893 = vunpack.c.0.s8 %v9892
  %v9894 = vlaneseq
  %v9895 = vshrl.u32 %v9894, 7
  %v9896 = vsub.s32 %v9893, %v9895
  %v9897 = vrot.slane %v9889, %v9896
  %v9899 = vunpack.c.l.s4 1966171168
  %v9900 = vunpack.c.0.s8 %v9899
  %v9901 = vlaneseq
  %v9902 = vshrl.u32 %v9901, 7
  %v9903 = vsub.s32 %v9900, %v9902
  %v9904 = vrot.slane %v9890, %v9903
  %v9905 = vcombine.low %v9897, %v9904
  %v9906 = vcombine.low %v9788, %v9789
  %v9908 = vunpack.c.l.s4 1966171168
  %v9909 = vunpack.c.0.s8 %v9908
  %v9910 = vlaneseq
  %v9911 = vshrl.u32 %v9910, 7
  %v9912 = vsub.s32 %v9909, %v9911
  %v9913 = vrot.slane %v9906, %v9912
  %v9915 = vunpack.c.l.s4 1966171168
  %v9916 = vunpack.c.0.s8 %v9915
  %v9917 = vlaneseq
  %v9918 = vshrl.u32 %v9917, 7
  %v9919 = vsub.s32 %v9916, %v9918
  %v9920 = vrot.slane %v9913, %v9919
  %v9924 = vsel %vm504, %v9856, 0.0
  %9925 = vadd.xlane.f32.xlu0 %v9924
  %v9926 = vpop.xlane.xlu0 %9925
  %v9927 = vsel %vm504, %v9905, 0.0
  %9928 = vadd.xlane.f32.xlu0 %v9927
  %v9929 = vpop.xlane.xlu0 %9928
  %v9930 = vsel %vm4265, %v9920, 0.0
  %9931 = vadd.xlane.f32.xlu0 %v9930
  %v9932 = vpop.xlane.xlu0 %9931
  %v9933 = vmul.f32 %v9926, %v4269
  %v9934 = vmul.f32 %v9929, %v4269
  %v9935 = vmul.f32 %v9932, %v4269
  %v9936 = vadd.f32 %v9933, 1e-05
  %v9937 = vadd.f32 %v9934, 1e-05
  %v9938 = vadd.f32 %v9935, 1e-05
  %v9939 = vrsqrt.pop %v9936
  %v9940 = vrsqrt.pop %v9937
  %v9941 = vrsqrt.pop %v9938
  %v9945 = vlaneseq
  %v9946 = vshrl.u32 %v9945, 7
  %v9947 = vsub.s32 0, %v9946
  %v9948 = vrot.slane %v9939, %v9947
  %v9949 = vlaneseq
  %v9950 = vshrl.u32 %v9949, 7
  %v9951 = vsub.s32 1, %v9950
  %v9952 = vrot.slane %v9939, %v9951
  %v9953 = vlaneseq
  %v9954 = vshrl.u32 %v9953, 7
  %v9955 = vsub.s32 2, %v9954
  %v9956 = vrot.slane %v9939, %v9955
  %v9957 = vlaneseq
  %v9958 = vshrl.u32 %v9957, 7
  %v9959 = vsub.s32 3, %v9958
  %v9960 = vrot.slane %v9939, %v9959
  %v9961 = vlaneseq
  %v9962 = vshrl.u32 %v9961, 7
  %v9963 = vsub.s32 4, %v9962
  %v9964 = vrot.slane %v9939, %v9963
  %v9965 = vlaneseq
  %v9966 = vshrl.u32 %v9965, 7
  %v9967 = vsub.s32 5, %v9966
  %v9968 = vrot.slane %v9939, %v9967
  %v9969 = vlaneseq
  %v9970 = vshrl.u32 %v9969, 7
  %v9971 = vsub.s32 6, %v9970
  %v9972 = vrot.slane %v9939, %v9971
  %v9973 = vlaneseq
  %v9974 = vshrl.u32 %v9973, 7
  %v9975 = vsub.s32 7, %v9974
  %v9976 = vrot.slane %v9939, %v9975
  %v9977 = vlaneseq
  %v9978 = vshrl.u32 %v9977, 7
  %v9979 = vsub.s32 0, %v9978
  %v9980 = vrot.slane %v9940, %v9979
  %v9981 = vlaneseq
  %v9982 = vshrl.u32 %v9981, 7
  %v9983 = vsub.s32 1, %v9982
  %v9984 = vrot.slane %v9940, %v9983
  %v9985 = vlaneseq
  %v9986 = vshrl.u32 %v9985, 7
  %v9987 = vsub.s32 2, %v9986
  %v9988 = vrot.slane %v9940, %v9987
  %v9989 = vlaneseq
  %v9990 = vshrl.u32 %v9989, 7
  %v9991 = vsub.s32 3, %v9990
  %v9992 = vrot.slane %v9940, %v9991
  %v9993 = vlaneseq
  %v9994 = vshrl.u32 %v9993, 7
  %v9995 = vsub.s32 4, %v9994
  %v9996 = vrot.slane %v9940, %v9995
  %v9997 = vlaneseq
  %v9998 = vshrl.u32 %v9997, 7
  %v9999 = vsub.s32 5, %v9998
  %v10000 = vrot.slane %v9940, %v9999
  %v10001 = vlaneseq
  %v10002 = vshrl.u32 %v10001, 7
  %v10003 = vsub.s32 6, %v10002
  %v10004 = vrot.slane %v9940, %v10003
  %v10005 = vlaneseq
  %v10006 = vshrl.u32 %v10005, 7
  %v10007 = vsub.s32 7, %v10006
  %v10008 = vrot.slane %v9940, %v10007
  %v10009 = vlaneseq
  %v10010 = vshrl.u32 %v10009, 7
  %v10011 = vsub.s32 0, %v10010
  %v10012 = vrot.slane %v9941, %v10011
  %v10013 = vlaneseq
  %v10014 = vshrl.u32 %v10013, 7
  %v10015 = vsub.s32 1, %v10014
  %v10016 = vrot.slane %v9941, %v10015
  %v10035 = vmul.f32 %v9754, %v9948
  %v10036 = vmul.f32 %v9755, %v9952
  %v10037 = vmul.f32 %v9756, %v9956
  %v10038 = vmul.f32 %v9757, %v9960
  %v10039 = vmul.f32 %v9758, %v9964
  %v10040 = vmul.f32 %v9759, %v9968
  %v10041 = vmul.f32 %v9760, %v9972
  %v10042 = vmul.f32 %v9761, %v9976
  %v10043 = vmul.f32 %v9762, %v9980
  %v10044 = vmul.f32 %v9763, %v9984
  %v10045 = vmul.f32 %v9764, %v9988
  %v10046 = vmul.f32 %v9765, %v9992
  %v10047 = vmul.f32 %v9766, %v9996
  %v10048 = vmul.f32 %v9767, %v10000
  %v10049 = vmul.f32 %v9768, %v10004
  %v10050 = vmul.f32 %v9769, %v10008
  %v10051 = vmul.f32 %v9770, %v10012
  %v10052 = vmul.f32 %v9771, %v10016
  %v10054 = vlaneseq
  %v10055 = vshrl.u32 %v10054, 7
  %v10056 = vsub.s32 0, %v10055
  %v10057 = vrot.slane %v9512, %v10056
  %v10058 = vcombine.high %v10057, %v10057
  %v10060 = vunpack.c.l.s4 1966171168
  %v10061 = vunpack.c.0.s8 %v10060
  %v10062 = vlaneseq
  %v10063 = vshrl.u32 %v10062, 7
  %v10064 = vsub.s32 %v10061, %v10063
  %v10065 = vrot.slane %v10057, %v10064
  %v10067 = vunpack.c.l.s4 1966171168
  %v10068 = vunpack.c.0.s8 %v10067
  %v10069 = vlaneseq
  %v10070 = vshrl.u32 %v10069, 7
  %v10071 = vsub.s32 %v10068, %v10070
  %v10072 = vrot.slane %v10058, %v10071
  %v10073 = vcombine.high %v10065, %v10065
  %v10074 = vcombine.high %v10072, %v10072
  %v10076 = vunpack.c.l.s4 1966171168
  %v10077 = vunpack.c.0.s8 %v10076
  %v10078 = vlaneseq
  %v10079 = vshrl.u32 %v10078, 7
  %v10080 = vsub.s32 %v10077, %v10079
  %v10081 = vrot.slane %v10065, %v10080
  %v10083 = vunpack.c.l.s4 1966171168
  %v10084 = vunpack.c.0.s8 %v10083
  %v10085 = vlaneseq
  %v10086 = vshrl.u32 %v10085, 7
  %v10087 = vsub.s32 %v10084, %v10086
  %v10088 = vrot.slane %v10072, %v10087
  %v10090 = vunpack.c.l.s4 1966171168
  %v10091 = vunpack.c.0.s8 %v10090
  %v10092 = vlaneseq
  %v10093 = vshrl.u32 %v10092, 7
  %v10094 = vsub.s32 %v10091, %v10093
  %v10095 = vrot.slane %v10073, %v10094
  %v10097 = vunpack.c.l.s4 1966171168
  %v10098 = vunpack.c.0.s8 %v10097
  %v10099 = vlaneseq
  %v10100 = vshrl.u32 %v10099, 7
  %v10101 = vsub.s32 %v10098, %v10100
  %v10102 = vrot.slane %v10074, %v10101
  %v10103 = vcombine.high %v10081, %v10081
  %v10104 = vcombine.high %v10088, %v10088
  %v10105 = vcombine.high %v10095, %v10095
  %v10106 = vcombine.high %v10102, %v10102
  %v10115 = vmul.f32 %v10035, %v10081
  %v10116 = vmul.f32 %v10036, %v10095
  %v10117 = vmul.f32 %v10037, %v10103
  %v10118 = vmul.f32 %v10038, %v10105
  %v10119 = vmul.f32 %v10039, %v10088
  %v10120 = vmul.f32 %v10040, %v10102
  %v10121 = vmul.f32 %v10041, %v10104
  %v10122 = vmul.f32 %v10042, %v10106
  %v10123 = vmul.f32 %v10043, %v10081
  %v10124 = vmul.f32 %v10044, %v10095
  %v10125 = vmul.f32 %v10045, %v10103
  %v10126 = vmul.f32 %v10046, %v10105
  %v10127 = vmul.f32 %v10047, %v10088
  %v10128 = vmul.f32 %v10048, %v10102
  %v10129 = vmul.f32 %v10049, %v10104
  %v10130 = vmul.f32 %v10050, %v10106
  %v10131 = vmul.f32 %v10051, %v10081
  %v10132 = vmul.f32 %v10052, %v10095
  %v10134 = vlaneseq
  %v10135 = vshrl.u32 %v10134, 7
  %v10136 = vsub.s32 0, %v10135
  %v10137 = vrot.slane %v9514, %v10136
  %v10138 = vcombine.high %v10137, %v10137
  %v10140 = vunpack.c.l.s4 1966171168
  %v10141 = vunpack.c.0.s8 %v10140
  %v10142 = vlaneseq
  %v10143 = vshrl.u32 %v10142, 7
  %v10144 = vsub.s32 %v10141, %v10143
  %v10145 = vrot.slane %v10137, %v10144
  %v10147 = vunpack.c.l.s4 1966171168
  %v10148 = vunpack.c.0.s8 %v10147
  %v10149 = vlaneseq
  %v10150 = vshrl.u32 %v10149, 7
  %v10151 = vsub.s32 %v10148, %v10150
  %v10152 = vrot.slane %v10138, %v10151
  %v10153 = vcombine.high %v10145, %v10145
  %v10154 = vcombine.high %v10152, %v10152
  %v10156 = vunpack.c.l.s4 1966171168
  %v10157 = vunpack.c.0.s8 %v10156
  %v10158 = vlaneseq
  %v10159 = vshrl.u32 %v10158, 7
  %v10160 = vsub.s32 %v10157, %v10159
  %v10161 = vrot.slane %v10145, %v10160
  %v10163 = vunpack.c.l.s4 1966171168
  %v10164 = vunpack.c.0.s8 %v10163
  %v10165 = vlaneseq
  %v10166 = vshrl.u32 %v10165, 7
  %v10167 = vsub.s32 %v10164, %v10166
  %v10168 = vrot.slane %v10152, %v10167
  %v10170 = vunpack.c.l.s4 1966171168
  %v10171 = vunpack.c.0.s8 %v10170
  %v10172 = vlaneseq
  %v10173 = vshrl.u32 %v10172, 7
  %v10174 = vsub.s32 %v10171, %v10173
  %v10175 = vrot.slane %v10153, %v10174
  %v10177 = vunpack.c.l.s4 1966171168
  %v10178 = vunpack.c.0.s8 %v10177
  %v10179 = vlaneseq
  %v10180 = vshrl.u32 %v10179, 7
  %v10181 = vsub.s32 %v10178, %v10180
  %v10182 = vrot.slane %v10154, %v10181
  %v10183 = vcombine.high %v10161, %v10161
  %v10184 = vcombine.high %v10168, %v10168
  %v10185 = vcombine.high %v10175, %v10175
  %v10186 = vcombine.high %v10182, %v10182
  %v10195 = vadd.f32 %v10115, %v10161
  %v10196 = vadd.f32 %v10116, %v10175
  %v10197 = vadd.f32 %v10117, %v10183
  %v10198 = vadd.f32 %v10118, %v10185
  %v10199 = vadd.f32 %v10119, %v10168
  %v10200 = vadd.f32 %v10120, %v10182
  %v10201 = vadd.f32 %v10121, %v10184
  %v10202 = vadd.f32 %v10122, %v10186
  %v10203 = vadd.f32 %v10123, %v10161
  %v10204 = vadd.f32 %v10124, %v10175
  %v10205 = vadd.f32 %v10125, %v10183
  %v10206 = vadd.f32 %v10126, %v10185
  %v10207 = vadd.f32 %v10127, %v10168
  %v10208 = vadd.f32 %v10128, %v10182
  %v10209 = vadd.f32 %v10129, %v10184
  %v10210 = vadd.f32 %v10130, %v10186
  %v10211 = vadd.f32 %v10131, %v10161
  %v10212 = vadd.f32 %v10132, %v10175
  %s10213 = scalar_lea.vmem %s9, 32
  %v10214 = vld [vmem:[%s10213] sm:$0xff]
  %v10215 = vld [vmem:[%s10213 + $0x8] sm:$0xff]
  %v10216 = vld [vmem:[%s10213 + $0x10] sm:$0xff]
  %v10217 = vld [vmem:[%s10213 + $0x18] sm:$0xff]
  %s10218 = scalar_lea.vmem %s10, 1
  %v10219 = vld [vmem:[%s10218] sm:$0x1]
  %v10221 = vlaneseq
  %v10222 = vshrl.u32 %v10221, 7
  %v10223 = vsub.s32 0, %v10222
  %v10224 = vrot.slane %v10219, %v10223
  %v10244 = vcombine.low %v10195, %v10196
  %v10245 = vcombine.low %v10197, %v10198
  %v10246 = vcombine.low %v10199, %v10200
  %v10247 = vcombine.low %v10201, %v10202
  %v10249 = vunpack.c.l.s4 1966171168
  %v10250 = vunpack.c.0.s8 %v10249
  %v10251 = vlaneseq
  %v10252 = vshrl.u32 %v10251, 7
  %v10253 = vsub.s32 %v10250, %v10252
  %v10254 = vrot.slane %v10244, %v10253
  %v10256 = vunpack.c.l.s4 1966171168
  %v10257 = vunpack.c.0.s8 %v10256
  %v10258 = vlaneseq
  %v10259 = vshrl.u32 %v10258, 7
  %v10260 = vsub.s32 %v10257, %v10259
  %v10261 = vrot.slane %v10245, %v10260
  %v10263 = vunpack.c.l.s4 1966171168
  %v10264 = vunpack.c.0.s8 %v10263
  %v10265 = vlaneseq
  %v10266 = vshrl.u32 %v10265, 7
  %v10267 = vsub.s32 %v10264, %v10266
  %v10268 = vrot.slane %v10246, %v10267
  %v10270 = vunpack.c.l.s4 1966171168
  %v10271 = vunpack.c.0.s8 %v10270
  %v10272 = vlaneseq
  %v10273 = vshrl.u32 %v10272, 7
  %v10274 = vsub.s32 %v10271, %v10273
  %v10275 = vrot.slane %v10247, %v10274
  %v10276 = vcombine.low %v10254, %v10261
  %v10277 = vcombine.low %v10268, %v10275
  %v10279 = vunpack.c.l.s4 1966171168
  %v10280 = vunpack.c.0.s8 %v10279
  %v10281 = vlaneseq
  %v10282 = vshrl.u32 %v10281, 7
  %v10283 = vsub.s32 %v10280, %v10282
  %v10284 = vrot.slane %v10276, %v10283
  %v10286 = vunpack.c.l.s4 1966171168
  %v10287 = vunpack.c.0.s8 %v10286
  %v10288 = vlaneseq
  %v10289 = vshrl.u32 %v10288, 7
  %v10290 = vsub.s32 %v10287, %v10289
  %v10291 = vrot.slane %v10277, %v10290
  %v10292 = vcombine.low %v10284, %v10291
  %v10293 = vcombine.low %v10203, %v10204
  %v10294 = vcombine.low %v10205, %v10206
  %v10295 = vcombine.low %v10207, %v10208
  %v10296 = vcombine.low %v10209, %v10210
  %v10298 = vunpack.c.l.s4 1966171168
  %v10299 = vunpack.c.0.s8 %v10298
  %v10300 = vlaneseq
  %v10301 = vshrl.u32 %v10300, 7
  %v10302 = vsub.s32 %v10299, %v10301
  %v10303 = vrot.slane %v10293, %v10302
  %v10305 = vunpack.c.l.s4 1966171168
  %v10306 = vunpack.c.0.s8 %v10305
  %v10307 = vlaneseq
  %v10308 = vshrl.u32 %v10307, 7
  %v10309 = vsub.s32 %v10306, %v10308
  %v10310 = vrot.slane %v10294, %v10309
  %v10312 = vunpack.c.l.s4 1966171168
  %v10313 = vunpack.c.0.s8 %v10312
  %v10314 = vlaneseq
  %v10315 = vshrl.u32 %v10314, 7
  %v10316 = vsub.s32 %v10313, %v10315
  %v10317 = vrot.slane %v10295, %v10316
  %v10319 = vunpack.c.l.s4 1966171168
  %v10320 = vunpack.c.0.s8 %v10319
  %v10321 = vlaneseq
  %v10322 = vshrl.u32 %v10321, 7
  %v10323 = vsub.s32 %v10320, %v10322
  %v10324 = vrot.slane %v10296, %v10323
  %v10325 = vcombine.low %v10303, %v10310
  %v10326 = vcombine.low %v10317, %v10324
  %v10328 = vunpack.c.l.s4 1966171168
  %v10329 = vunpack.c.0.s8 %v10328
  %v10330 = vlaneseq
  %v10331 = vshrl.u32 %v10330, 7
  %v10332 = vsub.s32 %v10329, %v10331
  %v10333 = vrot.slane %v10325, %v10332
  %v10335 = vunpack.c.l.s4 1966171168
  %v10336 = vunpack.c.0.s8 %v10335
  %v10337 = vlaneseq
  %v10338 = vshrl.u32 %v10337, 7
  %v10339 = vsub.s32 %v10336, %v10338
  %v10340 = vrot.slane %v10326, %v10339
  %v10341 = vcombine.low %v10333, %v10340
  %v10342 = vcombine.low %v10211, %v10212
  %v10344 = vunpack.c.l.s4 1966171168
  %v10345 = vunpack.c.0.s8 %v10344
  %v10346 = vlaneseq
  %v10347 = vshrl.u32 %v10346, 7
  %v10348 = vsub.s32 %v10345, %v10347
  %v10349 = vrot.slane %v10342, %v10348
  %v10351 = vunpack.c.l.s4 1966171168
  %v10352 = vunpack.c.0.s8 %v10351
  %v10353 = vlaneseq
  %v10354 = vshrl.u32 %v10353, 7
  %v10355 = vsub.s32 %v10352, %v10354
  %v10356 = vrot.slane %v10349, %v10355
  %v10357 = vsel %vm504, %v10292, 0
  %v10359 = vsel %vm504, %v10341, 0
  %v10361 = vsel %vm504, %v10356, 0
  %v10364 = vsel %vm504, %v10214, 0
  %v10367 = vsel %vm504, %v10215, 0
  %v10370 = vsel %vm504, %v10216, 0
  %v10373 = vsel %vm504, %v10217, 0
  %10375 = vmatprep.subr.mxu0 0.0
  %10376 = vmatpush1.xpose.msra.mxu0 0.0
  %10377 = vmatprep.subr.mxu0 0.0
  %10378 = vmatpush1.xpose.msra.mxu0 0.0
  %10379 = vmatprep.subr.mxu0 0.0
  %10380 = vmatpush1.xpose.msra.mxu0 0.0
  %10381 = vmatprep.subr.mxu0 0.0
  %10382 = vmatpush1.xpose.msra.mxu0 0.0
  %10383 = vmatprep.subr.mxu0 0.0
  %10384 = vmatpush1.xpose.msra.mxu0 0.0
  %10385 = vmatprep.subr.mxu0 0.0
  %10386 = vmatpush1.xpose.msra.mxu0 0.0
  %10387 = vmatprep.subr.mxu0 0.0
  %10388 = vmatpush1.xpose.msra.mxu0 0.0
  %10389 = vmatprep.subr.mxu0 0.0
  %10390 = vmatpush1.xpose.msra.mxu0 0.0
  %10391 = vmatprep.subr.mxu0 0.0
  %10392 = vmatpush1.xpose.msra.mxu0 0.0
  %10393 = vmatprep.subr.mxu0 0.0
  %10394 = vmatpush1.xpose.msra.mxu0 0.0
  %10395 = vmatprep.subr.mxu0 0.0
  %10396 = vmatpush1.xpose.msra.mxu0 0.0
  %10397 = vmatprep.subr.mxu0 0.0
  %10398 = vmatpush1.xpose.msra.mxu0 0.0
  %10399 = vmatprep.subr.mxu0 0.0
  %10400 = vmatpush1.xpose.msra.mxu0 %v10373
  %10401 = vmatprep.subr.mxu0 0.0
  %10402 = vmatpush1.xpose.msra.mxu0 %v10370
  %10403 = vmatprep.subr.mxu0 0.0
  %10404 = vmatpush1.xpose.msra.mxu0 %v10367
  %10405 = vmatprep.subr.mxu0 0.0
  %10406 = vmatpush1.xpose.msra.mxu0 %v10364
  %10407 = vmatprep.subr.mxu0 0.0
  %10408 = vmatpush2.xpose.msra.mxu0 0.0
  %10409 = vmatprep.subr.mxu0 0.0
  %10410 = vmatpush2.xpose.msra.mxu0 0.0
  %10411 = vmatprep.subr.mxu0 0.0
  %10412 = vmatpush2.xpose.msra.mxu0 0.0
  %10413 = vmatprep.subr.mxu0 0.0
  %10414 = vmatpush2.xpose.msra.mxu0 0.0
  %10415 = vmatprep.subr.mxu0 0.0
  %10416 = vmatpush2.xpose.msra.mxu0 0.0
  %10417 = vmatprep.subr.mxu0 0.0
  %10418 = vmatpush2.xpose.msra.mxu0 0.0
  %10419 = vmatprep.subr.mxu0 0.0
  %10420 = vmatpush2.xpose.msra.mxu0 0.0
  %10421 = vmatprep.subr.mxu0 0.0
  %10422 = vmatpush2.xpose.msra.mxu0 0.0
  %10423 = vmatprep.subr.mxu0 0.0
  %10424 = vmatpush2.xpose.msra.mxu0 0.0
  %10425 = vmatprep.subr.mxu0 0.0
  %10426 = vmatpush2.xpose.msra.mxu0 0.0
  %10427 = vmatprep.subr.mxu0 0.0
  %10428 = vmatpush2.xpose.msra.mxu0 0.0
  %10429 = vmatprep.subr.mxu0 0.0
  %10430 = vmatpush2.xpose.msra.mxu0 0.0
  %10431 = vmatprep.subr.mxu0 0.0
  %10432 = vmatpush2.xpose.msra.mxu0 0.0
  %10433 = vmatprep.subr.mxu0 0.0
  %10434 = vmatpush2.xpose.msra.mxu0 0.0
  %10435 = vmatprep.subr.mxu0 0.0
  %10436 = vmatpush2.xpose.msra.mxu0 0.0
  %10437 = vmatprep.subr.mxu0 0.0
  %10438 = vmatpush2.xpose.msra.mxu0 0.0
  %10439 = vmatprep.mubr.f32.mxu0 0.0
  %10440 = vmatmul.mubr.f32.gmra.mxu0 %v10357
  %v10441 = vpop.f32.mrf.mxu0
  %v10442 = vadd.f32 %v10224, %v10441
  %v10443 = vpop.f32.mrf.mxu0
  %10444 = vmatprep.mubr.f32.mxu0 0.0
  %10445 = vmatmul.mubr.f32.gmra.mxu0 %v10359
  %v10446 = vpop.f32.mrf.mxu0
  %v10447 = vadd.f32 %v10224, %v10446
  %v10448 = vpop.f32.mrf.mxu0
  %10449 = vmatprep.mubr.f32.mxu0 0.0
  %10450 = vmatmul.mubr.f32.gmra.mxu0 %v10361
  %v10451 = vpop.f32.mrf.mxu0
  %v10452 = vadd.f32 %v10224, %v10451
  %v10453 = vpop.f32.mrf.mxu0
  %10454 = vdwg.mxu0
  %v10455 = vmax.f32 %v10442, 0.0
  %v10456 = vmax.f32 %v10447, 0.0
  %v10457 = vmax.f32 %v10452, 0.0
  %s10458 = scalar_lea.vmem %s11, 32
  %v10459 = vld [vmem:[%s10458] sm:$0xff]
  %v10460 = vld [vmem:[%s10458 + $0x8] sm:$0xff]
  %v10461 = vld [vmem:[%s10458 + $0x10] sm:$0xff]
  %v10462 = vld [vmem:[%s10458 + $0x18] sm:$0xff]
  %s10463 = scalar_lea.vmem %s12, 1
  %v10464 = vld [vmem:[%s10463] sm:$0x1]
  %v10466 = vlaneseq
  %v10467 = vshrl.u32 %v10466, 7
  %v10468 = vsub.s32 0, %v10467
  %v10469 = vrot.slane %v10464, %v10468
  %v10472 = vsel %vm504, %v10455, 0
  %v10475 = vsel %vm504, %v10456, 0
  %v10478 = vsel %vm504, %v10457, 0
  %v10481 = vsel %vm504, %v10459, 0
  %v10484 = vsel %vm504, %v10460, 0
  %v10487 = vsel %vm504, %v10461, 0
  %v10490 = vsel %vm504, %v10462, 0
  %10492 = vmatprep.subr.mxu0 0.0
  %10493 = vmatpush1.xpose.msra.mxu0 0.0
  %10494 = vmatprep.subr.mxu0 0.0
  %10495 = vmatpush1.xpose.msra.mxu0 0.0
  %10496 = vmatprep.subr.mxu0 0.0
  %10497 = vmatpush1.xpose.msra.mxu0 0.0
  %10498 = vmatprep.subr.mxu0 0.0
  %10499 = vmatpush1.xpose.msra.mxu0 0.0
  %10500 = vmatprep.subr.mxu0 0.0
  %10501 = vmatpush1.xpose.msra.mxu0 0.0
  %10502 = vmatprep.subr.mxu0 0.0
  %10503 = vmatpush1.xpose.msra.mxu0 0.0
  %10504 = vmatprep.subr.mxu0 0.0
  %10505 = vmatpush1.xpose.msra.mxu0 0.0
  %10506 = vmatprep.subr.mxu0 0.0
  %10507 = vmatpush1.xpose.msra.mxu0 0.0
  %10508 = vmatprep.subr.mxu0 0.0
  %10509 = vmatpush1.xpose.msra.mxu0 0.0
  %10510 = vmatprep.subr.mxu0 0.0
  %10511 = vmatpush1.xpose.msra.mxu0 0.0
  %10512 = vmatprep.subr.mxu0 0.0
  %10513 = vmatpush1.xpose.msra.mxu0 0.0
  %10514 = vmatprep.subr.mxu0 0.0
  %10515 = vmatpush1.xpose.msra.mxu0 0.0
  %10516 = vmatprep.subr.mxu0 0.0
  %10517 = vmatpush1.xpose.msra.mxu0 %v10490
  %10518 = vmatprep.subr.mxu0 0.0
  %10519 = vmatpush1.xpose.msra.mxu0 %v10487
  %10520 = vmatprep.subr.mxu0 0.0
  %10521 = vmatpush1.xpose.msra.mxu0 %v10484
  %10522 = vmatprep.subr.mxu0 0.0
  %10523 = vmatpush1.xpose.msra.mxu0 %v10481
  %10524 = vmatprep.subr.mxu0 0.0
  %10525 = vmatpush2.xpose.msra.mxu0 0.0
  %10526 = vmatprep.subr.mxu0 0.0
  %10527 = vmatpush2.xpose.msra.mxu0 0.0
  %10528 = vmatprep.subr.mxu0 0.0
  %10529 = vmatpush2.xpose.msra.mxu0 0.0
  %10530 = vmatprep.subr.mxu0 0.0
  %10531 = vmatpush2.xpose.msra.mxu0 0.0
  %10532 = vmatprep.subr.mxu0 0.0
  %10533 = vmatpush2.xpose.msra.mxu0 0.0
  %10534 = vmatprep.subr.mxu0 0.0
  %10535 = vmatpush2.xpose.msra.mxu0 0.0
  %10536 = vmatprep.subr.mxu0 0.0
  %10537 = vmatpush2.xpose.msra.mxu0 0.0
  %10538 = vmatprep.subr.mxu0 0.0
  %10539 = vmatpush2.xpose.msra.mxu0 0.0
  %10540 = vmatprep.subr.mxu0 0.0
  %10541 = vmatpush2.xpose.msra.mxu0 0.0
  %10542 = vmatprep.subr.mxu0 0.0
  %10543 = vmatpush2.xpose.msra.mxu0 0.0
  %10544 = vmatprep.subr.mxu0 0.0
  %10545 = vmatpush2.xpose.msra.mxu0 0.0
  %10546 = vmatprep.subr.mxu0 0.0
  %10547 = vmatpush2.xpose.msra.mxu0 0.0
  %10548 = vmatprep.subr.mxu0 0.0
  %10549 = vmatpush2.xpose.msra.mxu0 0.0
  %10550 = vmatprep.subr.mxu0 0.0
  %10551 = vmatpush2.xpose.msra.mxu0 0.0
  %10552 = vmatprep.subr.mxu0 0.0
  %10553 = vmatpush2.xpose.msra.mxu0 0.0
  %10554 = vmatprep.subr.mxu0 0.0
  %10555 = vmatpush2.xpose.msra.mxu0 0.0
  %10556 = vmatprep.mubr.f32.mxu0 0.0
  %10557 = vmatmul.mubr.f32.gmra.mxu0 %v10472
  %v10558 = vpop.f32.mrf.mxu0
  %v10559 = vadd.f32 %v10469, %v10558
  %v10560 = vpop.f32.mrf.mxu0
  %10561 = vmatprep.mubr.f32.mxu0 0.0
  %10562 = vmatmul.mubr.f32.gmra.mxu0 %v10475
  %v10563 = vpop.f32.mrf.mxu0
  %v10564 = vadd.f32 %v10469, %v10563
  %v10565 = vpop.f32.mrf.mxu0
  %10566 = vmatprep.mubr.f32.mxu0 0.0
  %10567 = vmatmul.mubr.f32.gmra.mxu0 %v10478
  %v10568 = vpop.f32.mrf.mxu0
  %v10569 = vadd.f32 %v10469, %v10568
  %v10570 = vpop.f32.mrf.mxu0
  %10571 = vdwg.mxu0
  %v10575 = vcombine.high %v10559, %v10559
  %v10577 = vunpack.c.l.s4 1966171168
  %v10578 = vunpack.c.0.s8 %v10577
  %v10579 = vlaneseq
  %v10580 = vshrl.u32 %v10579, 7
  %v10581 = vsub.s32 %v10578, %v10580
  %v10582 = vrot.slane %v10559, %v10581
  %v10584 = vunpack.c.l.s4 1966171168
  %v10585 = vunpack.c.0.s8 %v10584
  %v10586 = vlaneseq
  %v10587 = vshrl.u32 %v10586, 7
  %v10588 = vsub.s32 %v10585, %v10587
  %v10589 = vrot.slane %v10575, %v10588
  %v10590 = vcombine.high %v10582, %v10582
  %v10591 = vcombine.high %v10589, %v10589
  %v10593 = vunpack.c.l.s4 1966171168
  %v10594 = vunpack.c.0.s8 %v10593
  %v10595 = vlaneseq
  %v10596 = vshrl.u32 %v10595, 7
  %v10597 = vsub.s32 %v10594, %v10596
  %v10598 = vrot.slane %v10582, %v10597
  %v10600 = vunpack.c.l.s4 1966171168
  %v10601 = vunpack.c.0.s8 %v10600
  %v10602 = vlaneseq
  %v10603 = vshrl.u32 %v10602, 7
  %v10604 = vsub.s32 %v10601, %v10603
  %v10605 = vrot.slane %v10589, %v10604
  %v10607 = vunpack.c.l.s4 1966171168
  %v10608 = vunpack.c.0.s8 %v10607
  %v10609 = vlaneseq
  %v10610 = vshrl.u32 %v10609, 7
  %v10611 = vsub.s32 %v10608, %v10610
  %v10612 = vrot.slane %v10590, %v10611
  %v10614 = vunpack.c.l.s4 1966171168
  %v10615 = vunpack.c.0.s8 %v10614
  %v10616 = vlaneseq
  %v10617 = vshrl.u32 %v10616, 7
  %v10618 = vsub.s32 %v10615, %v10617
  %v10619 = vrot.slane %v10591, %v10618
  %v10620 = vcombine.high %v10598, %v10598
  %v10621 = vcombine.high %v10605, %v10605
  %v10622 = vcombine.high %v10612, %v10612
  %v10623 = vcombine.high %v10619, %v10619
  %v10624 = vcombine.high %v10564, %v10564
  %v10626 = vunpack.c.l.s4 1966171168
  %v10627 = vunpack.c.0.s8 %v10626
  %v10628 = vlaneseq
  %v10629 = vshrl.u32 %v10628, 7
  %v10630 = vsub.s32 %v10627, %v10629
  %v10631 = vrot.slane %v10564, %v10630
  %v10633 = vunpack.c.l.s4 1966171168
  %v10634 = vunpack.c.0.s8 %v10633
  %v10635 = vlaneseq
  %v10636 = vshrl.u32 %v10635, 7
  %v10637 = vsub.s32 %v10634, %v10636
  %v10638 = vrot.slane %v10624, %v10637
  %v10639 = vcombine.high %v10631, %v10631
  %v10640 = vcombine.high %v10638, %v10638
  %v10642 = vunpack.c.l.s4 1966171168
  %v10643 = vunpack.c.0.s8 %v10642
  %v10644 = vlaneseq
  %v10645 = vshrl.u32 %v10644, 7
  %v10646 = vsub.s32 %v10643, %v10645
  %v10647 = vrot.slane %v10631, %v10646
  %v10649 = vunpack.c.l.s4 1966171168
  %v10650 = vunpack.c.0.s8 %v10649
  %v10651 = vlaneseq
  %v10652 = vshrl.u32 %v10651, 7
  %v10653 = vsub.s32 %v10650, %v10652
  %v10654 = vrot.slane %v10638, %v10653
  %v10656 = vunpack.c.l.s4 1966171168
  %v10657 = vunpack.c.0.s8 %v10656
  %v10658 = vlaneseq
  %v10659 = vshrl.u32 %v10658, 7
  %v10660 = vsub.s32 %v10657, %v10659
  %v10661 = vrot.slane %v10639, %v10660
  %v10663 = vunpack.c.l.s4 1966171168
  %v10664 = vunpack.c.0.s8 %v10663
  %v10665 = vlaneseq
  %v10666 = vshrl.u32 %v10665, 7
  %v10667 = vsub.s32 %v10664, %v10666
  %v10668 = vrot.slane %v10640, %v10667
  %v10669 = vcombine.high %v10647, %v10647
  %v10670 = vcombine.high %v10654, %v10654
  %v10671 = vcombine.high %v10661, %v10661
  %v10672 = vcombine.high %v10668, %v10668
  %v10674 = vunpack.c.l.s4 1966171168
  %v10675 = vunpack.c.0.s8 %v10674
  %v10676 = vlaneseq
  %v10677 = vshrl.u32 %v10676, 7
  %v10678 = vsub.s32 %v10675, %v10677
  %v10679 = vrot.slane %v10569, %v10678
  %v10680 = vcombine.high %v10679, %v10679
  %v10682 = vunpack.c.l.s4 1966171168
  %v10683 = vunpack.c.0.s8 %v10682
  %v10684 = vlaneseq
  %v10685 = vshrl.u32 %v10684, 7
  %v10686 = vsub.s32 %v10683, %v10685
  %v10687 = vrot.slane %v10679, %v10686
  %v10689 = vunpack.c.l.s4 1966171168
  %v10690 = vunpack.c.0.s8 %v10689
  %v10691 = vlaneseq
  %v10692 = vshrl.u32 %v10691, 7
  %v10693 = vsub.s32 %v10690, %v10692
  %v10694 = vrot.slane %v10680, %v10693
  %v10713 = vadd.f32 %v10195, %v10598
  %v10714 = vadd.f32 %v10196, %v10612
  %v10715 = vadd.f32 %v10197, %v10620
  %v10716 = vadd.f32 %v10198, %v10622
  %v10717 = vadd.f32 %v10199, %v10605
  %v10718 = vadd.f32 %v10200, %v10619
  %v10719 = vadd.f32 %v10201, %v10621
  %v10720 = vadd.f32 %v10202, %v10623
  %v10721 = vadd.f32 %v10203, %v10647
  %v10722 = vadd.f32 %v10204, %v10661
  %v10723 = vadd.f32 %v10205, %v10669
  %v10724 = vadd.f32 %v10206, %v10671
  %v10725 = vadd.f32 %v10207, %v10654
  %v10726 = vadd.f32 %v10208, %v10668
  %v10727 = vadd.f32 %v10209, %v10670
  %v10728 = vadd.f32 %v10210, %v10672
  %v10729 = vadd.f32 %v10211, %v10687
  %v10730 = vadd.f32 %v10212, %v10694
  %s10731 = scalar_lea.vmem %s13, 1
  %v10732 = vld [vmem:[%s10731] sm:$0x1]
  %s10733 = scalar_lea.vmem %s14, 1
  %v10734 = vld [vmem:[%s10733] sm:$0x1]
  %v10753 = vcombine.low %v10713, %v10714
  %v10754 = vcombine.low %v10715, %v10716
  %v10755 = vcombine.low %v10717, %v10718
  %v10756 = vcombine.low %v10719, %v10720
  %v10758 = vunpack.c.l.s4 1966171168
  %v10759 = vunpack.c.0.s8 %v10758
  %v10760 = vlaneseq
  %v10761 = vshrl.u32 %v10760, 7
  %v10762 = vsub.s32 %v10759, %v10761
  %v10763 = vrot.slane %v10753, %v10762
  %v10765 = vunpack.c.l.s4 1966171168
  %v10766 = vunpack.c.0.s8 %v10765
  %v10767 = vlaneseq
  %v10768 = vshrl.u32 %v10767, 7
  %v10769 = vsub.s32 %v10766, %v10768
  %v10770 = vrot.slane %v10754, %v10769
  %v10772 = vunpack.c.l.s4 1966171168
  %v10773 = vunpack.c.0.s8 %v10772
  %v10774 = vlaneseq
  %v10775 = vshrl.u32 %v10774, 7
  %v10776 = vsub.s32 %v10773, %v10775
  %v10777 = vrot.slane %v10755, %v10776
  %v10779 = vunpack.c.l.s4 1966171168
  %v10780 = vunpack.c.0.s8 %v10779
  %v10781 = vlaneseq
  %v10782 = vshrl.u32 %v10781, 7
  %v10783 = vsub.s32 %v10780, %v10782
  %v10784 = vrot.slane %v10756, %v10783
  %v10785 = vcombine.low %v10763, %v10770
  %v10786 = vcombine.low %v10777, %v10784
  %v10788 = vunpack.c.l.s4 1966171168
  %v10789 = vunpack.c.0.s8 %v10788
  %v10790 = vlaneseq
  %v10791 = vshrl.u32 %v10790, 7
  %v10792 = vsub.s32 %v10789, %v10791
  %v10793 = vrot.slane %v10785, %v10792
  %v10795 = vunpack.c.l.s4 1966171168
  %v10796 = vunpack.c.0.s8 %v10795
  %v10797 = vlaneseq
  %v10798 = vshrl.u32 %v10797, 7
  %v10799 = vsub.s32 %v10796, %v10798
  %v10800 = vrot.slane %v10786, %v10799
  %v10801 = vcombine.low %v10793, %v10800
  %v10802 = vcombine.low %v10721, %v10722
  %v10803 = vcombine.low %v10723, %v10724
  %v10804 = vcombine.low %v10725, %v10726
  %v10805 = vcombine.low %v10727, %v10728
  %v10807 = vunpack.c.l.s4 1966171168
  %v10808 = vunpack.c.0.s8 %v10807
  %v10809 = vlaneseq
  %v10810 = vshrl.u32 %v10809, 7
  %v10811 = vsub.s32 %v10808, %v10810
  %v10812 = vrot.slane %v10802, %v10811
  %v10814 = vunpack.c.l.s4 1966171168
  %v10815 = vunpack.c.0.s8 %v10814
  %v10816 = vlaneseq
  %v10817 = vshrl.u32 %v10816, 7
  %v10818 = vsub.s32 %v10815, %v10817
  %v10819 = vrot.slane %v10803, %v10818
  %v10821 = vunpack.c.l.s4 1966171168
  %v10822 = vunpack.c.0.s8 %v10821
  %v10823 = vlaneseq
  %v10824 = vshrl.u32 %v10823, 7
  %v10825 = vsub.s32 %v10822, %v10824
  %v10826 = vrot.slane %v10804, %v10825
  %v10828 = vunpack.c.l.s4 1966171168
  %v10829 = vunpack.c.0.s8 %v10828
  %v10830 = vlaneseq
  %v10831 = vshrl.u32 %v10830, 7
  %v10832 = vsub.s32 %v10829, %v10831
  %v10833 = vrot.slane %v10805, %v10832
  %v10834 = vcombine.low %v10812, %v10819
  %v10835 = vcombine.low %v10826, %v10833
  %v10837 = vunpack.c.l.s4 1966171168
  %v10838 = vunpack.c.0.s8 %v10837
  %v10839 = vlaneseq
  %v10840 = vshrl.u32 %v10839, 7
  %v10841 = vsub.s32 %v10838, %v10840
  %v10842 = vrot.slane %v10834, %v10841
  %v10844 = vunpack.c.l.s4 1966171168
  %v10845 = vunpack.c.0.s8 %v10844
  %v10846 = vlaneseq
  %v10847 = vshrl.u32 %v10846, 7
  %v10848 = vsub.s32 %v10845, %v10847
  %v10849 = vrot.slane %v10835, %v10848
  %v10850 = vcombine.low %v10842, %v10849
  %v10851 = vcombine.low %v10729, %v10730
  %v10853 = vunpack.c.l.s4 1966171168
  %v10854 = vunpack.c.0.s8 %v10853
  %v10855 = vlaneseq
  %v10856 = vshrl.u32 %v10855, 7
  %v10857 = vsub.s32 %v10854, %v10856
  %v10858 = vrot.slane %v10851, %v10857
  %v10860 = vunpack.c.l.s4 1966171168
  %v10861 = vunpack.c.0.s8 %v10860
  %v10862 = vlaneseq
  %v10863 = vshrl.u32 %v10862, 7
  %v10864 = vsub.s32 %v10861, %v10863
  %v10865 = vrot.slane %v10858, %v10864
  %v10869 = vsel %vm504, %v10801, 0.0
  %10870 = vadd.xlane.f32.xlu0 %v10869
  %v10871 = vpop.xlane.xlu0 %10870
  %v10872 = vsel %vm504, %v10850, 0.0
  %10873 = vadd.xlane.f32.xlu0 %v10872
  %v10874 = vpop.xlane.xlu0 %10873
  %v10875 = vsel %vm4265, %v10865, 0.0
  %10876 = vadd.xlane.f32.xlu0 %v10875
  %v10877 = vpop.xlane.xlu0 %10876
  %v10878 = vmul.f32 %v10871, %v4269
  %v10879 = vmul.f32 %v10874, %v4269
  %v10880 = vmul.f32 %v10877, %v4269
  %v10884 = vlaneseq
  %v10885 = vshrl.u32 %v10884, 7
  %v10886 = vsub.s32 0, %v10885
  %v10887 = vrot.slane %v10878, %v10886
  %v10888 = vlaneseq
  %v10889 = vshrl.u32 %v10888, 7
  %v10890 = vsub.s32 1, %v10889
  %v10891 = vrot.slane %v10878, %v10890
  %v10892 = vlaneseq
  %v10893 = vshrl.u32 %v10892, 7
  %v10894 = vsub.s32 2, %v10893
  %v10895 = vrot.slane %v10878, %v10894
  %v10896 = vlaneseq
  %v10897 = vshrl.u32 %v10896, 7
  %v10898 = vsub.s32 3, %v10897
  %v10899 = vrot.slane %v10878, %v10898
  %v10900 = vlaneseq
  %v10901 = vshrl.u32 %v10900, 7
  %v10902 = vsub.s32 4, %v10901
  %v10903 = vrot.slane %v10878, %v10902
  %v10904 = vlaneseq
  %v10905 = vshrl.u32 %v10904, 7
  %v10906 = vsub.s32 5, %v10905
  %v10907 = vrot.slane %v10878, %v10906
  %v10908 = vlaneseq
  %v10909 = vshrl.u32 %v10908, 7
  %v10910 = vsub.s32 6, %v10909
  %v10911 = vrot.slane %v10878, %v10910
  %v10912 = vlaneseq
  %v10913 = vshrl.u32 %v10912, 7
  %v10914 = vsub.s32 7, %v10913
  %v10915 = vrot.slane %v10878, %v10914
  %v10916 = vlaneseq
  %v10917 = vshrl.u32 %v10916, 7
  %v10918 = vsub.s32 0, %v10917
  %v10919 = vrot.slane %v10879, %v10918
  %v10920 = vlaneseq
  %v10921 = vshrl.u32 %v10920, 7
  %v10922 = vsub.s32 1, %v10921
  %v10923 = vrot.slane %v10879, %v10922
  %v10924 = vlaneseq
  %v10925 = vshrl.u32 %v10924, 7
  %v10926 = vsub.s32 2, %v10925
  %v10927 = vrot.slane %v10879, %v10926
  %v10928 = vlaneseq
  %v10929 = vshrl.u32 %v10928, 7
  %v10930 = vsub.s32 3, %v10929
  %v10931 = vrot.slane %v10879, %v10930
  %v10932 = vlaneseq
  %v10933 = vshrl.u32 %v10932, 7
  %v10934 = vsub.s32 4, %v10933
  %v10935 = vrot.slane %v10879, %v10934
  %v10936 = vlaneseq
  %v10937 = vshrl.u32 %v10936, 7
  %v10938 = vsub.s32 5, %v10937
  %v10939 = vrot.slane %v10879, %v10938
  %v10940 = vlaneseq
  %v10941 = vshrl.u32 %v10940, 7
  %v10942 = vsub.s32 6, %v10941
  %v10943 = vrot.slane %v10879, %v10942
  %v10944 = vlaneseq
  %v10945 = vshrl.u32 %v10944, 7
  %v10946 = vsub.s32 7, %v10945
  %v10947 = vrot.slane %v10879, %v10946
  %v10948 = vlaneseq
  %v10949 = vshrl.u32 %v10948, 7
  %v10950 = vsub.s32 0, %v10949
  %v10951 = vrot.slane %v10880, %v10950
  %v10952 = vlaneseq
  %v10953 = vshrl.u32 %v10952, 7
  %v10954 = vsub.s32 1, %v10953
  %v10955 = vrot.slane %v10880, %v10954
  %v10974 = vsub.f32 %v10713, %v10887
  %v10975 = vsub.f32 %v10714, %v10891
  %v10976 = vsub.f32 %v10715, %v10895
  %v10977 = vsub.f32 %v10716, %v10899
  %v10978 = vsub.f32 %v10717, %v10903
  %v10979 = vsub.f32 %v10718, %v10907
  %v10980 = vsub.f32 %v10719, %v10911
  %v10981 = vsub.f32 %v10720, %v10915
  %v10982 = vsub.f32 %v10721, %v10919
  %v10983 = vsub.f32 %v10722, %v10923
  %v10984 = vsub.f32 %v10723, %v10927
  %v10985 = vsub.f32 %v10724, %v10931
  %v10986 = vsub.f32 %v10725, %v10935
  %v10987 = vsub.f32 %v10726, %v10939
  %v10988 = vsub.f32 %v10727, %v10943
  %v10989 = vsub.f32 %v10728, %v10947
  %v10990 = vsub.f32 %v10729, %v10951
  %v10991 = vsub.f32 %v10730, %v10955
  %v10992 = vmul.f32 %v10974, %v10974
  %v10993 = vmul.f32 %v10975, %v10975
  %v10994 = vmul.f32 %v10976, %v10976
  %v10995 = vmul.f32 %v10977, %v10977
  %v10996 = vmul.f32 %v10978, %v10978
  %v10997 = vmul.f32 %v10979, %v10979
  %v10998 = vmul.f32 %v10980, %v10980
  %v10999 = vmul.f32 %v10981, %v10981
  %v11000 = vmul.f32 %v10982, %v10982
  %v11001 = vmul.f32 %v10983, %v10983
  %v11002 = vmul.f32 %v10984, %v10984
  %v11003 = vmul.f32 %v10985, %v10985
  %v11004 = vmul.f32 %v10986, %v10986
  %v11005 = vmul.f32 %v10987, %v10987
  %v11006 = vmul.f32 %v10988, %v10988
  %v11007 = vmul.f32 %v10989, %v10989
  %v11008 = vmul.f32 %v10990, %v10990
  %v11009 = vmul.f32 %v10991, %v10991
  %v11028 = vcombine.low %v10992, %v10993
  %v11029 = vcombine.low %v10994, %v10995
  %v11030 = vcombine.low %v10996, %v10997
  %v11031 = vcombine.low %v10998, %v10999
  %v11033 = vunpack.c.l.s4 1966171168
  %v11034 = vunpack.c.0.s8 %v11033
  %v11035 = vlaneseq
  %v11036 = vshrl.u32 %v11035, 7
  %v11037 = vsub.s32 %v11034, %v11036
  %v11038 = vrot.slane %v11028, %v11037
  %v11040 = vunpack.c.l.s4 1966171168
  %v11041 = vunpack.c.0.s8 %v11040
  %v11042 = vlaneseq
  %v11043 = vshrl.u32 %v11042, 7
  %v11044 = vsub.s32 %v11041, %v11043
  %v11045 = vrot.slane %v11029, %v11044
  %v11047 = vunpack.c.l.s4 1966171168
  %v11048 = vunpack.c.0.s8 %v11047
  %v11049 = vlaneseq
  %v11050 = vshrl.u32 %v11049, 7
  %v11051 = vsub.s32 %v11048, %v11050
  %v11052 = vrot.slane %v11030, %v11051
  %v11054 = vunpack.c.l.s4 1966171168
  %v11055 = vunpack.c.0.s8 %v11054
  %v11056 = vlaneseq
  %v11057 = vshrl.u32 %v11056, 7
  %v11058 = vsub.s32 %v11055, %v11057
  %v11059 = vrot.slane %v11031, %v11058
  %v11060 = vcombine.low %v11038, %v11045
  %v11061 = vcombine.low %v11052, %v11059
  %v11063 = vunpack.c.l.s4 1966171168
  %v11064 = vunpack.c.0.s8 %v11063
  %v11065 = vlaneseq
  %v11066 = vshrl.u32 %v11065, 7
  %v11067 = vsub.s32 %v11064, %v11066
  %v11068 = vrot.slane %v11060, %v11067
  %v11070 = vunpack.c.l.s4 1966171168
  %v11071 = vunpack.c.0.s8 %v11070
  %v11072 = vlaneseq
  %v11073 = vshrl.u32 %v11072, 7
  %v11074 = vsub.s32 %v11071, %v11073
  %v11075 = vrot.slane %v11061, %v11074
  %v11076 = vcombine.low %v11068, %v11075
  %v11077 = vcombine.low %v11000, %v11001
  %v11078 = vcombine.low %v11002, %v11003
  %v11079 = vcombine.low %v11004, %v11005
  %v11080 = vcombine.low %v11006, %v11007
  %v11082 = vunpack.c.l.s4 1966171168
  %v11083 = vunpack.c.0.s8 %v11082
  %v11084 = vlaneseq
  %v11085 = vshrl.u32 %v11084, 7
  %v11086 = vsub.s32 %v11083, %v11085
  %v11087 = vrot.slane %v11077, %v11086
  %v11089 = vunpack.c.l.s4 1966171168
  %v11090 = vunpack.c.0.s8 %v11089
  %v11091 = vlaneseq
  %v11092 = vshrl.u32 %v11091, 7
  %v11093 = vsub.s32 %v11090, %v11092
  %v11094 = vrot.slane %v11078, %v11093
  %v11096 = vunpack.c.l.s4 1966171168
  %v11097 = vunpack.c.0.s8 %v11096
  %v11098 = vlaneseq
  %v11099 = vshrl.u32 %v11098, 7
  %v11100 = vsub.s32 %v11097, %v11099
  %v11101 = vrot.slane %v11079, %v11100
  %v11103 = vunpack.c.l.s4 1966171168
  %v11104 = vunpack.c.0.s8 %v11103
  %v11105 = vlaneseq
  %v11106 = vshrl.u32 %v11105, 7
  %v11107 = vsub.s32 %v11104, %v11106
  %v11108 = vrot.slane %v11080, %v11107
  %v11109 = vcombine.low %v11087, %v11094
  %v11110 = vcombine.low %v11101, %v11108
  %v11112 = vunpack.c.l.s4 1966171168
  %v11113 = vunpack.c.0.s8 %v11112
  %v11114 = vlaneseq
  %v11115 = vshrl.u32 %v11114, 7
  %v11116 = vsub.s32 %v11113, %v11115
  %v11117 = vrot.slane %v11109, %v11116
  %v11119 = vunpack.c.l.s4 1966171168
  %v11120 = vunpack.c.0.s8 %v11119
  %v11121 = vlaneseq
  %v11122 = vshrl.u32 %v11121, 7
  %v11123 = vsub.s32 %v11120, %v11122
  %v11124 = vrot.slane %v11110, %v11123
  %v11125 = vcombine.low %v11117, %v11124
  %v11126 = vcombine.low %v11008, %v11009
  %v11128 = vunpack.c.l.s4 1966171168
  %v11129 = vunpack.c.0.s8 %v11128
  %v11130 = vlaneseq
  %v11131 = vshrl.u32 %v11130, 7
  %v11132 = vsub.s32 %v11129, %v11131
  %v11133 = vrot.slane %v11126, %v11132
  %v11135 = vunpack.c.l.s4 1966171168
  %v11136 = vunpack.c.0.s8 %v11135
  %v11137 = vlaneseq
  %v11138 = vshrl.u32 %v11137, 7
  %v11139 = vsub.s32 %v11136, %v11138
  %v11140 = vrot.slane %v11133, %v11139
  %v11144 = vsel %vm504, %v11076, 0.0
  %11145 = vadd.xlane.f32.xlu0 %v11144
  %v11146 = vpop.xlane.xlu0 %11145
  %v11147 = vsel %vm504, %v11125, 0.0
  %11148 = vadd.xlane.f32.xlu0 %v11147
  %v11149 = vpop.xlane.xlu0 %11148
  %v11150 = vsel %vm4265, %v11140, 0.0
  %11151 = vadd.xlane.f32.xlu0 %v11150
  %v11152 = vpop.xlane.xlu0 %11151
  %v11153 = vmul.f32 %v11146, %v4269
  %v11154 = vmul.f32 %v11149, %v4269
  %v11155 = vmul.f32 %v11152, %v4269
  %v11156 = vadd.f32 %v11153, 1e-05
  %v11157 = vadd.f32 %v11154, 1e-05
  %v11158 = vadd.f32 %v11155, 1e-05
  %v11159 = vrsqrt.pop %v11156
  %v11160 = vrsqrt.pop %v11157
  %v11161 = vrsqrt.pop %v11158
  %v11165 = vlaneseq
  %v11166 = vshrl.u32 %v11165, 7
  %v11167 = vsub.s32 0, %v11166
  %v11168 = vrot.slane %v11159, %v11167
  %v11169 = vlaneseq
  %v11170 = vshrl.u32 %v11169, 7
  %v11171 = vsub.s32 1, %v11170
  %v11172 = vrot.slane %v11159, %v11171
  %v11173 = vlaneseq
  %v11174 = vshrl.u32 %v11173, 7
  %v11175 = vsub.s32 2, %v11174
  %v11176 = vrot.slane %v11159, %v11175
  %v11177 = vlaneseq
  %v11178 = vshrl.u32 %v11177, 7
  %v11179 = vsub.s32 3, %v11178
  %v11180 = vrot.slane %v11159, %v11179
  %v11181 = vlaneseq
  %v11182 = vshrl.u32 %v11181, 7
  %v11183 = vsub.s32 4, %v11182
  %v11184 = vrot.slane %v11159, %v11183
  %v11185 = vlaneseq
  %v11186 = vshrl.u32 %v11185, 7
  %v11187 = vsub.s32 5, %v11186
  %v11188 = vrot.slane %v11159, %v11187
  %v11189 = vlaneseq
  %v11190 = vshrl.u32 %v11189, 7
  %v11191 = vsub.s32 6, %v11190
  %v11192 = vrot.slane %v11159, %v11191
  %v11193 = vlaneseq
  %v11194 = vshrl.u32 %v11193, 7
  %v11195 = vsub.s32 7, %v11194
  %v11196 = vrot.slane %v11159, %v11195
  %v11197 = vlaneseq
  %v11198 = vshrl.u32 %v11197, 7
  %v11199 = vsub.s32 0, %v11198
  %v11200 = vrot.slane %v11160, %v11199
  %v11201 = vlaneseq
  %v11202 = vshrl.u32 %v11201, 7
  %v11203 = vsub.s32 1, %v11202
  %v11204 = vrot.slane %v11160, %v11203
  %v11205 = vlaneseq
  %v11206 = vshrl.u32 %v11205, 7
  %v11207 = vsub.s32 2, %v11206
  %v11208 = vrot.slane %v11160, %v11207
  %v11209 = vlaneseq
  %v11210 = vshrl.u32 %v11209, 7
  %v11211 = vsub.s32 3, %v11210
  %v11212 = vrot.slane %v11160, %v11211
  %v11213 = vlaneseq
  %v11214 = vshrl.u32 %v11213, 7
  %v11215 = vsub.s32 4, %v11214
  %v11216 = vrot.slane %v11160, %v11215
  %v11217 = vlaneseq
  %v11218 = vshrl.u32 %v11217, 7
  %v11219 = vsub.s32 5, %v11218
  %v11220 = vrot.slane %v11160, %v11219
  %v11221 = vlaneseq
  %v11222 = vshrl.u32 %v11221, 7
  %v11223 = vsub.s32 6, %v11222
  %v11224 = vrot.slane %v11160, %v11223
  %v11225 = vlaneseq
  %v11226 = vshrl.u32 %v11225, 7
  %v11227 = vsub.s32 7, %v11226
  %v11228 = vrot.slane %v11160, %v11227
  %v11229 = vlaneseq
  %v11230 = vshrl.u32 %v11229, 7
  %v11231 = vsub.s32 0, %v11230
  %v11232 = vrot.slane %v11161, %v11231
  %v11233 = vlaneseq
  %v11234 = vshrl.u32 %v11233, 7
  %v11235 = vsub.s32 1, %v11234
  %v11236 = vrot.slane %v11161, %v11235
  %v11255 = vmul.f32 %v10974, %v11168
  %v11256 = vmul.f32 %v10975, %v11172
  %v11257 = vmul.f32 %v10976, %v11176
  %v11258 = vmul.f32 %v10977, %v11180
  %v11259 = vmul.f32 %v10978, %v11184
  %v11260 = vmul.f32 %v10979, %v11188
  %v11261 = vmul.f32 %v10980, %v11192
  %v11262 = vmul.f32 %v10981, %v11196
  %v11263 = vmul.f32 %v10982, %v11200
  %v11264 = vmul.f32 %v10983, %v11204
  %v11265 = vmul.f32 %v10984, %v11208
  %v11266 = vmul.f32 %v10985, %v11212
  %v11267 = vmul.f32 %v10986, %v11216
  %v11268 = vmul.f32 %v10987, %v11220
  %v11269 = vmul.f32 %v10988, %v11224
  %v11270 = vmul.f32 %v10989, %v11228
  %v11271 = vmul.f32 %v10990, %v11232
  %v11272 = vmul.f32 %v10991, %v11236
  %v11274 = vlaneseq
  %v11275 = vshrl.u32 %v11274, 7
  %v11276 = vsub.s32 0, %v11275
  %v11277 = vrot.slane %v10732, %v11276
  %v11278 = vcombine.high %v11277, %v11277
  %v11280 = vunpack.c.l.s4 1966171168
  %v11281 = vunpack.c.0.s8 %v11280
  %v11282 = vlaneseq
  %v11283 = vshrl.u32 %v11282, 7
  %v11284 = vsub.s32 %v11281, %v11283
  %v11285 = vrot.slane %v11277, %v11284
  %v11287 = vunpack.c.l.s4 1966171168
  %v11288 = vunpack.c.0.s8 %v11287
  %v11289 = vlaneseq
  %v11290 = vshrl.u32 %v11289, 7
  %v11291 = vsub.s32 %v11288, %v11290
  %v11292 = vrot.slane %v11278, %v11291
  %v11293 = vcombine.high %v11285, %v11285
  %v11294 = vcombine.high %v11292, %v11292
  %v11296 = vunpack.c.l.s4 1966171168
  %v11297 = vunpack.c.0.s8 %v11296
  %v11298 = vlaneseq
  %v11299 = vshrl.u32 %v11298, 7
  %v11300 = vsub.s32 %v11297, %v11299
  %v11301 = vrot.slane %v11285, %v11300
  %v11303 = vunpack.c.l.s4 1966171168
  %v11304 = vunpack.c.0.s8 %v11303
  %v11305 = vlaneseq
  %v11306 = vshrl.u32 %v11305, 7
  %v11307 = vsub.s32 %v11304, %v11306
  %v11308 = vrot.slane %v11292, %v11307
  %v11310 = vunpack.c.l.s4 1966171168
  %v11311 = vunpack.c.0.s8 %v11310
  %v11312 = vlaneseq
  %v11313 = vshrl.u32 %v11312, 7
  %v11314 = vsub.s32 %v11311, %v11313
  %v11315 = vrot.slane %v11293, %v11314
  %v11317 = vunpack.c.l.s4 1966171168
  %v11318 = vunpack.c.0.s8 %v11317
  %v11319 = vlaneseq
  %v11320 = vshrl.u32 %v11319, 7
  %v11321 = vsub.s32 %v11318, %v11320
  %v11322 = vrot.slane %v11294, %v11321
  %v11323 = vcombine.high %v11301, %v11301
  %v11324 = vcombine.high %v11308, %v11308
  %v11325 = vcombine.high %v11315, %v11315
  %v11326 = vcombine.high %v11322, %v11322
  %v11335 = vmul.f32 %v11255, %v11301
  %v11336 = vmul.f32 %v11256, %v11315
  %v11337 = vmul.f32 %v11257, %v11323
  %v11338 = vmul.f32 %v11258, %v11325
  %v11339 = vmul.f32 %v11259, %v11308
  %v11340 = vmul.f32 %v11260, %v11322
  %v11341 = vmul.f32 %v11261, %v11324
  %v11342 = vmul.f32 %v11262, %v11326
  %v11343 = vmul.f32 %v11263, %v11301
  %v11344 = vmul.f32 %v11264, %v11315
  %v11345 = vmul.f32 %v11265, %v11323
  %v11346 = vmul.f32 %v11266, %v11325
  %v11347 = vmul.f32 %v11267, %v11308
  %v11348 = vmul.f32 %v11268, %v11322
  %v11349 = vmul.f32 %v11269, %v11324
  %v11350 = vmul.f32 %v11270, %v11326
  %v11351 = vmul.f32 %v11271, %v11301
  %v11352 = vmul.f32 %v11272, %v11315
  %v11354 = vlaneseq
  %v11355 = vshrl.u32 %v11354, 7
  %v11356 = vsub.s32 0, %v11355
  %v11357 = vrot.slane %v10734, %v11356
  %v11358 = vcombine.high %v11357, %v11357
  %v11360 = vunpack.c.l.s4 1966171168
  %v11361 = vunpack.c.0.s8 %v11360
  %v11362 = vlaneseq
  %v11363 = vshrl.u32 %v11362, 7
  %v11364 = vsub.s32 %v11361, %v11363
  %v11365 = vrot.slane %v11357, %v11364
  %v11367 = vunpack.c.l.s4 1966171168
  %v11368 = vunpack.c.0.s8 %v11367
  %v11369 = vlaneseq
  %v11370 = vshrl.u32 %v11369, 7
  %v11371 = vsub.s32 %v11368, %v11370
  %v11372 = vrot.slane %v11358, %v11371
  %v11373 = vcombine.high %v11365, %v11365
  %v11374 = vcombine.high %v11372, %v11372
  %v11376 = vunpack.c.l.s4 1966171168
  %v11377 = vunpack.c.0.s8 %v11376
  %v11378 = vlaneseq
  %v11379 = vshrl.u32 %v11378, 7
  %v11380 = vsub.s32 %v11377, %v11379
  %v11381 = vrot.slane %v11365, %v11380
  %v11383 = vunpack.c.l.s4 1966171168
  %v11384 = vunpack.c.0.s8 %v11383
  %v11385 = vlaneseq
  %v11386 = vshrl.u32 %v11385, 7
  %v11387 = vsub.s32 %v11384, %v11386
  %v11388 = vrot.slane %v11372, %v11387
  %v11390 = vunpack.c.l.s4 1966171168
  %v11391 = vunpack.c.0.s8 %v11390
  %v11392 = vlaneseq
  %v11393 = vshrl.u32 %v11392, 7
  %v11394 = vsub.s32 %v11391, %v11393
  %v11395 = vrot.slane %v11373, %v11394
  %v11397 = vunpack.c.l.s4 1966171168
  %v11398 = vunpack.c.0.s8 %v11397
  %v11399 = vlaneseq
  %v11400 = vshrl.u32 %v11399, 7
  %v11401 = vsub.s32 %v11398, %v11400
  %v11402 = vrot.slane %v11374, %v11401
  %v11403 = vcombine.high %v11381, %v11381
  %v11404 = vcombine.high %v11388, %v11388
  %v11405 = vcombine.high %v11395, %v11395
  %v11406 = vcombine.high %v11402, %v11402
  %v11415 = vadd.f32 %v11335, %v11381
  %v11416 = vadd.f32 %v11336, %v11395
  %v11417 = vadd.f32 %v11337, %v11403
  %v11418 = vadd.f32 %v11338, %v11405
  %v11419 = vadd.f32 %v11339, %v11388
  %v11420 = vadd.f32 %v11340, %v11402
  %v11421 = vadd.f32 %v11341, %v11404
  %v11422 = vadd.f32 %v11342, %v11406
  %v11423 = vadd.f32 %v11343, %v11381
  %v11424 = vadd.f32 %v11344, %v11395
  %v11425 = vadd.f32 %v11345, %v11403
  %v11426 = vadd.f32 %v11346, %v11405
  %v11427 = vadd.f32 %v11347, %v11388
  %v11428 = vadd.f32 %v11348, %v11402
  %v11429 = vadd.f32 %v11349, %v11404
  %v11430 = vadd.f32 %v11350, %v11406
  %v11431 = vadd.f32 %v11351, %v11381
  %v11432 = vadd.f32 %v11352, %v11395
  %v11433 = vld [vmem:[%s15] sm:$0xff]
  %v11434 = vld [vmem:[%s15 + $0x8] sm:$0xff]
  %v11435 = vld [vmem:[%s15 + $0x10] sm:$0xff]
  %v11436 = vld [vmem:[%s15 + $0x18] sm:$0xff]
  %v11437 = vld [vmem:[%s15 + $0x20] sm:$0xff]
  %v11438 = vld [vmem:[%s15 + $0x28] sm:$0xff]
  %v11439 = vld [vmem:[%s15 + $0x30] sm:$0xff]
  %v11440 = vld [vmem:[%s15 + $0x38] sm:$0xff]
  %v11441 = vld [vmem:[%s15 + $0x40] sm:$0xff]
  %v11442 = vld [vmem:[%s15 + $0x48] sm:$0xff]
  %v11443 = vld [vmem:[%s15 + $0x50] sm:$0xff]
  %v11444 = vld [vmem:[%s15 + $0x58] sm:$0xff]
  %v11445 = vld [vmem:[%s15 + $0x60] sm:$0xff]
  %v11446 = vld [vmem:[%s15 + $0x68] sm:$0xff]
  %v11447 = vld [vmem:[%s15 + $0x70] sm:$0xff]
  %v11448 = vld [vmem:[%s15 + $0x78] sm:$0xff]
  %v11449 = vld [vmem:[%s16] sm:$0x1]
  %v11451 = vlaneseq
  %v11452 = vshrl.u32 %v11451, 7
  %v11453 = vsub.s32 0, %v11452
  %v11454 = vrot.slane %v11449, %v11453
  %v11474 = vcombine.low %v11415, %v11416
  %v11475 = vcombine.low %v11417, %v11418
  %v11476 = vcombine.low %v11419, %v11420
  %v11477 = vcombine.low %v11421, %v11422
  %v11479 = vunpack.c.l.s4 1966171168
  %v11480 = vunpack.c.0.s8 %v11479
  %v11481 = vlaneseq
  %v11482 = vshrl.u32 %v11481, 7
  %v11483 = vsub.s32 %v11480, %v11482
  %v11484 = vrot.slane %v11474, %v11483
  %v11486 = vunpack.c.l.s4 1966171168
  %v11487 = vunpack.c.0.s8 %v11486
  %v11488 = vlaneseq
  %v11489 = vshrl.u32 %v11488, 7
  %v11490 = vsub.s32 %v11487, %v11489
  %v11491 = vrot.slane %v11475, %v11490
  %v11493 = vunpack.c.l.s4 1966171168
  %v11494 = vunpack.c.0.s8 %v11493
  %v11495 = vlaneseq
  %v11496 = vshrl.u32 %v11495, 7
  %v11497 = vsub.s32 %v11494, %v11496
  %v11498 = vrot.slane %v11476, %v11497
  %v11500 = vunpack.c.l.s4 1966171168
  %v11501 = vunpack.c.0.s8 %v11500
  %v11502 = vlaneseq
  %v11503 = vshrl.u32 %v11502, 7
  %v11504 = vsub.s32 %v11501, %v11503
  %v11505 = vrot.slane %v11477, %v11504
  %v11506 = vcombine.low %v11484, %v11491
  %v11507 = vcombine.low %v11498, %v11505
  %v11509 = vunpack.c.l.s4 1966171168
  %v11510 = vunpack.c.0.s8 %v11509
  %v11511 = vlaneseq
  %v11512 = vshrl.u32 %v11511, 7
  %v11513 = vsub.s32 %v11510, %v11512
  %v11514 = vrot.slane %v11506, %v11513
  %v11516 = vunpack.c.l.s4 1966171168
  %v11517 = vunpack.c.0.s8 %v11516
  %v11518 = vlaneseq
  %v11519 = vshrl.u32 %v11518, 7
  %v11520 = vsub.s32 %v11517, %v11519
  %v11521 = vrot.slane %v11507, %v11520
  %v11522 = vcombine.low %v11514, %v11521
  %v11523 = vcombine.low %v11423, %v11424
  %v11524 = vcombine.low %v11425, %v11426
  %v11525 = vcombine.low %v11427, %v11428
  %v11526 = vcombine.low %v11429, %v11430
  %v11528 = vunpack.c.l.s4 1966171168
  %v11529 = vunpack.c.0.s8 %v11528
  %v11530 = vlaneseq
  %v11531 = vshrl.u32 %v11530, 7
  %v11532 = vsub.s32 %v11529, %v11531
  %v11533 = vrot.slane %v11523, %v11532
  %v11535 = vunpack.c.l.s4 1966171168
  %v11536 = vunpack.c.0.s8 %v11535
  %v11537 = vlaneseq
  %v11538 = vshrl.u32 %v11537, 7
  %v11539 = vsub.s32 %v11536, %v11538
  %v11540 = vrot.slane %v11524, %v11539
  %v11542 = vunpack.c.l.s4 1966171168
  %v11543 = vunpack.c.0.s8 %v11542
  %v11544 = vlaneseq
  %v11545 = vshrl.u32 %v11544, 7
  %v11546 = vsub.s32 %v11543, %v11545
  %v11547 = vrot.slane %v11525, %v11546
  %v11549 = vunpack.c.l.s4 1966171168
  %v11550 = vunpack.c.0.s8 %v11549
  %v11551 = vlaneseq
  %v11552 = vshrl.u32 %v11551, 7
  %v11553 = vsub.s32 %v11550, %v11552
  %v11554 = vrot.slane %v11526, %v11553
  %v11555 = vcombine.low %v11533, %v11540
  %v11556 = vcombine.low %v11547, %v11554
  %v11558 = vunpack.c.l.s4 1966171168
  %v11559 = vunpack.c.0.s8 %v11558
  %v11560 = vlaneseq
  %v11561 = vshrl.u32 %v11560, 7
  %v11562 = vsub.s32 %v11559, %v11561
  %v11563 = vrot.slane %v11555, %v11562
  %v11565 = vunpack.c.l.s4 1966171168
  %v11566 = vunpack.c.0.s8 %v11565
  %v11567 = vlaneseq
  %v11568 = vshrl.u32 %v11567, 7
  %v11569 = vsub.s32 %v11566, %v11568
  %v11570 = vrot.slane %v11556, %v11569
  %v11571 = vcombine.low %v11563, %v11570
  %v11572 = vcombine.low %v11431, %v11432
  %v11574 = vunpack.c.l.s4 1966171168
  %v11575 = vunpack.c.0.s8 %v11574
  %v11576 = vlaneseq
  %v11577 = vshrl.u32 %v11576, 7
  %v11578 = vsub.s32 %v11575, %v11577
  %v11579 = vrot.slane %v11572, %v11578
  %v11581 = vunpack.c.l.s4 1966171168
  %v11582 = vunpack.c.0.s8 %v11581
  %v11583 = vlaneseq
  %v11584 = vshrl.u32 %v11583, 7
  %v11585 = vsub.s32 %v11582, %v11584
  %v11586 = vrot.slane %v11579, %v11585
  %v11587 = vsel %vm504, %v11522, 0
  %v11589 = vsel %vm504, %v11571, 0
  %v11591 = vsel %vm504, %v11586, 0
  %v11594 = vsel %vm504, %v11433, 0
  %v11597 = vsel %vm504, %v11434, 0
  %v11600 = vsel %vm504, %v11435, 0
  %v11603 = vsel %vm504, %v11436, 0
  %v11606 = vsel %vm504, %v11437, 0
  %v11609 = vsel %vm504, %v11438, 0
  %v11612 = vsel %vm504, %v11439, 0
  %v11615 = vsel %vm504, %v11440, 0
  %v11618 = vsel %vm504, %v11441, 0
  %v11621 = vsel %vm504, %v11442, 0
  %v11624 = vsel %vm504, %v11443, 0
  %v11627 = vsel %vm504, %v11444, 0
  %v11630 = vsel %vm504, %v11445, 0
  %v11633 = vsel %vm504, %v11446, 0
  %v11636 = vsel %vm504, %v11447, 0
  %v11639 = vsel %vm504, %v11448, 0
  %11641 = vmatprep.subr.mxu0 0.0
  %11642 = vmatpush1.xpose.msra.mxu0 %v11639
  %11643 = vmatprep.subr.mxu0 0.0
  %11644 = vmatpush1.xpose.msra.mxu0 %v11636
  %11645 = vmatprep.subr.mxu0 0.0
  %11646 = vmatpush1.xpose.msra.mxu0 %v11633
  %11647 = vmatprep.subr.mxu0 0.0
  %11648 = vmatpush1.xpose.msra.mxu0 %v11630
  %11649 = vmatprep.subr.mxu0 0.0
  %11650 = vmatpush1.xpose.msra.mxu0 %v11627
  %11651 = vmatprep.subr.mxu0 0.0
  %11652 = vmatpush1.xpose.msra.mxu0 %v11624
  %11653 = vmatprep.subr.mxu0 0.0
  %11654 = vmatpush1.xpose.msra.mxu0 %v11621
  %11655 = vmatprep.subr.mxu0 0.0
  %11656 = vmatpush1.xpose.msra.mxu0 %v11618
  %11657 = vmatprep.subr.mxu0 0.0
  %11658 = vmatpush1.xpose.msra.mxu0 %v11615
  %11659 = vmatprep.subr.mxu0 0.0
  %11660 = vmatpush1.xpose.msra.mxu0 %v11612
  %11661 = vmatprep.subr.mxu0 0.0
  %11662 = vmatpush1.xpose.msra.mxu0 %v11609
  %11663 = vmatprep.subr.mxu0 0.0
  %11664 = vmatpush1.xpose.msra.mxu0 %v11606
  %11665 = vmatprep.subr.mxu0 0.0
  %11666 = vmatpush1.xpose.msra.mxu0 %v11603
  %11667 = vmatprep.subr.mxu0 0.0
  %11668 = vmatpush1.xpose.msra.mxu0 %v11600
  %11669 = vmatprep.subr.mxu0 0.0
  %11670 = vmatpush1.xpose.msra.mxu0 %v11597
  %11671 = vmatprep.subr.mxu0 0.0
  %11672 = vmatpush1.xpose.msra.mxu0 %v11594
  %11673 = vmatprep.subr.mxu0 0.0
  %11674 = vmatpush2.xpose.msra.mxu0 0.0
  %11675 = vmatprep.subr.mxu0 0.0
  %11676 = vmatpush2.xpose.msra.mxu0 0.0
  %11677 = vmatprep.subr.mxu0 0.0
  %11678 = vmatpush2.xpose.msra.mxu0 0.0
  %11679 = vmatprep.subr.mxu0 0.0
  %11680 = vmatpush2.xpose.msra.mxu0 0.0
  %11681 = vmatprep.subr.mxu0 0.0
  %11682 = vmatpush2.xpose.msra.mxu0 0.0
  %11683 = vmatprep.subr.mxu0 0.0
  %11684 = vmatpush2.xpose.msra.mxu0 0.0
  %11685 = vmatprep.subr.mxu0 0.0
  %11686 = vmatpush2.xpose.msra.mxu0 0.0
  %11687 = vmatprep.subr.mxu0 0.0
  %11688 = vmatpush2.xpose.msra.mxu0 0.0
  %11689 = vmatprep.subr.mxu0 0.0
  %11690 = vmatpush2.xpose.msra.mxu0 0.0
  %11691 = vmatprep.subr.mxu0 0.0
  %11692 = vmatpush2.xpose.msra.mxu0 0.0
  %11693 = vmatprep.subr.mxu0 0.0
  %11694 = vmatpush2.xpose.msra.mxu0 0.0
  %11695 = vmatprep.subr.mxu0 0.0
  %11696 = vmatpush2.xpose.msra.mxu0 0.0
  %11697 = vmatprep.subr.mxu0 0.0
  %11698 = vmatpush2.xpose.msra.mxu0 0.0
  %11699 = vmatprep.subr.mxu0 0.0
  %11700 = vmatpush2.xpose.msra.mxu0 0.0
  %11701 = vmatprep.subr.mxu0 0.0
  %11702 = vmatpush2.xpose.msra.mxu0 0.0
  %11703 = vmatprep.subr.mxu0 0.0
  %11704 = vmatpush2.xpose.msra.mxu0 0.0
  %11705 = vmatprep.mubr.f32.mxu0 0.0
  %11706 = vmatmul.mubr.f32.gmra.mxu0 %v11587
  %v11707 = vpop.f32.mrf.mxu0
  %v11708 = vadd.f32 %v11454, %v11707
  %v11709 = vpop.f32.mrf.mxu0
  %11710 = vmatprep.mubr.f32.mxu0 0.0
  %11711 = vmatmul.mubr.f32.gmra.mxu0 %v11589
  %v11712 = vpop.f32.mrf.mxu0
  %v11713 = vadd.f32 %v11454, %v11712
  %v11714 = vpop.f32.mrf.mxu0
  %11715 = vmatprep.mubr.f32.mxu0 0.0
  %11716 = vmatmul.mubr.f32.gmra.mxu0 %v11591
  %v11717 = vpop.f32.mrf.mxu0
  %v11718 = vadd.f32 %v11454, %v11717
  %v11719 = vpop.f32.mrf.mxu0
  %11720 = vdwg.mxu0
  %v11724 = vcombine.high %v11708, %v11708
  %v11726 = vunpack.c.l.s4 1966171168
  %v11727 = vunpack.c.0.s8 %v11726
  %v11728 = vlaneseq
  %v11729 = vshrl.u32 %v11728, 7
  %v11730 = vsub.s32 %v11727, %v11729
  %v11731 = vrot.slane %v11708, %v11730
  %v11733 = vunpack.c.l.s4 1966171168
  %v11734 = vunpack.c.0.s8 %v11733
  %v11735 = vlaneseq
  %v11736 = vshrl.u32 %v11735, 7
  %v11737 = vsub.s32 %v11734, %v11736
  %v11738 = vrot.slane %v11724, %v11737
  %v11739 = vcombine.high %v11731, %v11731
  %v11740 = vcombine.high %v11738, %v11738
  %v11742 = vunpack.c.l.s4 1966171168
  %v11743 = vunpack.c.0.s8 %v11742
  %v11744 = vlaneseq
  %v11745 = vshrl.u32 %v11744, 7
  %v11746 = vsub.s32 %v11743, %v11745
  %v11747 = vrot.slane %v11731, %v11746
  %v11749 = vunpack.c.l.s4 1966171168
  %v11750 = vunpack.c.0.s8 %v11749
  %v11751 = vlaneseq
  %v11752 = vshrl.u32 %v11751, 7
  %v11753 = vsub.s32 %v11750, %v11752
  %v11754 = vrot.slane %v11738, %v11753
  %v11756 = vunpack.c.l.s4 1966171168
  %v11757 = vunpack.c.0.s8 %v11756
  %v11758 = vlaneseq
  %v11759 = vshrl.u32 %v11758, 7
  %v11760 = vsub.s32 %v11757, %v11759
  %v11761 = vrot.slane %v11739, %v11760
  %v11763 = vunpack.c.l.s4 1966171168
  %v11764 = vunpack.c.0.s8 %v11763
  %v11765 = vlaneseq
  %v11766 = vshrl.u32 %v11765, 7
  %v11767 = vsub.s32 %v11764, %v11766
  %v11768 = vrot.slane %v11740, %v11767
  %v11769 = vcombine.high %v11747, %v11747
  %v11770 = vcombine.high %v11754, %v11754
  %v11771 = vcombine.high %v11761, %v11761
  %v11772 = vcombine.high %v11768, %v11768
  %v11773 = vcombine.high %v11713, %v11713
  %v11775 = vunpack.c.l.s4 1966171168
  %v11776 = vunpack.c.0.s8 %v11775
  %v11777 = vlaneseq
  %v11778 = vshrl.u32 %v11777, 7
  %v11779 = vsub.s32 %v11776, %v11778
  %v11780 = vrot.slane %v11713, %v11779
  %v11782 = vunpack.c.l.s4 1966171168
  %v11783 = vunpack.c.0.s8 %v11782
  %v11784 = vlaneseq
  %v11785 = vshrl.u32 %v11784, 7
  %v11786 = vsub.s32 %v11783, %v11785
  %v11787 = vrot.slane %v11773, %v11786
  %v11788 = vcombine.high %v11780, %v11780
  %v11789 = vcombine.high %v11787, %v11787
  %v11791 = vunpack.c.l.s4 1966171168
  %v11792 = vunpack.c.0.s8 %v11791
  %v11793 = vlaneseq
  %v11794 = vshrl.u32 %v11793, 7
  %v11795 = vsub.s32 %v11792, %v11794
  %v11796 = vrot.slane %v11780, %v11795
  %v11798 = vunpack.c.l.s4 1966171168
  %v11799 = vunpack.c.0.s8 %v11798
  %v11800 = vlaneseq
  %v11801 = vshrl.u32 %v11800, 7
  %v11802 = vsub.s32 %v11799, %v11801
  %v11803 = vrot.slane %v11787, %v11802
  %v11805 = vunpack.c.l.s4 1966171168
  %v11806 = vunpack.c.0.s8 %v11805
  %v11807 = vlaneseq
  %v11808 = vshrl.u32 %v11807, 7
  %v11809 = vsub.s32 %v11806, %v11808
  %v11810 = vrot.slane %v11788, %v11809
  %v11812 = vunpack.c.l.s4 1966171168
  %v11813 = vunpack.c.0.s8 %v11812
  %v11814 = vlaneseq
  %v11815 = vshrl.u32 %v11814, 7
  %v11816 = vsub.s32 %v11813, %v11815
  %v11817 = vrot.slane %v11789, %v11816
  %v11818 = vcombine.high %v11796, %v11796
  %v11819 = vcombine.high %v11803, %v11803
  %v11820 = vcombine.high %v11810, %v11810
  %v11821 = vcombine.high %v11817, %v11817
  %v11823 = vunpack.c.l.s4 1966171168
  %v11824 = vunpack.c.0.s8 %v11823
  %v11825 = vlaneseq
  %v11826 = vshrl.u32 %v11825, 7
  %v11827 = vsub.s32 %v11824, %v11826
  %v11828 = vrot.slane %v11718, %v11827
  %v11829 = vcombine.high %v11828, %v11828
  %v11831 = vunpack.c.l.s4 1966171168
  %v11832 = vunpack.c.0.s8 %v11831
  %v11833 = vlaneseq
  %v11834 = vshrl.u32 %v11833, 7
  %v11835 = vsub.s32 %v11832, %v11834
  %v11836 = vrot.slane %v11828, %v11835
  %v11838 = vunpack.c.l.s4 1966171168
  %v11839 = vunpack.c.0.s8 %v11838
  %v11840 = vlaneseq
  %v11841 = vshrl.u32 %v11840, 7
  %v11842 = vsub.s32 %v11839, %v11841
  %v11843 = vrot.slane %v11829, %v11842
  %v11844 = vcombine.low %v11747, %v11761
  %v11845 = vcombine.low %v11769, %v11771
  %v11846 = vcombine.low %v11754, %v11768
  %v11847 = vcombine.low %v11770, %v11772
  %v11849 = vunpack.c.l.s4 1966171168
  %v11850 = vunpack.c.0.s8 %v11849
  %v11851 = vlaneseq
  %v11852 = vshrl.u32 %v11851, 7
  %v11853 = vsub.s32 %v11850, %v11852
  %v11854 = vrot.slane %v11844, %v11853
  %v11856 = vunpack.c.l.s4 1966171168
  %v11857 = vunpack.c.0.s8 %v11856
  %v11858 = vlaneseq
  %v11859 = vshrl.u32 %v11858, 7
  %v11860 = vsub.s32 %v11857, %v11859
  %v11861 = vrot.slane %v11845, %v11860
  %v11863 = vunpack.c.l.s4 1966171168
  %v11864 = vunpack.c.0.s8 %v11863
  %v11865 = vlaneseq
  %v11866 = vshrl.u32 %v11865, 7
  %v11867 = vsub.s32 %v11864, %v11866
  %v11868 = vrot.slane %v11846, %v11867
  %v11870 = vunpack.c.l.s4 1966171168
  %v11871 = vunpack.c.0.s8 %v11870
  %v11872 = vlaneseq
  %v11873 = vshrl.u32 %v11872, 7
  %v11874 = vsub.s32 %v11871, %v11873
  %v11875 = vrot.slane %v11847, %v11874
  %v11876 = vcombine.low %v11854, %v11861
  %v11877 = vcombine.low %v11868, %v11875
  %v11879 = vunpack.c.l.s4 1966171168
  %v11880 = vunpack.c.0.s8 %v11879
  %v11881 = vlaneseq
  %v11882 = vshrl.u32 %v11881, 7
  %v11883 = vsub.s32 %v11880, %v11882
  %v11884 = vrot.slane %v11876, %v11883
  %v11886 = vunpack.c.l.s4 1966171168
  %v11887 = vunpack.c.0.s8 %v11886
  %v11888 = vlaneseq
  %v11889 = vshrl.u32 %v11888, 7
  %v11890 = vsub.s32 %v11887, %v11889
  %v11891 = vrot.slane %v11877, %v11890
  %v11892 = vcombine.low %v11884, %v11891
  %v11894 = vunpack.c.l.s4 1966171168
  %v11895 = vunpack.c.0.s8 %v11894
  %v11896 = vlaneseq
  %v11897 = vshrl.u32 %v11896, 7
  %v11898 = vsub.s32 %v11895, %v11897
  %v11899 = vrot.slane %v11796, %v11898
  %v11901 = vunpack.c.l.s4 1966171168
  %v11902 = vunpack.c.0.s8 %v11901
  %v11903 = vlaneseq
  %v11904 = vshrl.u32 %v11903, 7
  %v11905 = vsub.s32 %v11902, %v11904
  %v11906 = vrot.slane %v11899, %v11905
  %v11907 = vcombine.low %v11810, %v11818
  %v11908 = vcombine.low %v11820, %v11803
  %v11909 = vcombine.low %v11817, %v11819
  %v11910 = vcombine.low %v11821, %v11836
  %v11912 = vunpack.c.l.s4 1966171168
  %v11913 = vunpack.c.0.s8 %v11912
  %v11914 = vlaneseq
  %v11915 = vshrl.u32 %v11914, 7
  %v11916 = vsub.s32 %v11913, %v11915
  %v11917 = vrot.slane %v11907, %v11916
  %v11919 = vunpack.c.l.s4 1966171168
  %v11920 = vunpack.c.0.s8 %v11919
  %v11921 = vlaneseq
  %v11922 = vshrl.u32 %v11921, 7
  %v11923 = vsub.s32 %v11920, %v11922
  %v11924 = vrot.slane %v11908, %v11923
  %v11926 = vunpack.c.l.s4 1966171168
  %v11927 = vunpack.c.0.s8 %v11926
  %v11928 = vlaneseq
  %v11929 = vshrl.u32 %v11928, 7
  %v11930 = vsub.s32 %v11927, %v11929
  %v11931 = vrot.slane %v11909, %v11930
  %v11933 = vunpack.c.l.s4 1966171168
  %v11934 = vunpack.c.0.s8 %v11933
  %v11935 = vlaneseq
  %v11936 = vshrl.u32 %v11935, 7
  %v11937 = vsub.s32 %v11934, %v11936
  %v11938 = vrot.slane %v11910, %v11937
  %v11939 = vcombine.low %v11917, %v11924
  %v11940 = vcombine.low %v11931, %v11938
  %v11942 = vunpack.c.l.s4 1966171168
  %v11943 = vunpack.c.0.s8 %v11942
  %v11944 = vlaneseq
  %v11945 = vshrl.u32 %v11944, 7
  %v11946 = vsub.s32 %v11943, %v11945
  %v11947 = vrot.slane %v11939, %v11946
  %v11949 = vunpack.c.l.s4 1966171168
  %v11950 = vunpack.c.0.s8 %v11949
  %v11951 = vlaneseq
  %v11952 = vshrl.u32 %v11951, 7
  %v11953 = vsub.s32 %v11950, %v11952
  %v11954 = vrot.slane %v11940, %v11953
  %v11955 = vcombine.low %v11947, %v11954
  %v11957 = vunpack.c.l.s4 1966171168
  %v11958 = vunpack.c.0.s8 %v11957
  %v11959 = vlaneseq
  %v11960 = vshrl.u32 %v11959, 7
  %v11961 = vsub.s32 %v11958, %v11960
  %v11962 = vrot.slane %v11843, %v11961
  %v11964 = vunpack.c.l.s4 1966171168
  %v11965 = vunpack.c.0.s8 %v11964
  %v11966 = vlaneseq
  %v11967 = vshrl.u32 %v11966, 7
  %v11968 = vsub.s32 %v11965, %v11967
  %v11969 = vrot.slane %v11962, %v11968
  %11974 = vst [vmem:[%s17] sm:$0xff] %v11892
  %11975 = vst [vmem:[%s17 + $0x8] sm:$0x1] %v11906
  %11976 = vst [vmem:[%s17 + $0x10] sm:$0xff] %v11955
  %11977 = vst [vmem:[%s17 + $0x18] sm:$0x1] %v11969
  // Predicated region
  $region70: #{_lambda_.1} parent=0 // pred_check
    _
  $region71: #{_lambda_.1} parent=0 // pred_check_branch
    %11979 = sbr.rel (0) target = $region73
  $region72: #{_lambda_.1} parent=0 // pred_region
    _
  $region73: #{_lambda_.1} parent=0 // pred_fallthru
    _
  // Predicated region
  $region74: #{_lambda_.1} parent=0 // pred_check
    _
  $region75: #{_lambda_.1} parent=0 // pred_check_branch
    %11981 = sbr.rel (0) target = $region77
  $region76: #{_lambda_.1} parent=0 // pred_region
    _
  $region77: #{_lambda_.1} parent=0 // pred_fallthru
    _

</llo_original>
